<compile_context>
chip_gen: v5e
topology: v5e:2x2
jax: 0.10.0
libtpu: 0.0.40
codegen_flags: <defaults>
</compile_context>

<pallas_src>
import functools
import math

import jax
import jax.numpy as jnp
from jax import lax
from jax.experimental import pallas as pl
from jax.experimental.pallas import tpu as pltpu

HIDDEN = 256  # fc0 = nn.Linear(256, 128) hard-codes hidden_size == 256


def _round_up(n, m):
    return ((n + m - 1) // m) * m


def _sigmoid(x):
    # logistic via a single EUP tanh (no divide / exp on the serial recurrence chain)
    return 0.5 * jnp.tanh(0.5 * x) + 0.5


def nnpred_kernel(x_aug_ref,          # (S*G, P)  f32  rows t*G+[0:B]=path a, [B:2B]=path b
                  w_comb_ref,         # (P, 4H)   bf16 folded (in-proj + bias) @ W_ih_l0
                  b_l0_ref,           # (1, 4H)   f32  b_ih_l0 + b_hh_l0
                  w_hh0_ref,          # (H, 4H)   bf16 gate cols (i,f,o,g)
                  w_ih1_ref,          # (H, 4H)   bf16
                  w_hh1_ref,          # (H, 4H)   bf16
                  b_l1_ref,           # (1, 4H)   f32  b_ih_l1 + b_hh_l1
                  w_fc0_ref, b_fc0_ref,      # (H,128) bf16, (1,128) f32
                  w_fc1_ref, b_fc1_ref,      # (128,128) bf16 (cols [64:] zero), (1,128) f32
                  w_in2out_ref, b_in2out_ref,  # (P,128) f32 (rows [I:], cols [64:] zero)
                  w_fc2_ref, b_fc2_ref,      # (128,128) f32 (rows [64:], cols [O:] zero)
                  out_ref,            # (S*G, 128) f32  lane-dense padded output
                  g0_ref,             # scratch (S*G, 4H) f32: precomputed layer-0 ih gates
                  h1_ref,             # scratch (S*G, H)  f32: stashed layer-1 hidden state
                  *, batch, group):
    B, G = batch, group
    SG = x_aug_ref.shape[0]
    S = SG // G
    H = w_hh0_ref.shape[0]
    f32 = jnp.float32
    bf16 = jnp.bfloat16

    # ---- phase 1: batched non-recurrent precompute (off the serial chain) -----------
    # single fused matmul: (in-projection + bias) @ W_ih_l0 was folded into w_comb.
    g0_ref[...] = (jnp.dot(x_aug_ref[...].astype(bf16), w_comb_ref[...],
                           preferred_element_type=f32)
                   + b_l0_ref[...])                                     # (S*G, 4H)

    # ---- phase 2: fused 2-layer LSTM recurrence (split layer-1 dot) ------------------
    w_hh0 = w_hh0_ref[...]
    w_ih1 = w_ih1_ref[...]
    w_hh1 = w_hh1_ref[...]
    # hoist bias broadcast out of the loop (JAX does not CSE broadcast_in_dim)
    b_l1 = jnp.broadcast_to(b_l1_ref[...], (G, 4 * H))

    def gate_update(g, c):
        # g: (G, 4H) pre-activations, gate order (i, f, o, g)
        sio = _sigmoid(g[:, 0:3 * H])
        i = sio[:, 0:H]
        f = sio[:, H:2 * H]
        o = sio[:, 2 * H:3 * H]
        gg = jnp.tanh(g[:, 3 * H:4 * H])
        c_new = f * c + i * gg
        h_new = o * jnp.tanh(c_new)
        return h_new, c_new

    def step(row, carry):
        h0, c0, h1, c1 = carry
        # layer-1 hh partial depends only on LAST step's h1 -> overlaps with all layer-0 work
        g1_hh = jnp.dot(h1.astype(bf16), w_hh1, preferred_element_type=f32)
        # layer 0: precomputed ih gates + recurrent hh contribution
        g0 = g0_ref[pl.ds(row, G), :] + jnp.dot(
            h0.astype(bf16), w_hh0, preferred_element_type=f32)
        h0, c0 = gate_update(g0, c0)
        # layer 1: ih contribution from this step's h0
        g1 = g1_hh + jnp.dot(h0.astype(bf16), w_ih1,
                             preferred_element_type=f32) + b_l1
        h1, c1 = gate_update(g1, c1)
        h1_ref[pl.ds(row, G), :] = h1
        return h0, c0, h1, c1

    zeros = jnp.zeros((G, H), f32)
    carry = (zeros, zeros, zeros, zeros)
    if S <= 16:
        # short sequences: full unroll (static, tile-aligned row offsets)
        for t in range(S):
            carry = step(t * G, carry)
    else:
        # longer sequences: modest unroll keeps LLO visibility while capping vreg pressure
        def body(t, c):
            return step(pl.multiple_of(t * G, G), c)
        carry = lax.fori_loop(0, S, body, carry, unroll=4)

    # ---- phase 3: feed-forward head, batched over all timesteps, one bulk store -----
    h_all = h1_ref[...]                                                 # (S*G, H)
    # rows t*G+[0:B] hold path a, rows t*G+[B:2B] hold path b: shift up by B and add.
    # (rows [G-B:G] of each group read into the next group / zero pad; those output rows
    #  are padding and are discarded by the wrapper — keep that invariant.)
    h_shift = jnp.concatenate([h_all[B:, :], jnp.zeros((B, H), f32)], axis=0)
    s_all = h_all + h_shift                                             # lstm_out + bilstm_out

    o0 = jnp.tanh(jnp.dot(s_all.astype(bf16), w_fc0_ref[...],
                          preferred_element_type=f32) + b_fc0_ref[...])
    o1 = jnp.tanh(jnp.dot(o0.astype(bf16), w_fc1_ref[...],
                          preferred_element_type=f32) + b_fc1_ref[...])
    # in2out residual stays f32 (off the serial chain; improves final accuracy).
    # w_in2out rows beyond [0:I] are zero, so dotting the full padded x_aug is exact.
    resid = jnp.dot(x_aug_ref[...], w_in2out_ref[...],
                    preferred_element_type=f32) + b_in2out_ref[...]
    o1 = o1 + resid
    out_ref[...] = (jnp.dot(o1, w_fc2_ref[...],
                            preferred_element_type=f32) + b_fc2_ref[...])


def make_params(key, input_size, output_size, hidden_size):
    """Deterministic synthetic parameters; weights stored (in_features, out_features)."""
    def uni(k, shape, fan_in):
        bound = 1.0 / math.sqrt(fan_in)
        return jax.random.uniform(k, shape, jnp.float32, -bound, bound)

    ks = jax.random.split(key, 18)
    H = hidden_size
    p = {}
    p["w_in2lstm"]   = uni(ks[0],  (input_size, H), input_size)
    p["b_in2lstm"]   = uni(ks[1],  (1, H), input_size)
    p["w_in2bilstm"] = uni(ks[2],  (input_size, H), input_size)
    p["b_in2bilstm"] = uni(ks[3],  (1, H), input_size)
    p["w_ih0"]       = uni(ks[4],  (H, 4 * H), H)
    p["w_hh0"]       = uni(ks[5],  (H, 4 * H), H)
    p["b_l0"]        = uni(ks[6],  (1, 4 * H), H)        # b_ih_l0 + b_hh_l0 combined
    p["w_ih1"]       = uni(ks[7],  (H, 4 * H), H)
    p["w_hh1"]       = uni(ks[8],  (H, 4 * H), H)
    p["b_l1"]        = uni(ks[9],  (1, 4 * H), H)        # b_ih_l1 + b_hh_l1 combined
    p["w_fc0"]       = uni(ks[10], (H, 128), H)
    p["b_fc0"]       = uni(ks[11], (1, 128), H)
    p["w_fc1"]       = uni(ks[12], (128, 64), 128)
    p["b_fc1"]       = uni(ks[13], (1, 64), 128)
    p["w_fc2"]       = uni(ks[14], (64, output_size), 64)
    p["b_fc2"]       = uni(ks[15], (1, output_size), 64)
    p["w_in2out"]    = uni(ks[16], (input_size, 64), input_size)
    p["b_in2out"]    = uni(ks[17], (1, 64), input_size)
    return p


def _reorder_gates(w, hidden):
    """Permute the 4H gate columns from PyTorch order (i,f,g,o) to (i,f,o,g)."""
    H = hidden
    return jnp.concatenate([w[..., :2 * H], w[..., 3 * H:], w[..., 2 * H:3 * H]], axis=-1)


def _pad2d(a, rows, cols):
    """Zero-pad a 2-D array up to (rows, cols)."""
    r, c = a.shape
    return jnp.pad(a, ((0, rows - r), (0, cols - c)))


def _prep_inputs(x_bsi, params):
    """Wrapper-side layout prep (stacking / gate reorder / weight folding / padding)."""
    B, S, I = x_bsi.shape
    H = params["w_ih0"].shape[0]
    O = params["w_fc2"].shape[1]
    G = 8 * ((2 * B + 7) // 8)            # rows per timestep group, padded to a sublane tile
    P = _round_up(max(2 * I + 2, 128), 128)   # lane-dense augmented input width
    OP = _round_up(max(O, 128), 128)          # lane-dense head / output width

    bf16 = jnp.bfloat16
    hi = lax.Precision.HIGHEST

    # augmented, path-stacked, time-major input (f32):
    #   row t*G + b      -> [x[t,b], 0_I, 1, 0, 0...]   (path a: in2bilstm)
    #   row t*G + B + b  -> [0_I, x[t,b], 0, 1, 0...]   (path b: in2lstm)
    #   remaining rows of each group: zeros (harmless padding lanes for the MXU; their
    #   LSTM state evolves from bias-only gates and is discarded by the wrapper)
    x_sbi = jnp.transpose(x_bsi, (1, 0, 2))                       # (S, B, I)
    zI = jnp.zeros((S, B, I), jnp.float32)
    one = jnp.ones((S, B, 1), jnp.float32)
    z1 = jnp.zeros((S, B, 1), jnp.float32)
    zpadc = jnp.zeros((S, B, P - (2 * I + 2)), jnp.float32)
    xa = jnp.concatenate([x_sbi, zI, one, z1, zpadc], axis=-1)    # (S, B, P)
    xb = jnp.concatenate([zI, x_sbi, z1, one, zpadc], axis=-1)
    pad = jnp.zeros((S, G - 2 * B, P), jnp.float32)
    x_aug = jnp.concatenate([xa, xb, pad], axis=1).reshape(S * G, P)

    ro = functools.partial(_reorder_gates, hidden=H)

    # fold (in-projection + bias) @ W_ih_l0 into one (P, 4H) matrix (runs once, in XLA)
    w_aug = jnp.concatenate([params["w_in2bilstm"], params["w_in2lstm"],
                             params["b_in2bilstm"], params["b_in2lstm"]], axis=0)  # (2I+2, H)
    w_aug = jnp.pad(w_aug, ((0, P - (2 * I + 2)), (0, 0)))
    w_comb = jnp.dot(w_aug, ro(params["w_ih0"]), precision=hi)     # (P, 4H)

    kp = dict(
        x_aug=x_aug,                                               # f32 (residual accuracy)
        w_comb=w_comb.astype(bf16),
        b_l0=ro(params["b_l0"]),
        w_hh0=ro(params["w_hh0"]).astype(bf16),
        w_ih1=ro(params["w_ih1"]).astype(bf16),
        w_hh1=ro(params["w_hh1"]).astype(bf16),
        b_l1=ro(params["b_l1"]),
        w_fc0=params["w_fc0"].astype(bf16),
        b_fc0=params["b_fc0"],
        # lane-dense (128-wide) head: zero-padded columns make every store unmasked
        w_fc1=_pad2d(params["w_fc1"], 128, OP).astype(bf16),
        b_fc1=_pad2d(params["b_fc1"], 1, OP),
        w_in2out=_pad2d(params["w_in2out"], P, OP),                # f32
        b_in2out=_pad2d(params["b_in2out"], 1, OP),
        w_fc2=_pad2d(params["w_fc2"], OP, OP),                     # f32
        b_fc2=_pad2d(params["b_fc2"], 1, OP),
    )
    return kp, G, OP


def nnpred_forward(x_bsi, params):
    """x_bsi: (B, S, input_size) float32 (PyTorch batch_first layout) -> (B, S, output_size)."""
    B, S, _ = x_bsi.shape
    H = params["w_ih0"].shape[0]
    O = params["w_fc2"].shape[1]
    kp, G, OP = _prep_inputs(x_bsi, params)

    order = ("x_aug", "w_comb", "b_l0", "w_hh0", "w_ih1", "w_hh1", "b_l1",
             "w_fc0", "b_fc0", "w_fc1", "b_fc1", "w_in2out", "b_in2out",
             "w_fc2", "b_fc2")
    args = [kp[k] for k in order]
    vmem = pl.BlockSpec(memory_space=pltpu.MemorySpace.VMEM)
    y_all = pl.pallas_call(
        functools.partial(nnpred_kernel, batch=B, group=G),
        out_shape=jax.ShapeDtypeStruct((S * G, OP), jnp.float32),
        in_specs=[vmem] * len(args),
        out_specs=vmem,
        scratch_shapes=[pltpu.VMEM((S * G, 4 * H), jnp.float32),
                        pltpu.VMEM((S * G, H), jnp.float32)],
    )(*args)
    # rows t*G+[0:B] / cols [0:O] hold the real outputs; drop padding, return (B, S, O).
    y = y_all.reshape(S, G, OP)[:, :B, :O]
    return jnp.transpose(y, (1, 0, 2))


def nnpred_reference(x_bsi, params):
    """Pure-JAX reference (same math, f32, HIGHEST matmul precision)."""
    H = HIDDEN
    dot = functools.partial(jnp.dot, precision=lax.Precision.HIGHEST)

    def lstm2(proj):                                     # proj: (B, S, H)
        def run_layer(seq, w_ih, w_hh, b):
            B = seq.shape[0]

            def step(carry, x_t):
                h, c = carry
                g = dot(x_t, w_ih) + dot(h, w_hh) + b
                i, f, gg, o = jnp.split(g, 4, axis=-1)
                i, f, o = jax.nn.sigmoid(i), jax.nn.sigmoid(f), jax.nn.sigmoid(o)
                gg = jnp.tanh(gg)
                c = f * c + i * gg
                h = o * jnp.tanh(c)
                return (h, c), h

            init = (jnp.zeros((B, H)), jnp.zeros((B, H)))
            _, hs = lax.scan(step, init, jnp.transpose(seq, (1, 0, 2)))
            return jnp.transpose(hs, (1, 0, 2))

        o0 = run_layer(proj, params["w_ih0"], params["w_hh0"], params["b_l0"])
        o1 = run_layer(o0, params["w_ih1"], params["w_hh1"], params["b_l1"])
        return o1

    bilstm_out = lstm2(dot(x_bsi, params["w_in2bilstm"]) + params["b_in2bilstm"])
    lstm_out = lstm2(dot(x_bsi, params["w_in2lstm"]) + params["b_in2lstm"])
    out = jnp.tanh(dot(lstm_out + bilstm_out, params["w_fc0"]) + params["b_fc0"])
    out = jnp.tanh(dot(out, params["w_fc1"]) + params["b_fc1"])
    out = out + dot(x_bsi, params["w_in2out"]) + params["b_in2out"]
    return dot(out, params["w_fc2"]) + params["b_fc2"]


if __name__ == "__main__":
    key = jax.random.PRNGKey(0)
    B, S, I, O = 2, 8, 16, 8                              # batch, seq, input_size, output_size
    k_x, k_p = jax.random.split(key)
    x = jax.random.normal(k_x, (B, S, I), jnp.float32)
    params = make_params(k_p, I, O, HIDDEN)

    y = jax.jit(nnpred_forward)(x, params)
    y = jax.block_until_ready(y)
    assert y.shape == (B, S, O), y.shape

    y_ref = nnpred_reference(x, params)
    max_err = float(jnp.max(jnp.abs(y - y_ref)))
    # bf16 MXU operands on the recurrent path (f32 accumulation/state, f32 residual+fc2):
    # tolerance loosened vs. a pure-f32 kernel.
    assert max_err < 1e-1, f"kernel/reference mismatch: max abs err = {max_err}"
    print("KERNEL_OK")
</pallas_src>

<mosaic_0001>
module attributes {stable_mosaic.version = 11 : i64} {
  func.func @nnpred_kernel(%arg0: memref<64x128xf32, #tpu.memory_space<vmem>>, %arg1: memref<128x1024xbf16, #tpu.memory_space<vmem>>, %arg2: memref<1x1024xf32, #tpu.memory_space<vmem>>, %arg3: memref<256x1024xbf16, #tpu.memory_space<vmem>>, %arg4: memref<256x1024xbf16, #tpu.memory_space<vmem>>, %arg5: memref<256x1024xbf16, #tpu.memory_space<vmem>>, %arg6: memref<1x1024xf32, #tpu.memory_space<vmem>>, %arg7: memref<256x128xbf16, #tpu.memory_space<vmem>>, %arg8: memref<1x128xf32, #tpu.memory_space<vmem>>, %arg9: memref<128x128xbf16, #tpu.memory_space<vmem>>, %arg10: memref<1x128xf32, #tpu.memory_space<vmem>>, %arg11: memref<128x128xf32, #tpu.memory_space<vmem>>, %arg12: memref<1x128xf32, #tpu.memory_space<vmem>>, %arg13: memref<128x128xf32, #tpu.memory_space<vmem>>, %arg14: memref<1x128xf32, #tpu.memory_space<vmem>>, %arg15: memref<64x128xf32, #tpu.memory_space<vmem>>, %arg16: memref<64x1024xf32, #tpu.memory_space<vmem>>, %arg17: memref<64x256xf32, #tpu.memory_space<vmem>>) attributes {dimension_semantics = [], scalar_prefetch = 0 : i64, scratch_operands = 2 : i64, tpu.core_type = #tpu.core_type<tc>} {
    %c0 = arith.constant 0 : index
    %c0_0 = arith.constant 0 : index
    %0 = vector.load %arg0[%c0, %c0_0] : memref<64x128xf32, #tpu.memory_space<vmem>>, vector<64x128xf32>
    %1 = arith.truncf %0 : vector<64x128xf32> to vector<64x128xbf16>
    %c0_1 = arith.constant 0 : index
    %c0_2 = arith.constant 0 : index
    %2 = vector.load %arg1[%c0_1, %c0_2] : memref<128x1024xbf16, #tpu.memory_space<vmem>>, vector<128x1024xbf16>
    %cst = arith.constant dense<0.000000e+00> : vector<64x1024xf32>
    %3 = tpu.matmul %1, %2, %cst {dimension_numbers = #tpu.dot_dimension_numbers<[1], [0], [0], [1], [0, 0, 1, 1], [], []>} : vector<64x128xbf16>, vector<128x1024xbf16>, vector<64x1024xf32> -> vector<64x1024xf32>
    %c0_3 = arith.constant 0 : index
    %c0_4 = arith.constant 0 : index
    %4 = vector.load %arg2[%c0_3, %c0_4] : memref<1x1024xf32, #tpu.memory_space<vmem>>, vector<1x1024xf32>
    %5 = vector.broadcast %4 : vector<1x1024xf32> to vector<64x1024xf32>
    %6 = arith.addf %3, %5 : vector<64x1024xf32>
    %c0_5 = arith.constant 0 : index
    %c0_6 = arith.constant 0 : index
    %7 = vector.load %arg16[%c0_5, %c0_6] : memref<64x1024xf32, #tpu.memory_space<vmem>>, vector<64x1024xf32>
    tpu.vector_store %arg16[%c0_5, %c0_6], %6 {strides = array<i32>} : memref<64x1024xf32, #tpu.memory_space<vmem>>, vector<64x1024xf32>,
    %c0_7 = arith.constant 0 : index
    %c0_8 = arith.constant 0 : index
    %8 = vector.load %arg3[%c0_7, %c0_8] : memref<256x1024xbf16, #tpu.memory_space<vmem>>, vector<256x1024xbf16>
    %c0_9 = arith.constant 0 : index
    %c0_10 = arith.constant 0 : index
    %9 = vector.load %arg4[%c0_9, %c0_10] : memref<256x1024xbf16, #tpu.memory_space<vmem>>, vector<256x1024xbf16>
    %c0_11 = arith.constant 0 : index
    %c0_12 = arith.constant 0 : index
    %10 = vector.load %arg5[%c0_11, %c0_12] : memref<256x1024xbf16, #tpu.memory_space<vmem>>, vector<256x1024xbf16>
    %c0_13 = arith.constant 0 : index
    %c0_14 = arith.constant 0 : index
    %11 = vector.load %arg6[%c0_13, %c0_14] : memref<1x1024xf32, #tpu.memory_space<vmem>>, vector<1x1024xf32>
    %12 = vector.shape_cast %11 : vector<1x1024xf32> to vector<1x1024xf32>
    %13 = vector.broadcast %12 : vector<1x1024xf32> to vector<8x1024xf32>
    %cst_15 = arith.constant 0.000000e+00 : f32
    %14 = vector.broadcast %cst_15 : f32 to vector<8x256xf32>
    %15 = arith.truncf %14 : vector<8x256xf32> to vector<8x256xbf16>
    %cst_16 = arith.constant dense<0.000000e+00> : vector<8x1024xf32>
    %16 = tpu.matmul %15, %10, %cst_16 {dimension_numbers = #tpu.dot_dimension_numbers<[1], [0], [0], [1], [0, 0, 1, 1], [], []>} : vector<8x256xbf16>, vector<256x1024xbf16>, vector<8x1024xf32> -> vector<8x1024xf32>
    %c0_17 = arith.constant 0 : index
    %c0_18 = arith.constant 0 : index
    %17 = vector.load %arg16[%c0_17, %c0_18] : memref<64x1024xf32, #tpu.memory_space<vmem>>, vector<8x1024xf32>
    %18 = arith.truncf %14 : vector<8x256xf32> to vector<8x256xbf16>
    %cst_19 = arith.constant dense<0.000000e+00> : vector<8x1024xf32>
    %19 = tpu.matmul %18, %8, %cst_19 {dimension_numbers = #tpu.dot_dimension_numbers<[1], [0], [0], [1], [0, 0, 1, 1], [], []>} : vector<8x256xbf16>, vector<256x1024xbf16>, vector<8x1024xf32> -> vector<8x1024xf32>
    %20 = arith.addf %17, %19 : vector<8x1024xf32>
    %21 = vector.extract_strided_slice %20 {offsets = [0, 0], sizes = [8, 768], strides = [1, 1]} : vector<8x1024xf32> to vector<8x768xf32>
    %cst_20 = arith.constant 5.000000e-01 : f32
    %22 = vector.broadcast %cst_20 : f32 to vector<8x768xf32>
    %23 = arith.mulf %22, %21 : vector<8x768xf32>
    %24 = math.tanh %23 : vector<8x768xf32>
    %cst_21 = arith.constant 5.000000e-01 : f32
    %25 = vector.broadcast %cst_21 : f32 to vector<8x768xf32>
    %26 = arith.mulf %25, %24 : vector<8x768xf32>
    %cst_22 = arith.constant 5.000000e-01 : f32
    %27 = vector.broadcast %cst_22 : f32 to vector<8x768xf32>
    %28 = arith.addf %26, %27 : vector<8x768xf32>
    %29 = vector.extract_strided_slice %28 {offsets = [0, 0], sizes = [8, 256], strides = [1, 1]} : vector<8x768xf32> to vector<8x256xf32>
    %30 = vector.extract_strided_slice %28 {offsets = [0, 256], sizes = [8, 256], strides = [1, 1]} : vector<8x768xf32> to vector<8x256xf32>
    %31 = vector.extract_strided_slice %28 {offsets = [0, 512], sizes = [8, 256], strides = [1, 1]} : vector<8x768xf32> to vector<8x256xf32>
    %32 = vector.extract_strided_slice %20 {offsets = [0, 768], sizes = [8, 256], strides = [1, 1]} : vector<8x1024xf32> to vector<8x256xf32>
    %33 = math.tanh %32 : vector<8x256xf32>
    %34 = arith.mulf %30, %14 : vector<8x256xf32>
    %35 = arith.mulf %29, %33 : vector<8x256xf32>
    %36 = arith.addf %34, %35 : vector<8x256xf32>
    %37 = math.tanh %36 : vector<8x256xf32>
    %38 = arith.mulf %31, %37 : vector<8x256xf32>
    %39 = arith.truncf %38 : vector<8x256xf32> to vector<8x256xbf16>
    %cst_23 = arith.constant dense<0.000000e+00> : vector<8x1024xf32>
    %40 = tpu.matmul %39, %9, %cst_23 {dimension_numbers = #tpu.dot_dimension_numbers<[1], [0], [0], [1], [0, 0, 1, 1], [], []>} : vector<8x256xbf16>, vector<256x1024xbf16>, vector<8x1024xf32> -> vector<8x1024xf32>
    %41 = arith.addf %16, %40 : vector<8x1024xf32>
    %42 = arith.addf %41, %13 : vector<8x1024xf32>
    %43 = vector.extract_strided_slice %42 {offsets = [0, 0], sizes = [8, 768], strides = [1, 1]} : vector<8x1024xf32> to vector<8x768xf32>
    %cst_24 = arith.constant 5.000000e-01 : f32
    %44 = vector.broadcast %cst_24 : f32 to vector<8x768xf32>
    %45 = arith.mulf %44, %43 : vector<8x768xf32>
    %46 = math.tanh %45 : vector<8x768xf32>
    %cst_25 = arith.constant 5.000000e-01 : f32
    %47 = vector.broadcast %cst_25 : f32 to vector<8x768xf32>
    %48 = arith.mulf %47, %46 : vector<8x768xf32>
    %cst_26 = arith.constant 5.000000e-01 : f32
    %49 = vector.broadcast %cst_26 : f32 to vector<8x768xf32>
    %50 = arith.addf %48, %49 : vector<8x768xf32>
    %51 = vector.extract_strided_slice %50 {offsets = [0, 0], sizes = [8, 256], strides = [1, 1]} : vector<8x768xf32> to vector<8x256xf32>
    %52 = vector.extract_strided_slice %50 {offsets = [0, 256], sizes = [8, 256], strides = [1, 1]} : vector<8x768xf32> to vector<8x256xf32>
    %53 = vector.extract_strided_slice %50 {offsets = [0, 512], sizes = [8, 256], strides = [1, 1]} : vector<8x768xf32> to vector<8x256xf32>
    %54 = vector.extract_strided_slice %42 {offsets = [0, 768], sizes = [8, 256], strides = [1, 1]} : vector<8x1024xf32> to vector<8x256xf32>
    %55 = math.tanh %54 : vector<8x256xf32>
    %56 = arith.mulf %52, %14 : vector<8x256xf32>
    %57 = arith.mulf %51, %55 : vector<8x256xf32>
    %58 = arith.addf %56, %57 : vector<8x256xf32>
    %59 = math.tanh %58 : vector<8x256xf32>
    %60 = arith.mulf %53, %59 : vector<8x256xf32>
    %c0_27 = arith.constant 0 : index
    %c0_28 = arith.constant 0 : index
    %61 = vector.load %arg17[%c0_27, %c0_28] : memref<64x256xf32, #tpu.memory_space<vmem>>, vector<8x256xf32>
    tpu.vector_store %arg17[%c0_27, %c0_28], %60 {strides = array<i32>} : memref<64x256xf32, #tpu.memory_space<vmem>>, vector<8x256xf32>,
    %62 = arith.truncf %60 : vector<8x256xf32> to vector<8x256xbf16>
    %cst_29 = arith.constant dense<0.000000e+00> : vector<8x1024xf32>
    %63 = tpu.matmul %62, %10, %cst_29 {dimension_numbers = #tpu.dot_dimension_numbers<[1], [0], [0], [1], [0, 0, 1, 1], [], []>} : vector<8x256xbf16>, vector<256x1024xbf16>, vector<8x1024xf32> -> vector<8x1024xf32>
    %c8 = arith.constant 8 : index
    %c0_30 = arith.constant 0 : index
    %64 = vector.load %arg16[%c8, %c0_30] : memref<64x1024xf32, #tpu.memory_space<vmem>>, vector<8x1024xf32>
    %65 = arith.truncf %38 : vector<8x256xf32> to vector<8x256xbf16>
    %cst_31 = arith.constant dense<0.000000e+00> : vector<8x1024xf32>
    %66 = tpu.matmul %65, %8, %cst_31 {dimension_numbers = #tpu.dot_dimension_numbers<[1], [0], [0], [1], [0, 0, 1, 1], [], []>} : vector<8x256xbf16>, vector<256x1024xbf16>, vector<8x1024xf32> -> vector<8x1024xf32>
    %67 = arith.addf %64, %66 : vector<8x1024xf32>
    %68 = vector.extract_strided_slice %67 {offsets = [0, 0], sizes = [8, 768], strides = [1, 1]} : vector<8x1024xf32> to vector<8x768xf32>
    %cst_32 = arith.constant 5.000000e-01 : f32
    %69 = vector.broadcast %cst_32 : f32 to vector<8x768xf32>
    %70 = arith.mulf %69, %68 : vector<8x768xf32>
    %71 = math.tanh %70 : vector<8x768xf32>
    %cst_33 = arith.constant 5.000000e-01 : f32
    %72 = vector.broadcast %cst_33 : f32 to vector<8x768xf32>
    %73 = arith.mulf %72, %71 : vector<8x768xf32>
    %cst_34 = arith.constant 5.000000e-01 : f32
    %74 = vector.broadcast %cst_34 : f32 to vector<8x768xf32>
    %75 = arith.addf %73, %74 : vector<8x768xf32>
    %76 = vector.extract_strided_slice %75 {offsets = [0, 0], sizes = [8, 256], strides = [1, 1]} : vector<8x768xf32> to vector<8x256xf32>
    %77 = vector.extract_strided_slice %75 {offsets = [0, 256], sizes = [8, 256], strides = [1, 1]} : vector<8x768xf32> to vector<8x256xf32>
    %78 = vector.extract_strided_slice %75 {offsets = [0, 512], sizes = [8, 256], strides = [1, 1]} : vector<8x768xf32> to vector<8x256xf32>
    %79 = vector.extract_strided_slice %67 {offsets = [0, 768], sizes = [8, 256], strides = [1, 1]} : vector<8x1024xf32> to vector<8x256xf32>
    %80 = math.tanh %79 : vector<8x256xf32>
    %81 = arith.mulf %77, %36 : vector<8x256xf32>
    %82 = arith.mulf %76, %80 : vector<8x256xf32>
    %83 = arith.addf %81, %82 : vector<8x256xf32>
    %84 = math.tanh %83 : vector<8x256xf32>
    %85 = arith.mulf %78, %84 : vector<8x256xf32>
    %86 = arith.truncf %85 : vector<8x256xf32> to vector<8x256xbf16>
    %cst_35 = arith.constant dense<0.000000e+00> : vector<8x1024xf32>
    %87 = tpu.matmul %86, %9, %cst_35 {dimension_numbers = #tpu.dot_dimension_numbers<[1], [0], [0], [1], [0, 0, 1, 1], [], []>} : vector<8x256xbf16>, vector<256x1024xbf16>, vector<8x1024xf32> -> vector<8x1024xf32>
    %88 = arith.addf %63, %87 : vector<8x1024xf32>
    %89 = arith.addf %88, %13 : vector<8x1024xf32>
    %90 = vector.extract_strided_slice %89 {offsets = [0, 0], sizes = [8, 768], strides = [1, 1]} : vector<8x1024xf32> to vector<8x768xf32>
    %cst_36 = arith.constant 5.000000e-01 : f32
    %91 = vector.broadcast %cst_36 : f32 to vector<8x768xf32>
    %92 = arith.mulf %91, %90 : vector<8x768xf32>
    %93 = math.tanh %92 : vector<8x768xf32>
    %cst_37 = arith.constant 5.000000e-01 : f32
    %94 = vector.broadcast %cst_37 : f32 to vector<8x768xf32>
    %95 = arith.mulf %94, %93 : vector<8x768xf32>
    %cst_38 = arith.constant 5.000000e-01 : f32
    %96 = vector.broadcast %cst_38 : f32 to vector<8x768xf32>
    %97 = arith.addf %95, %96 : vector<8x768xf32>
    %98 = vector.extract_strided_slice %97 {offsets = [0, 0], sizes = [8, 256], strides = [1, 1]} : vector<8x768xf32> to vector<8x256xf32>
    %99 = vector.extract_strided_slice %97 {offsets = [0, 256], sizes = [8, 256], strides = [1, 1]} : vector<8x768xf32> to vector<8x256xf32>
    %100 = vector.extract_strided_slice %97 {offsets = [0, 512], sizes = [8, 256], strides = [1, 1]} : vector<8x768xf32> to vector<8x256xf32>
    %101 = vector.extract_strided_slice %89 {offsets = [0, 768], sizes = [8, 256], strides = [1, 1]} : vector<8x1024xf32> to vector<8x256xf32>
    %102 = math.tanh %101 : vector<8x256xf32>
    %103 = arith.mulf %99, %58 : vector<8x256xf32>
    %104 = arith.mulf %98, %102 : vector<8x256xf32>
    %105 = arith.addf %103, %104 : vector<8x256xf32>
    %106 = math.tanh %105 : vector<8x256xf32>
    %107 = arith.mulf %100, %106 : vector<8x256xf32>
    %c8_39 = arith.constant 8 : index
    %c0_40 = arith.constant 0 : index
    %108 = vector.load %arg17[%c8_39, %c0_40] : memref<64x256xf32, #tpu.memory_space<vmem>>, vector<8x256xf32>
    tpu.vector_store %arg17[%c8_39, %c0_40], %107 {strides = array<i32>} : memref<64x256xf32, #tpu.memory_space<vmem>>, vector<8x256xf32>,
    %109 = arith.truncf %107 : vector<8x256xf32> to vector<8x256xbf16>
    %cst_41 = arith.constant dense<0.000000e+00> : vector<8x1024xf32>
    %110 = tpu.matmul %109, %10, %cst_41 {dimension_numbers = #tpu.dot_dimension_numbers<[1], [0], [0], [1], [0, 0, 1, 1], [], []>} : vector<8x256xbf16>, vector<256x1024xbf16>, vector<8x1024xf32> -> vector<8x1024xf32>
    %c16 = arith.constant 16 : index
    %c0_42 = arith.constant 0 : index
    %111 = vector.load %arg16[%c16, %c0_42] : memref<64x1024xf32, #tpu.memory_space<vmem>>, vector<8x1024xf32>
    %112 = arith.truncf %85 : vector<8x256xf32> to vector<8x256xbf16>
    %cst_43 = arith.constant dense<0.000000e+00> : vector<8x1024xf32>
    %113 = tpu.matmul %112, %8, %cst_43 {dimension_numbers = #tpu.dot_dimension_numbers<[1], [0], [0], [1], [0, 0, 1, 1], [], []>} : vector<8x256xbf16>, vector<256x1024xbf16>, vector<8x1024xf32> -> vector<8x1024xf32>
    %114 = arith.addf %111, %113 : vector<8x1024xf32>
    %115 = vector.extract_strided_slice %114 {offsets = [0, 0], sizes = [8, 768], strides = [1, 1]} : vector<8x1024xf32> to vector<8x768xf32>
    %cst_44 = arith.constant 5.000000e-01 : f32
    %116 = vector.broadcast %cst_44 : f32 to vector<8x768xf32>
    %117 = arith.mulf %116, %115 : vector<8x768xf32>
    %118 = math.tanh %117 : vector<8x768xf32>
    %cst_45 = arith.constant 5.000000e-01 : f32
    %119 = vector.broadcast %cst_45 : f32 to vector<8x768xf32>
    %120 = arith.mulf %119, %118 : vector<8x768xf32>
    %cst_46 = arith.constant 5.000000e-01 : f32
    %121 = vector.broadcast %cst_46 : f32 to vector<8x768xf32>
    %122 = arith.addf %120, %121 : vector<8x768xf32>
    %123 = vector.extract_strided_slice %122 {offsets = [0, 0], sizes = [8, 256], strides = [1, 1]} : vector<8x768xf32> to vector<8x256xf32>
    %124 = vector.extract_strided_slice %122 {offsets = [0, 256], sizes = [8, 256], strides = [1, 1]} : vector<8x768xf32> to vector<8x256xf32>
    %125 = vector.extract_strided_slice %122 {offsets = [0, 512], sizes = [8, 256], strides = [1, 1]} : vector<8x768xf32> to vector<8x256xf32>
    %126 = vector.extract_strided_slice %114 {offsets = [0, 768], sizes = [8, 256], strides = [1, 1]} : vector<8x1024xf32> to vector<8x256xf32>
    %127 = math.tanh %126 : vector<8x256xf32>
    %128 = arith.mulf %124, %83 : vector<8x256xf32>
    %129 = arith.mulf %123, %127 : vector<8x256xf32>
    %130 = arith.addf %128, %129 : vector<8x256xf32>
    %131 = math.tanh %130 : vector<8x256xf32>
    %132 = arith.mulf %125, %131 : vector<8x256xf32>
    %133 = arith.truncf %132 : vector<8x256xf32> to vector<8x256xbf16>
    %cst_47 = arith.constant dense<0.000000e+00> : vector<8x1024xf32>
    %134 = tpu.matmul %133, %9, %cst_47 {dimension_numbers = #tpu.dot_dimension_numbers<[1], [0], [0], [1], [0, 0, 1, 1], [], []>} : vector<8x256xbf16>, vector<256x1024xbf16>, vector<8x1024xf32> -> vector<8x1024xf32>
    %135 = arith.addf %110, %134 : vector<8x1024xf32>
    %136 = arith.addf %135, %13 : vector<8x1024xf32>
    %137 = vector.extract_strided_slice %136 {offsets = [0, 0], sizes = [8, 768], strides = [1, 1]} : vector<8x1024xf32> to vector<8x768xf32>
    %cst_48 = arith.constant 5.000000e-01 : f32
    %138 = vector.broadcast %cst_48 : f32 to vector<8x768xf32>
    %139 = arith.mulf %138, %137 : vector<8x768xf32>
    %140 = math.tanh %139 : vector<8x768xf32>
    %cst_49 = arith.constant 5.000000e-01 : f32
    %141 = vector.broadcast %cst_49 : f32 to vector<8x768xf32>
    %142 = arith.mulf %141, %140 : vector<8x768xf32>
    %cst_50 = arith.constant 5.000000e-01 : f32
    %143 = vector.broadcast %cst_50 : f32 to vector<8x768xf32>
    %144 = arith.addf %142, %143 : vector<8x768xf32>
    %145 = vector.extract_strided_slice %144 {offsets = [0, 0], sizes = [8, 256], strides = [1, 1]} : vector<8x768xf32> to vector<8x256xf32>
    %146 = vector.extract_strided_slice %144 {offsets = [0, 256], sizes = [8, 256], strides = [1, 1]} : vector<8x768xf32> to vector<8x256xf32>
    %147 = vector.extract_strided_slice %144 {offsets = [0, 512], sizes = [8, 256], strides = [1, 1]} : vector<8x768xf32> to vector<8x256xf32>
    %148 = vector.extract_strided_slice %136 {offsets = [0, 768], sizes = [8, 256], strides = [1, 1]} : vector<8x1024xf32> to vector<8x256xf32>
    %149 = math.tanh %148 : vector<8x256xf32>
    %150 = arith.mulf %146, %105 : vector<8x256xf32>
    %151 = arith.mulf %145, %149 : vector<8x256xf32>
    %152 = arith.addf %150, %151 : vector<8x256xf32>
    %153 = math.tanh %152 : vector<8x256xf32>
    %154 = arith.mulf %147, %153 : vector<8x256xf32>
    %c16_51 = arith.constant 16 : index
    %c0_52 = arith.constant 0 : index
    %155 = vector.load %arg17[%c16_51, %c0_52] : memref<64x256xf32, #tpu.memory_space<vmem>>, vector<8x256xf32>
    tpu.vector_store %arg17[%c16_51, %c0_52], %154 {strides = array<i32>} : memref<64x256xf32, #tpu.memory_space<vmem>>, vector<8x256xf32>,
    %156 = arith.truncf %154 : vector<8x256xf32> to vector<8x256xbf16>
    %cst_53 = arith.constant dense<0.000000e+00> : vector<8x1024xf32>
    %157 = tpu.matmul %156, %10, %cst_53 {dimension_numbers = #tpu.dot_dimension_numbers<[1], [0], [0], [1], [0, 0, 1, 1], [], []>} : vector<8x256xbf16>, vector<256x1024xbf16>, vector<8x1024xf32> -> vector<8x1024xf32>
    %c24 = arith.constant 24 : index
    %c0_54 = arith.constant 0 : index
    %158 = vector.load %arg16[%c24, %c0_54] : memref<64x1024xf32, #tpu.memory_space<vmem>>, vector<8x1024xf32>
    %159 = arith.truncf %132 : vector<8x256xf32> to vector<8x256xbf16>
    %cst_55 = arith.constant dense<0.000000e+00> : vector<8x1024xf32>
    %160 = tpu.matmul %159, %8, %cst_55 {dimension_numbers = #tpu.dot_dimension_numbers<[1], [0], [0], [1], [0, 0, 1, 1], [], []>} : vector<8x256xbf16>, vector<256x1024xbf16>, vector<8x1024xf32> -> vector<8x1024xf32>
    %161 = arith.addf %158, %160 : vector<8x1024xf32>
    %162 = vector.extract_strided_slice %161 {offsets = [0, 0], sizes = [8, 768], strides = [1, 1]} : vector<8x1024xf32> to vector<8x768xf32>
    %cst_56 = arith.constant 5.000000e-01 : f32
    %163 = vector.broadcast %cst_56 : f32 to vector<8x768xf32>
    %164 = arith.mulf %163, %162 : vector<8x768xf32>
    %165 = math.tanh %164 : vector<8x768xf32>
    %cst_57 = arith.constant 5.000000e-01 : f32
    %166 = vector.broadcast %cst_57 : f32 to vector<8x768xf32>
    %167 = arith.mulf %166, %165 : vector<8x768xf32>
    %cst_58 = arith.constant 5.000000e-01 : f32
    %168 = vector.broadcast %cst_58 : f32 to vector<8x768xf32>
    %169 = arith.addf %167, %168 : vector<8x768xf32>
    %170 = vector.extract_strided_slice %169 {offsets = [0, 0], sizes = [8, 256], strides = [1, 1]} : vector<8x768xf32> to vector<8x256xf32>
    %171 = vector.extract_strided_slice %169 {offsets = [0, 256], sizes = [8, 256], strides = [1, 1]} : vector<8x768xf32> to vector<8x256xf32>
    %172 = vector.extract_strided_slice %169 {offsets = [0, 512], sizes = [8, 256], strides = [1, 1]} : vector<8x768xf32> to vector<8x256xf32>
    %173 = vector.extract_strided_slice %161 {offsets = [0, 768], sizes = [8, 256], strides = [1, 1]} : vector<8x1024xf32> to vector<8x256xf32>
    %174 = math.tanh %173 : vector<8x256xf32>
    %175 = arith.mulf %171, %130 : vector<8x256xf32>
    %176 = arith.mulf %170, %174 : vector<8x256xf32>
    %177 = arith.addf %175, %176 : vector<8x256xf32>
    %178 = math.tanh %177 : vector<8x256xf32>
    %179 = arith.mulf %172, %178 : vector<8x256xf32>
    %180 = arith.truncf %179 : vector<8x256xf32> to vector<8x256xbf16>
    %cst_59 = arith.constant dense<0.000000e+00> : vector<8x1024xf32>
    %181 = tpu.matmul %180, %9, %cst_59 {dimension_numbers = #tpu.dot_dimension_numbers<[1], [0], [0], [1], [0, 0, 1, 1], [], []>} : vector<8x256xbf16>, vector<256x1024xbf16>, vector<8x1024xf32> -> vector<8x1024xf32>
    %182 = arith.addf %157, %181 : vector<8x1024xf32>
    %183 = arith.addf %182, %13 : vector<8x1024xf32>
    %184 = vector.extract_strided_slice %183 {offsets = [0, 0], sizes = [8, 768], strides = [1, 1]} : vector<8x1024xf32> to vector<8x768xf32>
    %cst_60 = arith.constant 5.000000e-01 : f32
    %185 = vector.broadcast %cst_60 : f32 to vector<8x768xf32>
    %186 = arith.mulf %185, %184 : vector<8x768xf32>
    %187 = math.tanh %186 : vector<8x768xf32>
    %cst_61 = arith.constant 5.000000e-01 : f32
    %188 = vector.broadcast %cst_61 : f32 to vector<8x768xf32>
    %189 = arith.mulf %188, %187 : vector<8x768xf32>
    %cst_62 = arith.constant 5.000000e-01 : f32
    %190 = vector.broadcast %cst_62 : f32 to vector<8x768xf32>
    %191 = arith.addf %189, %190 : vector<8x768xf32>
    %192 = vector.extract_strided_slice %191 {offsets = [0, 0], sizes = [8, 256], strides = [1, 1]} : vector<8x768xf32> to vector<8x256xf32>
    %193 = vector.extract_strided_slice %191 {offsets = [0, 256], sizes = [8, 256], strides = [1, 1]} : vector<8x768xf32> to vector<8x256xf32>
    %194 = vector.extract_strided_slice %191 {offsets = [0, 512], sizes = [8, 256], strides = [1, 1]} : vector<8x768xf32> to vector<8x256xf32>
    %195 = vector.extract_strided_slice %183 {offsets = [0, 768], sizes = [8, 256], strides = [1, 1]} : vector<8x1024xf32> to vector<8x256xf32>
    %196 = math.tanh %195 : vector<8x256xf32>
    %197 = arith.mulf %193, %152 : vector<8x256xf32>
    %198 = arith.mulf %192, %196 : vector<8x256xf32>
    %199 = arith.addf %197, %198 : vector<8x256xf32>
    %200 = math.tanh %199 : vector<8x256xf32>
    %201 = arith.mulf %194, %200 : vector<8x256xf32>
    %c24_63 = arith.constant 24 : index
    %c0_64 = arith.constant 0 : index
    %202 = vector.load %arg17[%c24_63, %c0_64] : memref<64x256xf32, #tpu.memory_space<vmem>>, vector<8x256xf32>
    tpu.vector_store %arg17[%c24_63, %c0_64], %201 {strides = array<i32>} : memref<64x256xf32, #tpu.memory_space<vmem>>, vector<8x256xf32>,
    %203 = arith.truncf %201 : vector<8x256xf32> to vector<8x256xbf16>
    %cst_65 = arith.constant dense<0.000000e+00> : vector<8x1024xf32>
    %204 = tpu.matmul %203, %10, %cst_65 {dimension_numbers = #tpu.dot_dimension_numbers<[1], [0], [0], [1], [0, 0, 1, 1], [], []>} : vector<8x256xbf16>, vector<256x1024xbf16>, vector<8x1024xf32> -> vector<8x1024xf32>
    %c32 = arith.constant 32 : index
    %c0_66 = arith.constant 0 : index
    %205 = vector.load %arg16[%c32, %c0_66] : memref<64x1024xf32, #tpu.memory_space<vmem>>, vector<8x1024xf32>
    %206 = arith.truncf %179 : vector<8x256xf32> to vector<8x256xbf16>
    %cst_67 = arith.constant dense<0.000000e+00> : vector<8x1024xf32>
    %207 = tpu.matmul %206, %8, %cst_67 {dimension_numbers = #tpu.dot_dimension_numbers<[1], [0], [0], [1], [0, 0, 1, 1], [], []>} : vector<8x256xbf16>, vector<256x1024xbf16>, vector<8x1024xf32> -> vector<8x1024xf32>
    %208 = arith.addf %205, %207 : vector<8x1024xf32>
    %209 = vector.extract_strided_slice %208 {offsets = [0, 0], sizes = [8, 768], strides = [1, 1]} : vector<8x1024xf32> to vector<8x768xf32>
    %cst_68 = arith.constant 5.000000e-01 : f32
    %210 = vector.broadcast %cst_68 : f32 to vector<8x768xf32>
    %211 = arith.mulf %210, %209 : vector<8x768xf32>
    %212 = math.tanh %211 : vector<8x768xf32>
    %cst_69 = arith.constant 5.000000e-01 : f32
    %213 = vector.broadcast %cst_69 : f32 to vector<8x768xf32>
    %214 = arith.mulf %213, %212 : vector<8x768xf32>
    %cst_70 = arith.constant 5.000000e-01 : f32
    %215 = vector.broadcast %cst_70 : f32 to vector<8x768xf32>
    %216 = arith.addf %214, %215 : vector<8x768xf32>
    %217 = vector.extract_strided_slice %216 {offsets = [0, 0], sizes = [8, 256], strides = [1, 1]} : vector<8x768xf32> to vector<8x256xf32>
    %218 = vector.extract_strided_slice %216 {offsets = [0, 256], sizes = [8, 256], strides = [1, 1]} : vector<8x768xf32> to vector<8x256xf32>
    %219 = vector.extract_strided_slice %216 {offsets = [0, 512], sizes = [8, 256], strides = [1, 1]} : vector<8x768xf32> to vector<8x256xf32>
    %220 = vector.extract_strided_slice %208 {offsets = [0, 768], sizes = [8, 256], strides = [1, 1]} : vector<8x1024xf32> to vector<8x256xf32>
    %221 = math.tanh %220 : vector<8x256xf32>
    %222 = arith.mulf %218, %177 : vector<8x256xf32>
    %223 = arith.mulf %217, %221 : vector<8x256xf32>
    %224 = arith.addf %222, %223 : vector<8x256xf32>
    %225 = math.tanh %224 : vector<8x256xf32>
    %226 = arith.mulf %219, %225 : vector<8x256xf32>
    %227 = arith.truncf %226 : vector<8x256xf32> to vector<8x256xbf16>
    %cst_71 = arith.constant dense<0.000000e+00> : vector<8x1024xf32>
    %228 = tpu.matmul %227, %9, %cst_71 {dimension_numbers = #tpu.dot_dimension_numbers<[1], [0], [0], [1], [0, 0, 1, 1], [], []>} : vector<8x256xbf16>, vector<256x1024xbf16>, vector<8x1024xf32> -> vector<8x1024xf32>
    %229 = arith.addf %204, %228 : vector<8x1024xf32>
    %230 = arith.addf %229, %13 : vector<8x1024xf32>
    %231 = vector.extract_strided_slice %230 {offsets = [0, 0], sizes = [8, 768], strides = [1, 1]} : vector<8x1024xf32> to vector<8x768xf32>
    %cst_72 = arith.constant 5.000000e-01 : f32
    %232 = vector.broadcast %cst_72 : f32 to vector<8x768xf32>
    %233 = arith.mulf %232, %231 : vector<8x768xf32>
    %234 = math.tanh %233 : vector<8x768xf32>
    %cst_73 = arith.constant 5.000000e-01 : f32
    %235 = vector.broadcast %cst_73 : f32 to vector<8x768xf32>
    %236 = arith.mulf %235, %234 : vector<8x768xf32>
    %cst_74 = arith.constant 5.000000e-01 : f32
    %237 = vector.broadcast %cst_74 : f32 to vector<8x768xf32>
    %238 = arith.addf %236, %237 : vector<8x768xf32>
    %239 = vector.extract_strided_slice %238 {offsets = [0, 0], sizes = [8, 256], strides = [1, 1]} : vector<8x768xf32> to vector<8x256xf32>
    %240 = vector.extract_strided_slice %238 {offsets = [0, 256], sizes = [8, 256], strides = [1, 1]} : vector<8x768xf32> to vector<8x256xf32>
    %241 = vector.extract_strided_slice %238 {offsets = [0, 512], sizes = [8, 256], strides = [1, 1]} : vector<8x768xf32> to vector<8x256xf32>
    %242 = vector.extract_strided_slice %230 {offsets = [0, 768], sizes = [8, 256], strides = [1, 1]} : vector<8x1024xf32> to vector<8x256xf32>
    %243 = math.tanh %242 : vector<8x256xf32>
    %244 = arith.mulf %240, %199 : vector<8x256xf32>
    %245 = arith.mulf %239, %243 : vector<8x256xf32>
    %246 = arith.addf %244, %245 : vector<8x256xf32>
    %247 = math.tanh %246 : vector<8x256xf32>
    %248 = arith.mulf %241, %247 : vector<8x256xf32>
    %c32_75 = arith.constant 32 : index
    %c0_76 = arith.constant 0 : index
    %249 = vector.load %arg17[%c32_75, %c0_76] : memref<64x256xf32, #tpu.memory_space<vmem>>, vector<8x256xf32>
    tpu.vector_store %arg17[%c32_75, %c0_76], %248 {strides = array<i32>} : memref<64x256xf32, #tpu.memory_space<vmem>>, vector<8x256xf32>,
    %250 = arith.truncf %248 : vector<8x256xf32> to vector<8x256xbf16>
    %cst_77 = arith.constant dense<0.000000e+00> : vector<8x1024xf32>
    %251 = tpu.matmul %250, %10, %cst_77 {dimension_numbers = #tpu.dot_dimension_numbers<[1], [0], [0], [1], [0, 0, 1, 1], [], []>} : vector<8x256xbf16>, vector<256x1024xbf16>, vector<8x1024xf32> -> vector<8x1024xf32>
    %c40 = arith.constant 40 : index
    %c0_78 = arith.constant 0 : index
    %252 = vector.load %arg16[%c40, %c0_78] : memref<64x1024xf32, #tpu.memory_space<vmem>>, vector<8x1024xf32>
    %253 = arith.truncf %226 : vector<8x256xf32> to vector<8x256xbf16>
    %cst_79 = arith.constant dense<0.000000e+00> : vector<8x1024xf32>
    %254 = tpu.matmul %253, %8, %cst_79 {dimension_numbers = #tpu.dot_dimension_numbers<[1], [0], [0], [1], [0, 0, 1, 1], [], []>} : vector<8x256xbf16>, vector<256x1024xbf16>, vector<8x1024xf32> -> vector<8x1024xf32>
    %255 = arith.addf %252, %254 : vector<8x1024xf32>
    %256 = vector.extract_strided_slice %255 {offsets = [0, 0], sizes = [8, 768], strides = [1, 1]} : vector<8x1024xf32> to vector<8x768xf32>
    %cst_80 = arith.constant 5.000000e-01 : f32
    %257 = vector.broadcast %cst_80 : f32 to vector<8x768xf32>
    %258 = arith.mulf %257, %256 : vector<8x768xf32>
    %259 = math.tanh %258 : vector<8x768xf32>
    %cst_81 = arith.constant 5.000000e-01 : f32
    %260 = vector.broadcast %cst_81 : f32 to vector<8x768xf32>
    %261 = arith.mulf %260, %259 : vector<8x768xf32>
    %cst_82 = arith.constant 5.000000e-01 : f32
    %262 = vector.broadcast %cst_82 : f32 to vector<8x768xf32>
    %263 = arith.addf %261, %262 : vector<8x768xf32>
    %264 = vector.extract_strided_slice %263 {offsets = [0, 0], sizes = [8, 256], strides = [1, 1]} : vector<8x768xf32> to vector<8x256xf32>
    %265 = vector.extract_strided_slice %263 {offsets = [0, 256], sizes = [8, 256], strides = [1, 1]} : vector<8x768xf32> to vector<8x256xf32>
    %266 = vector.extract_strided_slice %263 {offsets = [0, 512], sizes = [8, 256], strides = [1, 1]} : vector<8x768xf32> to vector<8x256xf32>
    %267 = vector.extract_strided_slice %255 {offsets = [0, 768], sizes = [8, 256], strides = [1, 1]} : vector<8x1024xf32> to vector<8x256xf32>
    %268 = math.tanh %267 : vector<8x256xf32>
    %269 = arith.mulf %265, %224 : vector<8x256xf32>
    %270 = arith.mulf %264, %268 : vector<8x256xf32>
    %271 = arith.addf %269, %270 : vector<8x256xf32>
    %272 = math.tanh %271 : vector<8x256xf32>
    %273 = arith.mulf %266, %272 : vector<8x256xf32>
    %274 = arith.truncf %273 : vector<8x256xf32> to vector<8x256xbf16>
    %cst_83 = arith.constant dense<0.000000e+00> : vector<8x1024xf32>
    %275 = tpu.matmul %274, %9, %cst_83 {dimension_numbers = #tpu.dot_dimension_numbers<[1], [0], [0], [1], [0, 0, 1, 1], [], []>} : vector<8x256xbf16>, vector<256x1024xbf16>, vector<8x1024xf32> -> vector<8x1024xf32>
    %276 = arith.addf %251, %275 : vector<8x1024xf32>
    %277 = arith.addf %276, %13 : vector<8x1024xf32>
    %278 = vector.extract_strided_slice %277 {offsets = [0, 0], sizes = [8, 768], strides = [1, 1]} : vector<8x1024xf32> to vector<8x768xf32>
    %cst_84 = arith.constant 5.000000e-01 : f32
    %279 = vector.broadcast %cst_84 : f32 to vector<8x768xf32>
    %280 = arith.mulf %279, %278 : vector<8x768xf32>
    %281 = math.tanh %280 : vector<8x768xf32>
    %cst_85 = arith.constant 5.000000e-01 : f32
    %282 = vector.broadcast %cst_85 : f32 to vector<8x768xf32>
    %283 = arith.mulf %282, %281 : vector<8x768xf32>
    %cst_86 = arith.constant 5.000000e-01 : f32
    %284 = vector.broadcast %cst_86 : f32 to vector<8x768xf32>
    %285 = arith.addf %283, %284 : vector<8x768xf32>
    %286 = vector.extract_strided_slice %285 {offsets = [0, 0], sizes = [8, 256], strides = [1, 1]} : vector<8x768xf32> to vector<8x256xf32>
    %287 = vector.extract_strided_slice %285 {offsets = [0, 256], sizes = [8, 256], strides = [1, 1]} : vector<8x768xf32> to vector<8x256xf32>
    %288 = vector.extract_strided_slice %285 {offsets = [0, 512], sizes = [8, 256], strides = [1, 1]} : vector<8x768xf32> to vector<8x256xf32>
    %289 = vector.extract_strided_slice %277 {offsets = [0, 768], sizes = [8, 256], strides = [1, 1]} : vector<8x1024xf32> to vector<8x256xf32>
    %290 = math.tanh %289 : vector<8x256xf32>
    %291 = arith.mulf %287, %246 : vector<8x256xf32>
    %292 = arith.mulf %286, %290 : vector<8x256xf32>
    %293 = arith.addf %291, %292 : vector<8x256xf32>
    %294 = math.tanh %293 : vector<8x256xf32>
    %295 = arith.mulf %288, %294 : vector<8x256xf32>
    %c40_87 = arith.constant 40 : index
    %c0_88 = arith.constant 0 : index
    %296 = vector.load %arg17[%c40_87, %c0_88] : memref<64x256xf32, #tpu.memory_space<vmem>>, vector<8x256xf32>
    tpu.vector_store %arg17[%c40_87, %c0_88], %295 {strides = array<i32>} : memref<64x256xf32, #tpu.memory_space<vmem>>, vector<8x256xf32>,
    %297 = arith.truncf %295 : vector<8x256xf32> to vector<8x256xbf16>
    %cst_89 = arith.constant dense<0.000000e+00> : vector<8x1024xf32>
    %298 = tpu.matmul %297, %10, %cst_89 {dimension_numbers = #tpu.dot_dimension_numbers<[1], [0], [0], [1], [0, 0, 1, 1], [], []>} : vector<8x256xbf16>, vector<256x1024xbf16>, vector<8x1024xf32> -> vector<8x1024xf32>
    %c48 = arith.constant 48 : index
    %c0_90 = arith.constant 0 : index
    %299 = vector.load %arg16[%c48, %c0_90] : memref<64x1024xf32, #tpu.memory_space<vmem>>, vector<8x1024xf32>
    %300 = arith.truncf %273 : vector<8x256xf32> to vector<8x256xbf16>
    %cst_91 = arith.constant dense<0.000000e+00> : vector<8x1024xf32>
    %301 = tpu.matmul %300, %8, %cst_91 {dimension_numbers = #tpu.dot_dimension_numbers<[1], [0], [0], [1], [0, 0, 1, 1], [], []>} : vector<8x256xbf16>, vector<256x1024xbf16>, vector<8x1024xf32> -> vector<8x1024xf32>
    %302 = arith.addf %299, %301 : vector<8x1024xf32>
    %303 = vector.extract_strided_slice %302 {offsets = [0, 0], sizes = [8, 768], strides = [1, 1]} : vector<8x1024xf32> to vector<8x768xf32>
    %cst_92 = arith.constant 5.000000e-01 : f32
    %304 = vector.broadcast %cst_92 : f32 to vector<8x768xf32>
    %305 = arith.mulf %304, %303 : vector<8x768xf32>
    %306 = math.tanh %305 : vector<8x768xf32>
    %cst_93 = arith.constant 5.000000e-01 : f32
    %307 = vector.broadcast %cst_93 : f32 to vector<8x768xf32>
    %308 = arith.mulf %307, %306 : vector<8x768xf32>
    %cst_94 = arith.constant 5.000000e-01 : f32
    %309 = vector.broadcast %cst_94 : f32 to vector<8x768xf32>
    %310 = arith.addf %308, %309 : vector<8x768xf32>
    %311 = vector.extract_strided_slice %310 {offsets = [0, 0], sizes = [8, 256], strides = [1, 1]} : vector<8x768xf32> to vector<8x256xf32>
    %312 = vector.extract_strided_slice %310 {offsets = [0, 256], sizes = [8, 256], strides = [1, 1]} : vector<8x768xf32> to vector<8x256xf32>
    %313 = vector.extract_strided_slice %310 {offsets = [0, 512], sizes = [8, 256], strides = [1, 1]} : vector<8x768xf32> to vector<8x256xf32>
    %314 = vector.extract_strided_slice %302 {offsets = [0, 768], sizes = [8, 256], strides = [1, 1]} : vector<8x1024xf32> to vector<8x256xf32>
    %315 = math.tanh %314 : vector<8x256xf32>
    %316 = arith.mulf %312, %271 : vector<8x256xf32>
    %317 = arith.mulf %311, %315 : vector<8x256xf32>
    %318 = arith.addf %316, %317 : vector<8x256xf32>
    %319 = math.tanh %318 : vector<8x256xf32>
    %320 = arith.mulf %313, %319 : vector<8x256xf32>
    %321 = arith.truncf %320 : vector<8x256xf32> to vector<8x256xbf16>
    %cst_95 = arith.constant dense<0.000000e+00> : vector<8x1024xf32>
    %322 = tpu.matmul %321, %9, %cst_95 {dimension_numbers = #tpu.dot_dimension_numbers<[1], [0], [0], [1], [0, 0, 1, 1], [], []>} : vector<8x256xbf16>, vector<256x1024xbf16>, vector<8x1024xf32> -> vector<8x1024xf32>
    %323 = arith.addf %298, %322 : vector<8x1024xf32>
    %324 = arith.addf %323, %13 : vector<8x1024xf32>
    %325 = vector.extract_strided_slice %324 {offsets = [0, 0], sizes = [8, 768], strides = [1, 1]} : vector<8x1024xf32> to vector<8x768xf32>
    %cst_96 = arith.constant 5.000000e-01 : f32
    %326 = vector.broadcast %cst_96 : f32 to vector<8x768xf32>
    %327 = arith.mulf %326, %325 : vector<8x768xf32>
    %328 = math.tanh %327 : vector<8x768xf32>
    %cst_97 = arith.constant 5.000000e-01 : f32
    %329 = vector.broadcast %cst_97 : f32 to vector<8x768xf32>
    %330 = arith.mulf %329, %328 : vector<8x768xf32>
    %cst_98 = arith.constant 5.000000e-01 : f32
    %331 = vector.broadcast %cst_98 : f32 to vector<8x768xf32>
    %332 = arith.addf %330, %331 : vector<8x768xf32>
    %333 = vector.extract_strided_slice %332 {offsets = [0, 0], sizes = [8, 256], strides = [1, 1]} : vector<8x768xf32> to vector<8x256xf32>
    %334 = vector.extract_strided_slice %332 {offsets = [0, 256], sizes = [8, 256], strides = [1, 1]} : vector<8x768xf32> to vector<8x256xf32>
    %335 = vector.extract_strided_slice %332 {offsets = [0, 512], sizes = [8, 256], strides = [1, 1]} : vector<8x768xf32> to vector<8x256xf32>
    %336 = vector.extract_strided_slice %324 {offsets = [0, 768], sizes = [8, 256], strides = [1, 1]} : vector<8x1024xf32> to vector<8x256xf32>
    %337 = math.tanh %336 : vector<8x256xf32>
    %338 = arith.mulf %334, %293 : vector<8x256xf32>
    %339 = arith.mulf %333, %337 : vector<8x256xf32>
    %340 = arith.addf %338, %339 : vector<8x256xf32>
    %341 = math.tanh %340 : vector<8x256xf32>
    %342 = arith.mulf %335, %341 : vector<8x256xf32>
    %c48_99 = arith.constant 48 : index
    %c0_100 = arith.constant 0 : index
    %343 = vector.load %arg17[%c48_99, %c0_100] : memref<64x256xf32, #tpu.memory_space<vmem>>, vector<8x256xf32>
    tpu.vector_store %arg17[%c48_99, %c0_100], %342 {strides = array<i32>} : memref<64x256xf32, #tpu.memory_space<vmem>>, vector<8x256xf32>,
    %344 = arith.truncf %342 : vector<8x256xf32> to vector<8x256xbf16>
    %cst_101 = arith.constant dense<0.000000e+00> : vector<8x1024xf32>
    %345 = tpu.matmul %344, %10, %cst_101 {dimension_numbers = #tpu.dot_dimension_numbers<[1], [0], [0], [1], [0, 0, 1, 1], [], []>} : vector<8x256xbf16>, vector<256x1024xbf16>, vector<8x1024xf32> -> vector<8x1024xf32>
    %c56 = arith.constant 56 : index
    %c0_102 = arith.constant 0 : index
    %346 = vector.load %arg16[%c56, %c0_102] : memref<64x1024xf32, #tpu.memory_space<vmem>>, vector<8x1024xf32>
    %347 = arith.truncf %320 : vector<8x256xf32> to vector<8x256xbf16>
    %cst_103 = arith.constant dense<0.000000e+00> : vector<8x1024xf32>
    %348 = tpu.matmul %347, %8, %cst_103 {dimension_numbers = #tpu.dot_dimension_numbers<[1], [0], [0], [1], [0, 0, 1, 1], [], []>} : vector<8x256xbf16>, vector<256x1024xbf16>, vector<8x1024xf32> -> vector<8x1024xf32>
    %349 = arith.addf %346, %348 : vector<8x1024xf32>
    %350 = vector.extract_strided_slice %349 {offsets = [0, 0], sizes = [8, 768], strides = [1, 1]} : vector<8x1024xf32> to vector<8x768xf32>
    %cst_104 = arith.constant 5.000000e-01 : f32
    %351 = vector.broadcast %cst_104 : f32 to vector<8x768xf32>
    %352 = arith.mulf %351, %350 : vector<8x768xf32>
    %353 = math.tanh %352 : vector<8x768xf32>
    %cst_105 = arith.constant 5.000000e-01 : f32
    %354 = vector.broadcast %cst_105 : f32 to vector<8x768xf32>
    %355 = arith.mulf %354, %353 : vector<8x768xf32>
    %cst_106 = arith.constant 5.000000e-01 : f32
    %356 = vector.broadcast %cst_106 : f32 to vector<8x768xf32>
    %357 = arith.addf %355, %356 : vector<8x768xf32>
    %358 = vector.extract_strided_slice %357 {offsets = [0, 0], sizes = [8, 256], strides = [1, 1]} : vector<8x768xf32> to vector<8x256xf32>
    %359 = vector.extract_strided_slice %357 {offsets = [0, 256], sizes = [8, 256], strides = [1, 1]} : vector<8x768xf32> to vector<8x256xf32>
    %360 = vector.extract_strided_slice %357 {offsets = [0, 512], sizes = [8, 256], strides = [1, 1]} : vector<8x768xf32> to vector<8x256xf32>
    %361 = vector.extract_strided_slice %349 {offsets = [0, 768], sizes = [8, 256], strides = [1, 1]} : vector<8x1024xf32> to vector<8x256xf32>
    %362 = math.tanh %361 : vector<8x256xf32>
    %363 = arith.mulf %359, %318 : vector<8x256xf32>
    %364 = arith.mulf %358, %362 : vector<8x256xf32>
    %365 = arith.addf %363, %364 : vector<8x256xf32>
    %366 = math.tanh %365 : vector<8x256xf32>
    %367 = arith.mulf %360, %366 : vector<8x256xf32>
    %368 = arith.truncf %367 : vector<8x256xf32> to vector<8x256xbf16>
    %cst_107 = arith.constant dense<0.000000e+00> : vector<8x1024xf32>
    %369 = tpu.matmul %368, %9, %cst_107 {dimension_numbers = #tpu.dot_dimension_numbers<[1], [0], [0], [1], [0, 0, 1, 1], [], []>} : vector<8x256xbf16>, vector<256x1024xbf16>, vector<8x1024xf32> -> vector<8x1024xf32>
    %370 = arith.addf %345, %369 : vector<8x1024xf32>
    %371 = arith.addf %370, %13 : vector<8x1024xf32>
    %372 = vector.extract_strided_slice %371 {offsets = [0, 0], sizes = [8, 768], strides = [1, 1]} : vector<8x1024xf32> to vector<8x768xf32>
    %cst_108 = arith.constant 5.000000e-01 : f32
    %373 = vector.broadcast %cst_108 : f32 to vector<8x768xf32>
    %374 = arith.mulf %373, %372 : vector<8x768xf32>
    %375 = math.tanh %374 : vector<8x768xf32>
    %cst_109 = arith.constant 5.000000e-01 : f32
    %376 = vector.broadcast %cst_109 : f32 to vector<8x768xf32>
    %377 = arith.mulf %376, %375 : vector<8x768xf32>
    %cst_110 = arith.constant 5.000000e-01 : f32
    %378 = vector.broadcast %cst_110 : f32 to vector<8x768xf32>
    %379 = arith.addf %377, %378 : vector<8x768xf32>
    %380 = vector.extract_strided_slice %379 {offsets = [0, 0], sizes = [8, 256], strides = [1, 1]} : vector<8x768xf32> to vector<8x256xf32>
    %381 = vector.extract_strided_slice %379 {offsets = [0, 256], sizes = [8, 256], strides = [1, 1]} : vector<8x768xf32> to vector<8x256xf32>
    %382 = vector.extract_strided_slice %379 {offsets = [0, 512], sizes = [8, 256], strides = [1, 1]} : vector<8x768xf32> to vector<8x256xf32>
    %383 = vector.extract_strided_slice %371 {offsets = [0, 768], sizes = [8, 256], strides = [1, 1]} : vector<8x1024xf32> to vector<8x256xf32>
    %384 = math.tanh %383 : vector<8x256xf32>
    %385 = arith.mulf %381, %340 : vector<8x256xf32>
    %386 = arith.mulf %380, %384 : vector<8x256xf32>
    %387 = arith.addf %385, %386 : vector<8x256xf32>
    %388 = math.tanh %387 : vector<8x256xf32>
    %389 = arith.mulf %382, %388 : vector<8x256xf32>
    %c56_111 = arith.constant 56 : index
    %c0_112 = arith.constant 0 : index
    %390 = vector.load %arg17[%c56_111, %c0_112] : memref<64x256xf32, #tpu.memory_space<vmem>>, vector<8x256xf32>
    tpu.vector_store %arg17[%c56_111, %c0_112], %389 {strides = array<i32>} : memref<64x256xf32, #tpu.memory_space<vmem>>, vector<8x256xf32>,
    %c0_113 = arith.constant 0 : index
    %c0_114 = arith.constant 0 : index
    %391 = vector.load %arg17[%c0_113, %c0_114] : memref<64x256xf32, #tpu.memory_space<vmem>>, vector<64x256xf32>
    %392 = vector.extract_strided_slice %391 {offsets = [2, 0], sizes = [62, 256], strides = [1, 1]} : vector<64x256xf32> to vector<62x256xf32>
    %cst_115 = arith.constant 0.000000e+00 : f32
    %393 = vector.broadcast %cst_115 : f32 to vector<2x256xf32>
    %394 = tpu.concatenate %392, %393 in 0 : vector<62x256xf32>, vector<2x256xf32> -> vector<64x256xf32>
    %395 = arith.addf %391, %394 : vector<64x256xf32>
    %396 = arith.truncf %395 : vector<64x256xf32> to vector<64x256xbf16>
    %c0_116 = arith.constant 0 : index
    %c0_117 = arith.constant 0 : index
    %397 = vector.load %arg7[%c0_116, %c0_117] : memref<256x128xbf16, #tpu.memory_space<vmem>>, vector<256x128xbf16>
    %cst_118 = arith.constant dense<0.000000e+00> : vector<64x128xf32>
    %398 = tpu.matmul %396, %397, %cst_118 {dimension_numbers = #tpu.dot_dimension_numbers<[1], [0], [0], [1], [0, 0, 1, 1], [], []>} : vector<64x256xbf16>, vector<256x128xbf16>, vector<64x128xf32> -> vector<64x128xf32>
    %c0_119 = arith.constant 0 : index
    %c0_120 = arith.constant 0 : index
    %399 = vector.load %arg8[%c0_119, %c0_120] : memref<1x128xf32, #tpu.memory_space<vmem>>, vector<1x128xf32>
    %400 = vector.broadcast %399 : vector<1x128xf32> to vector<64x128xf32>
    %401 = arith.addf %398, %400 : vector<64x128xf32>
    %402 = math.tanh %401 : vector<64x128xf32>
    %403 = arith.truncf %402 : vector<64x128xf32> to vector<64x128xbf16>
    %c0_121 = arith.constant 0 : index
    %c0_122 = arith.constant 0 : index
    %404 = vector.load %arg9[%c0_121, %c0_122] : memref<128x128xbf16, #tpu.memory_space<vmem>>, vector<128x128xbf16>
    %cst_123 = arith.constant dense<0.000000e+00> : vector<64x128xf32>
    %405 = tpu.matmul %403, %404, %cst_123 {dimension_numbers = #tpu.dot_dimension_numbers<[1], [0], [0], [1], [0, 0, 1, 1], [], []>} : vector<64x128xbf16>, vector<128x128xbf16>, vector<64x128xf32> -> vector<64x128xf32>
    %c0_124 = arith.constant 0 : index
    %c0_125 = arith.constant 0 : index
    %406 = vector.load %arg10[%c0_124, %c0_125] : memref<1x128xf32, #tpu.memory_space<vmem>>, vector<1x128xf32>
    %407 = vector.broadcast %406 : vector<1x128xf32> to vector<64x128xf32>
    %408 = arith.addf %405, %407 : vector<64x128xf32>
    %409 = math.tanh %408 : vector<64x128xf32>
    %c0_126 = arith.constant 0 : index
    %c0_127 = arith.constant 0 : index
    %410 = vector.load %arg0[%c0_126, %c0_127] : memref<64x128xf32, #tpu.memory_space<vmem>>, vector<64x128xf32>
    %c0_128 = arith.constant 0 : index
    %c0_129 = arith.constant 0 : index
    %411 = vector.load %arg11[%c0_128, %c0_129] : memref<128x128xf32, #tpu.memory_space<vmem>>, vector<128x128xf32>
    %cst_130 = arith.constant dense<0.000000e+00> : vector<64x128xf32>
    %412 = tpu.matmul %410, %411, %cst_130 {dimension_numbers = #tpu.dot_dimension_numbers<[1], [0], [0], [1], [0, 0, 1, 1], [], []>} : vector<64x128xf32>, vector<128x128xf32>, vector<64x128xf32> -> vector<64x128xf32>
    %c0_131 = arith.constant 0 : index
    %c0_132 = arith.constant 0 : index
    %413 = vector.load %arg12[%c0_131, %c0_132] : memref<1x128xf32, #tpu.memory_space<vmem>>, vector<1x128xf32>
    %414 = vector.broadcast %413 : vector<1x128xf32> to vector<64x128xf32>
    %415 = arith.addf %412, %414 : vector<64x128xf32>
    %416 = arith.addf %409, %415 : vector<64x128xf32>
    %c0_133 = arith.constant 0 : index
    %c0_134 = arith.constant 0 : index
    %417 = vector.load %arg13[%c0_133, %c0_134] : memref<128x128xf32, #tpu.memory_space<vmem>>, vector<128x128xf32>
    %cst_135 = arith.constant dense<0.000000e+00> : vector<64x128xf32>
    %418 = tpu.matmul %416, %417, %cst_135 {dimension_numbers = #tpu.dot_dimension_numbers<[1], [0], [0], [1], [0, 0, 1, 1], [], []>} : vector<64x128xf32>, vector<128x128xf32>, vector<64x128xf32> -> vector<64x128xf32>
    %c0_136 = arith.constant 0 : index
    %c0_137 = arith.constant 0 : index
    %419 = vector.load %arg14[%c0_136, %c0_137] : memref<1x128xf32, #tpu.memory_space<vmem>>, vector<1x128xf32>
    %420 = vector.broadcast %419 : vector<1x128xf32> to vector<64x128xf32>
    %421 = arith.addf %418, %420 : vector<64x128xf32>
    %c0_138 = arith.constant 0 : index
    %c0_139 = arith.constant 0 : index
    %422 = vector.load %arg15[%c0_138, %c0_139] : memref<64x128xf32, #tpu.memory_space<vmem>>, vector<64x128xf32>
    tpu.vector_store %arg15[%c0_138, %c0_139], %421 {strides = array<i32>} : memref<64x128xf32, #tpu.memory_space<vmem>>, vector<64x128xf32>,
    return
  }
}

</mosaic_0001>

<llo_original>
// kernel: nnpred_forward.1
$region0: #{nnpred_forward.1}
  #allocation0 [shape = 'u32[]', space=smem, size = 0x4, offset = 0x4, fixed_abs, tag = 'smem constant byte address 0x4 - core index']
  #allocation1 [shape = 'u32[72,128]{1,0:T(1,128)}', space=vmem, size = 0x9000, scoped, tag = 'internal scratch']
  #allocation2 [shape = 'f32[64,1024]{1,0:T(8,128)}', space=vmem, size = 0x40000, scoped, tag = 'scratch operand']
  #allocation3 [shape = 'f32[64,256]{1,0:T(8,128)}', space=vmem, size = 0x10000, scoped, tag = 'scratch operand']
  %s0 = inlined_call_operand.vmem [shape: f32[64,128], index: 0, kind: input, shape index: {}]
  %s1 = inlined_call_operand.vmem [shape: bf16[128,1024], index: 1, kind: input, shape index: {}]
  %s2 = inlined_call_operand.vmem [shape: f32[1,1024], index: 2, kind: input, shape index: {}]
  %s3 = inlined_call_operand.vmem [shape: bf16[256,1024], index: 3, kind: input, shape index: {}]
  %s4 = inlined_call_operand.vmem [shape: bf16[256,1024], index: 4, kind: input, shape index: {}]
  %s5 = inlined_call_operand.vmem [shape: bf16[256,1024], index: 5, kind: input, shape index: {}]
  %s6 = inlined_call_operand.vmem [shape: f32[1,1024], index: 6, kind: input, shape index: {}]
  %s7 = inlined_call_operand.vmem [shape: bf16[256,128], index: 7, kind: input, shape index: {}]
  %s8 = inlined_call_operand.vmem [shape: f32[1,128], index: 8, kind: input, shape index: {}]
  %s9 = inlined_call_operand.vmem [shape: bf16[128,128], index: 9, kind: input, shape index: {}]
  %s10 = inlined_call_operand.vmem [shape: f32[1,128], index: 10, kind: input, shape index: {}]
  %s11 = inlined_call_operand.vmem [shape: f32[128,128], index: 11, kind: input, shape index: {}]
  %s12 = inlined_call_operand.vmem [shape: f32[1,128], index: 12, kind: input, shape index: {}]
  %s13 = inlined_call_operand.vmem [shape: f32[128,128], index: 13, kind: input, shape index: {}]
  %s14 = inlined_call_operand.vmem [shape: f32[1,128], index: 14, kind: input, shape index: {}]
  %s15 = inlined_call_operand.vmem [shape: f32[64,128], index: 15, kind: output, shape index: {}]
  %s16 = sld [smem:[#allocation0]]
  $region70: #{nnpred_forward.1} parent=0
    _
  %s18 = ssub.s32 1, %s16
  %s19 = scalar_select 0, %s18, %s16
  // Predicated region
  $region2: #{nnpred_forward.1} parent=0 // pred_check
    _
  $region3: #{nnpred_forward.1} parent=0 // pred_check_branch
    %21 = sbr.rel (0) target = $region5
  $region4: #{nnpred_forward.1} parent=0 // pred_region
    _
  $region5: #{nnpred_forward.1} parent=0 // pred_fallthru
    _
  // Predicated region
  $region6: #{nnpred_forward.1} parent=0 // pred_check
    _
  $region7: #{nnpred_forward.1} parent=0 // pred_check_branch
    %23 = sbr.rel (0) target = $region9
  $region8: #{nnpred_forward.1} parent=0 // pred_region
    _
  $region9: #{nnpred_forward.1} parent=0 // pred_fallthru
    _
  // Predicated region
  $region10: #{nnpred_forward.1} parent=0 // pred_check
    _
  $region11: #{nnpred_forward.1} parent=0 // pred_check_branch
    %25 = sbr.rel (0) target = $region13
  $region12: #{nnpred_forward.1} parent=0 // pred_region
    _
  $region13: #{nnpred_forward.1} parent=0 // pred_fallthru
    _
  // Predicated region
  $region14: #{nnpred_forward.1} parent=0 // pred_check
    _
  $region15: #{nnpred_forward.1} parent=0 // pred_check_branch
    %27 = sbr.rel (0) target = $region17
  $region16: #{nnpred_forward.1} parent=0 // pred_region
    _
  $region17: #{nnpred_forward.1} parent=0 // pred_fallthru
    _
  // Predicated region
  $region18: #{nnpred_forward.1} parent=0 // pred_check
    _
  $region19: #{nnpred_forward.1} parent=0 // pred_check_branch
    %29 = sbr.rel (0) target = $region21
  $region20: #{nnpred_forward.1} parent=0 // pred_region
    _
  $region21: #{nnpred_forward.1} parent=0 // pred_fallthru
    _
  // Predicated region
  $region22: #{nnpred_forward.1} parent=0 // pred_check
    _
  $region23: #{nnpred_forward.1} parent=0 // pred_check_branch
    %31 = sbr.rel (0) target = $region25
  $region24: #{nnpred_forward.1} parent=0 // pred_region
    _
  $region25: #{nnpred_forward.1} parent=0 // pred_fallthru
    _
  // Predicated region
  $region26: #{nnpred_forward.1} parent=0 // pred_check
    _
  $region27: #{nnpred_forward.1} parent=0 // pred_check_branch
    %33 = sbr.rel (0) target = $region29
  $region28: #{nnpred_forward.1} parent=0 // pred_region
    _
  $region29: #{nnpred_forward.1} parent=0 // pred_fallthru
    _
  // Predicated region
  $region30: #{nnpred_forward.1} parent=0 // pred_check
    _
  $region31: #{nnpred_forward.1} parent=0 // pred_check_branch
    %35 = sbr.rel (0) target = $region33
  $region32: #{nnpred_forward.1} parent=0 // pred_region
    _
  $region33: #{nnpred_forward.1} parent=0 // pred_fallthru
    _
  // Predicated region
  $region34: #{nnpred_forward.1} parent=0 // pred_check
    _
  $region35: #{nnpred_forward.1} parent=0 // pred_check_branch
    %37 = sbr.rel (0) target = $region37
  $region36: #{nnpred_forward.1} parent=0 // pred_region
    _
  $region37: #{nnpred_forward.1} parent=0 // pred_fallthru
    _
  // Predicated region
  $region38: #{nnpred_forward.1} parent=0 // pred_check
    _
  $region39: #{nnpred_forward.1} parent=0 // pred_check_branch
    %39 = sbr.rel (0) target = $region41
  $region40: #{nnpred_forward.1} parent=0 // pred_region
    _
  $region41: #{nnpred_forward.1} parent=0 // pred_fallthru
    _
  // Predicated region
  $region42: #{nnpred_forward.1} parent=0 // pred_check
    _
  $region43: #{nnpred_forward.1} parent=0 // pred_check_branch
    %41 = sbr.rel (0) target = $region45
  $region44: #{nnpred_forward.1} parent=0 // pred_region
    _
  $region45: #{nnpred_forward.1} parent=0 // pred_fallthru
    _
  // Predicated region
  $region46: #{nnpred_forward.1} parent=0 // pred_check
    _
  $region47: #{nnpred_forward.1} parent=0 // pred_check_branch
    %43 = sbr.rel (0) target = $region49
  $region48: #{nnpred_forward.1} parent=0 // pred_region
    _
  $region49: #{nnpred_forward.1} parent=0 // pred_fallthru
    _
  // Predicated region
  $region50: #{nnpred_forward.1} parent=0 // pred_check
    _
  $region51: #{nnpred_forward.1} parent=0 // pred_check_branch
    %45 = sbr.rel (0) target = $region53
  $region52: #{nnpred_forward.1} parent=0 // pred_region
    _
  $region53: #{nnpred_forward.1} parent=0 // pred_fallthru
    _
  // Predicated region
  $region54: #{nnpred_forward.1} parent=0 // pred_check
    _
  $region55: #{nnpred_forward.1} parent=0 // pred_check_branch
    %47 = sbr.rel (0) target = $region57
  $region56: #{nnpred_forward.1} parent=0 // pred_region
    _
  $region57: #{nnpred_forward.1} parent=0 // pred_fallthru
    _
  // Predicated region
  $region58: #{nnpred_forward.1} parent=0 // pred_check
    _
  $region59: #{nnpred_forward.1} parent=0 // pred_check_branch
    %49 = sbr.rel (0) target = $region61
  $region60: #{nnpred_forward.1} parent=0 // pred_region
    _
  $region61: #{nnpred_forward.1} parent=0 // pred_fallthru
    _
  %v51 = vld [vmem:[%s0] sm:$0xff]
  %v52 = vld [vmem:[%s0 + $0x8] sm:$0xff]
  %v53 = vld [vmem:[%s0 + $0x10] sm:$0xff]
  %v54 = vld [vmem:[%s0 + $0x18] sm:$0xff]
  %v55 = vld [vmem:[%s0 + $0x20] sm:$0xff]
  %v56 = vld [vmem:[%s0 + $0x28] sm:$0xff]
  %v57 = vld [vmem:[%s0 + $0x30] sm:$0xff]
  %v58 = vld [vmem:[%s0 + $0x38] sm:$0xff]
  %v59 = vpack.c.bf16 %v52, %v51
  %v60 = vpack.c.bf16 %v54, %v53
  %v61 = vpack.c.bf16 %v56, %v55
  %v62 = vpack.c.bf16 %v58, %v57
  %v63 = vld [vmem:[%s1] sm:$0xff]
  %v64 = vld [vmem:[%s1 + $0x8] sm:$0xff]
  %v65 = vld [vmem:[%s1 + $0x10] sm:$0xff]
  %v66 = vld [vmem:[%s1 + $0x18] sm:$0xff]
  %v67 = vld [vmem:[%s1 + $0x20] sm:$0xff]
  %v68 = vld [vmem:[%s1 + $0x28] sm:$0xff]
  %v69 = vld [vmem:[%s1 + $0x30] sm:$0xff]
  %v70 = vld [vmem:[%s1 + $0x38] sm:$0xff]
  %v71 = vld [vmem:[%s1 + $0x40] sm:$0xff]
  %v72 = vld [vmem:[%s1 + $0x48] sm:$0xff]
  %v73 = vld [vmem:[%s1 + $0x50] sm:$0xff]
  %v74 = vld [vmem:[%s1 + $0x58] sm:$0xff]
  %v75 = vld [vmem:[%s1 + $0x60] sm:$0xff]
  %v76 = vld [vmem:[%s1 + $0x68] sm:$0xff]
  %v77 = vld [vmem:[%s1 + $0x70] sm:$0xff]
  %v78 = vld [vmem:[%s1 + $0x78] sm:$0xff]
  %v79 = vld [vmem:[%s1 + $0x80] sm:$0xff]
  %v80 = vld [vmem:[%s1 + $0x88] sm:$0xff]
  %v81 = vld [vmem:[%s1 + $0x90] sm:$0xff]
  %v82 = vld [vmem:[%s1 + $0x98] sm:$0xff]
  %v83 = vld [vmem:[%s1 + $0xa0] sm:$0xff]
  %v84 = vld [vmem:[%s1 + $0xa8] sm:$0xff]
  %v85 = vld [vmem:[%s1 + $0xb0] sm:$0xff]
  %v86 = vld [vmem:[%s1 + $0xb8] sm:$0xff]
  %v87 = vld [vmem:[%s1 + $0xc0] sm:$0xff]
  %v88 = vld [vmem:[%s1 + $0xc8] sm:$0xff]
  %v89 = vld [vmem:[%s1 + $0xd0] sm:$0xff]
  %v90 = vld [vmem:[%s1 + $0xd8] sm:$0xff]
  %v91 = vld [vmem:[%s1 + $0xe0] sm:$0xff]
  %v92 = vld [vmem:[%s1 + $0xe8] sm:$0xff]
  %v93 = vld [vmem:[%s1 + $0xf0] sm:$0xff]
  %v94 = vld [vmem:[%s1 + $0xf8] sm:$0xff]
  %v95 = vld [vmem:[%s1 + $0x100] sm:$0xff]
  %v96 = vld [vmem:[%s1 + $0x108] sm:$0xff]
  %v97 = vld [vmem:[%s1 + $0x110] sm:$0xff]
  %v98 = vld [vmem:[%s1 + $0x118] sm:$0xff]
  %v99 = vld [vmem:[%s1 + $0x120] sm:$0xff]
  %v100 = vld [vmem:[%s1 + $0x128] sm:$0xff]
  %v101 = vld [vmem:[%s1 + $0x130] sm:$0xff]
  %v102 = vld [vmem:[%s1 + $0x138] sm:$0xff]
  %v103 = vld [vmem:[%s1 + $0x140] sm:$0xff]
  %v104 = vld [vmem:[%s1 + $0x148] sm:$0xff]
  %v105 = vld [vmem:[%s1 + $0x150] sm:$0xff]
  %v106 = vld [vmem:[%s1 + $0x158] sm:$0xff]
  %v107 = vld [vmem:[%s1 + $0x160] sm:$0xff]
  %v108 = vld [vmem:[%s1 + $0x168] sm:$0xff]
  %v109 = vld [vmem:[%s1 + $0x170] sm:$0xff]
  %v110 = vld [vmem:[%s1 + $0x178] sm:$0xff]
  %v111 = vld [vmem:[%s1 + $0x180] sm:$0xff]
  %v112 = vld [vmem:[%s1 + $0x188] sm:$0xff]
  %v113 = vld [vmem:[%s1 + $0x190] sm:$0xff]
  %v114 = vld [vmem:[%s1 + $0x198] sm:$0xff]
  %v115 = vld [vmem:[%s1 + $0x1a0] sm:$0xff]
  %v116 = vld [vmem:[%s1 + $0x1a8] sm:$0xff]
  %v117 = vld [vmem:[%s1 + $0x1b0] sm:$0xff]
  %v118 = vld [vmem:[%s1 + $0x1b8] sm:$0xff]
  %v119 = vld [vmem:[%s1 + $0x1c0] sm:$0xff]
  %v120 = vld [vmem:[%s1 + $0x1c8] sm:$0xff]
  %v121 = vld [vmem:[%s1 + $0x1d0] sm:$0xff]
  %v122 = vld [vmem:[%s1 + $0x1d8] sm:$0xff]
  %v123 = vld [vmem:[%s1 + $0x1e0] sm:$0xff]
  %v124 = vld [vmem:[%s1 + $0x1e8] sm:$0xff]
  %v125 = vld [vmem:[%s1 + $0x1f0] sm:$0xff]
  %v126 = vld [vmem:[%s1 + $0x1f8] sm:$0xff]
  %v127 = vld [vmem:[%s2] sm:$0xff]
  %v129 = vperm.slane %v127, 0
  %v130 = vperm.slane %v127, 1
  %v131 = vperm.slane %v127, 2
  %v132 = vperm.slane %v127, 3
  %v133 = vperm.slane %v127, 4
  %v134 = vperm.slane %v127, 5
  %v135 = vperm.slane %v127, 6
  %v136 = vperm.slane %v127, 7
  %v209 = vunpack.c.l.b16 %v63
  %v210 = vunpack.c.h.b16 %v63
  %v211 = vunpack.c.l.b16 %v64
  %v212 = vunpack.c.h.b16 %v64
  %v213 = vunpack.c.l.b16 %v65
  %v214 = vunpack.c.h.b16 %v65
  %v215 = vunpack.c.l.b16 %v66
  %v216 = vunpack.c.h.b16 %v66
  %v217 = vunpack.c.l.b16 %v67
  %v218 = vunpack.c.h.b16 %v67
  %v219 = vunpack.c.l.b16 %v68
  %v220 = vunpack.c.h.b16 %v68
  %v221 = vunpack.c.l.b16 %v69
  %v222 = vunpack.c.h.b16 %v69
  %v223 = vunpack.c.l.b16 %v70
  %v224 = vunpack.c.h.b16 %v70
  %v225 = vunpack.c.l.b16 %v71
  %v226 = vunpack.c.h.b16 %v71
  %v227 = vunpack.c.l.b16 %v72
  %v228 = vunpack.c.h.b16 %v72
  %v229 = vunpack.c.l.b16 %v73
  %v230 = vunpack.c.h.b16 %v73
  %v231 = vunpack.c.l.b16 %v74
  %v232 = vunpack.c.h.b16 %v74
  %v233 = vunpack.c.l.b16 %v75
  %v234 = vunpack.c.h.b16 %v75
  %v235 = vunpack.c.l.b16 %v76
  %v236 = vunpack.c.h.b16 %v76
  %v237 = vunpack.c.l.b16 %v77
  %v238 = vunpack.c.h.b16 %v77
  %v239 = vunpack.c.l.b16 %v78
  %v240 = vunpack.c.h.b16 %v78
  %v241 = vunpack.c.l.b16 %v79
  %v242 = vunpack.c.h.b16 %v79
  %v243 = vunpack.c.l.b16 %v80
  %v244 = vunpack.c.h.b16 %v80
  %v245 = vunpack.c.l.b16 %v81
  %v246 = vunpack.c.h.b16 %v81
  %v247 = vunpack.c.l.b16 %v82
  %v248 = vunpack.c.h.b16 %v82
  %v249 = vunpack.c.l.b16 %v83
  %v250 = vunpack.c.h.b16 %v83
  %v251 = vunpack.c.l.b16 %v84
  %v252 = vunpack.c.h.b16 %v84
  %v253 = vunpack.c.l.b16 %v85
  %v254 = vunpack.c.h.b16 %v85
  %v255 = vunpack.c.l.b16 %v86
  %v256 = vunpack.c.h.b16 %v86
  %v257 = vunpack.c.l.b16 %v87
  %v258 = vunpack.c.h.b16 %v87
  %v259 = vunpack.c.l.b16 %v88
  %v260 = vunpack.c.h.b16 %v88
  %v261 = vunpack.c.l.b16 %v89
  %v262 = vunpack.c.h.b16 %v89
  %v263 = vunpack.c.l.b16 %v90
  %v264 = vunpack.c.h.b16 %v90
  %v265 = vunpack.c.l.b16 %v91
  %v266 = vunpack.c.h.b16 %v91
  %v267 = vunpack.c.l.b16 %v92
  %v268 = vunpack.c.h.b16 %v92
  %v269 = vunpack.c.l.b16 %v93
  %v270 = vunpack.c.h.b16 %v93
  %v271 = vunpack.c.l.b16 %v94
  %v272 = vunpack.c.h.b16 %v94
  %v273 = vunpack.c.l.b16 %v95
  %v274 = vunpack.c.h.b16 %v95
  %v275 = vunpack.c.l.b16 %v96
  %v276 = vunpack.c.h.b16 %v96
  %v277 = vunpack.c.l.b16 %v97
  %v278 = vunpack.c.h.b16 %v97
  %v279 = vunpack.c.l.b16 %v98
  %v280 = vunpack.c.h.b16 %v98
  %v281 = vunpack.c.l.b16 %v99
  %v282 = vunpack.c.h.b16 %v99
  %v283 = vunpack.c.l.b16 %v100
  %v284 = vunpack.c.h.b16 %v100
  %v285 = vunpack.c.l.b16 %v101
  %v286 = vunpack.c.h.b16 %v101
  %v287 = vunpack.c.l.b16 %v102
  %v288 = vunpack.c.h.b16 %v102
  %v289 = vunpack.c.l.b16 %v103
  %v290 = vunpack.c.h.b16 %v103
  %v291 = vunpack.c.l.b16 %v104
  %v292 = vunpack.c.h.b16 %v104
  %v293 = vunpack.c.l.b16 %v105
  %v294 = vunpack.c.h.b16 %v105
  %v295 = vunpack.c.l.b16 %v106
  %v296 = vunpack.c.h.b16 %v106
  %v297 = vunpack.c.l.b16 %v107
  %v298 = vunpack.c.h.b16 %v107
  %v299 = vunpack.c.l.b16 %v108
  %v300 = vunpack.c.h.b16 %v108
  %v301 = vunpack.c.l.b16 %v109
  %v302 = vunpack.c.h.b16 %v109
  %v303 = vunpack.c.l.b16 %v110
  %v304 = vunpack.c.h.b16 %v110
  %v305 = vunpack.c.l.b16 %v111
  %v306 = vunpack.c.h.b16 %v111
  %v307 = vunpack.c.l.b16 %v112
  %v308 = vunpack.c.h.b16 %v112
  %v309 = vunpack.c.l.b16 %v113
  %v310 = vunpack.c.h.b16 %v113
  %v311 = vunpack.c.l.b16 %v114
  %v312 = vunpack.c.h.b16 %v114
  %v313 = vunpack.c.l.b16 %v115
  %v314 = vunpack.c.h.b16 %v115
  %v315 = vunpack.c.l.b16 %v116
  %v316 = vunpack.c.h.b16 %v116
  %v317 = vunpack.c.l.b16 %v117
  %v318 = vunpack.c.h.b16 %v117
  %v319 = vunpack.c.l.b16 %v118
  %v320 = vunpack.c.h.b16 %v118
  %v321 = vunpack.c.l.b16 %v119
  %v322 = vunpack.c.h.b16 %v119
  %v323 = vunpack.c.l.b16 %v120
  %v324 = vunpack.c.h.b16 %v120
  %v325 = vunpack.c.l.b16 %v121
  %v326 = vunpack.c.h.b16 %v121
  %v327 = vunpack.c.l.b16 %v122
  %v328 = vunpack.c.h.b16 %v122
  %v329 = vunpack.c.l.b16 %v123
  %v330 = vunpack.c.h.b16 %v123
  %v331 = vunpack.c.l.b16 %v124
  %v332 = vunpack.c.h.b16 %v124
  %v333 = vunpack.c.l.b16 %v125
  %v334 = vunpack.c.h.b16 %v125
  %v335 = vunpack.c.l.b16 %v126
  %v336 = vunpack.c.h.b16 %v126
  %v337 = vpack.c.b16 %v217, %v209
  %v338 = vpack.c.b16 %v218, %v210
  %v339 = vpack.c.b16 %v219, %v211
  %v340 = vpack.c.b16 %v220, %v212
  %v341 = vpack.c.b16 %v221, %v213
  %v342 = vpack.c.b16 %v222, %v214
  %v343 = vpack.c.b16 %v223, %v215
  %v344 = vpack.c.b16 %v224, %v216
  %v345 = vpack.c.b16 %v233, %v225
  %v346 = vpack.c.b16 %v234, %v226
  %v347 = vpack.c.b16 %v235, %v227
  %v348 = vpack.c.b16 %v236, %v228
  %v349 = vpack.c.b16 %v237, %v229
  %v350 = vpack.c.b16 %v238, %v230
  %v351 = vpack.c.b16 %v239, %v231
  %v352 = vpack.c.b16 %v240, %v232
  %v353 = vpack.c.b16 %v249, %v241
  %v354 = vpack.c.b16 %v250, %v242
  %v355 = vpack.c.b16 %v251, %v243
  %v356 = vpack.c.b16 %v252, %v244
  %v357 = vpack.c.b16 %v253, %v245
  %v358 = vpack.c.b16 %v254, %v246
  %v359 = vpack.c.b16 %v255, %v247
  %v360 = vpack.c.b16 %v256, %v248
  %v361 = vpack.c.b16 %v265, %v257
  %v362 = vpack.c.b16 %v266, %v258
  %v363 = vpack.c.b16 %v267, %v259
  %v364 = vpack.c.b16 %v268, %v260
  %v365 = vpack.c.b16 %v269, %v261
  %v366 = vpack.c.b16 %v270, %v262
  %v367 = vpack.c.b16 %v271, %v263
  %v368 = vpack.c.b16 %v272, %v264
  %v369 = vpack.c.b16 %v281, %v273
  %v370 = vpack.c.b16 %v282, %v274
  %v371 = vpack.c.b16 %v283, %v275
  %v372 = vpack.c.b16 %v284, %v276
  %v373 = vpack.c.b16 %v285, %v277
  %v374 = vpack.c.b16 %v286, %v278
  %v375 = vpack.c.b16 %v287, %v279
  %v376 = vpack.c.b16 %v288, %v280
  %v377 = vpack.c.b16 %v297, %v289
  %v378 = vpack.c.b16 %v298, %v290
  %v379 = vpack.c.b16 %v299, %v291
  %v380 = vpack.c.b16 %v300, %v292
  %v381 = vpack.c.b16 %v301, %v293
  %v382 = vpack.c.b16 %v302, %v294
  %v383 = vpack.c.b16 %v303, %v295
  %v384 = vpack.c.b16 %v304, %v296
  %v385 = vpack.c.b16 %v313, %v305
  %v386 = vpack.c.b16 %v314, %v306
  %v387 = vpack.c.b16 %v315, %v307
  %v388 = vpack.c.b16 %v316, %v308
  %v389 = vpack.c.b16 %v317, %v309
  %v390 = vpack.c.b16 %v318, %v310
  %v391 = vpack.c.b16 %v319, %v311
  %v392 = vpack.c.b16 %v320, %v312
  %v393 = vpack.c.b16 %v329, %v321
  %v394 = vpack.c.b16 %v330, %v322
  %v395 = vpack.c.b16 %v331, %v323
  %v396 = vpack.c.b16 %v332, %v324
  %v397 = vpack.c.b16 %v333, %v325
  %v398 = vpack.c.b16 %v334, %v326
  %v399 = vpack.c.b16 %v335, %v327
  %v400 = vpack.c.b16 %v336, %v328
  %465 = vmatpush.bf16.msra.mxu0 %v393
  %466 = vmatpush.bf16.msra.mxu0 %v385
  %467 = vmatpush.bf16.msra.mxu0 %v377
  %468 = vmatpush.bf16.msra.mxu0 %v369
  %469 = vmatpush.bf16.msra.mxu0 %v361
  %470 = vmatpush.bf16.msra.mxu0 %v353
  %471 = vmatpush.bf16.msra.mxu0 %v345
  %472 = vmatpush.bf16.msra.mxu0 %v337
  %473 = vmatmul.bf16.gmra.mxu0 %v59
  %v474 = vpop.f32.mrf.mxu0
  %v475 = vadd.f32 %v129, %v474
  %v476 = vpop.f32.mrf.mxu0
  %v477 = vadd.f32 %v129, %v476
  %478 = vmatmul.bf16.gmra.mxu0 %v60
  %v479 = vpop.f32.mrf.mxu0
  %v480 = vadd.f32 %v129, %v479
  %v481 = vpop.f32.mrf.mxu0
  %v482 = vadd.f32 %v129, %v481
  %483 = vmatmul.bf16.gmra.mxu0 %v61
  %v484 = vpop.f32.mrf.mxu0
  %v485 = vadd.f32 %v129, %v484
  %v486 = vpop.f32.mrf.mxu0
  %v487 = vadd.f32 %v129, %v486
  %488 = vmatmul.bf16.gmra.mxu0 %v62
  %v489 = vpop.f32.mrf.mxu0
  %v490 = vadd.f32 %v129, %v489
  %v491 = vpop.f32.mrf.mxu0
  %v492 = vadd.f32 %v129, %v491
  %493 = vdwg.mxu0
  %494 = vmatpush.bf16.msra.mxu0 %v394
  %495 = vmatpush.bf16.msra.mxu0 %v386
  %496 = vmatpush.bf16.msra.mxu0 %v378
  %497 = vmatpush.bf16.msra.mxu0 %v370
  %498 = vmatpush.bf16.msra.mxu0 %v362
  %499 = vmatpush.bf16.msra.mxu0 %v354
  %500 = vmatpush.bf16.msra.mxu0 %v346
  %501 = vmatpush.bf16.msra.mxu0 %v338
  %502 = vmatmul.bf16.gmra.mxu0 %v59
  %v503 = vpop.f32.mrf.mxu0
  %v504 = vadd.f32 %v130, %v503
  %v505 = vpop.f32.mrf.mxu0
  %v506 = vadd.f32 %v130, %v505
  %507 = vmatmul.bf16.gmra.mxu0 %v60
  %v508 = vpop.f32.mrf.mxu0
  %v509 = vadd.f32 %v130, %v508
  %v510 = vpop.f32.mrf.mxu0
  %v511 = vadd.f32 %v130, %v510
  %512 = vmatmul.bf16.gmra.mxu0 %v61
  %v513 = vpop.f32.mrf.mxu0
  %v514 = vadd.f32 %v130, %v513
  %v515 = vpop.f32.mrf.mxu0
  %v516 = vadd.f32 %v130, %v515
  %517 = vmatmul.bf16.gmra.mxu0 %v62
  %v518 = vpop.f32.mrf.mxu0
  %v519 = vadd.f32 %v130, %v518
  %v520 = vpop.f32.mrf.mxu0
  %v521 = vadd.f32 %v130, %v520
  %522 = vdwg.mxu0
  %523 = vmatpush.bf16.msra.mxu0 %v395
  %524 = vmatpush.bf16.msra.mxu0 %v387
  %525 = vmatpush.bf16.msra.mxu0 %v379
  %526 = vmatpush.bf16.msra.mxu0 %v371
  %527 = vmatpush.bf16.msra.mxu0 %v363
  %528 = vmatpush.bf16.msra.mxu0 %v355
  %529 = vmatpush.bf16.msra.mxu0 %v347
  %530 = vmatpush.bf16.msra.mxu0 %v339
  %531 = vmatmul.bf16.gmra.mxu0 %v59
  %v532 = vpop.f32.mrf.mxu0
  %v533 = vadd.f32 %v131, %v532
  %v534 = vpop.f32.mrf.mxu0
  %v535 = vadd.f32 %v131, %v534
  %536 = vmatmul.bf16.gmra.mxu0 %v60
  %v537 = vpop.f32.mrf.mxu0
  %v538 = vadd.f32 %v131, %v537
  %v539 = vpop.f32.mrf.mxu0
  %v540 = vadd.f32 %v131, %v539
  %541 = vmatmul.bf16.gmra.mxu0 %v61
  %v542 = vpop.f32.mrf.mxu0
  %v543 = vadd.f32 %v131, %v542
  %v544 = vpop.f32.mrf.mxu0
  %v545 = vadd.f32 %v131, %v544
  %546 = vmatmul.bf16.gmra.mxu0 %v62
  %v547 = vpop.f32.mrf.mxu0
  %v548 = vadd.f32 %v131, %v547
  %v549 = vpop.f32.mrf.mxu0
  %v550 = vadd.f32 %v131, %v549
  %551 = vdwg.mxu0
  %552 = vmatpush.bf16.msra.mxu0 %v396
  %553 = vmatpush.bf16.msra.mxu0 %v388
  %554 = vmatpush.bf16.msra.mxu0 %v380
  %555 = vmatpush.bf16.msra.mxu0 %v372
  %556 = vmatpush.bf16.msra.mxu0 %v364
  %557 = vmatpush.bf16.msra.mxu0 %v356
  %558 = vmatpush.bf16.msra.mxu0 %v348
  %559 = vmatpush.bf16.msra.mxu0 %v340
  %560 = vmatmul.bf16.gmra.mxu0 %v59
  %v561 = vpop.f32.mrf.mxu0
  %v562 = vadd.f32 %v132, %v561
  %v563 = vpop.f32.mrf.mxu0
  %v564 = vadd.f32 %v132, %v563
  %565 = vmatmul.bf16.gmra.mxu0 %v60
  %v566 = vpop.f32.mrf.mxu0
  %v567 = vadd.f32 %v132, %v566
  %v568 = vpop.f32.mrf.mxu0
  %v569 = vadd.f32 %v132, %v568
  %570 = vmatmul.bf16.gmra.mxu0 %v61
  %v571 = vpop.f32.mrf.mxu0
  %v572 = vadd.f32 %v132, %v571
  %v573 = vpop.f32.mrf.mxu0
  %v574 = vadd.f32 %v132, %v573
  %575 = vmatmul.bf16.gmra.mxu0 %v62
  %v576 = vpop.f32.mrf.mxu0
  %v577 = vadd.f32 %v132, %v576
  %v578 = vpop.f32.mrf.mxu0
  %v579 = vadd.f32 %v132, %v578
  %580 = vdwg.mxu0
  %581 = vmatpush.bf16.msra.mxu0 %v397
  %582 = vmatpush.bf16.msra.mxu0 %v389
  %583 = vmatpush.bf16.msra.mxu0 %v381
  %584 = vmatpush.bf16.msra.mxu0 %v373
  %585 = vmatpush.bf16.msra.mxu0 %v365
  %586 = vmatpush.bf16.msra.mxu0 %v357
  %587 = vmatpush.bf16.msra.mxu0 %v349
  %588 = vmatpush.bf16.msra.mxu0 %v341
  %589 = vmatmul.bf16.gmra.mxu0 %v59
  %v590 = vpop.f32.mrf.mxu0
  %v591 = vadd.f32 %v133, %v590
  %v592 = vpop.f32.mrf.mxu0
  %v593 = vadd.f32 %v133, %v592
  %594 = vmatmul.bf16.gmra.mxu0 %v60
  %v595 = vpop.f32.mrf.mxu0
  %v596 = vadd.f32 %v133, %v595
  %v597 = vpop.f32.mrf.mxu0
  %v598 = vadd.f32 %v133, %v597
  %599 = vmatmul.bf16.gmra.mxu0 %v61
  %v600 = vpop.f32.mrf.mxu0
  %v601 = vadd.f32 %v133, %v600
  %v602 = vpop.f32.mrf.mxu0
  %v603 = vadd.f32 %v133, %v602
  %604 = vmatmul.bf16.gmra.mxu0 %v62
  %v605 = vpop.f32.mrf.mxu0
  %v606 = vadd.f32 %v133, %v605
  %v607 = vpop.f32.mrf.mxu0
  %v608 = vadd.f32 %v133, %v607
  %609 = vdwg.mxu0
  %610 = vmatpush.bf16.msra.mxu0 %v398
  %611 = vmatpush.bf16.msra.mxu0 %v390
  %612 = vmatpush.bf16.msra.mxu0 %v382
  %613 = vmatpush.bf16.msra.mxu0 %v374
  %614 = vmatpush.bf16.msra.mxu0 %v366
  %615 = vmatpush.bf16.msra.mxu0 %v358
  %616 = vmatpush.bf16.msra.mxu0 %v350
  %617 = vmatpush.bf16.msra.mxu0 %v342
  %618 = vmatmul.bf16.gmra.mxu0 %v59
  %v619 = vpop.f32.mrf.mxu0
  %v620 = vadd.f32 %v134, %v619
  %v621 = vpop.f32.mrf.mxu0
  %v622 = vadd.f32 %v134, %v621
  %623 = vmatmul.bf16.gmra.mxu0 %v60
  %v624 = vpop.f32.mrf.mxu0
  %v625 = vadd.f32 %v134, %v624
  %v626 = vpop.f32.mrf.mxu0
  %v627 = vadd.f32 %v134, %v626
  %628 = vmatmul.bf16.gmra.mxu0 %v61
  %v629 = vpop.f32.mrf.mxu0
  %v630 = vadd.f32 %v134, %v629
  %v631 = vpop.f32.mrf.mxu0
  %v632 = vadd.f32 %v134, %v631
  %633 = vmatmul.bf16.gmra.mxu0 %v62
  %v634 = vpop.f32.mrf.mxu0
  %v635 = vadd.f32 %v134, %v634
  %v636 = vpop.f32.mrf.mxu0
  %v637 = vadd.f32 %v134, %v636
  %638 = vdwg.mxu0
  %639 = vmatpush.bf16.msra.mxu0 %v399
  %640 = vmatpush.bf16.msra.mxu0 %v391
  %641 = vmatpush.bf16.msra.mxu0 %v383
  %642 = vmatpush.bf16.msra.mxu0 %v375
  %643 = vmatpush.bf16.msra.mxu0 %v367
  %644 = vmatpush.bf16.msra.mxu0 %v359
  %645 = vmatpush.bf16.msra.mxu0 %v351
  %646 = vmatpush.bf16.msra.mxu0 %v343
  %647 = vmatmul.bf16.gmra.mxu0 %v59
  %v648 = vpop.f32.mrf.mxu0
  %v649 = vadd.f32 %v135, %v648
  %v650 = vpop.f32.mrf.mxu0
  %v651 = vadd.f32 %v135, %v650
  %652 = vmatmul.bf16.gmra.mxu0 %v60
  %v653 = vpop.f32.mrf.mxu0
  %v654 = vadd.f32 %v135, %v653
  %v655 = vpop.f32.mrf.mxu0
  %v656 = vadd.f32 %v135, %v655
  %657 = vmatmul.bf16.gmra.mxu0 %v61
  %v658 = vpop.f32.mrf.mxu0
  %v659 = vadd.f32 %v135, %v658
  %v660 = vpop.f32.mrf.mxu0
  %v661 = vadd.f32 %v135, %v660
  %662 = vmatmul.bf16.gmra.mxu0 %v62
  %v663 = vpop.f32.mrf.mxu0
  %v664 = vadd.f32 %v135, %v663
  %v665 = vpop.f32.mrf.mxu0
  %v666 = vadd.f32 %v135, %v665
  %667 = vdwg.mxu0
  %668 = vmatpush.bf16.msra.mxu0 %v400
  %669 = vmatpush.bf16.msra.mxu0 %v392
  %670 = vmatpush.bf16.msra.mxu0 %v384
  %671 = vmatpush.bf16.msra.mxu0 %v376
  %672 = vmatpush.bf16.msra.mxu0 %v368
  %673 = vmatpush.bf16.msra.mxu0 %v360
  %674 = vmatpush.bf16.msra.mxu0 %v352
  %675 = vmatpush.bf16.msra.mxu0 %v344
  %676 = vmatmul.bf16.gmra.mxu0 %v59
  %v677 = vpop.f32.mrf.mxu0
  %v678 = vadd.f32 %v136, %v677
  %v679 = vpop.f32.mrf.mxu0
  %v680 = vadd.f32 %v136, %v679
  %681 = vmatmul.bf16.gmra.mxu0 %v60
  %v682 = vpop.f32.mrf.mxu0
  %v683 = vadd.f32 %v136, %v682
  %v684 = vpop.f32.mrf.mxu0
  %v685 = vadd.f32 %v136, %v684
  %686 = vmatmul.bf16.gmra.mxu0 %v61
  %v687 = vpop.f32.mrf.mxu0
  %v688 = vadd.f32 %v136, %v687
  %v689 = vpop.f32.mrf.mxu0
  %v690 = vadd.f32 %v136, %v689
  %691 = vmatmul.bf16.gmra.mxu0 %v62
  %v692 = vpop.f32.mrf.mxu0
  %v693 = vadd.f32 %v136, %v692
  %v694 = vpop.f32.mrf.mxu0
  %v695 = vadd.f32 %v136, %v694
  %696 = vdwg.mxu0
  %697 = vst [vmem:[#allocation2] sm:$0xff] %v475
  %698 = vst [vmem:[#allocation2 + $0x8] sm:$0xff] %v504
  %699 = vst [vmem:[#allocation2 + $0x10] sm:$0xff] %v533
  %700 = vst [vmem:[#allocation2 + $0x18] sm:$0xff] %v562
  %701 = vst [vmem:[#allocation2 + $0x20] sm:$0xff] %v591
  %702 = vst [vmem:[#allocation2 + $0x28] sm:$0xff] %v620
  %703 = vst [vmem:[#allocation2 + $0x30] sm:$0xff] %v649
  %704 = vst [vmem:[#allocation2 + $0x38] sm:$0xff] %v678
  %705 = vst [vmem:[#allocation2 + $0x40] sm:$0xff] %v477
  %706 = vst [vmem:[#allocation2 + $0x48] sm:$0xff] %v506
  %707 = vst [vmem:[#allocation2 + $0x50] sm:$0xff] %v535
  %708 = vst [vmem:[#allocation2 + $0x58] sm:$0xff] %v564
  %709 = vst [vmem:[#allocation2 + $0x60] sm:$0xff] %v593
  %710 = vst [vmem:[#allocation2 + $0x68] sm:$0xff] %v622
  %711 = vst [vmem:[#allocation2 + $0x70] sm:$0xff] %v651
  %712 = vst [vmem:[#allocation2 + $0x78] sm:$0xff] %v680
  %713 = vst [vmem:[#allocation2 + $0x80] sm:$0xff] %v480
  %714 = vst [vmem:[#allocation2 + $0x88] sm:$0xff] %v509
  %715 = vst [vmem:[#allocation2 + $0x90] sm:$0xff] %v538
  %716 = vst [vmem:[#allocation2 + $0x98] sm:$0xff] %v567
  %717 = vst [vmem:[#allocation2 + $0xa0] sm:$0xff] %v596
  %718 = vst [vmem:[#allocation2 + $0xa8] sm:$0xff] %v625
  %719 = vst [vmem:[#allocation2 + $0xb0] sm:$0xff] %v654
  %720 = vst [vmem:[#allocation2 + $0xb8] sm:$0xff] %v683
  %721 = vst [vmem:[#allocation2 + $0xc0] sm:$0xff] %v482
  %722 = vst [vmem:[#allocation2 + $0xc8] sm:$0xff] %v511
  %723 = vst [vmem:[#allocation2 + $0xd0] sm:$0xff] %v540
  %724 = vst [vmem:[#allocation2 + $0xd8] sm:$0xff] %v569
  %725 = vst [vmem:[#allocation2 + $0xe0] sm:$0xff] %v598
  %726 = vst [vmem:[#allocation2 + $0xe8] sm:$0xff] %v627
  %727 = vst [vmem:[#allocation2 + $0xf0] sm:$0xff] %v656
  %728 = vst [vmem:[#allocation2 + $0xf8] sm:$0xff] %v685
  %729 = vst [vmem:[#allocation2 + $0x100] sm:$0xff] %v485
  %730 = vst [vmem:[#allocation2 + $0x108] sm:$0xff] %v514
  %731 = vst [vmem:[#allocation2 + $0x110] sm:$0xff] %v543
  %732 = vst [vmem:[#allocation2 + $0x118] sm:$0xff] %v572
  %733 = vst [vmem:[#allocation2 + $0x120] sm:$0xff] %v601
  %734 = vst [vmem:[#allocation2 + $0x128] sm:$0xff] %v630
  %735 = vst [vmem:[#allocation2 + $0x130] sm:$0xff] %v659
  %736 = vst [vmem:[#allocation2 + $0x138] sm:$0xff] %v688
  %737 = vst [vmem:[#allocation2 + $0x140] sm:$0xff] %v487
  %738 = vst [vmem:[#allocation2 + $0x148] sm:$0xff] %v516
  %739 = vst [vmem:[#allocation2 + $0x150] sm:$0xff] %v545
  %740 = vst [vmem:[#allocation2 + $0x158] sm:$0xff] %v574
  %741 = vst [vmem:[#allocation2 + $0x160] sm:$0xff] %v603
  %742 = vst [vmem:[#allocation2 + $0x168] sm:$0xff] %v632
  %743 = vst [vmem:[#allocation2 + $0x170] sm:$0xff] %v661
  %744 = vst [vmem:[#allocation2 + $0x178] sm:$0xff] %v690
  %745 = vst [vmem:[#allocation2 + $0x180] sm:$0xff] %v490
  %746 = vst [vmem:[#allocation2 + $0x188] sm:$0xff] %v519
  %747 = vst [vmem:[#allocation2 + $0x190] sm:$0xff] %v548
  %748 = vst [vmem:[#allocation2 + $0x198] sm:$0xff] %v577
  %749 = vst [vmem:[#allocation2 + $0x1a0] sm:$0xff] %v606
  %750 = vst [vmem:[#allocation2 + $0x1a8] sm:$0xff] %v635
  %751 = vst [vmem:[#allocation2 + $0x1b0] sm:$0xff] %v664
  %752 = vst [vmem:[#allocation2 + $0x1b8] sm:$0xff] %v693
  %753 = vst [vmem:[#allocation2 + $0x1c0] sm:$0xff] %v492
  %754 = vst [vmem:[#allocation2 + $0x1c8] sm:$0xff] %v521
  %755 = vst [vmem:[#allocation2 + $0x1d0] sm:$0xff] %v550
  %756 = vst [vmem:[#allocation2 + $0x1d8] sm:$0xff] %v579
  %757 = vst [vmem:[#allocation2 + $0x1e0] sm:$0xff] %v608
  %758 = vst [vmem:[#allocation2 + $0x1e8] sm:$0xff] %v637
  %759 = vst [vmem:[#allocation2 + $0x1f0] sm:$0xff] %v666
  %760 = vst [vmem:[#allocation2 + $0x1f8] sm:$0xff] %v695
  %v761 = vld [vmem:[%s3] sm:$0xff]
  %v762 = vld [vmem:[%s3 + $0x8] sm:$0xff]
  %v763 = vld [vmem:[%s3 + $0x10] sm:$0xff]
  %v764 = vld [vmem:[%s3 + $0x18] sm:$0xff]
  %v765 = vld [vmem:[%s3 + $0x20] sm:$0xff]
  %v766 = vld [vmem:[%s3 + $0x28] sm:$0xff]
  %v767 = vld [vmem:[%s3 + $0x30] sm:$0xff]
  %v768 = vld [vmem:[%s3 + $0x38] sm:$0xff]
  %v769 = vld [vmem:[%s3 + $0x40] sm:$0xff]
  %v770 = vld [vmem:[%s3 + $0x48] sm:$0xff]
  %v771 = vld [vmem:[%s3 + $0x50] sm:$0xff]
  %v772 = vld [vmem:[%s3 + $0x58] sm:$0xff]
  %v773 = vld [vmem:[%s3 + $0x60] sm:$0xff]
  %v774 = vld [vmem:[%s3 + $0x68] sm:$0xff]
  %v775 = vld [vmem:[%s3 + $0x70] sm:$0xff]
  %v776 = vld [vmem:[%s3 + $0x78] sm:$0xff]
  %v777 = vld [vmem:[%s3 + $0x80] sm:$0xff]
  %v778 = vld [vmem:[%s3 + $0x88] sm:$0xff]
  %v779 = vld [vmem:[%s3 + $0x90] sm:$0xff]
  %v780 = vld [vmem:[%s3 + $0x98] sm:$0xff]
  %v781 = vld [vmem:[%s3 + $0xa0] sm:$0xff]
  %v782 = vld [vmem:[%s3 + $0xa8] sm:$0xff]
  %v783 = vld [vmem:[%s3 + $0xb0] sm:$0xff]
  %v784 = vld [vmem:[%s3 + $0xb8] sm:$0xff]
  %v785 = vld [vmem:[%s3 + $0xc0] sm:$0xff]
  %v786 = vld [vmem:[%s3 + $0xc8] sm:$0xff]
  %v787 = vld [vmem:[%s3 + $0xd0] sm:$0xff]
  %v788 = vld [vmem:[%s3 + $0xd8] sm:$0xff]
  %v789 = vld [vmem:[%s3 + $0xe0] sm:$0xff]
  %v790 = vld [vmem:[%s3 + $0xe8] sm:$0xff]
  %v791 = vld [vmem:[%s3 + $0xf0] sm:$0xff]
  %v792 = vld [vmem:[%s3 + $0xf8] sm:$0xff]
  %v793 = vld [vmem:[%s3 + $0x100] sm:$0xff]
  %v794 = vld [vmem:[%s3 + $0x108] sm:$0xff]
  %v795 = vld [vmem:[%s3 + $0x110] sm:$0xff]
  %v796 = vld [vmem:[%s3 + $0x118] sm:$0xff]
  %v797 = vld [vmem:[%s3 + $0x120] sm:$0xff]
  %v798 = vld [vmem:[%s3 + $0x128] sm:$0xff]
  %v799 = vld [vmem:[%s3 + $0x130] sm:$0xff]
  %v800 = vld [vmem:[%s3 + $0x138] sm:$0xff]
  %v801 = vld [vmem:[%s3 + $0x140] sm:$0xff]
  %v802 = vld [vmem:[%s3 + $0x148] sm:$0xff]
  %v803 = vld [vmem:[%s3 + $0x150] sm:$0xff]
  %v804 = vld [vmem:[%s3 + $0x158] sm:$0xff]
  %v805 = vld [vmem:[%s3 + $0x160] sm:$0xff]
  %v806 = vld [vmem:[%s3 + $0x168] sm:$0xff]
  %v807 = vld [vmem:[%s3 + $0x170] sm:$0xff]
  %v808 = vld [vmem:[%s3 + $0x178] sm:$0xff]
  %v809 = vld [vmem:[%s3 + $0x180] sm:$0xff]
  %v810 = vld [vmem:[%s3 + $0x188] sm:$0xff]
  %v811 = vld [vmem:[%s3 + $0x190] sm:$0xff]
  %v812 = vld [vmem:[%s3 + $0x198] sm:$0xff]
  %v813 = vld [vmem:[%s3 + $0x1a0] sm:$0xff]
  %v814 = vld [vmem:[%s3 + $0x1a8] sm:$0xff]
  %v815 = vld [vmem:[%s3 + $0x1b0] sm:$0xff]
  %v816 = vld [vmem:[%s3 + $0x1b8] sm:$0xff]
  %v817 = vld [vmem:[%s3 + $0x1c0] sm:$0xff]
  %v818 = vld [vmem:[%s3 + $0x1c8] sm:$0xff]
  %v819 = vld [vmem:[%s3 + $0x1d0] sm:$0xff]
  %v820 = vld [vmem:[%s3 + $0x1d8] sm:$0xff]
  %v821 = vld [vmem:[%s3 + $0x1e0] sm:$0xff]
  %v822 = vld [vmem:[%s3 + $0x1e8] sm:$0xff]
  %v823 = vld [vmem:[%s3 + $0x1f0] sm:$0xff]
  %v824 = vld [vmem:[%s3 + $0x1f8] sm:$0xff]
  %v825 = vld [vmem:[%s3 + $0x200] sm:$0xff]
  %v826 = vld [vmem:[%s3 + $0x208] sm:$0xff]
  %v827 = vld [vmem:[%s3 + $0x210] sm:$0xff]
  %v828 = vld [vmem:[%s3 + $0x218] sm:$0xff]
  %v829 = vld [vmem:[%s3 + $0x220] sm:$0xff]
  %v830 = vld [vmem:[%s3 + $0x228] sm:$0xff]
  %v831 = vld [vmem:[%s3 + $0x230] sm:$0xff]
  %v832 = vld [vmem:[%s3 + $0x238] sm:$0xff]
  %v833 = vld [vmem:[%s3 + $0x240] sm:$0xff]
  %v834 = vld [vmem:[%s3 + $0x248] sm:$0xff]
  %v835 = vld [vmem:[%s3 + $0x250] sm:$0xff]
  %v836 = vld [vmem:[%s3 + $0x258] sm:$0xff]
  %v837 = vld [vmem:[%s3 + $0x260] sm:$0xff]
  %v838 = vld [vmem:[%s3 + $0x268] sm:$0xff]
  %v839 = vld [vmem:[%s3 + $0x270] sm:$0xff]
  %v840 = vld [vmem:[%s3 + $0x278] sm:$0xff]
  %v841 = vld [vmem:[%s3 + $0x280] sm:$0xff]
  %v842 = vld [vmem:[%s3 + $0x288] sm:$0xff]
  %v843 = vld [vmem:[%s3 + $0x290] sm:$0xff]
  %v844 = vld [vmem:[%s3 + $0x298] sm:$0xff]
  %v845 = vld [vmem:[%s3 + $0x2a0] sm:$0xff]
  %v846 = vld [vmem:[%s3 + $0x2a8] sm:$0xff]
  %v847 = vld [vmem:[%s3 + $0x2b0] sm:$0xff]
  %v848 = vld [vmem:[%s3 + $0x2b8] sm:$0xff]
  %v849 = vld [vmem:[%s3 + $0x2c0] sm:$0xff]
  %v850 = vld [vmem:[%s3 + $0x2c8] sm:$0xff]
  %v851 = vld [vmem:[%s3 + $0x2d0] sm:$0xff]
  %v852 = vld [vmem:[%s3 + $0x2d8] sm:$0xff]
  %v853 = vld [vmem:[%s3 + $0x2e0] sm:$0xff]
  %v854 = vld [vmem:[%s3 + $0x2e8] sm:$0xff]
  %v855 = vld [vmem:[%s3 + $0x2f0] sm:$0xff]
  %v856 = vld [vmem:[%s3 + $0x2f8] sm:$0xff]
  %v857 = vld [vmem:[%s3 + $0x300] sm:$0xff]
  %v858 = vld [vmem:[%s3 + $0x308] sm:$0xff]
  %v859 = vld [vmem:[%s3 + $0x310] sm:$0xff]
  %v860 = vld [vmem:[%s3 + $0x318] sm:$0xff]
  %v861 = vld [vmem:[%s3 + $0x320] sm:$0xff]
  %v862 = vld [vmem:[%s3 + $0x328] sm:$0xff]
  %v863 = vld [vmem:[%s3 + $0x330] sm:$0xff]
  %v864 = vld [vmem:[%s3 + $0x338] sm:$0xff]
  %v865 = vld [vmem:[%s3 + $0x340] sm:$0xff]
  %v866 = vld [vmem:[%s3 + $0x348] sm:$0xff]
  %v867 = vld [vmem:[%s3 + $0x350] sm:$0xff]
  %v868 = vld [vmem:[%s3 + $0x358] sm:$0xff]
  %v869 = vld [vmem:[%s3 + $0x360] sm:$0xff]
  %v870 = vld [vmem:[%s3 + $0x368] sm:$0xff]
  %v871 = vld [vmem:[%s3 + $0x370] sm:$0xff]
  %v872 = vld [vmem:[%s3 + $0x378] sm:$0xff]
  %v873 = vld [vmem:[%s3 + $0x380] sm:$0xff]
  %v874 = vld [vmem:[%s3 + $0x388] sm:$0xff]
  %v875 = vld [vmem:[%s3 + $0x390] sm:$0xff]
  %v876 = vld [vmem:[%s3 + $0x398] sm:$0xff]
  %v877 = vld [vmem:[%s3 + $0x3a0] sm:$0xff]
  %v878 = vld [vmem:[%s3 + $0x3a8] sm:$0xff]
  %v879 = vld [vmem:[%s3 + $0x3b0] sm:$0xff]
  %v880 = vld [vmem:[%s3 + $0x3b8] sm:$0xff]
  %v881 = vld [vmem:[%s3 + $0x3c0] sm:$0xff]
  %v882 = vld [vmem:[%s3 + $0x3c8] sm:$0xff]
  %v883 = vld [vmem:[%s3 + $0x3d0] sm:$0xff]
  %v884 = vld [vmem:[%s3 + $0x3d8] sm:$0xff]
  %v885 = vld [vmem:[%s3 + $0x3e0] sm:$0xff]
  %v886 = vld [vmem:[%s3 + $0x3e8] sm:$0xff]
  %v887 = vld [vmem:[%s3 + $0x3f0] sm:$0xff]
  %v888 = vld [vmem:[%s3 + $0x3f8] sm:$0xff]
  %v889 = vld [vmem:[%s4] sm:$0xff]
  %v890 = vld [vmem:[%s4 + $0x8] sm:$0xff]
  %v891 = vld [vmem:[%s4 + $0x10] sm:$0xff]
  %v892 = vld [vmem:[%s4 + $0x18] sm:$0xff]
  %v893 = vld [vmem:[%s4 + $0x20] sm:$0xff]
  %v894 = vld [vmem:[%s4 + $0x28] sm:$0xff]
  %v895 = vld [vmem:[%s4 + $0x30] sm:$0xff]
  %v896 = vld [vmem:[%s4 + $0x38] sm:$0xff]
  %v897 = vld [vmem:[%s4 + $0x40] sm:$0xff]
  %v898 = vld [vmem:[%s4 + $0x48] sm:$0xff]
  %v899 = vld [vmem:[%s4 + $0x50] sm:$0xff]
  %v900 = vld [vmem:[%s4 + $0x58] sm:$0xff]
  %v901 = vld [vmem:[%s4 + $0x60] sm:$0xff]
  %v902 = vld [vmem:[%s4 + $0x68] sm:$0xff]
  %v903 = vld [vmem:[%s4 + $0x70] sm:$0xff]
  %v904 = vld [vmem:[%s4 + $0x78] sm:$0xff]
  %v905 = vld [vmem:[%s4 + $0x80] sm:$0xff]
  %v906 = vld [vmem:[%s4 + $0x88] sm:$0xff]
  %v907 = vld [vmem:[%s4 + $0x90] sm:$0xff]
  %v908 = vld [vmem:[%s4 + $0x98] sm:$0xff]
  %v909 = vld [vmem:[%s4 + $0xa0] sm:$0xff]
  %v910 = vld [vmem:[%s4 + $0xa8] sm:$0xff]
  %v911 = vld [vmem:[%s4 + $0xb0] sm:$0xff]
  %v912 = vld [vmem:[%s4 + $0xb8] sm:$0xff]
  %v913 = vld [vmem:[%s4 + $0xc0] sm:$0xff]
  %v914 = vld [vmem:[%s4 + $0xc8] sm:$0xff]
  %v915 = vld [vmem:[%s4 + $0xd0] sm:$0xff]
  %v916 = vld [vmem:[%s4 + $0xd8] sm:$0xff]
  %v917 = vld [vmem:[%s4 + $0xe0] sm:$0xff]
  %v918 = vld [vmem:[%s4 + $0xe8] sm:$0xff]
  %v919 = vld [vmem:[%s4 + $0xf0] sm:$0xff]
  %v920 = vld [vmem:[%s4 + $0xf8] sm:$0xff]
  %v921 = vld [vmem:[%s4 + $0x100] sm:$0xff]
  %v922 = vld [vmem:[%s4 + $0x108] sm:$0xff]
  %v923 = vld [vmem:[%s4 + $0x110] sm:$0xff]
  %v924 = vld [vmem:[%s4 + $0x118] sm:$0xff]
  %v925 = vld [vmem:[%s4 + $0x120] sm:$0xff]
  %v926 = vld [vmem:[%s4 + $0x128] sm:$0xff]
  %v927 = vld [vmem:[%s4 + $0x130] sm:$0xff]
  %v928 = vld [vmem:[%s4 + $0x138] sm:$0xff]
  %v929 = vld [vmem:[%s4 + $0x140] sm:$0xff]
  %v930 = vld [vmem:[%s4 + $0x148] sm:$0xff]
  %v931 = vld [vmem:[%s4 + $0x150] sm:$0xff]
  %v932 = vld [vmem:[%s4 + $0x158] sm:$0xff]
  %v933 = vld [vmem:[%s4 + $0x160] sm:$0xff]
  %v934 = vld [vmem:[%s4 + $0x168] sm:$0xff]
  %v935 = vld [vmem:[%s4 + $0x170] sm:$0xff]
  %v936 = vld [vmem:[%s4 + $0x178] sm:$0xff]
  %v937 = vld [vmem:[%s4 + $0x180] sm:$0xff]
  %v938 = vld [vmem:[%s4 + $0x188] sm:$0xff]
  %v939 = vld [vmem:[%s4 + $0x190] sm:$0xff]
  %v940 = vld [vmem:[%s4 + $0x198] sm:$0xff]
  %v941 = vld [vmem:[%s4 + $0x1a0] sm:$0xff]
  %v942 = vld [vmem:[%s4 + $0x1a8] sm:$0xff]
  %v943 = vld [vmem:[%s4 + $0x1b0] sm:$0xff]
  %v944 = vld [vmem:[%s4 + $0x1b8] sm:$0xff]
  %v945 = vld [vmem:[%s4 + $0x1c0] sm:$0xff]
  %v946 = vld [vmem:[%s4 + $0x1c8] sm:$0xff]
  %v947 = vld [vmem:[%s4 + $0x1d0] sm:$0xff]
  %v948 = vld [vmem:[%s4 + $0x1d8] sm:$0xff]
  %v949 = vld [vmem:[%s4 + $0x1e0] sm:$0xff]
  %v950 = vld [vmem:[%s4 + $0x1e8] sm:$0xff]
  %v951 = vld [vmem:[%s4 + $0x1f0] sm:$0xff]
  %v952 = vld [vmem:[%s4 + $0x1f8] sm:$0xff]
  %v953 = vld [vmem:[%s4 + $0x200] sm:$0xff]
  %v954 = vld [vmem:[%s4 + $0x208] sm:$0xff]
  %v955 = vld [vmem:[%s4 + $0x210] sm:$0xff]
  %v956 = vld [vmem:[%s4 + $0x218] sm:$0xff]
  %v957 = vld [vmem:[%s4 + $0x220] sm:$0xff]
  %v958 = vld [vmem:[%s4 + $0x228] sm:$0xff]
  %v959 = vld [vmem:[%s4 + $0x230] sm:$0xff]
  %v960 = vld [vmem:[%s4 + $0x238] sm:$0xff]
  %v961 = vld [vmem:[%s4 + $0x240] sm:$0xff]
  %v962 = vld [vmem:[%s4 + $0x248] sm:$0xff]
  %v963 = vld [vmem:[%s4 + $0x250] sm:$0xff]
  %v964 = vld [vmem:[%s4 + $0x258] sm:$0xff]
  %v965 = vld [vmem:[%s4 + $0x260] sm:$0xff]
  %v966 = vld [vmem:[%s4 + $0x268] sm:$0xff]
  %v967 = vld [vmem:[%s4 + $0x270] sm:$0xff]
  %v968 = vld [vmem:[%s4 + $0x278] sm:$0xff]
  %v969 = vld [vmem:[%s4 + $0x280] sm:$0xff]
  %v970 = vld [vmem:[%s4 + $0x288] sm:$0xff]
  %v971 = vld [vmem:[%s4 + $0x290] sm:$0xff]
  %v972 = vld [vmem:[%s4 + $0x298] sm:$0xff]
  %v973 = vld [vmem:[%s4 + $0x2a0] sm:$0xff]
  %v974 = vld [vmem:[%s4 + $0x2a8] sm:$0xff]
  %v975 = vld [vmem:[%s4 + $0x2b0] sm:$0xff]
  %v976 = vld [vmem:[%s4 + $0x2b8] sm:$0xff]
  %v977 = vld [vmem:[%s4 + $0x2c0] sm:$0xff]
  %v978 = vld [vmem:[%s4 + $0x2c8] sm:$0xff]
  %v979 = vld [vmem:[%s4 + $0x2d0] sm:$0xff]
  %v980 = vld [vmem:[%s4 + $0x2d8] sm:$0xff]
  %v981 = vld [vmem:[%s4 + $0x2e0] sm:$0xff]
  %v982 = vld [vmem:[%s4 + $0x2e8] sm:$0xff]
  %v983 = vld [vmem:[%s4 + $0x2f0] sm:$0xff]
  %v984 = vld [vmem:[%s4 + $0x2f8] sm:$0xff]
  %v985 = vld [vmem:[%s4 + $0x300] sm:$0xff]
  %v986 = vld [vmem:[%s4 + $0x308] sm:$0xff]
  %v987 = vld [vmem:[%s4 + $0x310] sm:$0xff]
  %v988 = vld [vmem:[%s4 + $0x318] sm:$0xff]
  %v989 = vld [vmem:[%s4 + $0x320] sm:$0xff]
  %v990 = vld [vmem:[%s4 + $0x328] sm:$0xff]
  %v991 = vld [vmem:[%s4 + $0x330] sm:$0xff]
  %v992 = vld [vmem:[%s4 + $0x338] sm:$0xff]
  %v993 = vld [vmem:[%s4 + $0x340] sm:$0xff]
  %v994 = vld [vmem:[%s4 + $0x348] sm:$0xff]
  %v995 = vld [vmem:[%s4 + $0x350] sm:$0xff]
  %v996 = vld [vmem:[%s4 + $0x358] sm:$0xff]
  %v997 = vld [vmem:[%s4 + $0x360] sm:$0xff]
  %v998 = vld [vmem:[%s4 + $0x368] sm:$0xff]
  %v999 = vld [vmem:[%s4 + $0x370] sm:$0xff]
  %v1000 = vld [vmem:[%s4 + $0x378] sm:$0xff]
  %v1001 = vld [vmem:[%s4 + $0x380] sm:$0xff]
  %v1002 = vld [vmem:[%s4 + $0x388] sm:$0xff]
  %v1003 = vld [vmem:[%s4 + $0x390] sm:$0xff]
  %v1004 = vld [vmem:[%s4 + $0x398] sm:$0xff]
  %v1005 = vld [vmem:[%s4 + $0x3a0] sm:$0xff]
  %v1006 = vld [vmem:[%s4 + $0x3a8] sm:$0xff]
  %v1007 = vld [vmem:[%s4 + $0x3b0] sm:$0xff]
  %v1008 = vld [vmem:[%s4 + $0x3b8] sm:$0xff]
  %v1009 = vld [vmem:[%s4 + $0x3c0] sm:$0xff]
  %v1010 = vld [vmem:[%s4 + $0x3c8] sm:$0xff]
  %v1011 = vld [vmem:[%s4 + $0x3d0] sm:$0xff]
  %v1012 = vld [vmem:[%s4 + $0x3d8] sm:$0xff]
  %v1013 = vld [vmem:[%s4 + $0x3e0] sm:$0xff]
  %v1014 = vld [vmem:[%s4 + $0x3e8] sm:$0xff]
  %v1015 = vld [vmem:[%s4 + $0x3f0] sm:$0xff]
  %v1016 = vld [vmem:[%s4 + $0x3f8] sm:$0xff]
  %v1017 = vld [vmem:[%s5] sm:$0xff]
  %v1018 = vld [vmem:[%s5 + $0x8] sm:$0xff]
  %v1019 = vld [vmem:[%s5 + $0x10] sm:$0xff]
  %v1020 = vld [vmem:[%s5 + $0x18] sm:$0xff]
  %v1021 = vld [vmem:[%s5 + $0x20] sm:$0xff]
  %v1022 = vld [vmem:[%s5 + $0x28] sm:$0xff]
  %v1023 = vld [vmem:[%s5 + $0x30] sm:$0xff]
  %v1024 = vld [vmem:[%s5 + $0x38] sm:$0xff]
  %v1025 = vld [vmem:[%s5 + $0x40] sm:$0xff]
  %v1026 = vld [vmem:[%s5 + $0x48] sm:$0xff]
  %v1027 = vld [vmem:[%s5 + $0x50] sm:$0xff]
  %v1028 = vld [vmem:[%s5 + $0x58] sm:$0xff]
  %v1029 = vld [vmem:[%s5 + $0x60] sm:$0xff]
  %v1030 = vld [vmem:[%s5 + $0x68] sm:$0xff]
  %v1031 = vld [vmem:[%s5 + $0x70] sm:$0xff]
  %v1032 = vld [vmem:[%s5 + $0x78] sm:$0xff]
  %v1033 = vld [vmem:[%s5 + $0x80] sm:$0xff]
  %v1034 = vld [vmem:[%s5 + $0x88] sm:$0xff]
  %v1035 = vld [vmem:[%s5 + $0x90] sm:$0xff]
  %v1036 = vld [vmem:[%s5 + $0x98] sm:$0xff]
  %v1037 = vld [vmem:[%s5 + $0xa0] sm:$0xff]
  %v1038 = vld [vmem:[%s5 + $0xa8] sm:$0xff]
  %v1039 = vld [vmem:[%s5 + $0xb0] sm:$0xff]
  %v1040 = vld [vmem:[%s5 + $0xb8] sm:$0xff]
  %v1041 = vld [vmem:[%s5 + $0xc0] sm:$0xff]
  %v1042 = vld [vmem:[%s5 + $0xc8] sm:$0xff]
  %v1043 = vld [vmem:[%s5 + $0xd0] sm:$0xff]
  %v1044 = vld [vmem:[%s5 + $0xd8] sm:$0xff]
  %v1045 = vld [vmem:[%s5 + $0xe0] sm:$0xff]
  %v1046 = vld [vmem:[%s5 + $0xe8] sm:$0xff]
  %v1047 = vld [vmem:[%s5 + $0xf0] sm:$0xff]
  %v1048 = vld [vmem:[%s5 + $0xf8] sm:$0xff]
  %v1049 = vld [vmem:[%s5 + $0x100] sm:$0xff]
  %v1050 = vld [vmem:[%s5 + $0x108] sm:$0xff]
  %v1051 = vld [vmem:[%s5 + $0x110] sm:$0xff]
  %v1052 = vld [vmem:[%s5 + $0x118] sm:$0xff]
  %v1053 = vld [vmem:[%s5 + $0x120] sm:$0xff]
  %v1054 = vld [vmem:[%s5 + $0x128] sm:$0xff]
  %v1055 = vld [vmem:[%s5 + $0x130] sm:$0xff]
  %v1056 = vld [vmem:[%s5 + $0x138] sm:$0xff]
  %v1057 = vld [vmem:[%s5 + $0x140] sm:$0xff]
  %v1058 = vld [vmem:[%s5 + $0x148] sm:$0xff]
  %v1059 = vld [vmem:[%s5 + $0x150] sm:$0xff]
  %v1060 = vld [vmem:[%s5 + $0x158] sm:$0xff]
  %v1061 = vld [vmem:[%s5 + $0x160] sm:$0xff]
  %v1062 = vld [vmem:[%s5 + $0x168] sm:$0xff]
  %v1063 = vld [vmem:[%s5 + $0x170] sm:$0xff]
  %v1064 = vld [vmem:[%s5 + $0x178] sm:$0xff]
  %v1065 = vld [vmem:[%s5 + $0x180] sm:$0xff]
  %v1066 = vld [vmem:[%s5 + $0x188] sm:$0xff]
  %v1067 = vld [vmem:[%s5 + $0x190] sm:$0xff]
  %v1068 = vld [vmem:[%s5 + $0x198] sm:$0xff]
  %v1069 = vld [vmem:[%s5 + $0x1a0] sm:$0xff]
  %v1070 = vld [vmem:[%s5 + $0x1a8] sm:$0xff]
  %v1071 = vld [vmem:[%s5 + $0x1b0] sm:$0xff]
  %v1072 = vld [vmem:[%s5 + $0x1b8] sm:$0xff]
  %v1073 = vld [vmem:[%s5 + $0x1c0] sm:$0xff]
  %v1074 = vld [vmem:[%s5 + $0x1c8] sm:$0xff]
  %v1075 = vld [vmem:[%s5 + $0x1d0] sm:$0xff]
  %v1076 = vld [vmem:[%s5 + $0x1d8] sm:$0xff]
  %v1077 = vld [vmem:[%s5 + $0x1e0] sm:$0xff]
  %v1078 = vld [vmem:[%s5 + $0x1e8] sm:$0xff]
  %v1079 = vld [vmem:[%s5 + $0x1f0] sm:$0xff]
  %v1080 = vld [vmem:[%s5 + $0x1f8] sm:$0xff]
  %v1081 = vld [vmem:[%s5 + $0x200] sm:$0xff]
  %v1082 = vld [vmem:[%s5 + $0x208] sm:$0xff]
  %v1083 = vld [vmem:[%s5 + $0x210] sm:$0xff]
  %v1084 = vld [vmem:[%s5 + $0x218] sm:$0xff]
  %v1085 = vld [vmem:[%s5 + $0x220] sm:$0xff]
  %v1086 = vld [vmem:[%s5 + $0x228] sm:$0xff]
  %v1087 = vld [vmem:[%s5 + $0x230] sm:$0xff]
  %v1088 = vld [vmem:[%s5 + $0x238] sm:$0xff]
  %v1089 = vld [vmem:[%s5 + $0x240] sm:$0xff]
  %v1090 = vld [vmem:[%s5 + $0x248] sm:$0xff]
  %v1091 = vld [vmem:[%s5 + $0x250] sm:$0xff]
  %v1092 = vld [vmem:[%s5 + $0x258] sm:$0xff]
  %v1093 = vld [vmem:[%s5 + $0x260] sm:$0xff]
  %v1094 = vld [vmem:[%s5 + $0x268] sm:$0xff]
  %v1095 = vld [vmem:[%s5 + $0x270] sm:$0xff]
  %v1096 = vld [vmem:[%s5 + $0x278] sm:$0xff]
  %v1097 = vld [vmem:[%s5 + $0x280] sm:$0xff]
  %v1098 = vld [vmem:[%s5 + $0x288] sm:$0xff]
  %v1099 = vld [vmem:[%s5 + $0x290] sm:$0xff]
  %v1100 = vld [vmem:[%s5 + $0x298] sm:$0xff]
  %v1101 = vld [vmem:[%s5 + $0x2a0] sm:$0xff]
  %v1102 = vld [vmem:[%s5 + $0x2a8] sm:$0xff]
  %v1103 = vld [vmem:[%s5 + $0x2b0] sm:$0xff]
  %v1104 = vld [vmem:[%s5 + $0x2b8] sm:$0xff]
  %v1105 = vld [vmem:[%s5 + $0x2c0] sm:$0xff]
  %v1106 = vld [vmem:[%s5 + $0x2c8] sm:$0xff]
  %v1107 = vld [vmem:[%s5 + $0x2d0] sm:$0xff]
  %v1108 = vld [vmem:[%s5 + $0x2d8] sm:$0xff]
  %v1109 = vld [vmem:[%s5 + $0x2e0] sm:$0xff]
  %v1110 = vld [vmem:[%s5 + $0x2e8] sm:$0xff]
  %v1111 = vld [vmem:[%s5 + $0x2f0] sm:$0xff]
  %v1112 = vld [vmem:[%s5 + $0x2f8] sm:$0xff]
  %v1113 = vld [vmem:[%s5 + $0x300] sm:$0xff]
  %v1114 = vld [vmem:[%s5 + $0x308] sm:$0xff]
  %v1115 = vld [vmem:[%s5 + $0x310] sm:$0xff]
  %v1116 = vld [vmem:[%s5 + $0x318] sm:$0xff]
  %v1117 = vld [vmem:[%s5 + $0x320] sm:$0xff]
  %v1118 = vld [vmem:[%s5 + $0x328] sm:$0xff]
  %v1119 = vld [vmem:[%s5 + $0x330] sm:$0xff]
  %v1120 = vld [vmem:[%s5 + $0x338] sm:$0xff]
  %v1121 = vld [vmem:[%s5 + $0x340] sm:$0xff]
  %v1122 = vld [vmem:[%s5 + $0x348] sm:$0xff]
  %v1123 = vld [vmem:[%s5 + $0x350] sm:$0xff]
  %v1124 = vld [vmem:[%s5 + $0x358] sm:$0xff]
  %v1125 = vld [vmem:[%s5 + $0x360] sm:$0xff]
  %v1126 = vld [vmem:[%s5 + $0x368] sm:$0xff]
  %v1127 = vld [vmem:[%s5 + $0x370] sm:$0xff]
  %v1128 = vld [vmem:[%s5 + $0x378] sm:$0xff]
  %v1129 = vld [vmem:[%s5 + $0x380] sm:$0xff]
  %v1130 = vld [vmem:[%s5 + $0x388] sm:$0xff]
  %v1131 = vld [vmem:[%s5 + $0x390] sm:$0xff]
  %v1132 = vld [vmem:[%s5 + $0x398] sm:$0xff]
  %v1133 = vld [vmem:[%s5 + $0x3a0] sm:$0xff]
  %v1134 = vld [vmem:[%s5 + $0x3a8] sm:$0xff]
  %v1135 = vld [vmem:[%s5 + $0x3b0] sm:$0xff]
  %v1136 = vld [vmem:[%s5 + $0x3b8] sm:$0xff]
  %v1137 = vld [vmem:[%s5 + $0x3c0] sm:$0xff]
  %v1138 = vld [vmem:[%s5 + $0x3c8] sm:$0xff]
  %v1139 = vld [vmem:[%s5 + $0x3d0] sm:$0xff]
  %v1140 = vld [vmem:[%s5 + $0x3d8] sm:$0xff]
  %v1141 = vld [vmem:[%s5 + $0x3e0] sm:$0xff]
  %v1142 = vld [vmem:[%s5 + $0x3e8] sm:$0xff]
  %v1143 = vld [vmem:[%s5 + $0x3f0] sm:$0xff]
  %v1144 = vld [vmem:[%s5 + $0x3f8] sm:$0xff]
  %v1145 = vld [vmem:[%s6] sm:$0xff]
  %v1147 = vperm.slane %v1145, 0
  %v1148 = vperm.slane %v1145, 1
  %v1149 = vperm.slane %v1145, 2
  %v1150 = vperm.slane %v1145, 3
  %v1151 = vperm.slane %v1145, 4
  %v1152 = vperm.slane %v1145, 5
  %v1153 = vperm.slane %v1145, 6
  %v1154 = vperm.slane %v1145, 7
  %v1163 = vld [vmem:[#allocation2] sm:$0xff]
  %v1164 = vld [vmem:[#allocation2 + $0x8] sm:$0xff]
  %v1165 = vld [vmem:[#allocation2 + $0x10] sm:$0xff]
  %v1166 = vld [vmem:[#allocation2 + $0x18] sm:$0xff]
  %v1167 = vld [vmem:[#allocation2 + $0x20] sm:$0xff]
  %v1168 = vld [vmem:[#allocation2 + $0x28] sm:$0xff]
  %v1169 = vld [vmem:[#allocation2 + $0x30] sm:$0xff]
  %v1170 = vld [vmem:[#allocation2 + $0x38] sm:$0xff]
  %v1299 = vunpack.c.l.b16 %v761
  %v1300 = vunpack.c.h.b16 %v761
  %v1301 = vunpack.c.l.b16 %v762
  %v1302 = vunpack.c.h.b16 %v762
  %v1303 = vunpack.c.l.b16 %v763
  %v1304 = vunpack.c.h.b16 %v763
  %v1305 = vunpack.c.l.b16 %v764
  %v1306 = vunpack.c.h.b16 %v764
  %v1307 = vunpack.c.l.b16 %v765
  %v1308 = vunpack.c.h.b16 %v765
  %v1309 = vunpack.c.l.b16 %v766
  %v1310 = vunpack.c.h.b16 %v766
  %v1311 = vunpack.c.l.b16 %v767
  %v1312 = vunpack.c.h.b16 %v767
  %v1313 = vunpack.c.l.b16 %v768
  %v1314 = vunpack.c.h.b16 %v768
  %v1315 = vunpack.c.l.b16 %v769
  %v1316 = vunpack.c.h.b16 %v769
  %v1317 = vunpack.c.l.b16 %v770
  %v1318 = vunpack.c.h.b16 %v770
  %v1319 = vunpack.c.l.b16 %v771
  %v1320 = vunpack.c.h.b16 %v771
  %v1321 = vunpack.c.l.b16 %v772
  %v1322 = vunpack.c.h.b16 %v772
  %v1323 = vunpack.c.l.b16 %v773
  %v1324 = vunpack.c.h.b16 %v773
  %v1325 = vunpack.c.l.b16 %v774
  %v1326 = vunpack.c.h.b16 %v774
  %v1327 = vunpack.c.l.b16 %v775
  %v1328 = vunpack.c.h.b16 %v775
  %v1329 = vunpack.c.l.b16 %v776
  %v1330 = vunpack.c.h.b16 %v776
  %v1331 = vunpack.c.l.b16 %v777
  %v1332 = vunpack.c.h.b16 %v777
  %v1333 = vunpack.c.l.b16 %v778
  %v1334 = vunpack.c.h.b16 %v778
  %v1335 = vunpack.c.l.b16 %v779
  %v1336 = vunpack.c.h.b16 %v779
  %v1337 = vunpack.c.l.b16 %v780
  %v1338 = vunpack.c.h.b16 %v780
  %v1339 = vunpack.c.l.b16 %v781
  %v1340 = vunpack.c.h.b16 %v781
  %v1341 = vunpack.c.l.b16 %v782
  %v1342 = vunpack.c.h.b16 %v782
  %v1343 = vunpack.c.l.b16 %v783
  %v1344 = vunpack.c.h.b16 %v783
  %v1345 = vunpack.c.l.b16 %v784
  %v1346 = vunpack.c.h.b16 %v784
  %v1347 = vunpack.c.l.b16 %v785
  %v1348 = vunpack.c.h.b16 %v785
  %v1349 = vunpack.c.l.b16 %v786
  %v1350 = vunpack.c.h.b16 %v786
  %v1351 = vunpack.c.l.b16 %v787
  %v1352 = vunpack.c.h.b16 %v787
  %v1353 = vunpack.c.l.b16 %v788
  %v1354 = vunpack.c.h.b16 %v788
  %v1355 = vunpack.c.l.b16 %v789
  %v1356 = vunpack.c.h.b16 %v789
  %v1357 = vunpack.c.l.b16 %v790
  %v1358 = vunpack.c.h.b16 %v790
  %v1359 = vunpack.c.l.b16 %v791
  %v1360 = vunpack.c.h.b16 %v791
  %v1361 = vunpack.c.l.b16 %v792
  %v1362 = vunpack.c.h.b16 %v792
  %v1363 = vunpack.c.l.b16 %v793
  %v1364 = vunpack.c.h.b16 %v793
  %v1365 = vunpack.c.l.b16 %v794
  %v1366 = vunpack.c.h.b16 %v794
  %v1367 = vunpack.c.l.b16 %v795
  %v1368 = vunpack.c.h.b16 %v795
  %v1369 = vunpack.c.l.b16 %v796
  %v1370 = vunpack.c.h.b16 %v796
  %v1371 = vunpack.c.l.b16 %v797
  %v1372 = vunpack.c.h.b16 %v797
  %v1373 = vunpack.c.l.b16 %v798
  %v1374 = vunpack.c.h.b16 %v798
  %v1375 = vunpack.c.l.b16 %v799
  %v1376 = vunpack.c.h.b16 %v799
  %v1377 = vunpack.c.l.b16 %v800
  %v1378 = vunpack.c.h.b16 %v800
  %v1379 = vunpack.c.l.b16 %v801
  %v1380 = vunpack.c.h.b16 %v801
  %v1381 = vunpack.c.l.b16 %v802
  %v1382 = vunpack.c.h.b16 %v802
  %v1383 = vunpack.c.l.b16 %v803
  %v1384 = vunpack.c.h.b16 %v803
  %v1385 = vunpack.c.l.b16 %v804
  %v1386 = vunpack.c.h.b16 %v804
  %v1387 = vunpack.c.l.b16 %v805
  %v1388 = vunpack.c.h.b16 %v805
  %v1389 = vunpack.c.l.b16 %v806
  %v1390 = vunpack.c.h.b16 %v806
  %v1391 = vunpack.c.l.b16 %v807
  %v1392 = vunpack.c.h.b16 %v807
  %v1393 = vunpack.c.l.b16 %v808
  %v1394 = vunpack.c.h.b16 %v808
  %v1395 = vunpack.c.l.b16 %v809
  %v1396 = vunpack.c.h.b16 %v809
  %v1397 = vunpack.c.l.b16 %v810
  %v1398 = vunpack.c.h.b16 %v810
  %v1399 = vunpack.c.l.b16 %v811
  %v1400 = vunpack.c.h.b16 %v811
  %v1401 = vunpack.c.l.b16 %v812
  %v1402 = vunpack.c.h.b16 %v812
  %v1403 = vunpack.c.l.b16 %v813
  %v1404 = vunpack.c.h.b16 %v813
  %v1405 = vunpack.c.l.b16 %v814
  %v1406 = vunpack.c.h.b16 %v814
  %v1407 = vunpack.c.l.b16 %v815
  %v1408 = vunpack.c.h.b16 %v815
  %v1409 = vunpack.c.l.b16 %v816
  %v1410 = vunpack.c.h.b16 %v816
  %v1411 = vunpack.c.l.b16 %v817
  %v1412 = vunpack.c.h.b16 %v817
  %v1413 = vunpack.c.l.b16 %v818
  %v1414 = vunpack.c.h.b16 %v818
  %v1415 = vunpack.c.l.b16 %v819
  %v1416 = vunpack.c.h.b16 %v819
  %v1417 = vunpack.c.l.b16 %v820
  %v1418 = vunpack.c.h.b16 %v820
  %v1419 = vunpack.c.l.b16 %v821
  %v1420 = vunpack.c.h.b16 %v821
  %v1421 = vunpack.c.l.b16 %v822
  %v1422 = vunpack.c.h.b16 %v822
  %v1423 = vunpack.c.l.b16 %v823
  %v1424 = vunpack.c.h.b16 %v823
  %v1425 = vunpack.c.l.b16 %v824
  %v1426 = vunpack.c.h.b16 %v824
  %v1427 = vunpack.c.l.b16 %v825
  %v1428 = vunpack.c.h.b16 %v825
  %v1429 = vunpack.c.l.b16 %v826
  %v1430 = vunpack.c.h.b16 %v826
  %v1431 = vunpack.c.l.b16 %v827
  %v1432 = vunpack.c.h.b16 %v827
  %v1433 = vunpack.c.l.b16 %v828
  %v1434 = vunpack.c.h.b16 %v828
  %v1435 = vunpack.c.l.b16 %v829
  %v1436 = vunpack.c.h.b16 %v829
  %v1437 = vunpack.c.l.b16 %v830
  %v1438 = vunpack.c.h.b16 %v830
  %v1439 = vunpack.c.l.b16 %v831
  %v1440 = vunpack.c.h.b16 %v831
  %v1441 = vunpack.c.l.b16 %v832
  %v1442 = vunpack.c.h.b16 %v832
  %v1443 = vunpack.c.l.b16 %v833
  %v1444 = vunpack.c.h.b16 %v833
  %v1445 = vunpack.c.l.b16 %v834
  %v1446 = vunpack.c.h.b16 %v834
  %v1447 = vunpack.c.l.b16 %v835
  %v1448 = vunpack.c.h.b16 %v835
  %v1449 = vunpack.c.l.b16 %v836
  %v1450 = vunpack.c.h.b16 %v836
  %v1451 = vunpack.c.l.b16 %v837
  %v1452 = vunpack.c.h.b16 %v837
  %v1453 = vunpack.c.l.b16 %v838
  %v1454 = vunpack.c.h.b16 %v838
  %v1455 = vunpack.c.l.b16 %v839
  %v1456 = vunpack.c.h.b16 %v839
  %v1457 = vunpack.c.l.b16 %v840
  %v1458 = vunpack.c.h.b16 %v840
  %v1459 = vunpack.c.l.b16 %v841
  %v1460 = vunpack.c.h.b16 %v841
  %v1461 = vunpack.c.l.b16 %v842
  %v1462 = vunpack.c.h.b16 %v842
  %v1463 = vunpack.c.l.b16 %v843
  %v1464 = vunpack.c.h.b16 %v843
  %v1465 = vunpack.c.l.b16 %v844
  %v1466 = vunpack.c.h.b16 %v844
  %v1467 = vunpack.c.l.b16 %v845
  %v1468 = vunpack.c.h.b16 %v845
  %v1469 = vunpack.c.l.b16 %v846
  %v1470 = vunpack.c.h.b16 %v846
  %v1471 = vunpack.c.l.b16 %v847
  %v1472 = vunpack.c.h.b16 %v847
  %v1473 = vunpack.c.l.b16 %v848
  %v1474 = vunpack.c.h.b16 %v848
  %v1475 = vunpack.c.l.b16 %v849
  %v1476 = vunpack.c.h.b16 %v849
  %v1477 = vunpack.c.l.b16 %v850
  %v1478 = vunpack.c.h.b16 %v850
  %v1479 = vunpack.c.l.b16 %v851
  %v1480 = vunpack.c.h.b16 %v851
  %v1481 = vunpack.c.l.b16 %v852
  %v1482 = vunpack.c.h.b16 %v852
  %v1483 = vunpack.c.l.b16 %v853
  %v1484 = vunpack.c.h.b16 %v853
  %v1485 = vunpack.c.l.b16 %v854
  %v1486 = vunpack.c.h.b16 %v854
  %v1487 = vunpack.c.l.b16 %v855
  %v1488 = vunpack.c.h.b16 %v855
  %v1489 = vunpack.c.l.b16 %v856
  %v1490 = vunpack.c.h.b16 %v856
  %v1491 = vunpack.c.l.b16 %v857
  %v1492 = vunpack.c.h.b16 %v857
  %v1493 = vunpack.c.l.b16 %v858
  %v1494 = vunpack.c.h.b16 %v858
  %v1495 = vunpack.c.l.b16 %v859
  %v1496 = vunpack.c.h.b16 %v859
  %v1497 = vunpack.c.l.b16 %v860
  %v1498 = vunpack.c.h.b16 %v860
  %v1499 = vunpack.c.l.b16 %v861
  %v1500 = vunpack.c.h.b16 %v861
  %v1501 = vunpack.c.l.b16 %v862
  %v1502 = vunpack.c.h.b16 %v862
  %v1503 = vunpack.c.l.b16 %v863
  %v1504 = vunpack.c.h.b16 %v863
  %v1505 = vunpack.c.l.b16 %v864
  %v1506 = vunpack.c.h.b16 %v864
  %v1507 = vunpack.c.l.b16 %v865
  %v1508 = vunpack.c.h.b16 %v865
  %v1509 = vunpack.c.l.b16 %v866
  %v1510 = vunpack.c.h.b16 %v866
  %v1511 = vunpack.c.l.b16 %v867
  %v1512 = vunpack.c.h.b16 %v867
  %v1513 = vunpack.c.l.b16 %v868
  %v1514 = vunpack.c.h.b16 %v868
  %v1515 = vunpack.c.l.b16 %v869
  %v1516 = vunpack.c.h.b16 %v869
  %v1517 = vunpack.c.l.b16 %v870
  %v1518 = vunpack.c.h.b16 %v870
  %v1519 = vunpack.c.l.b16 %v871
  %v1520 = vunpack.c.h.b16 %v871
  %v1521 = vunpack.c.l.b16 %v872
  %v1522 = vunpack.c.h.b16 %v872
  %v1523 = vunpack.c.l.b16 %v873
  %v1524 = vunpack.c.h.b16 %v873
  %v1525 = vunpack.c.l.b16 %v874
  %v1526 = vunpack.c.h.b16 %v874
  %v1527 = vunpack.c.l.b16 %v875
  %v1528 = vunpack.c.h.b16 %v875
  %v1529 = vunpack.c.l.b16 %v876
  %v1530 = vunpack.c.h.b16 %v876
  %v1531 = vunpack.c.l.b16 %v877
  %v1532 = vunpack.c.h.b16 %v877
  %v1533 = vunpack.c.l.b16 %v878
  %v1534 = vunpack.c.h.b16 %v878
  %v1535 = vunpack.c.l.b16 %v879
  %v1536 = vunpack.c.h.b16 %v879
  %v1537 = vunpack.c.l.b16 %v880
  %v1538 = vunpack.c.h.b16 %v880
  %v1539 = vunpack.c.l.b16 %v881
  %v1540 = vunpack.c.h.b16 %v881
  %v1541 = vunpack.c.l.b16 %v882
  %v1542 = vunpack.c.h.b16 %v882
  %v1543 = vunpack.c.l.b16 %v883
  %v1544 = vunpack.c.h.b16 %v883
  %v1545 = vunpack.c.l.b16 %v884
  %v1546 = vunpack.c.h.b16 %v884
  %v1547 = vunpack.c.l.b16 %v885
  %v1548 = vunpack.c.h.b16 %v885
  %v1549 = vunpack.c.l.b16 %v886
  %v1550 = vunpack.c.h.b16 %v886
  %v1551 = vunpack.c.l.b16 %v887
  %v1552 = vunpack.c.h.b16 %v887
  %v1553 = vunpack.c.l.b16 %v888
  %v1554 = vunpack.c.h.b16 %v888
  %v1555 = vpack.c.b16 %v1307, %v1299
  %v1556 = vpack.c.b16 %v1308, %v1300
  %v1557 = vpack.c.b16 %v1309, %v1301
  %v1558 = vpack.c.b16 %v1310, %v1302
  %v1559 = vpack.c.b16 %v1311, %v1303
  %v1560 = vpack.c.b16 %v1312, %v1304
  %v1561 = vpack.c.b16 %v1313, %v1305
  %v1562 = vpack.c.b16 %v1314, %v1306
  %v1563 = vpack.c.b16 %v1323, %v1315
  %v1564 = vpack.c.b16 %v1324, %v1316
  %v1565 = vpack.c.b16 %v1325, %v1317
  %v1566 = vpack.c.b16 %v1326, %v1318
  %v1567 = vpack.c.b16 %v1327, %v1319
  %v1568 = vpack.c.b16 %v1328, %v1320
  %v1569 = vpack.c.b16 %v1329, %v1321
  %v1570 = vpack.c.b16 %v1330, %v1322
  %v1571 = vpack.c.b16 %v1339, %v1331
  %v1572 = vpack.c.b16 %v1340, %v1332
  %v1573 = vpack.c.b16 %v1341, %v1333
  %v1574 = vpack.c.b16 %v1342, %v1334
  %v1575 = vpack.c.b16 %v1343, %v1335
  %v1576 = vpack.c.b16 %v1344, %v1336
  %v1577 = vpack.c.b16 %v1345, %v1337
  %v1578 = vpack.c.b16 %v1346, %v1338
  %v1579 = vpack.c.b16 %v1355, %v1347
  %v1580 = vpack.c.b16 %v1356, %v1348
  %v1581 = vpack.c.b16 %v1357, %v1349
  %v1582 = vpack.c.b16 %v1358, %v1350
  %v1583 = vpack.c.b16 %v1359, %v1351
  %v1584 = vpack.c.b16 %v1360, %v1352
  %v1585 = vpack.c.b16 %v1361, %v1353
  %v1586 = vpack.c.b16 %v1362, %v1354
  %v1587 = vpack.c.b16 %v1371, %v1363
  %v1588 = vpack.c.b16 %v1372, %v1364
  %v1589 = vpack.c.b16 %v1373, %v1365
  %v1590 = vpack.c.b16 %v1374, %v1366
  %v1591 = vpack.c.b16 %v1375, %v1367
  %v1592 = vpack.c.b16 %v1376, %v1368
  %v1593 = vpack.c.b16 %v1377, %v1369
  %v1594 = vpack.c.b16 %v1378, %v1370
  %v1595 = vpack.c.b16 %v1387, %v1379
  %v1596 = vpack.c.b16 %v1388, %v1380
  %v1597 = vpack.c.b16 %v1389, %v1381
  %v1598 = vpack.c.b16 %v1390, %v1382
  %v1599 = vpack.c.b16 %v1391, %v1383
  %v1600 = vpack.c.b16 %v1392, %v1384
  %v1601 = vpack.c.b16 %v1393, %v1385
  %v1602 = vpack.c.b16 %v1394, %v1386
  %v1603 = vpack.c.b16 %v1403, %v1395
  %v1604 = vpack.c.b16 %v1404, %v1396
  %v1605 = vpack.c.b16 %v1405, %v1397
  %v1606 = vpack.c.b16 %v1406, %v1398
  %v1607 = vpack.c.b16 %v1407, %v1399
  %v1608 = vpack.c.b16 %v1408, %v1400
  %v1609 = vpack.c.b16 %v1409, %v1401
  %v1610 = vpack.c.b16 %v1410, %v1402
  %v1611 = vpack.c.b16 %v1419, %v1411
  %v1612 = vpack.c.b16 %v1420, %v1412
  %v1613 = vpack.c.b16 %v1421, %v1413
  %v1614 = vpack.c.b16 %v1422, %v1414
  %v1615 = vpack.c.b16 %v1423, %v1415
  %v1616 = vpack.c.b16 %v1424, %v1416
  %v1617 = vpack.c.b16 %v1425, %v1417
  %v1618 = vpack.c.b16 %v1426, %v1418
  %v1619 = vpack.c.b16 %v1435, %v1427
  %v1620 = vpack.c.b16 %v1436, %v1428
  %v1621 = vpack.c.b16 %v1437, %v1429
  %v1622 = vpack.c.b16 %v1438, %v1430
  %v1623 = vpack.c.b16 %v1439, %v1431
  %v1624 = vpack.c.b16 %v1440, %v1432
  %v1625 = vpack.c.b16 %v1441, %v1433
  %v1626 = vpack.c.b16 %v1442, %v1434
  %v1627 = vpack.c.b16 %v1451, %v1443
  %v1628 = vpack.c.b16 %v1452, %v1444
  %v1629 = vpack.c.b16 %v1453, %v1445
  %v1630 = vpack.c.b16 %v1454, %v1446
  %v1631 = vpack.c.b16 %v1455, %v1447
  %v1632 = vpack.c.b16 %v1456, %v1448
  %v1633 = vpack.c.b16 %v1457, %v1449
  %v1634 = vpack.c.b16 %v1458, %v1450
  %v1635 = vpack.c.b16 %v1467, %v1459
  %v1636 = vpack.c.b16 %v1468, %v1460
  %v1637 = vpack.c.b16 %v1469, %v1461
  %v1638 = vpack.c.b16 %v1470, %v1462
  %v1639 = vpack.c.b16 %v1471, %v1463
  %v1640 = vpack.c.b16 %v1472, %v1464
  %v1641 = vpack.c.b16 %v1473, %v1465
  %v1642 = vpack.c.b16 %v1474, %v1466
  %v1643 = vpack.c.b16 %v1483, %v1475
  %v1644 = vpack.c.b16 %v1484, %v1476
  %v1645 = vpack.c.b16 %v1485, %v1477
  %v1646 = vpack.c.b16 %v1486, %v1478
  %v1647 = vpack.c.b16 %v1487, %v1479
  %v1648 = vpack.c.b16 %v1488, %v1480
  %v1649 = vpack.c.b16 %v1489, %v1481
  %v1650 = vpack.c.b16 %v1490, %v1482
  %v1651 = vpack.c.b16 %v1499, %v1491
  %v1652 = vpack.c.b16 %v1500, %v1492
  %v1653 = vpack.c.b16 %v1501, %v1493
  %v1654 = vpack.c.b16 %v1502, %v1494
  %v1655 = vpack.c.b16 %v1503, %v1495
  %v1656 = vpack.c.b16 %v1504, %v1496
  %v1657 = vpack.c.b16 %v1505, %v1497
  %v1658 = vpack.c.b16 %v1506, %v1498
  %v1659 = vpack.c.b16 %v1515, %v1507
  %v1660 = vpack.c.b16 %v1516, %v1508
  %v1661 = vpack.c.b16 %v1517, %v1509
  %v1662 = vpack.c.b16 %v1518, %v1510
  %v1663 = vpack.c.b16 %v1519, %v1511
  %v1664 = vpack.c.b16 %v1520, %v1512
  %v1665 = vpack.c.b16 %v1521, %v1513
  %v1666 = vpack.c.b16 %v1522, %v1514
  %v1667 = vpack.c.b16 %v1531, %v1523
  %v1668 = vpack.c.b16 %v1532, %v1524
  %v1669 = vpack.c.b16 %v1533, %v1525
  %v1670 = vpack.c.b16 %v1534, %v1526
  %v1671 = vpack.c.b16 %v1535, %v1527
  %v1672 = vpack.c.b16 %v1536, %v1528
  %v1673 = vpack.c.b16 %v1537, %v1529
  %v1674 = vpack.c.b16 %v1538, %v1530
  %v1675 = vpack.c.b16 %v1547, %v1539
  %v1676 = vpack.c.b16 %v1548, %v1540
  %v1677 = vpack.c.b16 %v1549, %v1541
  %v1678 = vpack.c.b16 %v1550, %v1542
  %v1679 = vpack.c.b16 %v1551, %v1543
  %v1680 = vpack.c.b16 %v1552, %v1544
  %v1681 = vpack.c.b16 %v1553, %v1545
  %v1682 = vpack.c.b16 %v1554, %v1546
  %1811 = vmatpush.bf16.msra.mxu0 %v1611
  %1812 = vmatpush.bf16.msra.mxu0 %v1603
  %1813 = vmatpush.bf16.msra.mxu0 %v1595
  %1814 = vmatpush.bf16.msra.mxu0 %v1587
  %1815 = vmatpush.bf16.msra.mxu0 %v1579
  %1816 = vmatpush.bf16.msra.mxu0 %v1571
  %1817 = vmatpush.bf16.msra.mxu0 %v1563
  %1818 = vmatpush.bf16.msra.mxu0 %v1555
  %1819 = vmatmul.bf16.gmra.mxu0 0
  %v1820 = vpop.f32.mrf.mxu0
  %v1821 = vadd.f32 0.0, %v1820
  %v1822 = vpop.f32.mrf.mxu0
  %1823 = vdwg.mxu0
  %1824 = vmatpush.bf16.msra.mxu0 %v1675
  %1825 = vmatpush.bf16.msra.mxu0 %v1667
  %1826 = vmatpush.bf16.msra.mxu0 %v1659
  %1827 = vmatpush.bf16.msra.mxu0 %v1651
  %1828 = vmatpush.bf16.msra.mxu0 %v1643
  %1829 = vmatpush.bf16.msra.mxu0 %v1635
  %1830 = vmatpush.bf16.msra.mxu0 %v1627
  %1831 = vmatpush.bf16.msra.mxu0 %v1619
  %1832 = vmatmul.bf16.gmra.mxu0 0
  %v1833 = vpop.f32.mrf.mxu0
  %v1834 = vadd.f32 %v1821, %v1833
  %v1835 = vpop.f32.mrf.mxu0
  %1836 = vdwg.mxu0
  %1837 = vmatpush.bf16.msra.mxu0 %v1612
  %1838 = vmatpush.bf16.msra.mxu0 %v1604
  %1839 = vmatpush.bf16.msra.mxu0 %v1596
  %1840 = vmatpush.bf16.msra.mxu0 %v1588
  %1841 = vmatpush.bf16.msra.mxu0 %v1580
  %1842 = vmatpush.bf16.msra.mxu0 %v1572
  %1843 = vmatpush.bf16.msra.mxu0 %v1564
  %1844 = vmatpush.bf16.msra.mxu0 %v1556
  %1845 = vmatmul.bf16.gmra.mxu0 0
  %v1846 = vpop.f32.mrf.mxu0
  %v1847 = vadd.f32 0.0, %v1846
  %v1848 = vpop.f32.mrf.mxu0
  %1849 = vdwg.mxu0
  %1850 = vmatpush.bf16.msra.mxu0 %v1676
  %1851 = vmatpush.bf16.msra.mxu0 %v1668
  %1852 = vmatpush.bf16.msra.mxu0 %v1660
  %1853 = vmatpush.bf16.msra.mxu0 %v1652
  %1854 = vmatpush.bf16.msra.mxu0 %v1644
  %1855 = vmatpush.bf16.msra.mxu0 %v1636
  %1856 = vmatpush.bf16.msra.mxu0 %v1628
  %1857 = vmatpush.bf16.msra.mxu0 %v1620
  %1858 = vmatmul.bf16.gmra.mxu0 0
  %v1859 = vpop.f32.mrf.mxu0
  %v1860 = vadd.f32 %v1847, %v1859
  %v1861 = vpop.f32.mrf.mxu0
  %1862 = vdwg.mxu0
  %1863 = vmatpush.bf16.msra.mxu0 %v1613
  %1864 = vmatpush.bf16.msra.mxu0 %v1605
  %1865 = vmatpush.bf16.msra.mxu0 %v1597
  %1866 = vmatpush.bf16.msra.mxu0 %v1589
  %1867 = vmatpush.bf16.msra.mxu0 %v1581
  %1868 = vmatpush.bf16.msra.mxu0 %v1573
  %1869 = vmatpush.bf16.msra.mxu0 %v1565
  %1870 = vmatpush.bf16.msra.mxu0 %v1557
  %1871 = vmatmul.bf16.gmra.mxu0 0
  %v1872 = vpop.f32.mrf.mxu0
  %v1873 = vadd.f32 0.0, %v1872
  %v1874 = vpop.f32.mrf.mxu0
  %1875 = vdwg.mxu0
  %1876 = vmatpush.bf16.msra.mxu0 %v1677
  %1877 = vmatpush.bf16.msra.mxu0 %v1669
  %1878 = vmatpush.bf16.msra.mxu0 %v1661
  %1879 = vmatpush.bf16.msra.mxu0 %v1653
  %1880 = vmatpush.bf16.msra.mxu0 %v1645
  %1881 = vmatpush.bf16.msra.mxu0 %v1637
  %1882 = vmatpush.bf16.msra.mxu0 %v1629
  %1883 = vmatpush.bf16.msra.mxu0 %v1621
  %1884 = vmatmul.bf16.gmra.mxu0 0
  %v1885 = vpop.f32.mrf.mxu0
  %v1886 = vadd.f32 %v1873, %v1885
  %v1887 = vpop.f32.mrf.mxu0
  %1888 = vdwg.mxu0
  %1889 = vmatpush.bf16.msra.mxu0 %v1614
  %1890 = vmatpush.bf16.msra.mxu0 %v1606
  %1891 = vmatpush.bf16.msra.mxu0 %v1598
  %1892 = vmatpush.bf16.msra.mxu0 %v1590
  %1893 = vmatpush.bf16.msra.mxu0 %v1582
  %1894 = vmatpush.bf16.msra.mxu0 %v1574
  %1895 = vmatpush.bf16.msra.mxu0 %v1566
  %1896 = vmatpush.bf16.msra.mxu0 %v1558
  %1897 = vmatmul.bf16.gmra.mxu0 0
  %v1898 = vpop.f32.mrf.mxu0
  %v1899 = vadd.f32 0.0, %v1898
  %v1900 = vpop.f32.mrf.mxu0
  %1901 = vdwg.mxu0
  %1902 = vmatpush.bf16.msra.mxu0 %v1678
  %1903 = vmatpush.bf16.msra.mxu0 %v1670
  %1904 = vmatpush.bf16.msra.mxu0 %v1662
  %1905 = vmatpush.bf16.msra.mxu0 %v1654
  %1906 = vmatpush.bf16.msra.mxu0 %v1646
  %1907 = vmatpush.bf16.msra.mxu0 %v1638
  %1908 = vmatpush.bf16.msra.mxu0 %v1630
  %1909 = vmatpush.bf16.msra.mxu0 %v1622
  %1910 = vmatmul.bf16.gmra.mxu0 0
  %v1911 = vpop.f32.mrf.mxu0
  %v1912 = vadd.f32 %v1899, %v1911
  %v1913 = vpop.f32.mrf.mxu0
  %1914 = vdwg.mxu0
  %1915 = vmatpush.bf16.msra.mxu0 %v1615
  %1916 = vmatpush.bf16.msra.mxu0 %v1607
  %1917 = vmatpush.bf16.msra.mxu0 %v1599
  %1918 = vmatpush.bf16.msra.mxu0 %v1591
  %1919 = vmatpush.bf16.msra.mxu0 %v1583
  %1920 = vmatpush.bf16.msra.mxu0 %v1575
  %1921 = vmatpush.bf16.msra.mxu0 %v1567
  %1922 = vmatpush.bf16.msra.mxu0 %v1559
  %1923 = vmatmul.bf16.gmra.mxu0 0
  %v1924 = vpop.f32.mrf.mxu0
  %v1925 = vadd.f32 0.0, %v1924
  %v1926 = vpop.f32.mrf.mxu0
  %1927 = vdwg.mxu0
  %1928 = vmatpush.bf16.msra.mxu0 %v1679
  %1929 = vmatpush.bf16.msra.mxu0 %v1671
  %1930 = vmatpush.bf16.msra.mxu0 %v1663
  %1931 = vmatpush.bf16.msra.mxu0 %v1655
  %1932 = vmatpush.bf16.msra.mxu0 %v1647
  %1933 = vmatpush.bf16.msra.mxu0 %v1639
  %1934 = vmatpush.bf16.msra.mxu0 %v1631
  %1935 = vmatpush.bf16.msra.mxu0 %v1623
  %1936 = vmatmul.bf16.gmra.mxu0 0
  %v1937 = vpop.f32.mrf.mxu0
  %v1938 = vadd.f32 %v1925, %v1937
  %v1939 = vpop.f32.mrf.mxu0
  %1940 = vdwg.mxu0
  %1941 = vmatpush.bf16.msra.mxu0 %v1616
  %1942 = vmatpush.bf16.msra.mxu0 %v1608
  %1943 = vmatpush.bf16.msra.mxu0 %v1600
  %1944 = vmatpush.bf16.msra.mxu0 %v1592
  %1945 = vmatpush.bf16.msra.mxu0 %v1584
  %1946 = vmatpush.bf16.msra.mxu0 %v1576
  %1947 = vmatpush.bf16.msra.mxu0 %v1568
  %1948 = vmatpush.bf16.msra.mxu0 %v1560
  %1949 = vmatmul.bf16.gmra.mxu0 0
  %v1950 = vpop.f32.mrf.mxu0
  %v1951 = vadd.f32 0.0, %v1950
  %v1952 = vpop.f32.mrf.mxu0
  %1953 = vdwg.mxu0
  %1954 = vmatpush.bf16.msra.mxu0 %v1680
  %1955 = vmatpush.bf16.msra.mxu0 %v1672
  %1956 = vmatpush.bf16.msra.mxu0 %v1664
  %1957 = vmatpush.bf16.msra.mxu0 %v1656
  %1958 = vmatpush.bf16.msra.mxu0 %v1648
  %1959 = vmatpush.bf16.msra.mxu0 %v1640
  %1960 = vmatpush.bf16.msra.mxu0 %v1632
  %1961 = vmatpush.bf16.msra.mxu0 %v1624
  %1962 = vmatmul.bf16.gmra.mxu0 0
  %v1963 = vpop.f32.mrf.mxu0
  %v1964 = vadd.f32 %v1951, %v1963
  %v1965 = vpop.f32.mrf.mxu0
  %1966 = vdwg.mxu0
  %1967 = vmatpush.bf16.msra.mxu0 %v1617
  %1968 = vmatpush.bf16.msra.mxu0 %v1609
  %1969 = vmatpush.bf16.msra.mxu0 %v1601
  %1970 = vmatpush.bf16.msra.mxu0 %v1593
  %1971 = vmatpush.bf16.msra.mxu0 %v1585
  %1972 = vmatpush.bf16.msra.mxu0 %v1577
  %1973 = vmatpush.bf16.msra.mxu0 %v1569
  %1974 = vmatpush.bf16.msra.mxu0 %v1561
  %1975 = vmatmul.bf16.gmra.mxu0 0
  %v1976 = vpop.f32.mrf.mxu0
  %v1977 = vadd.f32 0.0, %v1976
  %v1978 = vpop.f32.mrf.mxu0
  %1979 = vdwg.mxu0
  %1980 = vmatpush.bf16.msra.mxu0 %v1681
  %1981 = vmatpush.bf16.msra.mxu0 %v1673
  %1982 = vmatpush.bf16.msra.mxu0 %v1665
  %1983 = vmatpush.bf16.msra.mxu0 %v1657
  %1984 = vmatpush.bf16.msra.mxu0 %v1649
  %1985 = vmatpush.bf16.msra.mxu0 %v1641
  %1986 = vmatpush.bf16.msra.mxu0 %v1633
  %1987 = vmatpush.bf16.msra.mxu0 %v1625
  %1988 = vmatmul.bf16.gmra.mxu0 0
  %v1989 = vpop.f32.mrf.mxu0
  %v1990 = vadd.f32 %v1977, %v1989
  %v1991 = vpop.f32.mrf.mxu0
  %1992 = vdwg.mxu0
  %1993 = vmatpush.bf16.msra.mxu0 %v1618
  %1994 = vmatpush.bf16.msra.mxu0 %v1610
  %1995 = vmatpush.bf16.msra.mxu0 %v1602
  %1996 = vmatpush.bf16.msra.mxu0 %v1594
  %1997 = vmatpush.bf16.msra.mxu0 %v1586
  %1998 = vmatpush.bf16.msra.mxu0 %v1578
  %1999 = vmatpush.bf16.msra.mxu0 %v1570
  %2000 = vmatpush.bf16.msra.mxu0 %v1562
  %2001 = vmatmul.bf16.gmra.mxu0 0
  %v2002 = vpop.f32.mrf.mxu0
  %v2003 = vadd.f32 0.0, %v2002
  %v2004 = vpop.f32.mrf.mxu0
  %2005 = vdwg.mxu0
  %2006 = vmatpush.bf16.msra.mxu0 %v1682
  %2007 = vmatpush.bf16.msra.mxu0 %v1674
  %2008 = vmatpush.bf16.msra.mxu0 %v1666
  %2009 = vmatpush.bf16.msra.mxu0 %v1658
  %2010 = vmatpush.bf16.msra.mxu0 %v1650
  %2011 = vmatpush.bf16.msra.mxu0 %v1642
  %2012 = vmatpush.bf16.msra.mxu0 %v1634
  %2013 = vmatpush.bf16.msra.mxu0 %v1626
  %2014 = vmatmul.bf16.gmra.mxu0 0
  %v2015 = vpop.f32.mrf.mxu0
  %v2016 = vadd.f32 %v2003, %v2015
  %v2017 = vpop.f32.mrf.mxu0
  %2018 = vdwg.mxu0
  %v2019 = vadd.f32 %v1163, %v1834
  %v2020 = vadd.f32 %v1164, %v1860
  %v2021 = vadd.f32 %v1165, %v1886
  %v2022 = vadd.f32 %v1166, %v1912
  %v2023 = vadd.f32 %v1167, %v1938
  %v2024 = vadd.f32 %v1168, %v1964
  %v2025 = vadd.f32 %v1169, %v1990
  %v2026 = vadd.f32 %v1170, %v2016
  %v2027 = vmul.f32 %v2019, 0.5
  %v2028 = vmul.f32 %v2020, 0.5
  %v2029 = vmul.f32 %v2021, 0.5
  %v2030 = vmul.f32 %v2022, 0.5
  %v2031 = vmul.f32 %v2023, 0.5
  %v2032 = vmul.f32 %v2024, 0.5
  %v2033 = vtanh.pop %v2027
  %v2034 = vtanh.pop %v2028
  %v2035 = vtanh.pop %v2029
  %v2036 = vtanh.pop %v2030
  %v2037 = vtanh.pop %v2031
  %v2038 = vtanh.pop %v2032
  %v2039 = vmul.f32 %v2033, 0.5
  %v2040 = vmul.f32 %v2034, 0.5
  %v2041 = vmul.f32 %v2035, 0.5
  %v2042 = vmul.f32 %v2036, 0.5
  %v2043 = vmul.f32 %v2037, 0.5
  %v2044 = vmul.f32 %v2038, 0.5
  %v2045 = vadd.f32 %v2039, 0.5
  %v2046 = vadd.f32 %v2040, 0.5
  %v2047 = vadd.f32 %v2041, 0.5
  %v2048 = vadd.f32 %v2042, 0.5
  %v2049 = vadd.f32 %v2043, 0.5
  %v2050 = vadd.f32 %v2044, 0.5
  %v2051 = vtanh.pop %v2025
  %v2052 = vtanh.pop %v2026
  %v2053 = vmul.f32 %v2047, 0.0
  %v2054 = vmul.f32 %v2048, 0.0
  %v2055 = vmul.f32 %v2045, %v2051
  %v2056 = vmul.f32 %v2046, %v2052
  %v2057 = vadd.f32 %v2053, %v2055
  %v2058 = vadd.f32 %v2054, %v2056
  %v2059 = vtanh.pop %v2057
  %v2060 = vtanh.pop %v2058
  %v2061 = vmul.f32 %v2049, %v2059
  %v2062 = vmul.f32 %v2050, %v2060
  %v2063 = vpack.c.bf16 %v2061, %v2061
  %v2064 = vpack.c.bf16 %v2062, %v2062
  %v2193 = vunpack.c.l.b16 %v889
  %v2194 = vunpack.c.h.b16 %v889
  %v2195 = vunpack.c.l.b16 %v890
  %v2196 = vunpack.c.h.b16 %v890
  %v2197 = vunpack.c.l.b16 %v891
  %v2198 = vunpack.c.h.b16 %v891
  %v2199 = vunpack.c.l.b16 %v892
  %v2200 = vunpack.c.h.b16 %v892
  %v2201 = vunpack.c.l.b16 %v893
  %v2202 = vunpack.c.h.b16 %v893
  %v2203 = vunpack.c.l.b16 %v894
  %v2204 = vunpack.c.h.b16 %v894
  %v2205 = vunpack.c.l.b16 %v895
  %v2206 = vunpack.c.h.b16 %v895
  %v2207 = vunpack.c.l.b16 %v896
  %v2208 = vunpack.c.h.b16 %v896
  %v2209 = vunpack.c.l.b16 %v897
  %v2210 = vunpack.c.h.b16 %v897
  %v2211 = vunpack.c.l.b16 %v898
  %v2212 = vunpack.c.h.b16 %v898
  %v2213 = vunpack.c.l.b16 %v899
  %v2214 = vunpack.c.h.b16 %v899
  %v2215 = vunpack.c.l.b16 %v900
  %v2216 = vunpack.c.h.b16 %v900
  %v2217 = vunpack.c.l.b16 %v901
  %v2218 = vunpack.c.h.b16 %v901
  %v2219 = vunpack.c.l.b16 %v902
  %v2220 = vunpack.c.h.b16 %v902
  %v2221 = vunpack.c.l.b16 %v903
  %v2222 = vunpack.c.h.b16 %v903
  %v2223 = vunpack.c.l.b16 %v904
  %v2224 = vunpack.c.h.b16 %v904
  %v2225 = vunpack.c.l.b16 %v905
  %v2226 = vunpack.c.h.b16 %v905
  %v2227 = vunpack.c.l.b16 %v906
  %v2228 = vunpack.c.h.b16 %v906
  %v2229 = vunpack.c.l.b16 %v907
  %v2230 = vunpack.c.h.b16 %v907
  %v2231 = vunpack.c.l.b16 %v908
  %v2232 = vunpack.c.h.b16 %v908
  %v2233 = vunpack.c.l.b16 %v909
  %v2234 = vunpack.c.h.b16 %v909
  %v2235 = vunpack.c.l.b16 %v910
  %v2236 = vunpack.c.h.b16 %v910
  %v2237 = vunpack.c.l.b16 %v911
  %v2238 = vunpack.c.h.b16 %v911
  %v2239 = vunpack.c.l.b16 %v912
  %v2240 = vunpack.c.h.b16 %v912
  %v2241 = vunpack.c.l.b16 %v913
  %v2242 = vunpack.c.h.b16 %v913
  %v2243 = vunpack.c.l.b16 %v914
  %v2244 = vunpack.c.h.b16 %v914
  %v2245 = vunpack.c.l.b16 %v915
  %v2246 = vunpack.c.h.b16 %v915
  %v2247 = vunpack.c.l.b16 %v916
  %v2248 = vunpack.c.h.b16 %v916
  %v2249 = vunpack.c.l.b16 %v917
  %v2250 = vunpack.c.h.b16 %v917
  %v2251 = vunpack.c.l.b16 %v918
  %v2252 = vunpack.c.h.b16 %v918
  %v2253 = vunpack.c.l.b16 %v919
  %v2254 = vunpack.c.h.b16 %v919
  %v2255 = vunpack.c.l.b16 %v920
  %v2256 = vunpack.c.h.b16 %v920
  %v2257 = vunpack.c.l.b16 %v921
  %v2258 = vunpack.c.h.b16 %v921
  %v2259 = vunpack.c.l.b16 %v922
  %v2260 = vunpack.c.h.b16 %v922
  %v2261 = vunpack.c.l.b16 %v923
  %v2262 = vunpack.c.h.b16 %v923
  %v2263 = vunpack.c.l.b16 %v924
  %v2264 = vunpack.c.h.b16 %v924
  %v2265 = vunpack.c.l.b16 %v925
  %v2266 = vunpack.c.h.b16 %v925
  %v2267 = vunpack.c.l.b16 %v926
  %v2268 = vunpack.c.h.b16 %v926
  %v2269 = vunpack.c.l.b16 %v927
  %v2270 = vunpack.c.h.b16 %v927
  %v2271 = vunpack.c.l.b16 %v928
  %v2272 = vunpack.c.h.b16 %v928
  %v2273 = vunpack.c.l.b16 %v929
  %v2274 = vunpack.c.h.b16 %v929
  %v2275 = vunpack.c.l.b16 %v930
  %v2276 = vunpack.c.h.b16 %v930
  %v2277 = vunpack.c.l.b16 %v931
  %v2278 = vunpack.c.h.b16 %v931
  %v2279 = vunpack.c.l.b16 %v932
  %v2280 = vunpack.c.h.b16 %v932
  %v2281 = vunpack.c.l.b16 %v933
  %v2282 = vunpack.c.h.b16 %v933
  %v2283 = vunpack.c.l.b16 %v934
  %v2284 = vunpack.c.h.b16 %v934
  %v2285 = vunpack.c.l.b16 %v935
  %v2286 = vunpack.c.h.b16 %v935
  %v2287 = vunpack.c.l.b16 %v936
  %v2288 = vunpack.c.h.b16 %v936
  %v2289 = vunpack.c.l.b16 %v937
  %v2290 = vunpack.c.h.b16 %v937
  %v2291 = vunpack.c.l.b16 %v938
  %v2292 = vunpack.c.h.b16 %v938
  %v2293 = vunpack.c.l.b16 %v939
  %v2294 = vunpack.c.h.b16 %v939
  %v2295 = vunpack.c.l.b16 %v940
  %v2296 = vunpack.c.h.b16 %v940
  %v2297 = vunpack.c.l.b16 %v941
  %v2298 = vunpack.c.h.b16 %v941
  %v2299 = vunpack.c.l.b16 %v942
  %v2300 = vunpack.c.h.b16 %v942
  %v2301 = vunpack.c.l.b16 %v943
  %v2302 = vunpack.c.h.b16 %v943
  %v2303 = vunpack.c.l.b16 %v944
  %v2304 = vunpack.c.h.b16 %v944
  %v2305 = vunpack.c.l.b16 %v945
  %v2306 = vunpack.c.h.b16 %v945
  %v2307 = vunpack.c.l.b16 %v946
  %v2308 = vunpack.c.h.b16 %v946
  %v2309 = vunpack.c.l.b16 %v947
  %v2310 = vunpack.c.h.b16 %v947
  %v2311 = vunpack.c.l.b16 %v948
  %v2312 = vunpack.c.h.b16 %v948
  %v2313 = vunpack.c.l.b16 %v949
  %v2314 = vunpack.c.h.b16 %v949
  %v2315 = vunpack.c.l.b16 %v950
  %v2316 = vunpack.c.h.b16 %v950
  %v2317 = vunpack.c.l.b16 %v951
  %v2318 = vunpack.c.h.b16 %v951
  %v2319 = vunpack.c.l.b16 %v952
  %v2320 = vunpack.c.h.b16 %v952
  %v2321 = vunpack.c.l.b16 %v953
  %v2322 = vunpack.c.h.b16 %v953
  %v2323 = vunpack.c.l.b16 %v954
  %v2324 = vunpack.c.h.b16 %v954
  %v2325 = vunpack.c.l.b16 %v955
  %v2326 = vunpack.c.h.b16 %v955
  %v2327 = vunpack.c.l.b16 %v956
  %v2328 = vunpack.c.h.b16 %v956
  %v2329 = vunpack.c.l.b16 %v957
  %v2330 = vunpack.c.h.b16 %v957
  %v2331 = vunpack.c.l.b16 %v958
  %v2332 = vunpack.c.h.b16 %v958
  %v2333 = vunpack.c.l.b16 %v959
  %v2334 = vunpack.c.h.b16 %v959
  %v2335 = vunpack.c.l.b16 %v960
  %v2336 = vunpack.c.h.b16 %v960
  %v2337 = vunpack.c.l.b16 %v961
  %v2338 = vunpack.c.h.b16 %v961
  %v2339 = vunpack.c.l.b16 %v962
  %v2340 = vunpack.c.h.b16 %v962
  %v2341 = vunpack.c.l.b16 %v963
  %v2342 = vunpack.c.h.b16 %v963
  %v2343 = vunpack.c.l.b16 %v964
  %v2344 = vunpack.c.h.b16 %v964
  %v2345 = vunpack.c.l.b16 %v965
  %v2346 = vunpack.c.h.b16 %v965
  %v2347 = vunpack.c.l.b16 %v966
  %v2348 = vunpack.c.h.b16 %v966
  %v2349 = vunpack.c.l.b16 %v967
  %v2350 = vunpack.c.h.b16 %v967
  %v2351 = vunpack.c.l.b16 %v968
  %v2352 = vunpack.c.h.b16 %v968
  %v2353 = vunpack.c.l.b16 %v969
  %v2354 = vunpack.c.h.b16 %v969
  %v2355 = vunpack.c.l.b16 %v970
  %v2356 = vunpack.c.h.b16 %v970
  %v2357 = vunpack.c.l.b16 %v971
  %v2358 = vunpack.c.h.b16 %v971
  %v2359 = vunpack.c.l.b16 %v972
  %v2360 = vunpack.c.h.b16 %v972
  %v2361 = vunpack.c.l.b16 %v973
  %v2362 = vunpack.c.h.b16 %v973
  %v2363 = vunpack.c.l.b16 %v974
  %v2364 = vunpack.c.h.b16 %v974
  %v2365 = vunpack.c.l.b16 %v975
  %v2366 = vunpack.c.h.b16 %v975
  %v2367 = vunpack.c.l.b16 %v976
  %v2368 = vunpack.c.h.b16 %v976
  %v2369 = vunpack.c.l.b16 %v977
  %v2370 = vunpack.c.h.b16 %v977
  %v2371 = vunpack.c.l.b16 %v978
  %v2372 = vunpack.c.h.b16 %v978
  %v2373 = vunpack.c.l.b16 %v979
  %v2374 = vunpack.c.h.b16 %v979
  %v2375 = vunpack.c.l.b16 %v980
  %v2376 = vunpack.c.h.b16 %v980
  %v2377 = vunpack.c.l.b16 %v981
  %v2378 = vunpack.c.h.b16 %v981
  %v2379 = vunpack.c.l.b16 %v982
  %v2380 = vunpack.c.h.b16 %v982
  %v2381 = vunpack.c.l.b16 %v983
  %v2382 = vunpack.c.h.b16 %v983
  %v2383 = vunpack.c.l.b16 %v984
  %v2384 = vunpack.c.h.b16 %v984
  %v2385 = vunpack.c.l.b16 %v985
  %v2386 = vunpack.c.h.b16 %v985
  %v2387 = vunpack.c.l.b16 %v986
  %v2388 = vunpack.c.h.b16 %v986
  %v2389 = vunpack.c.l.b16 %v987
  %v2390 = vunpack.c.h.b16 %v987
  %v2391 = vunpack.c.l.b16 %v988
  %v2392 = vunpack.c.h.b16 %v988
  %v2393 = vunpack.c.l.b16 %v989
  %v2394 = vunpack.c.h.b16 %v989
  %v2395 = vunpack.c.l.b16 %v990
  %v2396 = vunpack.c.h.b16 %v990
  %v2397 = vunpack.c.l.b16 %v991
  %v2398 = vunpack.c.h.b16 %v991
  %v2399 = vunpack.c.l.b16 %v992
  %v2400 = vunpack.c.h.b16 %v992
  %v2401 = vunpack.c.l.b16 %v993
  %v2402 = vunpack.c.h.b16 %v993
  %v2403 = vunpack.c.l.b16 %v994
  %v2404 = vunpack.c.h.b16 %v994
  %v2405 = vunpack.c.l.b16 %v995
  %v2406 = vunpack.c.h.b16 %v995
  %v2407 = vunpack.c.l.b16 %v996
  %v2408 = vunpack.c.h.b16 %v996
  %v2409 = vunpack.c.l.b16 %v997
  %v2410 = vunpack.c.h.b16 %v997
  %v2411 = vunpack.c.l.b16 %v998
  %v2412 = vunpack.c.h.b16 %v998
  %v2413 = vunpack.c.l.b16 %v999
  %v2414 = vunpack.c.h.b16 %v999
  %v2415 = vunpack.c.l.b16 %v1000
  %v2416 = vunpack.c.h.b16 %v1000
  %v2417 = vunpack.c.l.b16 %v1001
  %v2418 = vunpack.c.h.b16 %v1001
  %v2419 = vunpack.c.l.b16 %v1002
  %v2420 = vunpack.c.h.b16 %v1002
  %v2421 = vunpack.c.l.b16 %v1003
  %v2422 = vunpack.c.h.b16 %v1003
  %v2423 = vunpack.c.l.b16 %v1004
  %v2424 = vunpack.c.h.b16 %v1004
  %v2425 = vunpack.c.l.b16 %v1005
  %v2426 = vunpack.c.h.b16 %v1005
  %v2427 = vunpack.c.l.b16 %v1006
  %v2428 = vunpack.c.h.b16 %v1006
  %v2429 = vunpack.c.l.b16 %v1007
  %v2430 = vunpack.c.h.b16 %v1007
  %v2431 = vunpack.c.l.b16 %v1008
  %v2432 = vunpack.c.h.b16 %v1008
  %v2433 = vunpack.c.l.b16 %v1009
  %v2434 = vunpack.c.h.b16 %v1009
  %v2435 = vunpack.c.l.b16 %v1010
  %v2436 = vunpack.c.h.b16 %v1010
  %v2437 = vunpack.c.l.b16 %v1011
  %v2438 = vunpack.c.h.b16 %v1011
  %v2439 = vunpack.c.l.b16 %v1012
  %v2440 = vunpack.c.h.b16 %v1012
  %v2441 = vunpack.c.l.b16 %v1013
  %v2442 = vunpack.c.h.b16 %v1013
  %v2443 = vunpack.c.l.b16 %v1014
  %v2444 = vunpack.c.h.b16 %v1014
  %v2445 = vunpack.c.l.b16 %v1015
  %v2446 = vunpack.c.h.b16 %v1015
  %v2447 = vunpack.c.l.b16 %v1016
  %v2448 = vunpack.c.h.b16 %v1016
  %v2449 = vpack.c.b16 %v2201, %v2193
  %v2450 = vpack.c.b16 %v2202, %v2194
  %v2451 = vpack.c.b16 %v2203, %v2195
  %v2452 = vpack.c.b16 %v2204, %v2196
  %v2453 = vpack.c.b16 %v2205, %v2197
  %v2454 = vpack.c.b16 %v2206, %v2198
  %v2455 = vpack.c.b16 %v2207, %v2199
  %v2456 = vpack.c.b16 %v2208, %v2200
  %v2457 = vpack.c.b16 %v2217, %v2209
  %v2458 = vpack.c.b16 %v2218, %v2210
  %v2459 = vpack.c.b16 %v2219, %v2211
  %v2460 = vpack.c.b16 %v2220, %v2212
  %v2461 = vpack.c.b16 %v2221, %v2213
  %v2462 = vpack.c.b16 %v2222, %v2214
  %v2463 = vpack.c.b16 %v2223, %v2215
  %v2464 = vpack.c.b16 %v2224, %v2216
  %v2465 = vpack.c.b16 %v2233, %v2225
  %v2466 = vpack.c.b16 %v2234, %v2226
  %v2467 = vpack.c.b16 %v2235, %v2227
  %v2468 = vpack.c.b16 %v2236, %v2228
  %v2469 = vpack.c.b16 %v2237, %v2229
  %v2470 = vpack.c.b16 %v2238, %v2230
  %v2471 = vpack.c.b16 %v2239, %v2231
  %v2472 = vpack.c.b16 %v2240, %v2232
  %v2473 = vpack.c.b16 %v2249, %v2241
  %v2474 = vpack.c.b16 %v2250, %v2242
  %v2475 = vpack.c.b16 %v2251, %v2243
  %v2476 = vpack.c.b16 %v2252, %v2244
  %v2477 = vpack.c.b16 %v2253, %v2245
  %v2478 = vpack.c.b16 %v2254, %v2246
  %v2479 = vpack.c.b16 %v2255, %v2247
  %v2480 = vpack.c.b16 %v2256, %v2248
  %v2481 = vpack.c.b16 %v2265, %v2257
  %v2482 = vpack.c.b16 %v2266, %v2258
  %v2483 = vpack.c.b16 %v2267, %v2259
  %v2484 = vpack.c.b16 %v2268, %v2260
  %v2485 = vpack.c.b16 %v2269, %v2261
  %v2486 = vpack.c.b16 %v2270, %v2262
  %v2487 = vpack.c.b16 %v2271, %v2263
  %v2488 = vpack.c.b16 %v2272, %v2264
  %v2489 = vpack.c.b16 %v2281, %v2273
  %v2490 = vpack.c.b16 %v2282, %v2274
  %v2491 = vpack.c.b16 %v2283, %v2275
  %v2492 = vpack.c.b16 %v2284, %v2276
  %v2493 = vpack.c.b16 %v2285, %v2277
  %v2494 = vpack.c.b16 %v2286, %v2278
  %v2495 = vpack.c.b16 %v2287, %v2279
  %v2496 = vpack.c.b16 %v2288, %v2280
  %v2497 = vpack.c.b16 %v2297, %v2289
  %v2498 = vpack.c.b16 %v2298, %v2290
  %v2499 = vpack.c.b16 %v2299, %v2291
  %v2500 = vpack.c.b16 %v2300, %v2292
  %v2501 = vpack.c.b16 %v2301, %v2293
  %v2502 = vpack.c.b16 %v2302, %v2294
  %v2503 = vpack.c.b16 %v2303, %v2295
  %v2504 = vpack.c.b16 %v2304, %v2296
  %v2505 = vpack.c.b16 %v2313, %v2305
  %v2506 = vpack.c.b16 %v2314, %v2306
  %v2507 = vpack.c.b16 %v2315, %v2307
  %v2508 = vpack.c.b16 %v2316, %v2308
  %v2509 = vpack.c.b16 %v2317, %v2309
  %v2510 = vpack.c.b16 %v2318, %v2310
  %v2511 = vpack.c.b16 %v2319, %v2311
  %v2512 = vpack.c.b16 %v2320, %v2312
  %v2513 = vpack.c.b16 %v2329, %v2321
  %v2514 = vpack.c.b16 %v2330, %v2322
  %v2515 = vpack.c.b16 %v2331, %v2323
  %v2516 = vpack.c.b16 %v2332, %v2324
  %v2517 = vpack.c.b16 %v2333, %v2325
  %v2518 = vpack.c.b16 %v2334, %v2326
  %v2519 = vpack.c.b16 %v2335, %v2327
  %v2520 = vpack.c.b16 %v2336, %v2328
  %v2521 = vpack.c.b16 %v2345, %v2337
  %v2522 = vpack.c.b16 %v2346, %v2338
  %v2523 = vpack.c.b16 %v2347, %v2339
  %v2524 = vpack.c.b16 %v2348, %v2340
  %v2525 = vpack.c.b16 %v2349, %v2341
  %v2526 = vpack.c.b16 %v2350, %v2342
  %v2527 = vpack.c.b16 %v2351, %v2343
  %v2528 = vpack.c.b16 %v2352, %v2344
  %v2529 = vpack.c.b16 %v2361, %v2353
  %v2530 = vpack.c.b16 %v2362, %v2354
  %v2531 = vpack.c.b16 %v2363, %v2355
  %v2532 = vpack.c.b16 %v2364, %v2356
  %v2533 = vpack.c.b16 %v2365, %v2357
  %v2534 = vpack.c.b16 %v2366, %v2358
  %v2535 = vpack.c.b16 %v2367, %v2359
  %v2536 = vpack.c.b16 %v2368, %v2360
  %v2537 = vpack.c.b16 %v2377, %v2369
  %v2538 = vpack.c.b16 %v2378, %v2370
  %v2539 = vpack.c.b16 %v2379, %v2371
  %v2540 = vpack.c.b16 %v2380, %v2372
  %v2541 = vpack.c.b16 %v2381, %v2373
  %v2542 = vpack.c.b16 %v2382, %v2374
  %v2543 = vpack.c.b16 %v2383, %v2375
  %v2544 = vpack.c.b16 %v2384, %v2376
  %v2545 = vpack.c.b16 %v2393, %v2385
  %v2546 = vpack.c.b16 %v2394, %v2386
  %v2547 = vpack.c.b16 %v2395, %v2387
  %v2548 = vpack.c.b16 %v2396, %v2388
  %v2549 = vpack.c.b16 %v2397, %v2389
  %v2550 = vpack.c.b16 %v2398, %v2390
  %v2551 = vpack.c.b16 %v2399, %v2391
  %v2552 = vpack.c.b16 %v2400, %v2392
  %v2553 = vpack.c.b16 %v2409, %v2401
  %v2554 = vpack.c.b16 %v2410, %v2402
  %v2555 = vpack.c.b16 %v2411, %v2403
  %v2556 = vpack.c.b16 %v2412, %v2404
  %v2557 = vpack.c.b16 %v2413, %v2405
  %v2558 = vpack.c.b16 %v2414, %v2406
  %v2559 = vpack.c.b16 %v2415, %v2407
  %v2560 = vpack.c.b16 %v2416, %v2408
  %v2561 = vpack.c.b16 %v2425, %v2417
  %v2562 = vpack.c.b16 %v2426, %v2418
  %v2563 = vpack.c.b16 %v2427, %v2419
  %v2564 = vpack.c.b16 %v2428, %v2420
  %v2565 = vpack.c.b16 %v2429, %v2421
  %v2566 = vpack.c.b16 %v2430, %v2422
  %v2567 = vpack.c.b16 %v2431, %v2423
  %v2568 = vpack.c.b16 %v2432, %v2424
  %v2569 = vpack.c.b16 %v2441, %v2433
  %v2570 = vpack.c.b16 %v2442, %v2434
  %v2571 = vpack.c.b16 %v2443, %v2435
  %v2572 = vpack.c.b16 %v2444, %v2436
  %v2573 = vpack.c.b16 %v2445, %v2437
  %v2574 = vpack.c.b16 %v2446, %v2438
  %v2575 = vpack.c.b16 %v2447, %v2439
  %v2576 = vpack.c.b16 %v2448, %v2440
  %2705 = vmatpush.bf16.msra.mxu0 %v2505
  %2706 = vmatpush.bf16.msra.mxu0 %v2497
  %2707 = vmatpush.bf16.msra.mxu0 %v2489
  %2708 = vmatpush.bf16.msra.mxu0 %v2481
  %2709 = vmatpush.bf16.msra.mxu0 %v2473
  %2710 = vmatpush.bf16.msra.mxu0 %v2465
  %2711 = vmatpush.bf16.msra.mxu0 %v2457
  %2712 = vmatpush.bf16.msra.mxu0 %v2449
  %2713 = vmatmul.bf16.gmra.mxu0 %v2063
  %v2714 = vpop.f32.mrf.mxu0
  %v2715 = vadd.f32 0.0, %v2714
  %v2716 = vpop.f32.mrf.mxu0
  %2717 = vdwg.mxu0
  %2718 = vmatpush.bf16.msra.mxu0 %v2569
  %2719 = vmatpush.bf16.msra.mxu0 %v2561
  %2720 = vmatpush.bf16.msra.mxu0 %v2553
  %2721 = vmatpush.bf16.msra.mxu0 %v2545
  %2722 = vmatpush.bf16.msra.mxu0 %v2537
  %2723 = vmatpush.bf16.msra.mxu0 %v2529
  %2724 = vmatpush.bf16.msra.mxu0 %v2521
  %2725 = vmatpush.bf16.msra.mxu0 %v2513
  %2726 = vmatmul.bf16.gmra.mxu0 %v2064
  %v2727 = vpop.f32.mrf.mxu0
  %v2728 = vadd.f32 %v2715, %v2727
  %v2729 = vpop.f32.mrf.mxu0
  %2730 = vdwg.mxu0
  %2731 = vmatpush.bf16.msra.mxu0 %v2506
  %2732 = vmatpush.bf16.msra.mxu0 %v2498
  %2733 = vmatpush.bf16.msra.mxu0 %v2490
  %2734 = vmatpush.bf16.msra.mxu0 %v2482
  %2735 = vmatpush.bf16.msra.mxu0 %v2474
  %2736 = vmatpush.bf16.msra.mxu0 %v2466
  %2737 = vmatpush.bf16.msra.mxu0 %v2458
  %2738 = vmatpush.bf16.msra.mxu0 %v2450
  %2739 = vmatmul.bf16.gmra.mxu0 %v2063
  %v2740 = vpop.f32.mrf.mxu0
  %v2741 = vadd.f32 0.0, %v2740
  %v2742 = vpop.f32.mrf.mxu0
  %2743 = vdwg.mxu0
  %2744 = vmatpush.bf16.msra.mxu0 %v2570
  %2745 = vmatpush.bf16.msra.mxu0 %v2562
  %2746 = vmatpush.bf16.msra.mxu0 %v2554
  %2747 = vmatpush.bf16.msra.mxu0 %v2546
  %2748 = vmatpush.bf16.msra.mxu0 %v2538
  %2749 = vmatpush.bf16.msra.mxu0 %v2530
  %2750 = vmatpush.bf16.msra.mxu0 %v2522
  %2751 = vmatpush.bf16.msra.mxu0 %v2514
  %2752 = vmatmul.bf16.gmra.mxu0 %v2064
  %v2753 = vpop.f32.mrf.mxu0
  %v2754 = vadd.f32 %v2741, %v2753
  %v2755 = vpop.f32.mrf.mxu0
  %2756 = vdwg.mxu0
  %2757 = vmatpush.bf16.msra.mxu0 %v2507
  %2758 = vmatpush.bf16.msra.mxu0 %v2499
  %2759 = vmatpush.bf16.msra.mxu0 %v2491
  %2760 = vmatpush.bf16.msra.mxu0 %v2483
  %2761 = vmatpush.bf16.msra.mxu0 %v2475
  %2762 = vmatpush.bf16.msra.mxu0 %v2467
  %2763 = vmatpush.bf16.msra.mxu0 %v2459
  %2764 = vmatpush.bf16.msra.mxu0 %v2451
  %2765 = vmatmul.bf16.gmra.mxu0 %v2063
  %v2766 = vpop.f32.mrf.mxu0
  %v2767 = vadd.f32 0.0, %v2766
  %v2768 = vpop.f32.mrf.mxu0
  %2769 = vdwg.mxu0
  %2770 = vmatpush.bf16.msra.mxu0 %v2571
  %2771 = vmatpush.bf16.msra.mxu0 %v2563
  %2772 = vmatpush.bf16.msra.mxu0 %v2555
  %2773 = vmatpush.bf16.msra.mxu0 %v2547
  %2774 = vmatpush.bf16.msra.mxu0 %v2539
  %2775 = vmatpush.bf16.msra.mxu0 %v2531
  %2776 = vmatpush.bf16.msra.mxu0 %v2523
  %2777 = vmatpush.bf16.msra.mxu0 %v2515
  %2778 = vmatmul.bf16.gmra.mxu0 %v2064
  %v2779 = vpop.f32.mrf.mxu0
  %v2780 = vadd.f32 %v2767, %v2779
  %v2781 = vpop.f32.mrf.mxu0
  %2782 = vdwg.mxu0
  %2783 = vmatpush.bf16.msra.mxu0 %v2508
  %2784 = vmatpush.bf16.msra.mxu0 %v2500
  %2785 = vmatpush.bf16.msra.mxu0 %v2492
  %2786 = vmatpush.bf16.msra.mxu0 %v2484
  %2787 = vmatpush.bf16.msra.mxu0 %v2476
  %2788 = vmatpush.bf16.msra.mxu0 %v2468
  %2789 = vmatpush.bf16.msra.mxu0 %v2460
  %2790 = vmatpush.bf16.msra.mxu0 %v2452
  %2791 = vmatmul.bf16.gmra.mxu0 %v2063
  %v2792 = vpop.f32.mrf.mxu0
  %v2793 = vadd.f32 0.0, %v2792
  %v2794 = vpop.f32.mrf.mxu0
  %2795 = vdwg.mxu0
  %2796 = vmatpush.bf16.msra.mxu0 %v2572
  %2797 = vmatpush.bf16.msra.mxu0 %v2564
  %2798 = vmatpush.bf16.msra.mxu0 %v2556
  %2799 = vmatpush.bf16.msra.mxu0 %v2548
  %2800 = vmatpush.bf16.msra.mxu0 %v2540
  %2801 = vmatpush.bf16.msra.mxu0 %v2532
  %2802 = vmatpush.bf16.msra.mxu0 %v2524
  %2803 = vmatpush.bf16.msra.mxu0 %v2516
  %2804 = vmatmul.bf16.gmra.mxu0 %v2064
  %v2805 = vpop.f32.mrf.mxu0
  %v2806 = vadd.f32 %v2793, %v2805
  %v2807 = vpop.f32.mrf.mxu0
  %2808 = vdwg.mxu0
  %2809 = vmatpush.bf16.msra.mxu0 %v2509
  %2810 = vmatpush.bf16.msra.mxu0 %v2501
  %2811 = vmatpush.bf16.msra.mxu0 %v2493
  %2812 = vmatpush.bf16.msra.mxu0 %v2485
  %2813 = vmatpush.bf16.msra.mxu0 %v2477
  %2814 = vmatpush.bf16.msra.mxu0 %v2469
  %2815 = vmatpush.bf16.msra.mxu0 %v2461
  %2816 = vmatpush.bf16.msra.mxu0 %v2453
  %2817 = vmatmul.bf16.gmra.mxu0 %v2063
  %v2818 = vpop.f32.mrf.mxu0
  %v2819 = vadd.f32 0.0, %v2818
  %v2820 = vpop.f32.mrf.mxu0
  %2821 = vdwg.mxu0
  %2822 = vmatpush.bf16.msra.mxu0 %v2573
  %2823 = vmatpush.bf16.msra.mxu0 %v2565
  %2824 = vmatpush.bf16.msra.mxu0 %v2557
  %2825 = vmatpush.bf16.msra.mxu0 %v2549
  %2826 = vmatpush.bf16.msra.mxu0 %v2541
  %2827 = vmatpush.bf16.msra.mxu0 %v2533
  %2828 = vmatpush.bf16.msra.mxu0 %v2525
  %2829 = vmatpush.bf16.msra.mxu0 %v2517
  %2830 = vmatmul.bf16.gmra.mxu0 %v2064
  %v2831 = vpop.f32.mrf.mxu0
  %v2832 = vadd.f32 %v2819, %v2831
  %v2833 = vpop.f32.mrf.mxu0
  %2834 = vdwg.mxu0
  %2835 = vmatpush.bf16.msra.mxu0 %v2510
  %2836 = vmatpush.bf16.msra.mxu0 %v2502
  %2837 = vmatpush.bf16.msra.mxu0 %v2494
  %2838 = vmatpush.bf16.msra.mxu0 %v2486
  %2839 = vmatpush.bf16.msra.mxu0 %v2478
  %2840 = vmatpush.bf16.msra.mxu0 %v2470
  %2841 = vmatpush.bf16.msra.mxu0 %v2462
  %2842 = vmatpush.bf16.msra.mxu0 %v2454
  %2843 = vmatmul.bf16.gmra.mxu0 %v2063
  %v2844 = vpop.f32.mrf.mxu0
  %v2845 = vadd.f32 0.0, %v2844
  %v2846 = vpop.f32.mrf.mxu0
  %2847 = vdwg.mxu0
  %2848 = vmatpush.bf16.msra.mxu0 %v2574
  %2849 = vmatpush.bf16.msra.mxu0 %v2566
  %2850 = vmatpush.bf16.msra.mxu0 %v2558
  %2851 = vmatpush.bf16.msra.mxu0 %v2550
  %2852 = vmatpush.bf16.msra.mxu0 %v2542
  %2853 = vmatpush.bf16.msra.mxu0 %v2534
  %2854 = vmatpush.bf16.msra.mxu0 %v2526
  %2855 = vmatpush.bf16.msra.mxu0 %v2518
  %2856 = vmatmul.bf16.gmra.mxu0 %v2064
  %v2857 = vpop.f32.mrf.mxu0
  %v2858 = vadd.f32 %v2845, %v2857
  %v2859 = vpop.f32.mrf.mxu0
  %2860 = vdwg.mxu0
  %2861 = vmatpush.bf16.msra.mxu0 %v2511
  %2862 = vmatpush.bf16.msra.mxu0 %v2503
  %2863 = vmatpush.bf16.msra.mxu0 %v2495
  %2864 = vmatpush.bf16.msra.mxu0 %v2487
  %2865 = vmatpush.bf16.msra.mxu0 %v2479
  %2866 = vmatpush.bf16.msra.mxu0 %v2471
  %2867 = vmatpush.bf16.msra.mxu0 %v2463
  %2868 = vmatpush.bf16.msra.mxu0 %v2455
  %2869 = vmatmul.bf16.gmra.mxu0 %v2063
  %v2870 = vpop.f32.mrf.mxu0
  %v2871 = vadd.f32 0.0, %v2870
  %v2872 = vpop.f32.mrf.mxu0
  %2873 = vdwg.mxu0
  %2874 = vmatpush.bf16.msra.mxu0 %v2575
  %2875 = vmatpush.bf16.msra.mxu0 %v2567
  %2876 = vmatpush.bf16.msra.mxu0 %v2559
  %2877 = vmatpush.bf16.msra.mxu0 %v2551
  %2878 = vmatpush.bf16.msra.mxu0 %v2543
  %2879 = vmatpush.bf16.msra.mxu0 %v2535
  %2880 = vmatpush.bf16.msra.mxu0 %v2527
  %2881 = vmatpush.bf16.msra.mxu0 %v2519
  %2882 = vmatmul.bf16.gmra.mxu0 %v2064
  %v2883 = vpop.f32.mrf.mxu0
  %v2884 = vadd.f32 %v2871, %v2883
  %v2885 = vpop.f32.mrf.mxu0
  %2886 = vdwg.mxu0
  %2887 = vmatpush.bf16.msra.mxu0 %v2512
  %2888 = vmatpush.bf16.msra.mxu0 %v2504
  %2889 = vmatpush.bf16.msra.mxu0 %v2496
  %2890 = vmatpush.bf16.msra.mxu0 %v2488
  %2891 = vmatpush.bf16.msra.mxu0 %v2480
  %2892 = vmatpush.bf16.msra.mxu0 %v2472
  %2893 = vmatpush.bf16.msra.mxu0 %v2464
  %2894 = vmatpush.bf16.msra.mxu0 %v2456
  %2895 = vmatmul.bf16.gmra.mxu0 %v2063
  %v2896 = vpop.f32.mrf.mxu0
  %v2897 = vadd.f32 0.0, %v2896
  %v2898 = vpop.f32.mrf.mxu0
  %2899 = vdwg.mxu0
  %2900 = vmatpush.bf16.msra.mxu0 %v2576
  %2901 = vmatpush.bf16.msra.mxu0 %v2568
  %2902 = vmatpush.bf16.msra.mxu0 %v2560
  %2903 = vmatpush.bf16.msra.mxu0 %v2552
  %2904 = vmatpush.bf16.msra.mxu0 %v2544
  %2905 = vmatpush.bf16.msra.mxu0 %v2536
  %2906 = vmatpush.bf16.msra.mxu0 %v2528
  %2907 = vmatpush.bf16.msra.mxu0 %v2520
  %2908 = vmatmul.bf16.gmra.mxu0 %v2064
  %v2909 = vpop.f32.mrf.mxu0
  %v2910 = vadd.f32 %v2897, %v2909
  %v2911 = vpop.f32.mrf.mxu0
  %2912 = vdwg.mxu0
  %v3041 = vunpack.c.l.b16 %v1017
  %v3042 = vunpack.c.h.b16 %v1017
  %v3043 = vunpack.c.l.b16 %v1018
  %v3044 = vunpack.c.h.b16 %v1018
  %v3045 = vunpack.c.l.b16 %v1019
  %v3046 = vunpack.c.h.b16 %v1019
  %v3047 = vunpack.c.l.b16 %v1020
  %v3048 = vunpack.c.h.b16 %v1020
  %v3049 = vunpack.c.l.b16 %v1021
  %v3050 = vunpack.c.h.b16 %v1021
  %v3051 = vunpack.c.l.b16 %v1022
  %v3052 = vunpack.c.h.b16 %v1022
  %v3053 = vunpack.c.l.b16 %v1023
  %v3054 = vunpack.c.h.b16 %v1023
  %v3055 = vunpack.c.l.b16 %v1024
  %v3056 = vunpack.c.h.b16 %v1024
  %v3057 = vunpack.c.l.b16 %v1025
  %v3058 = vunpack.c.h.b16 %v1025
  %v3059 = vunpack.c.l.b16 %v1026
  %v3060 = vunpack.c.h.b16 %v1026
  %v3061 = vunpack.c.l.b16 %v1027
  %v3062 = vunpack.c.h.b16 %v1027
  %v3063 = vunpack.c.l.b16 %v1028
  %v3064 = vunpack.c.h.b16 %v1028
  %v3065 = vunpack.c.l.b16 %v1029
  %v3066 = vunpack.c.h.b16 %v1029
  %v3067 = vunpack.c.l.b16 %v1030
  %v3068 = vunpack.c.h.b16 %v1030
  %v3069 = vunpack.c.l.b16 %v1031
  %v3070 = vunpack.c.h.b16 %v1031
  %v3071 = vunpack.c.l.b16 %v1032
  %v3072 = vunpack.c.h.b16 %v1032
  %v3073 = vunpack.c.l.b16 %v1033
  %v3074 = vunpack.c.h.b16 %v1033
  %v3075 = vunpack.c.l.b16 %v1034
  %v3076 = vunpack.c.h.b16 %v1034
  %v3077 = vunpack.c.l.b16 %v1035
  %v3078 = vunpack.c.h.b16 %v1035
  %v3079 = vunpack.c.l.b16 %v1036
  %v3080 = vunpack.c.h.b16 %v1036
  %v3081 = vunpack.c.l.b16 %v1037
  %v3082 = vunpack.c.h.b16 %v1037
  %v3083 = vunpack.c.l.b16 %v1038
  %v3084 = vunpack.c.h.b16 %v1038
  %v3085 = vunpack.c.l.b16 %v1039
  %v3086 = vunpack.c.h.b16 %v1039
  %v3087 = vunpack.c.l.b16 %v1040
  %v3088 = vunpack.c.h.b16 %v1040
  %v3089 = vunpack.c.l.b16 %v1041
  %v3090 = vunpack.c.h.b16 %v1041
  %v3091 = vunpack.c.l.b16 %v1042
  %v3092 = vunpack.c.h.b16 %v1042
  %v3093 = vunpack.c.l.b16 %v1043
  %v3094 = vunpack.c.h.b16 %v1043
  %v3095 = vunpack.c.l.b16 %v1044
  %v3096 = vunpack.c.h.b16 %v1044
  %v3097 = vunpack.c.l.b16 %v1045
  %v3098 = vunpack.c.h.b16 %v1045
  %v3099 = vunpack.c.l.b16 %v1046
  %v3100 = vunpack.c.h.b16 %v1046
  %v3101 = vunpack.c.l.b16 %v1047
  %v3102 = vunpack.c.h.b16 %v1047
  %v3103 = vunpack.c.l.b16 %v1048
  %v3104 = vunpack.c.h.b16 %v1048
  %v3105 = vunpack.c.l.b16 %v1049
  %v3106 = vunpack.c.h.b16 %v1049
  %v3107 = vunpack.c.l.b16 %v1050
  %v3108 = vunpack.c.h.b16 %v1050
  %v3109 = vunpack.c.l.b16 %v1051
  %v3110 = vunpack.c.h.b16 %v1051
  %v3111 = vunpack.c.l.b16 %v1052
  %v3112 = vunpack.c.h.b16 %v1052
  %v3113 = vunpack.c.l.b16 %v1053
  %v3114 = vunpack.c.h.b16 %v1053
  %v3115 = vunpack.c.l.b16 %v1054
  %v3116 = vunpack.c.h.b16 %v1054
  %v3117 = vunpack.c.l.b16 %v1055
  %v3118 = vunpack.c.h.b16 %v1055
  %v3119 = vunpack.c.l.b16 %v1056
  %v3120 = vunpack.c.h.b16 %v1056
  %v3121 = vunpack.c.l.b16 %v1057
  %v3122 = vunpack.c.h.b16 %v1057
  %v3123 = vunpack.c.l.b16 %v1058
  %v3124 = vunpack.c.h.b16 %v1058
  %v3125 = vunpack.c.l.b16 %v1059
  %v3126 = vunpack.c.h.b16 %v1059
  %v3127 = vunpack.c.l.b16 %v1060
  %v3128 = vunpack.c.h.b16 %v1060
  %v3129 = vunpack.c.l.b16 %v1061
  %v3130 = vunpack.c.h.b16 %v1061
  %v3131 = vunpack.c.l.b16 %v1062
  %v3132 = vunpack.c.h.b16 %v1062
  %v3133 = vunpack.c.l.b16 %v1063
  %v3134 = vunpack.c.h.b16 %v1063
  %v3135 = vunpack.c.l.b16 %v1064
  %v3136 = vunpack.c.h.b16 %v1064
  %v3137 = vunpack.c.l.b16 %v1065
  %v3138 = vunpack.c.h.b16 %v1065
  %v3139 = vunpack.c.l.b16 %v1066
  %v3140 = vunpack.c.h.b16 %v1066
  %v3141 = vunpack.c.l.b16 %v1067
  %v3142 = vunpack.c.h.b16 %v1067
  %v3143 = vunpack.c.l.b16 %v1068
  %v3144 = vunpack.c.h.b16 %v1068
  %v3145 = vunpack.c.l.b16 %v1069
  %v3146 = vunpack.c.h.b16 %v1069
  %v3147 = vunpack.c.l.b16 %v1070
  %v3148 = vunpack.c.h.b16 %v1070
  %v3149 = vunpack.c.l.b16 %v1071
  %v3150 = vunpack.c.h.b16 %v1071
  %v3151 = vunpack.c.l.b16 %v1072
  %v3152 = vunpack.c.h.b16 %v1072
  %v3153 = vunpack.c.l.b16 %v1073
  %v3154 = vunpack.c.h.b16 %v1073
  %v3155 = vunpack.c.l.b16 %v1074
  %v3156 = vunpack.c.h.b16 %v1074
  %v3157 = vunpack.c.l.b16 %v1075
  %v3158 = vunpack.c.h.b16 %v1075
  %v3159 = vunpack.c.l.b16 %v1076
  %v3160 = vunpack.c.h.b16 %v1076
  %v3161 = vunpack.c.l.b16 %v1077
  %v3162 = vunpack.c.h.b16 %v1077
  %v3163 = vunpack.c.l.b16 %v1078
  %v3164 = vunpack.c.h.b16 %v1078
  %v3165 = vunpack.c.l.b16 %v1079
  %v3166 = vunpack.c.h.b16 %v1079
  %v3167 = vunpack.c.l.b16 %v1080
  %v3168 = vunpack.c.h.b16 %v1080
  %v3169 = vunpack.c.l.b16 %v1081
  %v3170 = vunpack.c.h.b16 %v1081
  %v3171 = vunpack.c.l.b16 %v1082
  %v3172 = vunpack.c.h.b16 %v1082
  %v3173 = vunpack.c.l.b16 %v1083
  %v3174 = vunpack.c.h.b16 %v1083
  %v3175 = vunpack.c.l.b16 %v1084
  %v3176 = vunpack.c.h.b16 %v1084
  %v3177 = vunpack.c.l.b16 %v1085
  %v3178 = vunpack.c.h.b16 %v1085
  %v3179 = vunpack.c.l.b16 %v1086
  %v3180 = vunpack.c.h.b16 %v1086
  %v3181 = vunpack.c.l.b16 %v1087
  %v3182 = vunpack.c.h.b16 %v1087
  %v3183 = vunpack.c.l.b16 %v1088
  %v3184 = vunpack.c.h.b16 %v1088
  %v3185 = vunpack.c.l.b16 %v1089
  %v3186 = vunpack.c.h.b16 %v1089
  %v3187 = vunpack.c.l.b16 %v1090
  %v3188 = vunpack.c.h.b16 %v1090
  %v3189 = vunpack.c.l.b16 %v1091
  %v3190 = vunpack.c.h.b16 %v1091
  %v3191 = vunpack.c.l.b16 %v1092
  %v3192 = vunpack.c.h.b16 %v1092
  %v3193 = vunpack.c.l.b16 %v1093
  %v3194 = vunpack.c.h.b16 %v1093
  %v3195 = vunpack.c.l.b16 %v1094
  %v3196 = vunpack.c.h.b16 %v1094
  %v3197 = vunpack.c.l.b16 %v1095
  %v3198 = vunpack.c.h.b16 %v1095
  %v3199 = vunpack.c.l.b16 %v1096
  %v3200 = vunpack.c.h.b16 %v1096
  %v3201 = vunpack.c.l.b16 %v1097
  %v3202 = vunpack.c.h.b16 %v1097
  %v3203 = vunpack.c.l.b16 %v1098
  %v3204 = vunpack.c.h.b16 %v1098
  %v3205 = vunpack.c.l.b16 %v1099
  %v3206 = vunpack.c.h.b16 %v1099
  %v3207 = vunpack.c.l.b16 %v1100
  %v3208 = vunpack.c.h.b16 %v1100
  %v3209 = vunpack.c.l.b16 %v1101
  %v3210 = vunpack.c.h.b16 %v1101
  %v3211 = vunpack.c.l.b16 %v1102
  %v3212 = vunpack.c.h.b16 %v1102
  %v3213 = vunpack.c.l.b16 %v1103
  %v3214 = vunpack.c.h.b16 %v1103
  %v3215 = vunpack.c.l.b16 %v1104
  %v3216 = vunpack.c.h.b16 %v1104
  %v3217 = vunpack.c.l.b16 %v1105
  %v3218 = vunpack.c.h.b16 %v1105
  %v3219 = vunpack.c.l.b16 %v1106
  %v3220 = vunpack.c.h.b16 %v1106
  %v3221 = vunpack.c.l.b16 %v1107
  %v3222 = vunpack.c.h.b16 %v1107
  %v3223 = vunpack.c.l.b16 %v1108
  %v3224 = vunpack.c.h.b16 %v1108
  %v3225 = vunpack.c.l.b16 %v1109
  %v3226 = vunpack.c.h.b16 %v1109
  %v3227 = vunpack.c.l.b16 %v1110
  %v3228 = vunpack.c.h.b16 %v1110
  %v3229 = vunpack.c.l.b16 %v1111
  %v3230 = vunpack.c.h.b16 %v1111
  %v3231 = vunpack.c.l.b16 %v1112
  %v3232 = vunpack.c.h.b16 %v1112
  %v3233 = vunpack.c.l.b16 %v1113
  %v3234 = vunpack.c.h.b16 %v1113
  %v3235 = vunpack.c.l.b16 %v1114
  %v3236 = vunpack.c.h.b16 %v1114
  %v3237 = vunpack.c.l.b16 %v1115
  %v3238 = vunpack.c.h.b16 %v1115
  %v3239 = vunpack.c.l.b16 %v1116
  %v3240 = vunpack.c.h.b16 %v1116
  %v3241 = vunpack.c.l.b16 %v1117
  %v3242 = vunpack.c.h.b16 %v1117
  %v3243 = vunpack.c.l.b16 %v1118
  %v3244 = vunpack.c.h.b16 %v1118
  %v3245 = vunpack.c.l.b16 %v1119
  %v3246 = vunpack.c.h.b16 %v1119
  %v3247 = vunpack.c.l.b16 %v1120
  %v3248 = vunpack.c.h.b16 %v1120
  %v3249 = vunpack.c.l.b16 %v1121
  %v3250 = vunpack.c.h.b16 %v1121
  %v3251 = vunpack.c.l.b16 %v1122
  %v3252 = vunpack.c.h.b16 %v1122
  %v3253 = vunpack.c.l.b16 %v1123
  %v3254 = vunpack.c.h.b16 %v1123
  %v3255 = vunpack.c.l.b16 %v1124
  %v3256 = vunpack.c.h.b16 %v1124
  %v3257 = vunpack.c.l.b16 %v1125
  %v3258 = vunpack.c.h.b16 %v1125
  %v3259 = vunpack.c.l.b16 %v1126
  %v3260 = vunpack.c.h.b16 %v1126
  %v3261 = vunpack.c.l.b16 %v1127
  %v3262 = vunpack.c.h.b16 %v1127
  %v3263 = vunpack.c.l.b16 %v1128
  %v3264 = vunpack.c.h.b16 %v1128
  %v3265 = vunpack.c.l.b16 %v1129
  %v3266 = vunpack.c.h.b16 %v1129
  %v3267 = vunpack.c.l.b16 %v1130
  %v3268 = vunpack.c.h.b16 %v1130
  %v3269 = vunpack.c.l.b16 %v1131
  %v3270 = vunpack.c.h.b16 %v1131
  %v3271 = vunpack.c.l.b16 %v1132
  %v3272 = vunpack.c.h.b16 %v1132
  %v3273 = vunpack.c.l.b16 %v1133
  %v3274 = vunpack.c.h.b16 %v1133
  %v3275 = vunpack.c.l.b16 %v1134
  %v3276 = vunpack.c.h.b16 %v1134
  %v3277 = vunpack.c.l.b16 %v1135
  %v3278 = vunpack.c.h.b16 %v1135
  %v3279 = vunpack.c.l.b16 %v1136
  %v3280 = vunpack.c.h.b16 %v1136
  %v3281 = vunpack.c.l.b16 %v1137
  %v3282 = vunpack.c.h.b16 %v1137
  %v3283 = vunpack.c.l.b16 %v1138
  %v3284 = vunpack.c.h.b16 %v1138
  %v3285 = vunpack.c.l.b16 %v1139
  %v3286 = vunpack.c.h.b16 %v1139
  %v3287 = vunpack.c.l.b16 %v1140
  %v3288 = vunpack.c.h.b16 %v1140
  %v3289 = vunpack.c.l.b16 %v1141
  %v3290 = vunpack.c.h.b16 %v1141
  %v3291 = vunpack.c.l.b16 %v1142
  %v3292 = vunpack.c.h.b16 %v1142
  %v3293 = vunpack.c.l.b16 %v1143
  %v3294 = vunpack.c.h.b16 %v1143
  %v3295 = vunpack.c.l.b16 %v1144
  %v3296 = vunpack.c.h.b16 %v1144
  %v3297 = vpack.c.b16 %v3049, %v3041
  %v3298 = vpack.c.b16 %v3050, %v3042
  %v3299 = vpack.c.b16 %v3051, %v3043
  %v3300 = vpack.c.b16 %v3052, %v3044
  %v3301 = vpack.c.b16 %v3053, %v3045
  %v3302 = vpack.c.b16 %v3054, %v3046
  %v3303 = vpack.c.b16 %v3055, %v3047
  %v3304 = vpack.c.b16 %v3056, %v3048
  %v3305 = vpack.c.b16 %v3065, %v3057
  %v3306 = vpack.c.b16 %v3066, %v3058
  %v3307 = vpack.c.b16 %v3067, %v3059
  %v3308 = vpack.c.b16 %v3068, %v3060
  %v3309 = vpack.c.b16 %v3069, %v3061
  %v3310 = vpack.c.b16 %v3070, %v3062
  %v3311 = vpack.c.b16 %v3071, %v3063
  %v3312 = vpack.c.b16 %v3072, %v3064
  %v3313 = vpack.c.b16 %v3081, %v3073
  %v3314 = vpack.c.b16 %v3082, %v3074
  %v3315 = vpack.c.b16 %v3083, %v3075
  %v3316 = vpack.c.b16 %v3084, %v3076
  %v3317 = vpack.c.b16 %v3085, %v3077
  %v3318 = vpack.c.b16 %v3086, %v3078
  %v3319 = vpack.c.b16 %v3087, %v3079
  %v3320 = vpack.c.b16 %v3088, %v3080
  %v3321 = vpack.c.b16 %v3097, %v3089
  %v3322 = vpack.c.b16 %v3098, %v3090
  %v3323 = vpack.c.b16 %v3099, %v3091
  %v3324 = vpack.c.b16 %v3100, %v3092
  %v3325 = vpack.c.b16 %v3101, %v3093
  %v3326 = vpack.c.b16 %v3102, %v3094
  %v3327 = vpack.c.b16 %v3103, %v3095
  %v3328 = vpack.c.b16 %v3104, %v3096
  %v3329 = vpack.c.b16 %v3113, %v3105
  %v3330 = vpack.c.b16 %v3114, %v3106
  %v3331 = vpack.c.b16 %v3115, %v3107
  %v3332 = vpack.c.b16 %v3116, %v3108
  %v3333 = vpack.c.b16 %v3117, %v3109
  %v3334 = vpack.c.b16 %v3118, %v3110
  %v3335 = vpack.c.b16 %v3119, %v3111
  %v3336 = vpack.c.b16 %v3120, %v3112
  %v3337 = vpack.c.b16 %v3129, %v3121
  %v3338 = vpack.c.b16 %v3130, %v3122
  %v3339 = vpack.c.b16 %v3131, %v3123
  %v3340 = vpack.c.b16 %v3132, %v3124
  %v3341 = vpack.c.b16 %v3133, %v3125
  %v3342 = vpack.c.b16 %v3134, %v3126
  %v3343 = vpack.c.b16 %v3135, %v3127
  %v3344 = vpack.c.b16 %v3136, %v3128
  %v3345 = vpack.c.b16 %v3145, %v3137
  %v3346 = vpack.c.b16 %v3146, %v3138
  %v3347 = vpack.c.b16 %v3147, %v3139
  %v3348 = vpack.c.b16 %v3148, %v3140
  %v3349 = vpack.c.b16 %v3149, %v3141
  %v3350 = vpack.c.b16 %v3150, %v3142
  %v3351 = vpack.c.b16 %v3151, %v3143
  %v3352 = vpack.c.b16 %v3152, %v3144
  %v3353 = vpack.c.b16 %v3161, %v3153
  %v3354 = vpack.c.b16 %v3162, %v3154
  %v3355 = vpack.c.b16 %v3163, %v3155
  %v3356 = vpack.c.b16 %v3164, %v3156
  %v3357 = vpack.c.b16 %v3165, %v3157
  %v3358 = vpack.c.b16 %v3166, %v3158
  %v3359 = vpack.c.b16 %v3167, %v3159
  %v3360 = vpack.c.b16 %v3168, %v3160
  %v3361 = vpack.c.b16 %v3177, %v3169
  %v3362 = vpack.c.b16 %v3178, %v3170
  %v3363 = vpack.c.b16 %v3179, %v3171
  %v3364 = vpack.c.b16 %v3180, %v3172
  %v3365 = vpack.c.b16 %v3181, %v3173
  %v3366 = vpack.c.b16 %v3182, %v3174
  %v3367 = vpack.c.b16 %v3183, %v3175
  %v3368 = vpack.c.b16 %v3184, %v3176
  %v3369 = vpack.c.b16 %v3193, %v3185
  %v3370 = vpack.c.b16 %v3194, %v3186
  %v3371 = vpack.c.b16 %v3195, %v3187
  %v3372 = vpack.c.b16 %v3196, %v3188
  %v3373 = vpack.c.b16 %v3197, %v3189
  %v3374 = vpack.c.b16 %v3198, %v3190
  %v3375 = vpack.c.b16 %v3199, %v3191
  %v3376 = vpack.c.b16 %v3200, %v3192
  %v3377 = vpack.c.b16 %v3209, %v3201
  %v3378 = vpack.c.b16 %v3210, %v3202
  %v3379 = vpack.c.b16 %v3211, %v3203
  %v3380 = vpack.c.b16 %v3212, %v3204
  %v3381 = vpack.c.b16 %v3213, %v3205
  %v3382 = vpack.c.b16 %v3214, %v3206
  %v3383 = vpack.c.b16 %v3215, %v3207
  %v3384 = vpack.c.b16 %v3216, %v3208
  %v3385 = vpack.c.b16 %v3225, %v3217
  %v3386 = vpack.c.b16 %v3226, %v3218
  %v3387 = vpack.c.b16 %v3227, %v3219
  %v3388 = vpack.c.b16 %v3228, %v3220
  %v3389 = vpack.c.b16 %v3229, %v3221
  %v3390 = vpack.c.b16 %v3230, %v3222
  %v3391 = vpack.c.b16 %v3231, %v3223
  %v3392 = vpack.c.b16 %v3232, %v3224
  %v3393 = vpack.c.b16 %v3241, %v3233
  %v3394 = vpack.c.b16 %v3242, %v3234
  %v3395 = vpack.c.b16 %v3243, %v3235
  %v3396 = vpack.c.b16 %v3244, %v3236
  %v3397 = vpack.c.b16 %v3245, %v3237
  %v3398 = vpack.c.b16 %v3246, %v3238
  %v3399 = vpack.c.b16 %v3247, %v3239
  %v3400 = vpack.c.b16 %v3248, %v3240
  %v3401 = vpack.c.b16 %v3257, %v3249
  %v3402 = vpack.c.b16 %v3258, %v3250
  %v3403 = vpack.c.b16 %v3259, %v3251
  %v3404 = vpack.c.b16 %v3260, %v3252
  %v3405 = vpack.c.b16 %v3261, %v3253
  %v3406 = vpack.c.b16 %v3262, %v3254
  %v3407 = vpack.c.b16 %v3263, %v3255
  %v3408 = vpack.c.b16 %v3264, %v3256
  %v3409 = vpack.c.b16 %v3273, %v3265
  %v3410 = vpack.c.b16 %v3274, %v3266
  %v3411 = vpack.c.b16 %v3275, %v3267
  %v3412 = vpack.c.b16 %v3276, %v3268
  %v3413 = vpack.c.b16 %v3277, %v3269
  %v3414 = vpack.c.b16 %v3278, %v3270
  %v3415 = vpack.c.b16 %v3279, %v3271
  %v3416 = vpack.c.b16 %v3280, %v3272
  %v3417 = vpack.c.b16 %v3289, %v3281
  %v3418 = vpack.c.b16 %v3290, %v3282
  %v3419 = vpack.c.b16 %v3291, %v3283
  %v3420 = vpack.c.b16 %v3292, %v3284
  %v3421 = vpack.c.b16 %v3293, %v3285
  %v3422 = vpack.c.b16 %v3294, %v3286
  %v3423 = vpack.c.b16 %v3295, %v3287
  %v3424 = vpack.c.b16 %v3296, %v3288
  %3553 = vmatpush.bf16.msra.mxu0 %v3353
  %3554 = vmatpush.bf16.msra.mxu0 %v3345
  %3555 = vmatpush.bf16.msra.mxu0 %v3337
  %3556 = vmatpush.bf16.msra.mxu0 %v3329
  %3557 = vmatpush.bf16.msra.mxu0 %v3321
  %3558 = vmatpush.bf16.msra.mxu0 %v3313
  %3559 = vmatpush.bf16.msra.mxu0 %v3305
  %3560 = vmatpush.bf16.msra.mxu0 %v3297
  %3561 = vmatmul.bf16.gmra.mxu0 0
  %v3562 = vpop.f32.mrf.mxu0
  %v3563 = vadd.f32 %v2728, %v3562
  %v3564 = vpop.f32.mrf.mxu0
  %3565 = vdwg.mxu0
  %3566 = vmatpush.bf16.msra.mxu0 %v3417
  %3567 = vmatpush.bf16.msra.mxu0 %v3409
  %3568 = vmatpush.bf16.msra.mxu0 %v3401
  %3569 = vmatpush.bf16.msra.mxu0 %v3393
  %3570 = vmatpush.bf16.msra.mxu0 %v3385
  %3571 = vmatpush.bf16.msra.mxu0 %v3377
  %3572 = vmatpush.bf16.msra.mxu0 %v3369
  %3573 = vmatpush.bf16.msra.mxu0 %v3361
  %3574 = vmatmul.bf16.gmra.mxu0 0
  %v3575 = vpop.f32.mrf.mxu0
  %v3576 = vadd.f32 %v3563, %v3575
  %v3577 = vpop.f32.mrf.mxu0
  %3578 = vdwg.mxu0
  %3579 = vmatpush.bf16.msra.mxu0 %v3354
  %3580 = vmatpush.bf16.msra.mxu0 %v3346
  %3581 = vmatpush.bf16.msra.mxu0 %v3338
  %3582 = vmatpush.bf16.msra.mxu0 %v3330
  %3583 = vmatpush.bf16.msra.mxu0 %v3322
  %3584 = vmatpush.bf16.msra.mxu0 %v3314
  %3585 = vmatpush.bf16.msra.mxu0 %v3306
  %3586 = vmatpush.bf16.msra.mxu0 %v3298
  %3587 = vmatmul.bf16.gmra.mxu0 0
  %v3588 = vpop.f32.mrf.mxu0
  %v3589 = vadd.f32 %v2754, %v3588
  %v3590 = vpop.f32.mrf.mxu0
  %3591 = vdwg.mxu0
  %3592 = vmatpush.bf16.msra.mxu0 %v3418
  %3593 = vmatpush.bf16.msra.mxu0 %v3410
  %3594 = vmatpush.bf16.msra.mxu0 %v3402
  %3595 = vmatpush.bf16.msra.mxu0 %v3394
  %3596 = vmatpush.bf16.msra.mxu0 %v3386
  %3597 = vmatpush.bf16.msra.mxu0 %v3378
  %3598 = vmatpush.bf16.msra.mxu0 %v3370
  %3599 = vmatpush.bf16.msra.mxu0 %v3362
  %3600 = vmatmul.bf16.gmra.mxu0 0
  %v3601 = vpop.f32.mrf.mxu0
  %v3602 = vadd.f32 %v3589, %v3601
  %v3603 = vpop.f32.mrf.mxu0
  %3604 = vdwg.mxu0
  %3605 = vmatpush.bf16.msra.mxu0 %v3355
  %3606 = vmatpush.bf16.msra.mxu0 %v3347
  %3607 = vmatpush.bf16.msra.mxu0 %v3339
  %3608 = vmatpush.bf16.msra.mxu0 %v3331
  %3609 = vmatpush.bf16.msra.mxu0 %v3323
  %3610 = vmatpush.bf16.msra.mxu0 %v3315
  %3611 = vmatpush.bf16.msra.mxu0 %v3307
  %3612 = vmatpush.bf16.msra.mxu0 %v3299
  %3613 = vmatmul.bf16.gmra.mxu0 0
  %v3614 = vpop.f32.mrf.mxu0
  %v3615 = vadd.f32 %v2780, %v3614
  %v3616 = vpop.f32.mrf.mxu0
  %3617 = vdwg.mxu0
  %3618 = vmatpush.bf16.msra.mxu0 %v3419
  %3619 = vmatpush.bf16.msra.mxu0 %v3411
  %3620 = vmatpush.bf16.msra.mxu0 %v3403
  %3621 = vmatpush.bf16.msra.mxu0 %v3395
  %3622 = vmatpush.bf16.msra.mxu0 %v3387
  %3623 = vmatpush.bf16.msra.mxu0 %v3379
  %3624 = vmatpush.bf16.msra.mxu0 %v3371
  %3625 = vmatpush.bf16.msra.mxu0 %v3363
  %3626 = vmatmul.bf16.gmra.mxu0 0
  %v3627 = vpop.f32.mrf.mxu0
  %v3628 = vadd.f32 %v3615, %v3627
  %v3629 = vpop.f32.mrf.mxu0
  %3630 = vdwg.mxu0
  %3631 = vmatpush.bf16.msra.mxu0 %v3356
  %3632 = vmatpush.bf16.msra.mxu0 %v3348
  %3633 = vmatpush.bf16.msra.mxu0 %v3340
  %3634 = vmatpush.bf16.msra.mxu0 %v3332
  %3635 = vmatpush.bf16.msra.mxu0 %v3324
  %3636 = vmatpush.bf16.msra.mxu0 %v3316
  %3637 = vmatpush.bf16.msra.mxu0 %v3308
  %3638 = vmatpush.bf16.msra.mxu0 %v3300
  %3639 = vmatmul.bf16.gmra.mxu0 0
  %v3640 = vpop.f32.mrf.mxu0
  %v3641 = vadd.f32 %v2806, %v3640
  %v3642 = vpop.f32.mrf.mxu0
  %3643 = vdwg.mxu0
  %3644 = vmatpush.bf16.msra.mxu0 %v3420
  %3645 = vmatpush.bf16.msra.mxu0 %v3412
  %3646 = vmatpush.bf16.msra.mxu0 %v3404
  %3647 = vmatpush.bf16.msra.mxu0 %v3396
  %3648 = vmatpush.bf16.msra.mxu0 %v3388
  %3649 = vmatpush.bf16.msra.mxu0 %v3380
  %3650 = vmatpush.bf16.msra.mxu0 %v3372
  %3651 = vmatpush.bf16.msra.mxu0 %v3364
  %3652 = vmatmul.bf16.gmra.mxu0 0
  %v3653 = vpop.f32.mrf.mxu0
  %v3654 = vadd.f32 %v3641, %v3653
  %v3655 = vpop.f32.mrf.mxu0
  %3656 = vdwg.mxu0
  %3657 = vmatpush.bf16.msra.mxu0 %v3357
  %3658 = vmatpush.bf16.msra.mxu0 %v3349
  %3659 = vmatpush.bf16.msra.mxu0 %v3341
  %3660 = vmatpush.bf16.msra.mxu0 %v3333
  %3661 = vmatpush.bf16.msra.mxu0 %v3325
  %3662 = vmatpush.bf16.msra.mxu0 %v3317
  %3663 = vmatpush.bf16.msra.mxu0 %v3309
  %3664 = vmatpush.bf16.msra.mxu0 %v3301
  %3665 = vmatmul.bf16.gmra.mxu0 0
  %v3666 = vpop.f32.mrf.mxu0
  %v3667 = vadd.f32 %v2832, %v3666
  %v3668 = vpop.f32.mrf.mxu0
  %3669 = vdwg.mxu0
  %3670 = vmatpush.bf16.msra.mxu0 %v3421
  %3671 = vmatpush.bf16.msra.mxu0 %v3413
  %3672 = vmatpush.bf16.msra.mxu0 %v3405
  %3673 = vmatpush.bf16.msra.mxu0 %v3397
  %3674 = vmatpush.bf16.msra.mxu0 %v3389
  %3675 = vmatpush.bf16.msra.mxu0 %v3381
  %3676 = vmatpush.bf16.msra.mxu0 %v3373
  %3677 = vmatpush.bf16.msra.mxu0 %v3365
  %3678 = vmatmul.bf16.gmra.mxu0 0
  %v3679 = vpop.f32.mrf.mxu0
  %v3680 = vadd.f32 %v3667, %v3679
  %v3681 = vpop.f32.mrf.mxu0
  %3682 = vdwg.mxu0
  %3683 = vmatpush.bf16.msra.mxu0 %v3358
  %3684 = vmatpush.bf16.msra.mxu0 %v3350
  %3685 = vmatpush.bf16.msra.mxu0 %v3342
  %3686 = vmatpush.bf16.msra.mxu0 %v3334
  %3687 = vmatpush.bf16.msra.mxu0 %v3326
  %3688 = vmatpush.bf16.msra.mxu0 %v3318
  %3689 = vmatpush.bf16.msra.mxu0 %v3310
  %3690 = vmatpush.bf16.msra.mxu0 %v3302
  %3691 = vmatmul.bf16.gmra.mxu0 0
  %v3692 = vpop.f32.mrf.mxu0
  %v3693 = vadd.f32 %v2858, %v3692
  %v3694 = vpop.f32.mrf.mxu0
  %3695 = vdwg.mxu0
  %3696 = vmatpush.bf16.msra.mxu0 %v3422
  %3697 = vmatpush.bf16.msra.mxu0 %v3414
  %3698 = vmatpush.bf16.msra.mxu0 %v3406
  %3699 = vmatpush.bf16.msra.mxu0 %v3398
  %3700 = vmatpush.bf16.msra.mxu0 %v3390
  %3701 = vmatpush.bf16.msra.mxu0 %v3382
  %3702 = vmatpush.bf16.msra.mxu0 %v3374
  %3703 = vmatpush.bf16.msra.mxu0 %v3366
  %3704 = vmatmul.bf16.gmra.mxu0 0
  %v3705 = vpop.f32.mrf.mxu0
  %v3706 = vadd.f32 %v3693, %v3705
  %v3707 = vpop.f32.mrf.mxu0
  %3708 = vdwg.mxu0
  %3709 = vmatpush.bf16.msra.mxu0 %v3359
  %3710 = vmatpush.bf16.msra.mxu0 %v3351
  %3711 = vmatpush.bf16.msra.mxu0 %v3343
  %3712 = vmatpush.bf16.msra.mxu0 %v3335
  %3713 = vmatpush.bf16.msra.mxu0 %v3327
  %3714 = vmatpush.bf16.msra.mxu0 %v3319
  %3715 = vmatpush.bf16.msra.mxu0 %v3311
  %3716 = vmatpush.bf16.msra.mxu0 %v3303
  %3717 = vmatmul.bf16.gmra.mxu0 0
  %v3718 = vpop.f32.mrf.mxu0
  %v3719 = vadd.f32 %v2884, %v3718
  %v3720 = vpop.f32.mrf.mxu0
  %3721 = vdwg.mxu0
  %3722 = vmatpush.bf16.msra.mxu0 %v3423
  %3723 = vmatpush.bf16.msra.mxu0 %v3415
  %3724 = vmatpush.bf16.msra.mxu0 %v3407
  %3725 = vmatpush.bf16.msra.mxu0 %v3399
  %3726 = vmatpush.bf16.msra.mxu0 %v3391
  %3727 = vmatpush.bf16.msra.mxu0 %v3383
  %3728 = vmatpush.bf16.msra.mxu0 %v3375
  %3729 = vmatpush.bf16.msra.mxu0 %v3367
  %3730 = vmatmul.bf16.gmra.mxu0 0
  %v3731 = vpop.f32.mrf.mxu0
  %v3732 = vadd.f32 %v3719, %v3731
  %v3733 = vpop.f32.mrf.mxu0
  %3734 = vdwg.mxu0
  %3735 = vmatpush.bf16.msra.mxu0 %v3360
  %3736 = vmatpush.bf16.msra.mxu0 %v3352
  %3737 = vmatpush.bf16.msra.mxu0 %v3344
  %3738 = vmatpush.bf16.msra.mxu0 %v3336
  %3739 = vmatpush.bf16.msra.mxu0 %v3328
  %3740 = vmatpush.bf16.msra.mxu0 %v3320
  %3741 = vmatpush.bf16.msra.mxu0 %v3312
  %3742 = vmatpush.bf16.msra.mxu0 %v3304
  %3743 = vmatmul.bf16.gmra.mxu0 0
  %v3744 = vpop.f32.mrf.mxu0
  %v3745 = vadd.f32 %v2910, %v3744
  %v3746 = vpop.f32.mrf.mxu0
  %3747 = vdwg.mxu0
  %3748 = vmatpush.bf16.msra.mxu0 %v3424
  %3749 = vmatpush.bf16.msra.mxu0 %v3416
  %3750 = vmatpush.bf16.msra.mxu0 %v3408
  %3751 = vmatpush.bf16.msra.mxu0 %v3400
  %3752 = vmatpush.bf16.msra.mxu0 %v3392
  %3753 = vmatpush.bf16.msra.mxu0 %v3384
  %3754 = vmatpush.bf16.msra.mxu0 %v3376
  %3755 = vmatpush.bf16.msra.mxu0 %v3368
  %3756 = vmatmul.bf16.gmra.mxu0 0
  %v3757 = vpop.f32.mrf.mxu0
  %v3758 = vadd.f32 %v3745, %v3757
  %v3759 = vpop.f32.mrf.mxu0
  %3760 = vdwg.mxu0
  %v3761 = vadd.f32 %v3576, %v1147
  %v3762 = vadd.f32 %v3602, %v1148
  %v3763 = vadd.f32 %v3628, %v1149
  %v3764 = vadd.f32 %v3654, %v1150
  %v3765 = vadd.f32 %v3680, %v1151
  %v3766 = vadd.f32 %v3706, %v1152
  %v3767 = vadd.f32 %v3732, %v1153
  %v3768 = vadd.f32 %v3758, %v1154
  %v3769 = vmul.f32 %v3761, 0.5
  %v3770 = vmul.f32 %v3762, 0.5
  %v3771 = vmul.f32 %v3763, 0.5
  %v3772 = vmul.f32 %v3764, 0.5
  %v3773 = vmul.f32 %v3765, 0.5
  %v3774 = vmul.f32 %v3766, 0.5
  %v3775 = vtanh.pop %v3769
  %v3776 = vtanh.pop %v3770
  %v3777 = vtanh.pop %v3771
  %v3778 = vtanh.pop %v3772
  %v3779 = vtanh.pop %v3773
  %v3780 = vtanh.pop %v3774
  %v3781 = vmul.f32 %v3775, 0.5
  %v3782 = vmul.f32 %v3776, 0.5
  %v3783 = vmul.f32 %v3777, 0.5
  %v3784 = vmul.f32 %v3778, 0.5
  %v3785 = vmul.f32 %v3779, 0.5
  %v3786 = vmul.f32 %v3780, 0.5
  %v3787 = vadd.f32 %v3781, 0.5
  %v3788 = vadd.f32 %v3782, 0.5
  %v3789 = vadd.f32 %v3783, 0.5
  %v3790 = vadd.f32 %v3784, 0.5
  %v3791 = vadd.f32 %v3785, 0.5
  %v3792 = vadd.f32 %v3786, 0.5
  %v3793 = vtanh.pop %v3767
  %v3794 = vtanh.pop %v3768
  %v3795 = vmul.f32 %v3789, 0.0
  %v3796 = vmul.f32 %v3790, 0.0
  %v3797 = vmul.f32 %v3787, %v3793
  %v3798 = vmul.f32 %v3788, %v3794
  %v3799 = vadd.f32 %v3795, %v3797
  %v3800 = vadd.f32 %v3796, %v3798
  %v3801 = vtanh.pop %v3799
  %v3802 = vtanh.pop %v3800
  %v3803 = vmul.f32 %v3791, %v3801
  %v3804 = vmul.f32 %v3792, %v3802
  %3805 = vst [vmem:[#allocation3] sm:$0xff] %v3803
  %3806 = vst [vmem:[#allocation3 + $0x8] sm:$0xff] %v3804
  %v3807 = vpack.c.bf16 %v3803, %v3803
  %v3808 = vpack.c.bf16 %v3804, %v3804
  %v3809 = vld [vmem:[#allocation2 + $0x40] sm:$0xff]
  %v3810 = vld [vmem:[#allocation2 + $0x48] sm:$0xff]
  %v3811 = vld [vmem:[#allocation2 + $0x50] sm:$0xff]
  %v3812 = vld [vmem:[#allocation2 + $0x58] sm:$0xff]
  %v3813 = vld [vmem:[#allocation2 + $0x60] sm:$0xff]
  %v3814 = vld [vmem:[#allocation2 + $0x68] sm:$0xff]
  %v3815 = vld [vmem:[#allocation2 + $0x70] sm:$0xff]
  %v3816 = vld [vmem:[#allocation2 + $0x78] sm:$0xff]
  %3817 = vmatpush.bf16.msra.mxu0 %v1611
  %3818 = vmatpush.bf16.msra.mxu0 %v1603
  %3819 = vmatpush.bf16.msra.mxu0 %v1595
  %3820 = vmatpush.bf16.msra.mxu0 %v1587
  %3821 = vmatpush.bf16.msra.mxu0 %v1579
  %3822 = vmatpush.bf16.msra.mxu0 %v1571
  %3823 = vmatpush.bf16.msra.mxu0 %v1563
  %3824 = vmatpush.bf16.msra.mxu0 %v1555
  %3825 = vmatmul.bf16.gmra.mxu0 %v2063
  %v3826 = vpop.f32.mrf.mxu0
  %v3827 = vadd.f32 0.0, %v3826
  %v3828 = vpop.f32.mrf.mxu0
  %3829 = vdwg.mxu0
  %3830 = vmatpush.bf16.msra.mxu0 %v1675
  %3831 = vmatpush.bf16.msra.mxu0 %v1667
  %3832 = vmatpush.bf16.msra.mxu0 %v1659
  %3833 = vmatpush.bf16.msra.mxu0 %v1651
  %3834 = vmatpush.bf16.msra.mxu0 %v1643
  %3835 = vmatpush.bf16.msra.mxu0 %v1635
  %3836 = vmatpush.bf16.msra.mxu0 %v1627
  %3837 = vmatpush.bf16.msra.mxu0 %v1619
  %3838 = vmatmul.bf16.gmra.mxu0 %v2064
  %v3839 = vpop.f32.mrf.mxu0
  %v3840 = vadd.f32 %v3827, %v3839
  %v3841 = vpop.f32.mrf.mxu0
  %3842 = vdwg.mxu0
  %3843 = vmatpush.bf16.msra.mxu0 %v1612
  %3844 = vmatpush.bf16.msra.mxu0 %v1604
  %3845 = vmatpush.bf16.msra.mxu0 %v1596
  %3846 = vmatpush.bf16.msra.mxu0 %v1588
  %3847 = vmatpush.bf16.msra.mxu0 %v1580
  %3848 = vmatpush.bf16.msra.mxu0 %v1572
  %3849 = vmatpush.bf16.msra.mxu0 %v1564
  %3850 = vmatpush.bf16.msra.mxu0 %v1556
  %3851 = vmatmul.bf16.gmra.mxu0 %v2063
  %v3852 = vpop.f32.mrf.mxu0
  %v3853 = vadd.f32 0.0, %v3852
  %v3854 = vpop.f32.mrf.mxu0
  %3855 = vdwg.mxu0
  %3856 = vmatpush.bf16.msra.mxu0 %v1676
  %3857 = vmatpush.bf16.msra.mxu0 %v1668
  %3858 = vmatpush.bf16.msra.mxu0 %v1660
  %3859 = vmatpush.bf16.msra.mxu0 %v1652
  %3860 = vmatpush.bf16.msra.mxu0 %v1644
  %3861 = vmatpush.bf16.msra.mxu0 %v1636
  %3862 = vmatpush.bf16.msra.mxu0 %v1628
  %3863 = vmatpush.bf16.msra.mxu0 %v1620
  %3864 = vmatmul.bf16.gmra.mxu0 %v2064
  %v3865 = vpop.f32.mrf.mxu0
  %v3866 = vadd.f32 %v3853, %v3865
  %v3867 = vpop.f32.mrf.mxu0
  %3868 = vdwg.mxu0
  %3869 = vmatpush.bf16.msra.mxu0 %v1613
  %3870 = vmatpush.bf16.msra.mxu0 %v1605
  %3871 = vmatpush.bf16.msra.mxu0 %v1597
  %3872 = vmatpush.bf16.msra.mxu0 %v1589
  %3873 = vmatpush.bf16.msra.mxu0 %v1581
  %3874 = vmatpush.bf16.msra.mxu0 %v1573
  %3875 = vmatpush.bf16.msra.mxu0 %v1565
  %3876 = vmatpush.bf16.msra.mxu0 %v1557
  %3877 = vmatmul.bf16.gmra.mxu0 %v2063
  %v3878 = vpop.f32.mrf.mxu0
  %v3879 = vadd.f32 0.0, %v3878
  %v3880 = vpop.f32.mrf.mxu0
  %3881 = vdwg.mxu0
  %3882 = vmatpush.bf16.msra.mxu0 %v1677
  %3883 = vmatpush.bf16.msra.mxu0 %v1669
  %3884 = vmatpush.bf16.msra.mxu0 %v1661
  %3885 = vmatpush.bf16.msra.mxu0 %v1653
  %3886 = vmatpush.bf16.msra.mxu0 %v1645
  %3887 = vmatpush.bf16.msra.mxu0 %v1637
  %3888 = vmatpush.bf16.msra.mxu0 %v1629
  %3889 = vmatpush.bf16.msra.mxu0 %v1621
  %3890 = vmatmul.bf16.gmra.mxu0 %v2064
  %v3891 = vpop.f32.mrf.mxu0
  %v3892 = vadd.f32 %v3879, %v3891
  %v3893 = vpop.f32.mrf.mxu0
  %3894 = vdwg.mxu0
  %3895 = vmatpush.bf16.msra.mxu0 %v1614
  %3896 = vmatpush.bf16.msra.mxu0 %v1606
  %3897 = vmatpush.bf16.msra.mxu0 %v1598
  %3898 = vmatpush.bf16.msra.mxu0 %v1590
  %3899 = vmatpush.bf16.msra.mxu0 %v1582
  %3900 = vmatpush.bf16.msra.mxu0 %v1574
  %3901 = vmatpush.bf16.msra.mxu0 %v1566
  %3902 = vmatpush.bf16.msra.mxu0 %v1558
  %3903 = vmatmul.bf16.gmra.mxu0 %v2063
  %v3904 = vpop.f32.mrf.mxu0
  %v3905 = vadd.f32 0.0, %v3904
  %v3906 = vpop.f32.mrf.mxu0
  %3907 = vdwg.mxu0
  %3908 = vmatpush.bf16.msra.mxu0 %v1678
  %3909 = vmatpush.bf16.msra.mxu0 %v1670
  %3910 = vmatpush.bf16.msra.mxu0 %v1662
  %3911 = vmatpush.bf16.msra.mxu0 %v1654
  %3912 = vmatpush.bf16.msra.mxu0 %v1646
  %3913 = vmatpush.bf16.msra.mxu0 %v1638
  %3914 = vmatpush.bf16.msra.mxu0 %v1630
  %3915 = vmatpush.bf16.msra.mxu0 %v1622
  %3916 = vmatmul.bf16.gmra.mxu0 %v2064
  %v3917 = vpop.f32.mrf.mxu0
  %v3918 = vadd.f32 %v3905, %v3917
  %v3919 = vpop.f32.mrf.mxu0
  %3920 = vdwg.mxu0
  %3921 = vmatpush.bf16.msra.mxu0 %v1615
  %3922 = vmatpush.bf16.msra.mxu0 %v1607
  %3923 = vmatpush.bf16.msra.mxu0 %v1599
  %3924 = vmatpush.bf16.msra.mxu0 %v1591
  %3925 = vmatpush.bf16.msra.mxu0 %v1583
  %3926 = vmatpush.bf16.msra.mxu0 %v1575
  %3927 = vmatpush.bf16.msra.mxu0 %v1567
  %3928 = vmatpush.bf16.msra.mxu0 %v1559
  %3929 = vmatmul.bf16.gmra.mxu0 %v2063
  %v3930 = vpop.f32.mrf.mxu0
  %v3931 = vadd.f32 0.0, %v3930
  %v3932 = vpop.f32.mrf.mxu0
  %3933 = vdwg.mxu0
  %3934 = vmatpush.bf16.msra.mxu0 %v1679
  %3935 = vmatpush.bf16.msra.mxu0 %v1671
  %3936 = vmatpush.bf16.msra.mxu0 %v1663
  %3937 = vmatpush.bf16.msra.mxu0 %v1655
  %3938 = vmatpush.bf16.msra.mxu0 %v1647
  %3939 = vmatpush.bf16.msra.mxu0 %v1639
  %3940 = vmatpush.bf16.msra.mxu0 %v1631
  %3941 = vmatpush.bf16.msra.mxu0 %v1623
  %3942 = vmatmul.bf16.gmra.mxu0 %v2064
  %v3943 = vpop.f32.mrf.mxu0
  %v3944 = vadd.f32 %v3931, %v3943
  %v3945 = vpop.f32.mrf.mxu0
  %3946 = vdwg.mxu0
  %3947 = vmatpush.bf16.msra.mxu0 %v1616
  %3948 = vmatpush.bf16.msra.mxu0 %v1608
  %3949 = vmatpush.bf16.msra.mxu0 %v1600
  %3950 = vmatpush.bf16.msra.mxu0 %v1592
  %3951 = vmatpush.bf16.msra.mxu0 %v1584
  %3952 = vmatpush.bf16.msra.mxu0 %v1576
  %3953 = vmatpush.bf16.msra.mxu0 %v1568
  %3954 = vmatpush.bf16.msra.mxu0 %v1560
  %3955 = vmatmul.bf16.gmra.mxu0 %v2063
  %v3956 = vpop.f32.mrf.mxu0
  %v3957 = vadd.f32 0.0, %v3956
  %v3958 = vpop.f32.mrf.mxu0
  %3959 = vdwg.mxu0
  %3960 = vmatpush.bf16.msra.mxu0 %v1680
  %3961 = vmatpush.bf16.msra.mxu0 %v1672
  %3962 = vmatpush.bf16.msra.mxu0 %v1664
  %3963 = vmatpush.bf16.msra.mxu0 %v1656
  %3964 = vmatpush.bf16.msra.mxu0 %v1648
  %3965 = vmatpush.bf16.msra.mxu0 %v1640
  %3966 = vmatpush.bf16.msra.mxu0 %v1632
  %3967 = vmatpush.bf16.msra.mxu0 %v1624
  %3968 = vmatmul.bf16.gmra.mxu0 %v2064
  %v3969 = vpop.f32.mrf.mxu0
  %v3970 = vadd.f32 %v3957, %v3969
  %v3971 = vpop.f32.mrf.mxu0
  %3972 = vdwg.mxu0
  %3973 = vmatpush.bf16.msra.mxu0 %v1617
  %3974 = vmatpush.bf16.msra.mxu0 %v1609
  %3975 = vmatpush.bf16.msra.mxu0 %v1601
  %3976 = vmatpush.bf16.msra.mxu0 %v1593
  %3977 = vmatpush.bf16.msra.mxu0 %v1585
  %3978 = vmatpush.bf16.msra.mxu0 %v1577
  %3979 = vmatpush.bf16.msra.mxu0 %v1569
  %3980 = vmatpush.bf16.msra.mxu0 %v1561
  %3981 = vmatmul.bf16.gmra.mxu0 %v2063
  %v3982 = vpop.f32.mrf.mxu0
  %v3983 = vadd.f32 0.0, %v3982
  %v3984 = vpop.f32.mrf.mxu0
  %3985 = vdwg.mxu0
  %3986 = vmatpush.bf16.msra.mxu0 %v1681
  %3987 = vmatpush.bf16.msra.mxu0 %v1673
  %3988 = vmatpush.bf16.msra.mxu0 %v1665
  %3989 = vmatpush.bf16.msra.mxu0 %v1657
  %3990 = vmatpush.bf16.msra.mxu0 %v1649
  %3991 = vmatpush.bf16.msra.mxu0 %v1641
  %3992 = vmatpush.bf16.msra.mxu0 %v1633
  %3993 = vmatpush.bf16.msra.mxu0 %v1625
  %3994 = vmatmul.bf16.gmra.mxu0 %v2064
  %v3995 = vpop.f32.mrf.mxu0
  %v3996 = vadd.f32 %v3983, %v3995
  %v3997 = vpop.f32.mrf.mxu0
  %3998 = vdwg.mxu0
  %3999 = vmatpush.bf16.msra.mxu0 %v1618
  %4000 = vmatpush.bf16.msra.mxu0 %v1610
  %4001 = vmatpush.bf16.msra.mxu0 %v1602
  %4002 = vmatpush.bf16.msra.mxu0 %v1594
  %4003 = vmatpush.bf16.msra.mxu0 %v1586
  %4004 = vmatpush.bf16.msra.mxu0 %v1578
  %4005 = vmatpush.bf16.msra.mxu0 %v1570
  %4006 = vmatpush.bf16.msra.mxu0 %v1562
  %4007 = vmatmul.bf16.gmra.mxu0 %v2063
  %v4008 = vpop.f32.mrf.mxu0
  %v4009 = vadd.f32 0.0, %v4008
  %v4010 = vpop.f32.mrf.mxu0
  %4011 = vdwg.mxu0
  %4012 = vmatpush.bf16.msra.mxu0 %v1682
  %4013 = vmatpush.bf16.msra.mxu0 %v1674
  %4014 = vmatpush.bf16.msra.mxu0 %v1666
  %4015 = vmatpush.bf16.msra.mxu0 %v1658
  %4016 = vmatpush.bf16.msra.mxu0 %v1650
  %4017 = vmatpush.bf16.msra.mxu0 %v1642
  %4018 = vmatpush.bf16.msra.mxu0 %v1634
  %4019 = vmatpush.bf16.msra.mxu0 %v1626
  %4020 = vmatmul.bf16.gmra.mxu0 %v2064
  %v4021 = vpop.f32.mrf.mxu0
  %v4022 = vadd.f32 %v4009, %v4021
  %v4023 = vpop.f32.mrf.mxu0
  %4024 = vdwg.mxu0
  %v4025 = vadd.f32 %v3809, %v3840
  %v4026 = vadd.f32 %v3810, %v3866
  %v4027 = vadd.f32 %v3811, %v3892
  %v4028 = vadd.f32 %v3812, %v3918
  %v4029 = vadd.f32 %v3813, %v3944
  %v4030 = vadd.f32 %v3814, %v3970
  %v4031 = vadd.f32 %v3815, %v3996
  %v4032 = vadd.f32 %v3816, %v4022
  %v4033 = vmul.f32 %v4025, 0.5
  %v4034 = vmul.f32 %v4026, 0.5
  %v4035 = vmul.f32 %v4027, 0.5
  %v4036 = vmul.f32 %v4028, 0.5
  %v4037 = vmul.f32 %v4029, 0.5
  %v4038 = vmul.f32 %v4030, 0.5
  %v4039 = vtanh.pop %v4033
  %v4040 = vtanh.pop %v4034
  %v4041 = vtanh.pop %v4035
  %v4042 = vtanh.pop %v4036
  %v4043 = vtanh.pop %v4037
  %v4044 = vtanh.pop %v4038
  %v4045 = vmul.f32 %v4039, 0.5
  %v4046 = vmul.f32 %v4040, 0.5
  %v4047 = vmul.f32 %v4041, 0.5
  %v4048 = vmul.f32 %v4042, 0.5
  %v4049 = vmul.f32 %v4043, 0.5
  %v4050 = vmul.f32 %v4044, 0.5
  %v4051 = vadd.f32 %v4045, 0.5
  %v4052 = vadd.f32 %v4046, 0.5
  %v4053 = vadd.f32 %v4047, 0.5
  %v4054 = vadd.f32 %v4048, 0.5
  %v4055 = vadd.f32 %v4049, 0.5
  %v4056 = vadd.f32 %v4050, 0.5
  %v4057 = vtanh.pop %v4031
  %v4058 = vtanh.pop %v4032
  %v4059 = vmul.f32 %v4053, %v2057
  %v4060 = vmul.f32 %v4054, %v2058
  %v4061 = vmul.f32 %v4051, %v4057
  %v4062 = vmul.f32 %v4052, %v4058
  %v4063 = vadd.f32 %v4059, %v4061
  %v4064 = vadd.f32 %v4060, %v4062
  %v4065 = vtanh.pop %v4063
  %v4066 = vtanh.pop %v4064
  %v4067 = vmul.f32 %v4055, %v4065
  %v4068 = vmul.f32 %v4056, %v4066
  %v4069 = vpack.c.bf16 %v4067, %v4067
  %v4070 = vpack.c.bf16 %v4068, %v4068
  %4071 = vmatpush.bf16.msra.mxu0 %v2505
  %4072 = vmatpush.bf16.msra.mxu0 %v2497
  %4073 = vmatpush.bf16.msra.mxu0 %v2489
  %4074 = vmatpush.bf16.msra.mxu0 %v2481
  %4075 = vmatpush.bf16.msra.mxu0 %v2473
  %4076 = vmatpush.bf16.msra.mxu0 %v2465
  %4077 = vmatpush.bf16.msra.mxu0 %v2457
  %4078 = vmatpush.bf16.msra.mxu0 %v2449
  %4079 = vmatmul.bf16.gmra.mxu0 %v4069
  %v4080 = vpop.f32.mrf.mxu0
  %v4081 = vadd.f32 0.0, %v4080
  %v4082 = vpop.f32.mrf.mxu0
  %4083 = vdwg.mxu0
  %4084 = vmatpush.bf16.msra.mxu0 %v2569
  %4085 = vmatpush.bf16.msra.mxu0 %v2561
  %4086 = vmatpush.bf16.msra.mxu0 %v2553
  %4087 = vmatpush.bf16.msra.mxu0 %v2545
  %4088 = vmatpush.bf16.msra.mxu0 %v2537
  %4089 = vmatpush.bf16.msra.mxu0 %v2529
  %4090 = vmatpush.bf16.msra.mxu0 %v2521
  %4091 = vmatpush.bf16.msra.mxu0 %v2513
  %4092 = vmatmul.bf16.gmra.mxu0 %v4070
  %v4093 = vpop.f32.mrf.mxu0
  %v4094 = vadd.f32 %v4081, %v4093
  %v4095 = vpop.f32.mrf.mxu0
  %4096 = vdwg.mxu0
  %4097 = vmatpush.bf16.msra.mxu0 %v2506
  %4098 = vmatpush.bf16.msra.mxu0 %v2498
  %4099 = vmatpush.bf16.msra.mxu0 %v2490
  %4100 = vmatpush.bf16.msra.mxu0 %v2482
  %4101 = vmatpush.bf16.msra.mxu0 %v2474
  %4102 = vmatpush.bf16.msra.mxu0 %v2466
  %4103 = vmatpush.bf16.msra.mxu0 %v2458
  %4104 = vmatpush.bf16.msra.mxu0 %v2450
  %4105 = vmatmul.bf16.gmra.mxu0 %v4069
  %v4106 = vpop.f32.mrf.mxu0
  %v4107 = vadd.f32 0.0, %v4106
  %v4108 = vpop.f32.mrf.mxu0
  %4109 = vdwg.mxu0
  %4110 = vmatpush.bf16.msra.mxu0 %v2570
  %4111 = vmatpush.bf16.msra.mxu0 %v2562
  %4112 = vmatpush.bf16.msra.mxu0 %v2554
  %4113 = vmatpush.bf16.msra.mxu0 %v2546
  %4114 = vmatpush.bf16.msra.mxu0 %v2538
  %4115 = vmatpush.bf16.msra.mxu0 %v2530
  %4116 = vmatpush.bf16.msra.mxu0 %v2522
  %4117 = vmatpush.bf16.msra.mxu0 %v2514
  %4118 = vmatmul.bf16.gmra.mxu0 %v4070
  %v4119 = vpop.f32.mrf.mxu0
  %v4120 = vadd.f32 %v4107, %v4119
  %v4121 = vpop.f32.mrf.mxu0
  %4122 = vdwg.mxu0
  %4123 = vmatpush.bf16.msra.mxu0 %v2507
  %4124 = vmatpush.bf16.msra.mxu0 %v2499
  %4125 = vmatpush.bf16.msra.mxu0 %v2491
  %4126 = vmatpush.bf16.msra.mxu0 %v2483
  %4127 = vmatpush.bf16.msra.mxu0 %v2475
  %4128 = vmatpush.bf16.msra.mxu0 %v2467
  %4129 = vmatpush.bf16.msra.mxu0 %v2459
  %4130 = vmatpush.bf16.msra.mxu0 %v2451
  %4131 = vmatmul.bf16.gmra.mxu0 %v4069
  %v4132 = vpop.f32.mrf.mxu0
  %v4133 = vadd.f32 0.0, %v4132
  %v4134 = vpop.f32.mrf.mxu0
  %4135 = vdwg.mxu0
  %4136 = vmatpush.bf16.msra.mxu0 %v2571
  %4137 = vmatpush.bf16.msra.mxu0 %v2563
  %4138 = vmatpush.bf16.msra.mxu0 %v2555
  %4139 = vmatpush.bf16.msra.mxu0 %v2547
  %4140 = vmatpush.bf16.msra.mxu0 %v2539
  %4141 = vmatpush.bf16.msra.mxu0 %v2531
  %4142 = vmatpush.bf16.msra.mxu0 %v2523
  %4143 = vmatpush.bf16.msra.mxu0 %v2515
  %4144 = vmatmul.bf16.gmra.mxu0 %v4070
  %v4145 = vpop.f32.mrf.mxu0
  %v4146 = vadd.f32 %v4133, %v4145
  %v4147 = vpop.f32.mrf.mxu0
  %4148 = vdwg.mxu0
  %4149 = vmatpush.bf16.msra.mxu0 %v2508
  %4150 = vmatpush.bf16.msra.mxu0 %v2500
  %4151 = vmatpush.bf16.msra.mxu0 %v2492
  %4152 = vmatpush.bf16.msra.mxu0 %v2484
  %4153 = vmatpush.bf16.msra.mxu0 %v2476
  %4154 = vmatpush.bf16.msra.mxu0 %v2468
  %4155 = vmatpush.bf16.msra.mxu0 %v2460
  %4156 = vmatpush.bf16.msra.mxu0 %v2452
  %4157 = vmatmul.bf16.gmra.mxu0 %v4069
  %v4158 = vpop.f32.mrf.mxu0
  %v4159 = vadd.f32 0.0, %v4158
  %v4160 = vpop.f32.mrf.mxu0
  %4161 = vdwg.mxu0
  %4162 = vmatpush.bf16.msra.mxu0 %v2572
  %4163 = vmatpush.bf16.msra.mxu0 %v2564
  %4164 = vmatpush.bf16.msra.mxu0 %v2556
  %4165 = vmatpush.bf16.msra.mxu0 %v2548
  %4166 = vmatpush.bf16.msra.mxu0 %v2540
  %4167 = vmatpush.bf16.msra.mxu0 %v2532
  %4168 = vmatpush.bf16.msra.mxu0 %v2524
  %4169 = vmatpush.bf16.msra.mxu0 %v2516
  %4170 = vmatmul.bf16.gmra.mxu0 %v4070
  %v4171 = vpop.f32.mrf.mxu0
  %v4172 = vadd.f32 %v4159, %v4171
  %v4173 = vpop.f32.mrf.mxu0
  %4174 = vdwg.mxu0
  %4175 = vmatpush.bf16.msra.mxu0 %v2509
  %4176 = vmatpush.bf16.msra.mxu0 %v2501
  %4177 = vmatpush.bf16.msra.mxu0 %v2493
  %4178 = vmatpush.bf16.msra.mxu0 %v2485
  %4179 = vmatpush.bf16.msra.mxu0 %v2477
  %4180 = vmatpush.bf16.msra.mxu0 %v2469
  %4181 = vmatpush.bf16.msra.mxu0 %v2461
  %4182 = vmatpush.bf16.msra.mxu0 %v2453
  %4183 = vmatmul.bf16.gmra.mxu0 %v4069
  %v4184 = vpop.f32.mrf.mxu0
  %v4185 = vadd.f32 0.0, %v4184
  %v4186 = vpop.f32.mrf.mxu0
  %4187 = vdwg.mxu0
  %4188 = vmatpush.bf16.msra.mxu0 %v2573
  %4189 = vmatpush.bf16.msra.mxu0 %v2565
  %4190 = vmatpush.bf16.msra.mxu0 %v2557
  %4191 = vmatpush.bf16.msra.mxu0 %v2549
  %4192 = vmatpush.bf16.msra.mxu0 %v2541
  %4193 = vmatpush.bf16.msra.mxu0 %v2533
  %4194 = vmatpush.bf16.msra.mxu0 %v2525
  %4195 = vmatpush.bf16.msra.mxu0 %v2517
  %4196 = vmatmul.bf16.gmra.mxu0 %v4070
  %v4197 = vpop.f32.mrf.mxu0
  %v4198 = vadd.f32 %v4185, %v4197
  %v4199 = vpop.f32.mrf.mxu0
  %4200 = vdwg.mxu0
  %4201 = vmatpush.bf16.msra.mxu0 %v2510
  %4202 = vmatpush.bf16.msra.mxu0 %v2502
  %4203 = vmatpush.bf16.msra.mxu0 %v2494
  %4204 = vmatpush.bf16.msra.mxu0 %v2486
  %4205 = vmatpush.bf16.msra.mxu0 %v2478
  %4206 = vmatpush.bf16.msra.mxu0 %v2470
  %4207 = vmatpush.bf16.msra.mxu0 %v2462
  %4208 = vmatpush.bf16.msra.mxu0 %v2454
  %4209 = vmatmul.bf16.gmra.mxu0 %v4069
  %v4210 = vpop.f32.mrf.mxu0
  %v4211 = vadd.f32 0.0, %v4210
  %v4212 = vpop.f32.mrf.mxu0
  %4213 = vdwg.mxu0
  %4214 = vmatpush.bf16.msra.mxu0 %v2574
  %4215 = vmatpush.bf16.msra.mxu0 %v2566
  %4216 = vmatpush.bf16.msra.mxu0 %v2558
  %4217 = vmatpush.bf16.msra.mxu0 %v2550
  %4218 = vmatpush.bf16.msra.mxu0 %v2542
  %4219 = vmatpush.bf16.msra.mxu0 %v2534
  %4220 = vmatpush.bf16.msra.mxu0 %v2526
  %4221 = vmatpush.bf16.msra.mxu0 %v2518
  %4222 = vmatmul.bf16.gmra.mxu0 %v4070
  %v4223 = vpop.f32.mrf.mxu0
  %v4224 = vadd.f32 %v4211, %v4223
  %v4225 = vpop.f32.mrf.mxu0
  %4226 = vdwg.mxu0
  %4227 = vmatpush.bf16.msra.mxu0 %v2511
  %4228 = vmatpush.bf16.msra.mxu0 %v2503
  %4229 = vmatpush.bf16.msra.mxu0 %v2495
  %4230 = vmatpush.bf16.msra.mxu0 %v2487
  %4231 = vmatpush.bf16.msra.mxu0 %v2479
  %4232 = vmatpush.bf16.msra.mxu0 %v2471
  %4233 = vmatpush.bf16.msra.mxu0 %v2463
  %4234 = vmatpush.bf16.msra.mxu0 %v2455
  %4235 = vmatmul.bf16.gmra.mxu0 %v4069
  %v4236 = vpop.f32.mrf.mxu0
  %v4237 = vadd.f32 0.0, %v4236
  %v4238 = vpop.f32.mrf.mxu0
  %4239 = vdwg.mxu0
  %4240 = vmatpush.bf16.msra.mxu0 %v2575
  %4241 = vmatpush.bf16.msra.mxu0 %v2567
  %4242 = vmatpush.bf16.msra.mxu0 %v2559
  %4243 = vmatpush.bf16.msra.mxu0 %v2551
  %4244 = vmatpush.bf16.msra.mxu0 %v2543
  %4245 = vmatpush.bf16.msra.mxu0 %v2535
  %4246 = vmatpush.bf16.msra.mxu0 %v2527
  %4247 = vmatpush.bf16.msra.mxu0 %v2519
  %4248 = vmatmul.bf16.gmra.mxu0 %v4070
  %v4249 = vpop.f32.mrf.mxu0
  %v4250 = vadd.f32 %v4237, %v4249
  %v4251 = vpop.f32.mrf.mxu0
  %4252 = vdwg.mxu0
  %4253 = vmatpush.bf16.msra.mxu0 %v2512
  %4254 = vmatpush.bf16.msra.mxu0 %v2504
  %4255 = vmatpush.bf16.msra.mxu0 %v2496
  %4256 = vmatpush.bf16.msra.mxu0 %v2488
  %4257 = vmatpush.bf16.msra.mxu0 %v2480
  %4258 = vmatpush.bf16.msra.mxu0 %v2472
  %4259 = vmatpush.bf16.msra.mxu0 %v2464
  %4260 = vmatpush.bf16.msra.mxu0 %v2456
  %4261 = vmatmul.bf16.gmra.mxu0 %v4069
  %v4262 = vpop.f32.mrf.mxu0
  %v4263 = vadd.f32 0.0, %v4262
  %v4264 = vpop.f32.mrf.mxu0
  %4265 = vdwg.mxu0
  %4266 = vmatpush.bf16.msra.mxu0 %v2576
  %4267 = vmatpush.bf16.msra.mxu0 %v2568
  %4268 = vmatpush.bf16.msra.mxu0 %v2560
  %4269 = vmatpush.bf16.msra.mxu0 %v2552
  %4270 = vmatpush.bf16.msra.mxu0 %v2544
  %4271 = vmatpush.bf16.msra.mxu0 %v2536
  %4272 = vmatpush.bf16.msra.mxu0 %v2528
  %4273 = vmatpush.bf16.msra.mxu0 %v2520
  %4274 = vmatmul.bf16.gmra.mxu0 %v4070
  %v4275 = vpop.f32.mrf.mxu0
  %v4276 = vadd.f32 %v4263, %v4275
  %v4277 = vpop.f32.mrf.mxu0
  %4278 = vdwg.mxu0
  %4279 = vmatpush.bf16.msra.mxu0 %v3353
  %4280 = vmatpush.bf16.msra.mxu0 %v3345
  %4281 = vmatpush.bf16.msra.mxu0 %v3337
  %4282 = vmatpush.bf16.msra.mxu0 %v3329
  %4283 = vmatpush.bf16.msra.mxu0 %v3321
  %4284 = vmatpush.bf16.msra.mxu0 %v3313
  %4285 = vmatpush.bf16.msra.mxu0 %v3305
  %4286 = vmatpush.bf16.msra.mxu0 %v3297
  %4287 = vmatmul.bf16.gmra.mxu0 %v3807
  %v4288 = vpop.f32.mrf.mxu0
  %v4289 = vadd.f32 %v4094, %v4288
  %v4290 = vpop.f32.mrf.mxu0
  %4291 = vdwg.mxu0
  %4292 = vmatpush.bf16.msra.mxu0 %v3417
  %4293 = vmatpush.bf16.msra.mxu0 %v3409
  %4294 = vmatpush.bf16.msra.mxu0 %v3401
  %4295 = vmatpush.bf16.msra.mxu0 %v3393
  %4296 = vmatpush.bf16.msra.mxu0 %v3385
  %4297 = vmatpush.bf16.msra.mxu0 %v3377
  %4298 = vmatpush.bf16.msra.mxu0 %v3369
  %4299 = vmatpush.bf16.msra.mxu0 %v3361
  %4300 = vmatmul.bf16.gmra.mxu0 %v3808
  %v4301 = vpop.f32.mrf.mxu0
  %v4302 = vadd.f32 %v4289, %v4301
  %v4303 = vpop.f32.mrf.mxu0
  %4304 = vdwg.mxu0
  %4305 = vmatpush.bf16.msra.mxu0 %v3354
  %4306 = vmatpush.bf16.msra.mxu0 %v3346
  %4307 = vmatpush.bf16.msra.mxu0 %v3338
  %4308 = vmatpush.bf16.msra.mxu0 %v3330
  %4309 = vmatpush.bf16.msra.mxu0 %v3322
  %4310 = vmatpush.bf16.msra.mxu0 %v3314
  %4311 = vmatpush.bf16.msra.mxu0 %v3306
  %4312 = vmatpush.bf16.msra.mxu0 %v3298
  %4313 = vmatmul.bf16.gmra.mxu0 %v3807
  %v4314 = vpop.f32.mrf.mxu0
  %v4315 = vadd.f32 %v4120, %v4314
  %v4316 = vpop.f32.mrf.mxu0
  %4317 = vdwg.mxu0
  %4318 = vmatpush.bf16.msra.mxu0 %v3418
  %4319 = vmatpush.bf16.msra.mxu0 %v3410
  %4320 = vmatpush.bf16.msra.mxu0 %v3402
  %4321 = vmatpush.bf16.msra.mxu0 %v3394
  %4322 = vmatpush.bf16.msra.mxu0 %v3386
  %4323 = vmatpush.bf16.msra.mxu0 %v3378
  %4324 = vmatpush.bf16.msra.mxu0 %v3370
  %4325 = vmatpush.bf16.msra.mxu0 %v3362
  %4326 = vmatmul.bf16.gmra.mxu0 %v3808
  %v4327 = vpop.f32.mrf.mxu0
  %v4328 = vadd.f32 %v4315, %v4327
  %v4329 = vpop.f32.mrf.mxu0
  %4330 = vdwg.mxu0
  %4331 = vmatpush.bf16.msra.mxu0 %v3355
  %4332 = vmatpush.bf16.msra.mxu0 %v3347
  %4333 = vmatpush.bf16.msra.mxu0 %v3339
  %4334 = vmatpush.bf16.msra.mxu0 %v3331
  %4335 = vmatpush.bf16.msra.mxu0 %v3323
  %4336 = vmatpush.bf16.msra.mxu0 %v3315
  %4337 = vmatpush.bf16.msra.mxu0 %v3307
  %4338 = vmatpush.bf16.msra.mxu0 %v3299
  %4339 = vmatmul.bf16.gmra.mxu0 %v3807
  %v4340 = vpop.f32.mrf.mxu0
  %v4341 = vadd.f32 %v4146, %v4340
  %v4342 = vpop.f32.mrf.mxu0
  %4343 = vdwg.mxu0
  %4344 = vmatpush.bf16.msra.mxu0 %v3419
  %4345 = vmatpush.bf16.msra.mxu0 %v3411
  %4346 = vmatpush.bf16.msra.mxu0 %v3403
  %4347 = vmatpush.bf16.msra.mxu0 %v3395
  %4348 = vmatpush.bf16.msra.mxu0 %v3387
  %4349 = vmatpush.bf16.msra.mxu0 %v3379
  %4350 = vmatpush.bf16.msra.mxu0 %v3371
  %4351 = vmatpush.bf16.msra.mxu0 %v3363
  %4352 = vmatmul.bf16.gmra.mxu0 %v3808
  %v4353 = vpop.f32.mrf.mxu0
  %v4354 = vadd.f32 %v4341, %v4353
  %v4355 = vpop.f32.mrf.mxu0
  %4356 = vdwg.mxu0
  %4357 = vmatpush.bf16.msra.mxu0 %v3356
  %4358 = vmatpush.bf16.msra.mxu0 %v3348
  %4359 = vmatpush.bf16.msra.mxu0 %v3340
  %4360 = vmatpush.bf16.msra.mxu0 %v3332
  %4361 = vmatpush.bf16.msra.mxu0 %v3324
  %4362 = vmatpush.bf16.msra.mxu0 %v3316
  %4363 = vmatpush.bf16.msra.mxu0 %v3308
  %4364 = vmatpush.bf16.msra.mxu0 %v3300
  %4365 = vmatmul.bf16.gmra.mxu0 %v3807
  %v4366 = vpop.f32.mrf.mxu0
  %v4367 = vadd.f32 %v4172, %v4366
  %v4368 = vpop.f32.mrf.mxu0
  %4369 = vdwg.mxu0
  %4370 = vmatpush.bf16.msra.mxu0 %v3420
  %4371 = vmatpush.bf16.msra.mxu0 %v3412
  %4372 = vmatpush.bf16.msra.mxu0 %v3404
  %4373 = vmatpush.bf16.msra.mxu0 %v3396
  %4374 = vmatpush.bf16.msra.mxu0 %v3388
  %4375 = vmatpush.bf16.msra.mxu0 %v3380
  %4376 = vmatpush.bf16.msra.mxu0 %v3372
  %4377 = vmatpush.bf16.msra.mxu0 %v3364
  %4378 = vmatmul.bf16.gmra.mxu0 %v3808
  %v4379 = vpop.f32.mrf.mxu0
  %v4380 = vadd.f32 %v4367, %v4379
  %v4381 = vpop.f32.mrf.mxu0
  %4382 = vdwg.mxu0
  %4383 = vmatpush.bf16.msra.mxu0 %v3357
  %4384 = vmatpush.bf16.msra.mxu0 %v3349
  %4385 = vmatpush.bf16.msra.mxu0 %v3341
  %4386 = vmatpush.bf16.msra.mxu0 %v3333
  %4387 = vmatpush.bf16.msra.mxu0 %v3325
  %4388 = vmatpush.bf16.msra.mxu0 %v3317
  %4389 = vmatpush.bf16.msra.mxu0 %v3309
  %4390 = vmatpush.bf16.msra.mxu0 %v3301
  %4391 = vmatmul.bf16.gmra.mxu0 %v3807
  %v4392 = vpop.f32.mrf.mxu0
  %v4393 = vadd.f32 %v4198, %v4392
  %v4394 = vpop.f32.mrf.mxu0
  %4395 = vdwg.mxu0
  %4396 = vmatpush.bf16.msra.mxu0 %v3421
  %4397 = vmatpush.bf16.msra.mxu0 %v3413
  %4398 = vmatpush.bf16.msra.mxu0 %v3405
  %4399 = vmatpush.bf16.msra.mxu0 %v3397
  %4400 = vmatpush.bf16.msra.mxu0 %v3389
  %4401 = vmatpush.bf16.msra.mxu0 %v3381
  %4402 = vmatpush.bf16.msra.mxu0 %v3373
  %4403 = vmatpush.bf16.msra.mxu0 %v3365
  %4404 = vmatmul.bf16.gmra.mxu0 %v3808
  %v4405 = vpop.f32.mrf.mxu0
  %v4406 = vadd.f32 %v4393, %v4405
  %v4407 = vpop.f32.mrf.mxu0
  %4408 = vdwg.mxu0
  %4409 = vmatpush.bf16.msra.mxu0 %v3358
  %4410 = vmatpush.bf16.msra.mxu0 %v3350
  %4411 = vmatpush.bf16.msra.mxu0 %v3342
  %4412 = vmatpush.bf16.msra.mxu0 %v3334
  %4413 = vmatpush.bf16.msra.mxu0 %v3326
  %4414 = vmatpush.bf16.msra.mxu0 %v3318
  %4415 = vmatpush.bf16.msra.mxu0 %v3310
  %4416 = vmatpush.bf16.msra.mxu0 %v3302
  %4417 = vmatmul.bf16.gmra.mxu0 %v3807
  %v4418 = vpop.f32.mrf.mxu0
  %v4419 = vadd.f32 %v4224, %v4418
  %v4420 = vpop.f32.mrf.mxu0
  %4421 = vdwg.mxu0
  %4422 = vmatpush.bf16.msra.mxu0 %v3422
  %4423 = vmatpush.bf16.msra.mxu0 %v3414
  %4424 = vmatpush.bf16.msra.mxu0 %v3406
  %4425 = vmatpush.bf16.msra.mxu0 %v3398
  %4426 = vmatpush.bf16.msra.mxu0 %v3390
  %4427 = vmatpush.bf16.msra.mxu0 %v3382
  %4428 = vmatpush.bf16.msra.mxu0 %v3374
  %4429 = vmatpush.bf16.msra.mxu0 %v3366
  %4430 = vmatmul.bf16.gmra.mxu0 %v3808
  %v4431 = vpop.f32.mrf.mxu0
  %v4432 = vadd.f32 %v4419, %v4431
  %v4433 = vpop.f32.mrf.mxu0
  %4434 = vdwg.mxu0
  %4435 = vmatpush.bf16.msra.mxu0 %v3359
  %4436 = vmatpush.bf16.msra.mxu0 %v3351
  %4437 = vmatpush.bf16.msra.mxu0 %v3343
  %4438 = vmatpush.bf16.msra.mxu0 %v3335
  %4439 = vmatpush.bf16.msra.mxu0 %v3327
  %4440 = vmatpush.bf16.msra.mxu0 %v3319
  %4441 = vmatpush.bf16.msra.mxu0 %v3311
  %4442 = vmatpush.bf16.msra.mxu0 %v3303
  %4443 = vmatmul.bf16.gmra.mxu0 %v3807
  %v4444 = vpop.f32.mrf.mxu0
  %v4445 = vadd.f32 %v4250, %v4444
  %v4446 = vpop.f32.mrf.mxu0
  %4447 = vdwg.mxu0
  %4448 = vmatpush.bf16.msra.mxu0 %v3423
  %4449 = vmatpush.bf16.msra.mxu0 %v3415
  %4450 = vmatpush.bf16.msra.mxu0 %v3407
  %4451 = vmatpush.bf16.msra.mxu0 %v3399
  %4452 = vmatpush.bf16.msra.mxu0 %v3391
  %4453 = vmatpush.bf16.msra.mxu0 %v3383
  %4454 = vmatpush.bf16.msra.mxu0 %v3375
  %4455 = vmatpush.bf16.msra.mxu0 %v3367
  %4456 = vmatmul.bf16.gmra.mxu0 %v3808
  %v4457 = vpop.f32.mrf.mxu0
  %v4458 = vadd.f32 %v4445, %v4457
  %v4459 = vpop.f32.mrf.mxu0
  %4460 = vdwg.mxu0
  %4461 = vmatpush.bf16.msra.mxu0 %v3360
  %4462 = vmatpush.bf16.msra.mxu0 %v3352
  %4463 = vmatpush.bf16.msra.mxu0 %v3344
  %4464 = vmatpush.bf16.msra.mxu0 %v3336
  %4465 = vmatpush.bf16.msra.mxu0 %v3328
  %4466 = vmatpush.bf16.msra.mxu0 %v3320
  %4467 = vmatpush.bf16.msra.mxu0 %v3312
  %4468 = vmatpush.bf16.msra.mxu0 %v3304
  %4469 = vmatmul.bf16.gmra.mxu0 %v3807
  %v4470 = vpop.f32.mrf.mxu0
  %v4471 = vadd.f32 %v4276, %v4470
  %v4472 = vpop.f32.mrf.mxu0
  %4473 = vdwg.mxu0
  %4474 = vmatpush.bf16.msra.mxu0 %v3424
  %4475 = vmatpush.bf16.msra.mxu0 %v3416
  %4476 = vmatpush.bf16.msra.mxu0 %v3408
  %4477 = vmatpush.bf16.msra.mxu0 %v3400
  %4478 = vmatpush.bf16.msra.mxu0 %v3392
  %4479 = vmatpush.bf16.msra.mxu0 %v3384
  %4480 = vmatpush.bf16.msra.mxu0 %v3376
  %4481 = vmatpush.bf16.msra.mxu0 %v3368
  %4482 = vmatmul.bf16.gmra.mxu0 %v3808
  %v4483 = vpop.f32.mrf.mxu0
  %v4484 = vadd.f32 %v4471, %v4483
  %v4485 = vpop.f32.mrf.mxu0
  %4486 = vdwg.mxu0
  %v4487 = vadd.f32 %v4302, %v1147
  %v4488 = vadd.f32 %v4328, %v1148
  %v4489 = vadd.f32 %v4354, %v1149
  %v4490 = vadd.f32 %v4380, %v1150
  %v4491 = vadd.f32 %v4406, %v1151
  %v4492 = vadd.f32 %v4432, %v1152
  %v4493 = vadd.f32 %v4458, %v1153
  %v4494 = vadd.f32 %v4484, %v1154
  %v4495 = vmul.f32 %v4487, 0.5
  %v4496 = vmul.f32 %v4488, 0.5
  %v4497 = vmul.f32 %v4489, 0.5
  %v4498 = vmul.f32 %v4490, 0.5
  %v4499 = vmul.f32 %v4491, 0.5
  %v4500 = vmul.f32 %v4492, 0.5
  %v4501 = vtanh.pop %v4495
  %v4502 = vtanh.pop %v4496
  %v4503 = vtanh.pop %v4497
  %v4504 = vtanh.pop %v4498
  %v4505 = vtanh.pop %v4499
  %v4506 = vtanh.pop %v4500
  %v4507 = vmul.f32 %v4501, 0.5
  %v4508 = vmul.f32 %v4502, 0.5
  %v4509 = vmul.f32 %v4503, 0.5
  %v4510 = vmul.f32 %v4504, 0.5
  %v4511 = vmul.f32 %v4505, 0.5
  %v4512 = vmul.f32 %v4506, 0.5
  %v4513 = vadd.f32 %v4507, 0.5
  %v4514 = vadd.f32 %v4508, 0.5
  %v4515 = vadd.f32 %v4509, 0.5
  %v4516 = vadd.f32 %v4510, 0.5
  %v4517 = vadd.f32 %v4511, 0.5
  %v4518 = vadd.f32 %v4512, 0.5
  %v4519 = vtanh.pop %v4493
  %v4520 = vtanh.pop %v4494
  %v4521 = vmul.f32 %v4515, %v3799
  %v4522 = vmul.f32 %v4516, %v3800
  %v4523 = vmul.f32 %v4513, %v4519
  %v4524 = vmul.f32 %v4514, %v4520
  %v4525 = vadd.f32 %v4521, %v4523
  %v4526 = vadd.f32 %v4522, %v4524
  %v4527 = vtanh.pop %v4525
  %v4528 = vtanh.pop %v4526
  %v4529 = vmul.f32 %v4517, %v4527
  %v4530 = vmul.f32 %v4518, %v4528
  %4531 = vst [vmem:[#allocation3 + $0x10] sm:$0xff] %v4529
  %4532 = vst [vmem:[#allocation3 + $0x18] sm:$0xff] %v4530
  %v4533 = vpack.c.bf16 %v4529, %v4529
  %v4534 = vpack.c.bf16 %v4530, %v4530
  %v4535 = vld [vmem:[#allocation2 + $0x80] sm:$0xff]
  %v4536 = vld [vmem:[#allocation2 + $0x88] sm:$0xff]
  %v4537 = vld [vmem:[#allocation2 + $0x90] sm:$0xff]
  %v4538 = vld [vmem:[#allocation2 + $0x98] sm:$0xff]
  %v4539 = vld [vmem:[#allocation2 + $0xa0] sm:$0xff]
  %v4540 = vld [vmem:[#allocation2 + $0xa8] sm:$0xff]
  %v4541 = vld [vmem:[#allocation2 + $0xb0] sm:$0xff]
  %v4542 = vld [vmem:[#allocation2 + $0xb8] sm:$0xff]
  %4543 = vmatpush.bf16.msra.mxu0 %v1611
  %4544 = vmatpush.bf16.msra.mxu0 %v1603
  %4545 = vmatpush.bf16.msra.mxu0 %v1595
  %4546 = vmatpush.bf16.msra.mxu0 %v1587
  %4547 = vmatpush.bf16.msra.mxu0 %v1579
  %4548 = vmatpush.bf16.msra.mxu0 %v1571
  %4549 = vmatpush.bf16.msra.mxu0 %v1563
  %4550 = vmatpush.bf16.msra.mxu0 %v1555
  %4551 = vmatmul.bf16.gmra.mxu0 %v4069
  %v4552 = vpop.f32.mrf.mxu0
  %v4553 = vadd.f32 0.0, %v4552
  %v4554 = vpop.f32.mrf.mxu0
  %4555 = vdwg.mxu0
  %4556 = vmatpush.bf16.msra.mxu0 %v1675
  %4557 = vmatpush.bf16.msra.mxu0 %v1667
  %4558 = vmatpush.bf16.msra.mxu0 %v1659
  %4559 = vmatpush.bf16.msra.mxu0 %v1651
  %4560 = vmatpush.bf16.msra.mxu0 %v1643
  %4561 = vmatpush.bf16.msra.mxu0 %v1635
  %4562 = vmatpush.bf16.msra.mxu0 %v1627
  %4563 = vmatpush.bf16.msra.mxu0 %v1619
  %4564 = vmatmul.bf16.gmra.mxu0 %v4070
  %v4565 = vpop.f32.mrf.mxu0
  %v4566 = vadd.f32 %v4553, %v4565
  %v4567 = vpop.f32.mrf.mxu0
  %4568 = vdwg.mxu0
  %4569 = vmatpush.bf16.msra.mxu0 %v1612
  %4570 = vmatpush.bf16.msra.mxu0 %v1604
  %4571 = vmatpush.bf16.msra.mxu0 %v1596
  %4572 = vmatpush.bf16.msra.mxu0 %v1588
  %4573 = vmatpush.bf16.msra.mxu0 %v1580
  %4574 = vmatpush.bf16.msra.mxu0 %v1572
  %4575 = vmatpush.bf16.msra.mxu0 %v1564
  %4576 = vmatpush.bf16.msra.mxu0 %v1556
  %4577 = vmatmul.bf16.gmra.mxu0 %v4069
  %v4578 = vpop.f32.mrf.mxu0
  %v4579 = vadd.f32 0.0, %v4578
  %v4580 = vpop.f32.mrf.mxu0
  %4581 = vdwg.mxu0
  %4582 = vmatpush.bf16.msra.mxu0 %v1676
  %4583 = vmatpush.bf16.msra.mxu0 %v1668
  %4584 = vmatpush.bf16.msra.mxu0 %v1660
  %4585 = vmatpush.bf16.msra.mxu0 %v1652
  %4586 = vmatpush.bf16.msra.mxu0 %v1644
  %4587 = vmatpush.bf16.msra.mxu0 %v1636
  %4588 = vmatpush.bf16.msra.mxu0 %v1628
  %4589 = vmatpush.bf16.msra.mxu0 %v1620
  %4590 = vmatmul.bf16.gmra.mxu0 %v4070
  %v4591 = vpop.f32.mrf.mxu0
  %v4592 = vadd.f32 %v4579, %v4591
  %v4593 = vpop.f32.mrf.mxu0
  %4594 = vdwg.mxu0
  %4595 = vmatpush.bf16.msra.mxu0 %v1613
  %4596 = vmatpush.bf16.msra.mxu0 %v1605
  %4597 = vmatpush.bf16.msra.mxu0 %v1597
  %4598 = vmatpush.bf16.msra.mxu0 %v1589
  %4599 = vmatpush.bf16.msra.mxu0 %v1581
  %4600 = vmatpush.bf16.msra.mxu0 %v1573
  %4601 = vmatpush.bf16.msra.mxu0 %v1565
  %4602 = vmatpush.bf16.msra.mxu0 %v1557
  %4603 = vmatmul.bf16.gmra.mxu0 %v4069
  %v4604 = vpop.f32.mrf.mxu0
  %v4605 = vadd.f32 0.0, %v4604
  %v4606 = vpop.f32.mrf.mxu0
  %4607 = vdwg.mxu0
  %4608 = vmatpush.bf16.msra.mxu0 %v1677
  %4609 = vmatpush.bf16.msra.mxu0 %v1669
  %4610 = vmatpush.bf16.msra.mxu0 %v1661
  %4611 = vmatpush.bf16.msra.mxu0 %v1653
  %4612 = vmatpush.bf16.msra.mxu0 %v1645
  %4613 = vmatpush.bf16.msra.mxu0 %v1637
  %4614 = vmatpush.bf16.msra.mxu0 %v1629
  %4615 = vmatpush.bf16.msra.mxu0 %v1621
  %4616 = vmatmul.bf16.gmra.mxu0 %v4070
  %v4617 = vpop.f32.mrf.mxu0
  %v4618 = vadd.f32 %v4605, %v4617
  %v4619 = vpop.f32.mrf.mxu0
  %4620 = vdwg.mxu0
  %4621 = vmatpush.bf16.msra.mxu0 %v1614
  %4622 = vmatpush.bf16.msra.mxu0 %v1606
  %4623 = vmatpush.bf16.msra.mxu0 %v1598
  %4624 = vmatpush.bf16.msra.mxu0 %v1590
  %4625 = vmatpush.bf16.msra.mxu0 %v1582
  %4626 = vmatpush.bf16.msra.mxu0 %v1574
  %4627 = vmatpush.bf16.msra.mxu0 %v1566
  %4628 = vmatpush.bf16.msra.mxu0 %v1558
  %4629 = vmatmul.bf16.gmra.mxu0 %v4069
  %v4630 = vpop.f32.mrf.mxu0
  %v4631 = vadd.f32 0.0, %v4630
  %v4632 = vpop.f32.mrf.mxu0
  %4633 = vdwg.mxu0
  %4634 = vmatpush.bf16.msra.mxu0 %v1678
  %4635 = vmatpush.bf16.msra.mxu0 %v1670
  %4636 = vmatpush.bf16.msra.mxu0 %v1662
  %4637 = vmatpush.bf16.msra.mxu0 %v1654
  %4638 = vmatpush.bf16.msra.mxu0 %v1646
  %4639 = vmatpush.bf16.msra.mxu0 %v1638
  %4640 = vmatpush.bf16.msra.mxu0 %v1630
  %4641 = vmatpush.bf16.msra.mxu0 %v1622
  %4642 = vmatmul.bf16.gmra.mxu0 %v4070
  %v4643 = vpop.f32.mrf.mxu0
  %v4644 = vadd.f32 %v4631, %v4643
  %v4645 = vpop.f32.mrf.mxu0
  %4646 = vdwg.mxu0
  %4647 = vmatpush.bf16.msra.mxu0 %v1615
  %4648 = vmatpush.bf16.msra.mxu0 %v1607
  %4649 = vmatpush.bf16.msra.mxu0 %v1599
  %4650 = vmatpush.bf16.msra.mxu0 %v1591
  %4651 = vmatpush.bf16.msra.mxu0 %v1583
  %4652 = vmatpush.bf16.msra.mxu0 %v1575
  %4653 = vmatpush.bf16.msra.mxu0 %v1567
  %4654 = vmatpush.bf16.msra.mxu0 %v1559
  %4655 = vmatmul.bf16.gmra.mxu0 %v4069
  %v4656 = vpop.f32.mrf.mxu0
  %v4657 = vadd.f32 0.0, %v4656
  %v4658 = vpop.f32.mrf.mxu0
  %4659 = vdwg.mxu0
  %4660 = vmatpush.bf16.msra.mxu0 %v1679
  %4661 = vmatpush.bf16.msra.mxu0 %v1671
  %4662 = vmatpush.bf16.msra.mxu0 %v1663
  %4663 = vmatpush.bf16.msra.mxu0 %v1655
  %4664 = vmatpush.bf16.msra.mxu0 %v1647
  %4665 = vmatpush.bf16.msra.mxu0 %v1639
  %4666 = vmatpush.bf16.msra.mxu0 %v1631
  %4667 = vmatpush.bf16.msra.mxu0 %v1623
  %4668 = vmatmul.bf16.gmra.mxu0 %v4070
  %v4669 = vpop.f32.mrf.mxu0
  %v4670 = vadd.f32 %v4657, %v4669
  %v4671 = vpop.f32.mrf.mxu0
  %4672 = vdwg.mxu0
  %4673 = vmatpush.bf16.msra.mxu0 %v1616
  %4674 = vmatpush.bf16.msra.mxu0 %v1608
  %4675 = vmatpush.bf16.msra.mxu0 %v1600
  %4676 = vmatpush.bf16.msra.mxu0 %v1592
  %4677 = vmatpush.bf16.msra.mxu0 %v1584
  %4678 = vmatpush.bf16.msra.mxu0 %v1576
  %4679 = vmatpush.bf16.msra.mxu0 %v1568
  %4680 = vmatpush.bf16.msra.mxu0 %v1560
  %4681 = vmatmul.bf16.gmra.mxu0 %v4069
  %v4682 = vpop.f32.mrf.mxu0
  %v4683 = vadd.f32 0.0, %v4682
  %v4684 = vpop.f32.mrf.mxu0
  %4685 = vdwg.mxu0
  %4686 = vmatpush.bf16.msra.mxu0 %v1680
  %4687 = vmatpush.bf16.msra.mxu0 %v1672
  %4688 = vmatpush.bf16.msra.mxu0 %v1664
  %4689 = vmatpush.bf16.msra.mxu0 %v1656
  %4690 = vmatpush.bf16.msra.mxu0 %v1648
  %4691 = vmatpush.bf16.msra.mxu0 %v1640
  %4692 = vmatpush.bf16.msra.mxu0 %v1632
  %4693 = vmatpush.bf16.msra.mxu0 %v1624
  %4694 = vmatmul.bf16.gmra.mxu0 %v4070
  %v4695 = vpop.f32.mrf.mxu0
  %v4696 = vadd.f32 %v4683, %v4695
  %v4697 = vpop.f32.mrf.mxu0
  %4698 = vdwg.mxu0
  %4699 = vmatpush.bf16.msra.mxu0 %v1617
  %4700 = vmatpush.bf16.msra.mxu0 %v1609
  %4701 = vmatpush.bf16.msra.mxu0 %v1601
  %4702 = vmatpush.bf16.msra.mxu0 %v1593
  %4703 = vmatpush.bf16.msra.mxu0 %v1585
  %4704 = vmatpush.bf16.msra.mxu0 %v1577
  %4705 = vmatpush.bf16.msra.mxu0 %v1569
  %4706 = vmatpush.bf16.msra.mxu0 %v1561
  %4707 = vmatmul.bf16.gmra.mxu0 %v4069
  %v4708 = vpop.f32.mrf.mxu0
  %v4709 = vadd.f32 0.0, %v4708
  %v4710 = vpop.f32.mrf.mxu0
  %4711 = vdwg.mxu0
  %4712 = vmatpush.bf16.msra.mxu0 %v1681
  %4713 = vmatpush.bf16.msra.mxu0 %v1673
  %4714 = vmatpush.bf16.msra.mxu0 %v1665
  %4715 = vmatpush.bf16.msra.mxu0 %v1657
  %4716 = vmatpush.bf16.msra.mxu0 %v1649
  %4717 = vmatpush.bf16.msra.mxu0 %v1641
  %4718 = vmatpush.bf16.msra.mxu0 %v1633
  %4719 = vmatpush.bf16.msra.mxu0 %v1625
  %4720 = vmatmul.bf16.gmra.mxu0 %v4070
  %v4721 = vpop.f32.mrf.mxu0
  %v4722 = vadd.f32 %v4709, %v4721
  %v4723 = vpop.f32.mrf.mxu0
  %4724 = vdwg.mxu0
  %4725 = vmatpush.bf16.msra.mxu0 %v1618
  %4726 = vmatpush.bf16.msra.mxu0 %v1610
  %4727 = vmatpush.bf16.msra.mxu0 %v1602
  %4728 = vmatpush.bf16.msra.mxu0 %v1594
  %4729 = vmatpush.bf16.msra.mxu0 %v1586
  %4730 = vmatpush.bf16.msra.mxu0 %v1578
  %4731 = vmatpush.bf16.msra.mxu0 %v1570
  %4732 = vmatpush.bf16.msra.mxu0 %v1562
  %4733 = vmatmul.bf16.gmra.mxu0 %v4069
  %v4734 = vpop.f32.mrf.mxu0
  %v4735 = vadd.f32 0.0, %v4734
  %v4736 = vpop.f32.mrf.mxu0
  %4737 = vdwg.mxu0
  %4738 = vmatpush.bf16.msra.mxu0 %v1682
  %4739 = vmatpush.bf16.msra.mxu0 %v1674
  %4740 = vmatpush.bf16.msra.mxu0 %v1666
  %4741 = vmatpush.bf16.msra.mxu0 %v1658
  %4742 = vmatpush.bf16.msra.mxu0 %v1650
  %4743 = vmatpush.bf16.msra.mxu0 %v1642
  %4744 = vmatpush.bf16.msra.mxu0 %v1634
  %4745 = vmatpush.bf16.msra.mxu0 %v1626
  %4746 = vmatmul.bf16.gmra.mxu0 %v4070
  %v4747 = vpop.f32.mrf.mxu0
  %v4748 = vadd.f32 %v4735, %v4747
  %v4749 = vpop.f32.mrf.mxu0
  %4750 = vdwg.mxu0
  %v4751 = vadd.f32 %v4535, %v4566
  %v4752 = vadd.f32 %v4536, %v4592
  %v4753 = vadd.f32 %v4537, %v4618
  %v4754 = vadd.f32 %v4538, %v4644
  %v4755 = vadd.f32 %v4539, %v4670
  %v4756 = vadd.f32 %v4540, %v4696
  %v4757 = vadd.f32 %v4541, %v4722
  %v4758 = vadd.f32 %v4542, %v4748
  %v4759 = vmul.f32 %v4751, 0.5
  %v4760 = vmul.f32 %v4752, 0.5
  %v4761 = vmul.f32 %v4753, 0.5
  %v4762 = vmul.f32 %v4754, 0.5
  %v4763 = vmul.f32 %v4755, 0.5
  %v4764 = vmul.f32 %v4756, 0.5
  %v4765 = vtanh.pop %v4759
  %v4766 = vtanh.pop %v4760
  %v4767 = vtanh.pop %v4761
  %v4768 = vtanh.pop %v4762
  %v4769 = vtanh.pop %v4763
  %v4770 = vtanh.pop %v4764
  %v4771 = vmul.f32 %v4765, 0.5
  %v4772 = vmul.f32 %v4766, 0.5
  %v4773 = vmul.f32 %v4767, 0.5
  %v4774 = vmul.f32 %v4768, 0.5
  %v4775 = vmul.f32 %v4769, 0.5
  %v4776 = vmul.f32 %v4770, 0.5
  %v4777 = vadd.f32 %v4771, 0.5
  %v4778 = vadd.f32 %v4772, 0.5
  %v4779 = vadd.f32 %v4773, 0.5
  %v4780 = vadd.f32 %v4774, 0.5
  %v4781 = vadd.f32 %v4775, 0.5
  %v4782 = vadd.f32 %v4776, 0.5
  %v4783 = vtanh.pop %v4757
  %v4784 = vtanh.pop %v4758
  %v4785 = vmul.f32 %v4779, %v4063
  %v4786 = vmul.f32 %v4780, %v4064
  %v4787 = vmul.f32 %v4777, %v4783
  %v4788 = vmul.f32 %v4778, %v4784
  %v4789 = vadd.f32 %v4785, %v4787
  %v4790 = vadd.f32 %v4786, %v4788
  %v4791 = vtanh.pop %v4789
  %v4792 = vtanh.pop %v4790
  %v4793 = vmul.f32 %v4781, %v4791
  %v4794 = vmul.f32 %v4782, %v4792
  %v4795 = vpack.c.bf16 %v4793, %v4793
  %v4796 = vpack.c.bf16 %v4794, %v4794
  %4797 = vmatpush.bf16.msra.mxu0 %v2505
  %4798 = vmatpush.bf16.msra.mxu0 %v2497
  %4799 = vmatpush.bf16.msra.mxu0 %v2489
  %4800 = vmatpush.bf16.msra.mxu0 %v2481
  %4801 = vmatpush.bf16.msra.mxu0 %v2473
  %4802 = vmatpush.bf16.msra.mxu0 %v2465
  %4803 = vmatpush.bf16.msra.mxu0 %v2457
  %4804 = vmatpush.bf16.msra.mxu0 %v2449
  %4805 = vmatmul.bf16.gmra.mxu0 %v4795
  %v4806 = vpop.f32.mrf.mxu0
  %v4807 = vadd.f32 0.0, %v4806
  %v4808 = vpop.f32.mrf.mxu0
  %4809 = vdwg.mxu0
  %4810 = vmatpush.bf16.msra.mxu0 %v2569
  %4811 = vmatpush.bf16.msra.mxu0 %v2561
  %4812 = vmatpush.bf16.msra.mxu0 %v2553
  %4813 = vmatpush.bf16.msra.mxu0 %v2545
  %4814 = vmatpush.bf16.msra.mxu0 %v2537
  %4815 = vmatpush.bf16.msra.mxu0 %v2529
  %4816 = vmatpush.bf16.msra.mxu0 %v2521
  %4817 = vmatpush.bf16.msra.mxu0 %v2513
  %4818 = vmatmul.bf16.gmra.mxu0 %v4796
  %v4819 = vpop.f32.mrf.mxu0
  %v4820 = vadd.f32 %v4807, %v4819
  %v4821 = vpop.f32.mrf.mxu0
  %4822 = vdwg.mxu0
  %4823 = vmatpush.bf16.msra.mxu0 %v2506
  %4824 = vmatpush.bf16.msra.mxu0 %v2498
  %4825 = vmatpush.bf16.msra.mxu0 %v2490
  %4826 = vmatpush.bf16.msra.mxu0 %v2482
  %4827 = vmatpush.bf16.msra.mxu0 %v2474
  %4828 = vmatpush.bf16.msra.mxu0 %v2466
  %4829 = vmatpush.bf16.msra.mxu0 %v2458
  %4830 = vmatpush.bf16.msra.mxu0 %v2450
  %4831 = vmatmul.bf16.gmra.mxu0 %v4795
  %v4832 = vpop.f32.mrf.mxu0
  %v4833 = vadd.f32 0.0, %v4832
  %v4834 = vpop.f32.mrf.mxu0
  %4835 = vdwg.mxu0
  %4836 = vmatpush.bf16.msra.mxu0 %v2570
  %4837 = vmatpush.bf16.msra.mxu0 %v2562
  %4838 = vmatpush.bf16.msra.mxu0 %v2554
  %4839 = vmatpush.bf16.msra.mxu0 %v2546
  %4840 = vmatpush.bf16.msra.mxu0 %v2538
  %4841 = vmatpush.bf16.msra.mxu0 %v2530
  %4842 = vmatpush.bf16.msra.mxu0 %v2522
  %4843 = vmatpush.bf16.msra.mxu0 %v2514
  %4844 = vmatmul.bf16.gmra.mxu0 %v4796
  %v4845 = vpop.f32.mrf.mxu0
  %v4846 = vadd.f32 %v4833, %v4845
  %v4847 = vpop.f32.mrf.mxu0
  %4848 = vdwg.mxu0
  %4849 = vmatpush.bf16.msra.mxu0 %v2507
  %4850 = vmatpush.bf16.msra.mxu0 %v2499
  %4851 = vmatpush.bf16.msra.mxu0 %v2491
  %4852 = vmatpush.bf16.msra.mxu0 %v2483
  %4853 = vmatpush.bf16.msra.mxu0 %v2475
  %4854 = vmatpush.bf16.msra.mxu0 %v2467
  %4855 = vmatpush.bf16.msra.mxu0 %v2459
  %4856 = vmatpush.bf16.msra.mxu0 %v2451
  %4857 = vmatmul.bf16.gmra.mxu0 %v4795
  %v4858 = vpop.f32.mrf.mxu0
  %v4859 = vadd.f32 0.0, %v4858
  %v4860 = vpop.f32.mrf.mxu0
  %4861 = vdwg.mxu0
  %4862 = vmatpush.bf16.msra.mxu0 %v2571
  %4863 = vmatpush.bf16.msra.mxu0 %v2563
  %4864 = vmatpush.bf16.msra.mxu0 %v2555
  %4865 = vmatpush.bf16.msra.mxu0 %v2547
  %4866 = vmatpush.bf16.msra.mxu0 %v2539
  %4867 = vmatpush.bf16.msra.mxu0 %v2531
  %4868 = vmatpush.bf16.msra.mxu0 %v2523
  %4869 = vmatpush.bf16.msra.mxu0 %v2515
  %4870 = vmatmul.bf16.gmra.mxu0 %v4796
  %v4871 = vpop.f32.mrf.mxu0
  %v4872 = vadd.f32 %v4859, %v4871
  %v4873 = vpop.f32.mrf.mxu0
  %4874 = vdwg.mxu0
  %4875 = vmatpush.bf16.msra.mxu0 %v2508
  %4876 = vmatpush.bf16.msra.mxu0 %v2500
  %4877 = vmatpush.bf16.msra.mxu0 %v2492
  %4878 = vmatpush.bf16.msra.mxu0 %v2484
  %4879 = vmatpush.bf16.msra.mxu0 %v2476
  %4880 = vmatpush.bf16.msra.mxu0 %v2468
  %4881 = vmatpush.bf16.msra.mxu0 %v2460
  %4882 = vmatpush.bf16.msra.mxu0 %v2452
  %4883 = vmatmul.bf16.gmra.mxu0 %v4795
  %v4884 = vpop.f32.mrf.mxu0
  %v4885 = vadd.f32 0.0, %v4884
  %v4886 = vpop.f32.mrf.mxu0
  %4887 = vdwg.mxu0
  %4888 = vmatpush.bf16.msra.mxu0 %v2572
  %4889 = vmatpush.bf16.msra.mxu0 %v2564
  %4890 = vmatpush.bf16.msra.mxu0 %v2556
  %4891 = vmatpush.bf16.msra.mxu0 %v2548
  %4892 = vmatpush.bf16.msra.mxu0 %v2540
  %4893 = vmatpush.bf16.msra.mxu0 %v2532
  %4894 = vmatpush.bf16.msra.mxu0 %v2524
  %4895 = vmatpush.bf16.msra.mxu0 %v2516
  %4896 = vmatmul.bf16.gmra.mxu0 %v4796
  %v4897 = vpop.f32.mrf.mxu0
  %v4898 = vadd.f32 %v4885, %v4897
  %v4899 = vpop.f32.mrf.mxu0
  %4900 = vdwg.mxu0
  %4901 = vmatpush.bf16.msra.mxu0 %v2509
  %4902 = vmatpush.bf16.msra.mxu0 %v2501
  %4903 = vmatpush.bf16.msra.mxu0 %v2493
  %4904 = vmatpush.bf16.msra.mxu0 %v2485
  %4905 = vmatpush.bf16.msra.mxu0 %v2477
  %4906 = vmatpush.bf16.msra.mxu0 %v2469
  %4907 = vmatpush.bf16.msra.mxu0 %v2461
  %4908 = vmatpush.bf16.msra.mxu0 %v2453
  %4909 = vmatmul.bf16.gmra.mxu0 %v4795
  %v4910 = vpop.f32.mrf.mxu0
  %v4911 = vadd.f32 0.0, %v4910
  %v4912 = vpop.f32.mrf.mxu0
  %4913 = vdwg.mxu0
  %4914 = vmatpush.bf16.msra.mxu0 %v2573
  %4915 = vmatpush.bf16.msra.mxu0 %v2565
  %4916 = vmatpush.bf16.msra.mxu0 %v2557
  %4917 = vmatpush.bf16.msra.mxu0 %v2549
  %4918 = vmatpush.bf16.msra.mxu0 %v2541
  %4919 = vmatpush.bf16.msra.mxu0 %v2533
  %4920 = vmatpush.bf16.msra.mxu0 %v2525
  %4921 = vmatpush.bf16.msra.mxu0 %v2517
  %4922 = vmatmul.bf16.gmra.mxu0 %v4796
  %v4923 = vpop.f32.mrf.mxu0
  %v4924 = vadd.f32 %v4911, %v4923
  %v4925 = vpop.f32.mrf.mxu0
  %4926 = vdwg.mxu0
  %4927 = vmatpush.bf16.msra.mxu0 %v2510
  %4928 = vmatpush.bf16.msra.mxu0 %v2502
  %4929 = vmatpush.bf16.msra.mxu0 %v2494
  %4930 = vmatpush.bf16.msra.mxu0 %v2486
  %4931 = vmatpush.bf16.msra.mxu0 %v2478
  %4932 = vmatpush.bf16.msra.mxu0 %v2470
  %4933 = vmatpush.bf16.msra.mxu0 %v2462
  %4934 = vmatpush.bf16.msra.mxu0 %v2454
  %4935 = vmatmul.bf16.gmra.mxu0 %v4795
  %v4936 = vpop.f32.mrf.mxu0
  %v4937 = vadd.f32 0.0, %v4936
  %v4938 = vpop.f32.mrf.mxu0
  %4939 = vdwg.mxu0
  %4940 = vmatpush.bf16.msra.mxu0 %v2574
  %4941 = vmatpush.bf16.msra.mxu0 %v2566
  %4942 = vmatpush.bf16.msra.mxu0 %v2558
  %4943 = vmatpush.bf16.msra.mxu0 %v2550
  %4944 = vmatpush.bf16.msra.mxu0 %v2542
  %4945 = vmatpush.bf16.msra.mxu0 %v2534
  %4946 = vmatpush.bf16.msra.mxu0 %v2526
  %4947 = vmatpush.bf16.msra.mxu0 %v2518
  %4948 = vmatmul.bf16.gmra.mxu0 %v4796
  %v4949 = vpop.f32.mrf.mxu0
  %v4950 = vadd.f32 %v4937, %v4949
  %v4951 = vpop.f32.mrf.mxu0
  %4952 = vdwg.mxu0
  %4953 = vmatpush.bf16.msra.mxu0 %v2511
  %4954 = vmatpush.bf16.msra.mxu0 %v2503
  %4955 = vmatpush.bf16.msra.mxu0 %v2495
  %4956 = vmatpush.bf16.msra.mxu0 %v2487
  %4957 = vmatpush.bf16.msra.mxu0 %v2479
  %4958 = vmatpush.bf16.msra.mxu0 %v2471
  %4959 = vmatpush.bf16.msra.mxu0 %v2463
  %4960 = vmatpush.bf16.msra.mxu0 %v2455
  %4961 = vmatmul.bf16.gmra.mxu0 %v4795
  %v4962 = vpop.f32.mrf.mxu0
  %v4963 = vadd.f32 0.0, %v4962
  %v4964 = vpop.f32.mrf.mxu0
  %4965 = vdwg.mxu0
  %4966 = vmatpush.bf16.msra.mxu0 %v2575
  %4967 = vmatpush.bf16.msra.mxu0 %v2567
  %4968 = vmatpush.bf16.msra.mxu0 %v2559
  %4969 = vmatpush.bf16.msra.mxu0 %v2551
  %4970 = vmatpush.bf16.msra.mxu0 %v2543
  %4971 = vmatpush.bf16.msra.mxu0 %v2535
  %4972 = vmatpush.bf16.msra.mxu0 %v2527
  %4973 = vmatpush.bf16.msra.mxu0 %v2519
  %4974 = vmatmul.bf16.gmra.mxu0 %v4796
  %v4975 = vpop.f32.mrf.mxu0
  %v4976 = vadd.f32 %v4963, %v4975
  %v4977 = vpop.f32.mrf.mxu0
  %4978 = vdwg.mxu0
  %4979 = vmatpush.bf16.msra.mxu0 %v2512
  %4980 = vmatpush.bf16.msra.mxu0 %v2504
  %4981 = vmatpush.bf16.msra.mxu0 %v2496
  %4982 = vmatpush.bf16.msra.mxu0 %v2488
  %4983 = vmatpush.bf16.msra.mxu0 %v2480
  %4984 = vmatpush.bf16.msra.mxu0 %v2472
  %4985 = vmatpush.bf16.msra.mxu0 %v2464
  %4986 = vmatpush.bf16.msra.mxu0 %v2456
  %4987 = vmatmul.bf16.gmra.mxu0 %v4795
  %v4988 = vpop.f32.mrf.mxu0
  %v4989 = vadd.f32 0.0, %v4988
  %v4990 = vpop.f32.mrf.mxu0
  %4991 = vdwg.mxu0
  %4992 = vmatpush.bf16.msra.mxu0 %v2576
  %4993 = vmatpush.bf16.msra.mxu0 %v2568
  %4994 = vmatpush.bf16.msra.mxu0 %v2560
  %4995 = vmatpush.bf16.msra.mxu0 %v2552
  %4996 = vmatpush.bf16.msra.mxu0 %v2544
  %4997 = vmatpush.bf16.msra.mxu0 %v2536
  %4998 = vmatpush.bf16.msra.mxu0 %v2528
  %4999 = vmatpush.bf16.msra.mxu0 %v2520
  %5000 = vmatmul.bf16.gmra.mxu0 %v4796
  %v5001 = vpop.f32.mrf.mxu0
  %v5002 = vadd.f32 %v4989, %v5001
  %v5003 = vpop.f32.mrf.mxu0
  %5004 = vdwg.mxu0
  %5005 = vmatpush.bf16.msra.mxu0 %v3353
  %5006 = vmatpush.bf16.msra.mxu0 %v3345
  %5007 = vmatpush.bf16.msra.mxu0 %v3337
  %5008 = vmatpush.bf16.msra.mxu0 %v3329
  %5009 = vmatpush.bf16.msra.mxu0 %v3321
  %5010 = vmatpush.bf16.msra.mxu0 %v3313
  %5011 = vmatpush.bf16.msra.mxu0 %v3305
  %5012 = vmatpush.bf16.msra.mxu0 %v3297
  %5013 = vmatmul.bf16.gmra.mxu0 %v4533
  %v5014 = vpop.f32.mrf.mxu0
  %v5015 = vadd.f32 %v4820, %v5014
  %v5016 = vpop.f32.mrf.mxu0
  %5017 = vdwg.mxu0
  %5018 = vmatpush.bf16.msra.mxu0 %v3417
  %5019 = vmatpush.bf16.msra.mxu0 %v3409
  %5020 = vmatpush.bf16.msra.mxu0 %v3401
  %5021 = vmatpush.bf16.msra.mxu0 %v3393
  %5022 = vmatpush.bf16.msra.mxu0 %v3385
  %5023 = vmatpush.bf16.msra.mxu0 %v3377
  %5024 = vmatpush.bf16.msra.mxu0 %v3369
  %5025 = vmatpush.bf16.msra.mxu0 %v3361
  %5026 = vmatmul.bf16.gmra.mxu0 %v4534
  %v5027 = vpop.f32.mrf.mxu0
  %v5028 = vadd.f32 %v5015, %v5027
  %v5029 = vpop.f32.mrf.mxu0
  %5030 = vdwg.mxu0
  %5031 = vmatpush.bf16.msra.mxu0 %v3354
  %5032 = vmatpush.bf16.msra.mxu0 %v3346
  %5033 = vmatpush.bf16.msra.mxu0 %v3338
  %5034 = vmatpush.bf16.msra.mxu0 %v3330
  %5035 = vmatpush.bf16.msra.mxu0 %v3322
  %5036 = vmatpush.bf16.msra.mxu0 %v3314
  %5037 = vmatpush.bf16.msra.mxu0 %v3306
  %5038 = vmatpush.bf16.msra.mxu0 %v3298
  %5039 = vmatmul.bf16.gmra.mxu0 %v4533
  %v5040 = vpop.f32.mrf.mxu0
  %v5041 = vadd.f32 %v4846, %v5040
  %v5042 = vpop.f32.mrf.mxu0
  %5043 = vdwg.mxu0
  %5044 = vmatpush.bf16.msra.mxu0 %v3418
  %5045 = vmatpush.bf16.msra.mxu0 %v3410
  %5046 = vmatpush.bf16.msra.mxu0 %v3402
  %5047 = vmatpush.bf16.msra.mxu0 %v3394
  %5048 = vmatpush.bf16.msra.mxu0 %v3386
  %5049 = vmatpush.bf16.msra.mxu0 %v3378
  %5050 = vmatpush.bf16.msra.mxu0 %v3370
  %5051 = vmatpush.bf16.msra.mxu0 %v3362
  %5052 = vmatmul.bf16.gmra.mxu0 %v4534
  %v5053 = vpop.f32.mrf.mxu0
  %v5054 = vadd.f32 %v5041, %v5053
  %v5055 = vpop.f32.mrf.mxu0
  %5056 = vdwg.mxu0
  %5057 = vmatpush.bf16.msra.mxu0 %v3355
  %5058 = vmatpush.bf16.msra.mxu0 %v3347
  %5059 = vmatpush.bf16.msra.mxu0 %v3339
  %5060 = vmatpush.bf16.msra.mxu0 %v3331
  %5061 = vmatpush.bf16.msra.mxu0 %v3323
  %5062 = vmatpush.bf16.msra.mxu0 %v3315
  %5063 = vmatpush.bf16.msra.mxu0 %v3307
  %5064 = vmatpush.bf16.msra.mxu0 %v3299
  %5065 = vmatmul.bf16.gmra.mxu0 %v4533
  %v5066 = vpop.f32.mrf.mxu0
  %v5067 = vadd.f32 %v4872, %v5066
  %v5068 = vpop.f32.mrf.mxu0
  %5069 = vdwg.mxu0
  %5070 = vmatpush.bf16.msra.mxu0 %v3419
  %5071 = vmatpush.bf16.msra.mxu0 %v3411
  %5072 = vmatpush.bf16.msra.mxu0 %v3403
  %5073 = vmatpush.bf16.msra.mxu0 %v3395
  %5074 = vmatpush.bf16.msra.mxu0 %v3387
  %5075 = vmatpush.bf16.msra.mxu0 %v3379
  %5076 = vmatpush.bf16.msra.mxu0 %v3371
  %5077 = vmatpush.bf16.msra.mxu0 %v3363
  %5078 = vmatmul.bf16.gmra.mxu0 %v4534
  %v5079 = vpop.f32.mrf.mxu0
  %v5080 = vadd.f32 %v5067, %v5079
  %v5081 = vpop.f32.mrf.mxu0
  %5082 = vdwg.mxu0
  %5083 = vmatpush.bf16.msra.mxu0 %v3356
  %5084 = vmatpush.bf16.msra.mxu0 %v3348
  %5085 = vmatpush.bf16.msra.mxu0 %v3340
  %5086 = vmatpush.bf16.msra.mxu0 %v3332
  %5087 = vmatpush.bf16.msra.mxu0 %v3324
  %5088 = vmatpush.bf16.msra.mxu0 %v3316
  %5089 = vmatpush.bf16.msra.mxu0 %v3308
  %5090 = vmatpush.bf16.msra.mxu0 %v3300
  %5091 = vmatmul.bf16.gmra.mxu0 %v4533
  %v5092 = vpop.f32.mrf.mxu0
  %v5093 = vadd.f32 %v4898, %v5092
  %v5094 = vpop.f32.mrf.mxu0
  %5095 = vdwg.mxu0
  %5096 = vmatpush.bf16.msra.mxu0 %v3420
  %5097 = vmatpush.bf16.msra.mxu0 %v3412
  %5098 = vmatpush.bf16.msra.mxu0 %v3404
  %5099 = vmatpush.bf16.msra.mxu0 %v3396
  %5100 = vmatpush.bf16.msra.mxu0 %v3388
  %5101 = vmatpush.bf16.msra.mxu0 %v3380
  %5102 = vmatpush.bf16.msra.mxu0 %v3372
  %5103 = vmatpush.bf16.msra.mxu0 %v3364
  %5104 = vmatmul.bf16.gmra.mxu0 %v4534
  %v5105 = vpop.f32.mrf.mxu0
  %v5106 = vadd.f32 %v5093, %v5105
  %v5107 = vpop.f32.mrf.mxu0
  %5108 = vdwg.mxu0
  %5109 = vmatpush.bf16.msra.mxu0 %v3357
  %5110 = vmatpush.bf16.msra.mxu0 %v3349
  %5111 = vmatpush.bf16.msra.mxu0 %v3341
  %5112 = vmatpush.bf16.msra.mxu0 %v3333
  %5113 = vmatpush.bf16.msra.mxu0 %v3325
  %5114 = vmatpush.bf16.msra.mxu0 %v3317
  %5115 = vmatpush.bf16.msra.mxu0 %v3309
  %5116 = vmatpush.bf16.msra.mxu0 %v3301
  %5117 = vmatmul.bf16.gmra.mxu0 %v4533
  %v5118 = vpop.f32.mrf.mxu0
  %v5119 = vadd.f32 %v4924, %v5118
  %v5120 = vpop.f32.mrf.mxu0
  %5121 = vdwg.mxu0
  %5122 = vmatpush.bf16.msra.mxu0 %v3421
  %5123 = vmatpush.bf16.msra.mxu0 %v3413
  %5124 = vmatpush.bf16.msra.mxu0 %v3405
  %5125 = vmatpush.bf16.msra.mxu0 %v3397
  %5126 = vmatpush.bf16.msra.mxu0 %v3389
  %5127 = vmatpush.bf16.msra.mxu0 %v3381
  %5128 = vmatpush.bf16.msra.mxu0 %v3373
  %5129 = vmatpush.bf16.msra.mxu0 %v3365
  %5130 = vmatmul.bf16.gmra.mxu0 %v4534
  %v5131 = vpop.f32.mrf.mxu0
  %v5132 = vadd.f32 %v5119, %v5131
  %v5133 = vpop.f32.mrf.mxu0
  %5134 = vdwg.mxu0
  %5135 = vmatpush.bf16.msra.mxu0 %v3358
  %5136 = vmatpush.bf16.msra.mxu0 %v3350
  %5137 = vmatpush.bf16.msra.mxu0 %v3342
  %5138 = vmatpush.bf16.msra.mxu0 %v3334
  %5139 = vmatpush.bf16.msra.mxu0 %v3326
  %5140 = vmatpush.bf16.msra.mxu0 %v3318
  %5141 = vmatpush.bf16.msra.mxu0 %v3310
  %5142 = vmatpush.bf16.msra.mxu0 %v3302
  %5143 = vmatmul.bf16.gmra.mxu0 %v4533
  %v5144 = vpop.f32.mrf.mxu0
  %v5145 = vadd.f32 %v4950, %v5144
  %v5146 = vpop.f32.mrf.mxu0
  %5147 = vdwg.mxu0
  %5148 = vmatpush.bf16.msra.mxu0 %v3422
  %5149 = vmatpush.bf16.msra.mxu0 %v3414
  %5150 = vmatpush.bf16.msra.mxu0 %v3406
  %5151 = vmatpush.bf16.msra.mxu0 %v3398
  %5152 = vmatpush.bf16.msra.mxu0 %v3390
  %5153 = vmatpush.bf16.msra.mxu0 %v3382
  %5154 = vmatpush.bf16.msra.mxu0 %v3374
  %5155 = vmatpush.bf16.msra.mxu0 %v3366
  %5156 = vmatmul.bf16.gmra.mxu0 %v4534
  %v5157 = vpop.f32.mrf.mxu0
  %v5158 = vadd.f32 %v5145, %v5157
  %v5159 = vpop.f32.mrf.mxu0
  %5160 = vdwg.mxu0
  %5161 = vmatpush.bf16.msra.mxu0 %v3359
  %5162 = vmatpush.bf16.msra.mxu0 %v3351
  %5163 = vmatpush.bf16.msra.mxu0 %v3343
  %5164 = vmatpush.bf16.msra.mxu0 %v3335
  %5165 = vmatpush.bf16.msra.mxu0 %v3327
  %5166 = vmatpush.bf16.msra.mxu0 %v3319
  %5167 = vmatpush.bf16.msra.mxu0 %v3311
  %5168 = vmatpush.bf16.msra.mxu0 %v3303
  %5169 = vmatmul.bf16.gmra.mxu0 %v4533
  %v5170 = vpop.f32.mrf.mxu0
  %v5171 = vadd.f32 %v4976, %v5170
  %v5172 = vpop.f32.mrf.mxu0
  %5173 = vdwg.mxu0
  %5174 = vmatpush.bf16.msra.mxu0 %v3423
  %5175 = vmatpush.bf16.msra.mxu0 %v3415
  %5176 = vmatpush.bf16.msra.mxu0 %v3407
  %5177 = vmatpush.bf16.msra.mxu0 %v3399
  %5178 = vmatpush.bf16.msra.mxu0 %v3391
  %5179 = vmatpush.bf16.msra.mxu0 %v3383
  %5180 = vmatpush.bf16.msra.mxu0 %v3375
  %5181 = vmatpush.bf16.msra.mxu0 %v3367
  %5182 = vmatmul.bf16.gmra.mxu0 %v4534
  %v5183 = vpop.f32.mrf.mxu0
  %v5184 = vadd.f32 %v5171, %v5183
  %v5185 = vpop.f32.mrf.mxu0
  %5186 = vdwg.mxu0
  %5187 = vmatpush.bf16.msra.mxu0 %v3360
  %5188 = vmatpush.bf16.msra.mxu0 %v3352
  %5189 = vmatpush.bf16.msra.mxu0 %v3344
  %5190 = vmatpush.bf16.msra.mxu0 %v3336
  %5191 = vmatpush.bf16.msra.mxu0 %v3328
  %5192 = vmatpush.bf16.msra.mxu0 %v3320
  %5193 = vmatpush.bf16.msra.mxu0 %v3312
  %5194 = vmatpush.bf16.msra.mxu0 %v3304
  %5195 = vmatmul.bf16.gmra.mxu0 %v4533
  %v5196 = vpop.f32.mrf.mxu0
  %v5197 = vadd.f32 %v5002, %v5196
  %v5198 = vpop.f32.mrf.mxu0
  %5199 = vdwg.mxu0
  %5200 = vmatpush.bf16.msra.mxu0 %v3424
  %5201 = vmatpush.bf16.msra.mxu0 %v3416
  %5202 = vmatpush.bf16.msra.mxu0 %v3408
  %5203 = vmatpush.bf16.msra.mxu0 %v3400
  %5204 = vmatpush.bf16.msra.mxu0 %v3392
  %5205 = vmatpush.bf16.msra.mxu0 %v3384
  %5206 = vmatpush.bf16.msra.mxu0 %v3376
  %5207 = vmatpush.bf16.msra.mxu0 %v3368
  %5208 = vmatmul.bf16.gmra.mxu0 %v4534
  %v5209 = vpop.f32.mrf.mxu0
  %v5210 = vadd.f32 %v5197, %v5209
  %v5211 = vpop.f32.mrf.mxu0
  %5212 = vdwg.mxu0
  %v5213 = vadd.f32 %v5028, %v1147
  %v5214 = vadd.f32 %v5054, %v1148
  %v5215 = vadd.f32 %v5080, %v1149
  %v5216 = vadd.f32 %v5106, %v1150
  %v5217 = vadd.f32 %v5132, %v1151
  %v5218 = vadd.f32 %v5158, %v1152
  %v5219 = vadd.f32 %v5184, %v1153
  %v5220 = vadd.f32 %v5210, %v1154
  %v5221 = vmul.f32 %v5213, 0.5
  %v5222 = vmul.f32 %v5214, 0.5
  %v5223 = vmul.f32 %v5215, 0.5
  %v5224 = vmul.f32 %v5216, 0.5
  %v5225 = vmul.f32 %v5217, 0.5
  %v5226 = vmul.f32 %v5218, 0.5
  %v5227 = vtanh.pop %v5221
  %v5228 = vtanh.pop %v5222
  %v5229 = vtanh.pop %v5223
  %v5230 = vtanh.pop %v5224
  %v5231 = vtanh.pop %v5225
  %v5232 = vtanh.pop %v5226
  %v5233 = vmul.f32 %v5227, 0.5
  %v5234 = vmul.f32 %v5228, 0.5
  %v5235 = vmul.f32 %v5229, 0.5
  %v5236 = vmul.f32 %v5230, 0.5
  %v5237 = vmul.f32 %v5231, 0.5
  %v5238 = vmul.f32 %v5232, 0.5
  %v5239 = vadd.f32 %v5233, 0.5
  %v5240 = vadd.f32 %v5234, 0.5
  %v5241 = vadd.f32 %v5235, 0.5
  %v5242 = vadd.f32 %v5236, 0.5
  %v5243 = vadd.f32 %v5237, 0.5
  %v5244 = vadd.f32 %v5238, 0.5
  %v5245 = vtanh.pop %v5219
  %v5246 = vtanh.pop %v5220
  %v5247 = vmul.f32 %v5241, %v4525
  %v5248 = vmul.f32 %v5242, %v4526
  %v5249 = vmul.f32 %v5239, %v5245
  %v5250 = vmul.f32 %v5240, %v5246
  %v5251 = vadd.f32 %v5247, %v5249
  %v5252 = vadd.f32 %v5248, %v5250
  %v5253 = vtanh.pop %v5251
  %v5254 = vtanh.pop %v5252
  %v5255 = vmul.f32 %v5243, %v5253
  %v5256 = vmul.f32 %v5244, %v5254
  %5257 = vst [vmem:[#allocation3 + $0x20] sm:$0xff] %v5255
  %5258 = vst [vmem:[#allocation3 + $0x28] sm:$0xff] %v5256
  %v5259 = vpack.c.bf16 %v5255, %v5255
  %v5260 = vpack.c.bf16 %v5256, %v5256
  %v5261 = vld [vmem:[#allocation2 + $0xc0] sm:$0xff]
  %v5262 = vld [vmem:[#allocation2 + $0xc8] sm:$0xff]
  %v5263 = vld [vmem:[#allocation2 + $0xd0] sm:$0xff]
  %v5264 = vld [vmem:[#allocation2 + $0xd8] sm:$0xff]
  %v5265 = vld [vmem:[#allocation2 + $0xe0] sm:$0xff]
  %v5266 = vld [vmem:[#allocation2 + $0xe8] sm:$0xff]
  %v5267 = vld [vmem:[#allocation2 + $0xf0] sm:$0xff]
  %v5268 = vld [vmem:[#allocation2 + $0xf8] sm:$0xff]
  %5269 = vmatpush.bf16.msra.mxu0 %v1611
  %5270 = vmatpush.bf16.msra.mxu0 %v1603
  %5271 = vmatpush.bf16.msra.mxu0 %v1595
  %5272 = vmatpush.bf16.msra.mxu0 %v1587
  %5273 = vmatpush.bf16.msra.mxu0 %v1579
  %5274 = vmatpush.bf16.msra.mxu0 %v1571
  %5275 = vmatpush.bf16.msra.mxu0 %v1563
  %5276 = vmatpush.bf16.msra.mxu0 %v1555
  %5277 = vmatmul.bf16.gmra.mxu0 %v4795
  %v5278 = vpop.f32.mrf.mxu0
  %v5279 = vadd.f32 0.0, %v5278
  %v5280 = vpop.f32.mrf.mxu0
  %5281 = vdwg.mxu0
  %5282 = vmatpush.bf16.msra.mxu0 %v1675
  %5283 = vmatpush.bf16.msra.mxu0 %v1667
  %5284 = vmatpush.bf16.msra.mxu0 %v1659
  %5285 = vmatpush.bf16.msra.mxu0 %v1651
  %5286 = vmatpush.bf16.msra.mxu0 %v1643
  %5287 = vmatpush.bf16.msra.mxu0 %v1635
  %5288 = vmatpush.bf16.msra.mxu0 %v1627
  %5289 = vmatpush.bf16.msra.mxu0 %v1619
  %5290 = vmatmul.bf16.gmra.mxu0 %v4796
  %v5291 = vpop.f32.mrf.mxu0
  %v5292 = vadd.f32 %v5279, %v5291
  %v5293 = vpop.f32.mrf.mxu0
  %5294 = vdwg.mxu0
  %5295 = vmatpush.bf16.msra.mxu0 %v1612
  %5296 = vmatpush.bf16.msra.mxu0 %v1604
  %5297 = vmatpush.bf16.msra.mxu0 %v1596
  %5298 = vmatpush.bf16.msra.mxu0 %v1588
  %5299 = vmatpush.bf16.msra.mxu0 %v1580
  %5300 = vmatpush.bf16.msra.mxu0 %v1572
  %5301 = vmatpush.bf16.msra.mxu0 %v1564
  %5302 = vmatpush.bf16.msra.mxu0 %v1556
  %5303 = vmatmul.bf16.gmra.mxu0 %v4795
  %v5304 = vpop.f32.mrf.mxu0
  %v5305 = vadd.f32 0.0, %v5304
  %v5306 = vpop.f32.mrf.mxu0
  %5307 = vdwg.mxu0
  %5308 = vmatpush.bf16.msra.mxu0 %v1676
  %5309 = vmatpush.bf16.msra.mxu0 %v1668
  %5310 = vmatpush.bf16.msra.mxu0 %v1660
  %5311 = vmatpush.bf16.msra.mxu0 %v1652
  %5312 = vmatpush.bf16.msra.mxu0 %v1644
  %5313 = vmatpush.bf16.msra.mxu0 %v1636
  %5314 = vmatpush.bf16.msra.mxu0 %v1628
  %5315 = vmatpush.bf16.msra.mxu0 %v1620
  %5316 = vmatmul.bf16.gmra.mxu0 %v4796
  %v5317 = vpop.f32.mrf.mxu0
  %v5318 = vadd.f32 %v5305, %v5317
  %v5319 = vpop.f32.mrf.mxu0
  %5320 = vdwg.mxu0
  %5321 = vmatpush.bf16.msra.mxu0 %v1613
  %5322 = vmatpush.bf16.msra.mxu0 %v1605
  %5323 = vmatpush.bf16.msra.mxu0 %v1597
  %5324 = vmatpush.bf16.msra.mxu0 %v1589
  %5325 = vmatpush.bf16.msra.mxu0 %v1581
  %5326 = vmatpush.bf16.msra.mxu0 %v1573
  %5327 = vmatpush.bf16.msra.mxu0 %v1565
  %5328 = vmatpush.bf16.msra.mxu0 %v1557
  %5329 = vmatmul.bf16.gmra.mxu0 %v4795
  %v5330 = vpop.f32.mrf.mxu0
  %v5331 = vadd.f32 0.0, %v5330
  %v5332 = vpop.f32.mrf.mxu0
  %5333 = vdwg.mxu0
  %5334 = vmatpush.bf16.msra.mxu0 %v1677
  %5335 = vmatpush.bf16.msra.mxu0 %v1669
  %5336 = vmatpush.bf16.msra.mxu0 %v1661
  %5337 = vmatpush.bf16.msra.mxu0 %v1653
  %5338 = vmatpush.bf16.msra.mxu0 %v1645
  %5339 = vmatpush.bf16.msra.mxu0 %v1637
  %5340 = vmatpush.bf16.msra.mxu0 %v1629
  %5341 = vmatpush.bf16.msra.mxu0 %v1621
  %5342 = vmatmul.bf16.gmra.mxu0 %v4796
  %v5343 = vpop.f32.mrf.mxu0
  %v5344 = vadd.f32 %v5331, %v5343
  %v5345 = vpop.f32.mrf.mxu0
  %5346 = vdwg.mxu0
  %5347 = vmatpush.bf16.msra.mxu0 %v1614
  %5348 = vmatpush.bf16.msra.mxu0 %v1606
  %5349 = vmatpush.bf16.msra.mxu0 %v1598
  %5350 = vmatpush.bf16.msra.mxu0 %v1590
  %5351 = vmatpush.bf16.msra.mxu0 %v1582
  %5352 = vmatpush.bf16.msra.mxu0 %v1574
  %5353 = vmatpush.bf16.msra.mxu0 %v1566
  %5354 = vmatpush.bf16.msra.mxu0 %v1558
  %5355 = vmatmul.bf16.gmra.mxu0 %v4795
  %v5356 = vpop.f32.mrf.mxu0
  %v5357 = vadd.f32 0.0, %v5356
  %v5358 = vpop.f32.mrf.mxu0
  %5359 = vdwg.mxu0
  %5360 = vmatpush.bf16.msra.mxu0 %v1678
  %5361 = vmatpush.bf16.msra.mxu0 %v1670
  %5362 = vmatpush.bf16.msra.mxu0 %v1662
  %5363 = vmatpush.bf16.msra.mxu0 %v1654
  %5364 = vmatpush.bf16.msra.mxu0 %v1646
  %5365 = vmatpush.bf16.msra.mxu0 %v1638
  %5366 = vmatpush.bf16.msra.mxu0 %v1630
  %5367 = vmatpush.bf16.msra.mxu0 %v1622
  %5368 = vmatmul.bf16.gmra.mxu0 %v4796
  %v5369 = vpop.f32.mrf.mxu0
  %v5370 = vadd.f32 %v5357, %v5369
  %v5371 = vpop.f32.mrf.mxu0
  %5372 = vdwg.mxu0
  %5373 = vmatpush.bf16.msra.mxu0 %v1615
  %5374 = vmatpush.bf16.msra.mxu0 %v1607
  %5375 = vmatpush.bf16.msra.mxu0 %v1599
  %5376 = vmatpush.bf16.msra.mxu0 %v1591
  %5377 = vmatpush.bf16.msra.mxu0 %v1583
  %5378 = vmatpush.bf16.msra.mxu0 %v1575
  %5379 = vmatpush.bf16.msra.mxu0 %v1567
  %5380 = vmatpush.bf16.msra.mxu0 %v1559
  %5381 = vmatmul.bf16.gmra.mxu0 %v4795
  %v5382 = vpop.f32.mrf.mxu0
  %v5383 = vadd.f32 0.0, %v5382
  %v5384 = vpop.f32.mrf.mxu0
  %5385 = vdwg.mxu0
  %5386 = vmatpush.bf16.msra.mxu0 %v1679
  %5387 = vmatpush.bf16.msra.mxu0 %v1671
  %5388 = vmatpush.bf16.msra.mxu0 %v1663
  %5389 = vmatpush.bf16.msra.mxu0 %v1655
  %5390 = vmatpush.bf16.msra.mxu0 %v1647
  %5391 = vmatpush.bf16.msra.mxu0 %v1639
  %5392 = vmatpush.bf16.msra.mxu0 %v1631
  %5393 = vmatpush.bf16.msra.mxu0 %v1623
  %5394 = vmatmul.bf16.gmra.mxu0 %v4796
  %v5395 = vpop.f32.mrf.mxu0
  %v5396 = vadd.f32 %v5383, %v5395
  %v5397 = vpop.f32.mrf.mxu0
  %5398 = vdwg.mxu0
  %5399 = vmatpush.bf16.msra.mxu0 %v1616
  %5400 = vmatpush.bf16.msra.mxu0 %v1608
  %5401 = vmatpush.bf16.msra.mxu0 %v1600
  %5402 = vmatpush.bf16.msra.mxu0 %v1592
  %5403 = vmatpush.bf16.msra.mxu0 %v1584
  %5404 = vmatpush.bf16.msra.mxu0 %v1576
  %5405 = vmatpush.bf16.msra.mxu0 %v1568
  %5406 = vmatpush.bf16.msra.mxu0 %v1560
  %5407 = vmatmul.bf16.gmra.mxu0 %v4795
  %v5408 = vpop.f32.mrf.mxu0
  %v5409 = vadd.f32 0.0, %v5408
  %v5410 = vpop.f32.mrf.mxu0
  %5411 = vdwg.mxu0
  %5412 = vmatpush.bf16.msra.mxu0 %v1680
  %5413 = vmatpush.bf16.msra.mxu0 %v1672
  %5414 = vmatpush.bf16.msra.mxu0 %v1664
  %5415 = vmatpush.bf16.msra.mxu0 %v1656
  %5416 = vmatpush.bf16.msra.mxu0 %v1648
  %5417 = vmatpush.bf16.msra.mxu0 %v1640
  %5418 = vmatpush.bf16.msra.mxu0 %v1632
  %5419 = vmatpush.bf16.msra.mxu0 %v1624
  %5420 = vmatmul.bf16.gmra.mxu0 %v4796
  %v5421 = vpop.f32.mrf.mxu0
  %v5422 = vadd.f32 %v5409, %v5421
  %v5423 = vpop.f32.mrf.mxu0
  %5424 = vdwg.mxu0
  %5425 = vmatpush.bf16.msra.mxu0 %v1617
  %5426 = vmatpush.bf16.msra.mxu0 %v1609
  %5427 = vmatpush.bf16.msra.mxu0 %v1601
  %5428 = vmatpush.bf16.msra.mxu0 %v1593
  %5429 = vmatpush.bf16.msra.mxu0 %v1585
  %5430 = vmatpush.bf16.msra.mxu0 %v1577
  %5431 = vmatpush.bf16.msra.mxu0 %v1569
  %5432 = vmatpush.bf16.msra.mxu0 %v1561
  %5433 = vmatmul.bf16.gmra.mxu0 %v4795
  %v5434 = vpop.f32.mrf.mxu0
  %v5435 = vadd.f32 0.0, %v5434
  %v5436 = vpop.f32.mrf.mxu0
  %5437 = vdwg.mxu0
  %5438 = vmatpush.bf16.msra.mxu0 %v1681
  %5439 = vmatpush.bf16.msra.mxu0 %v1673
  %5440 = vmatpush.bf16.msra.mxu0 %v1665
  %5441 = vmatpush.bf16.msra.mxu0 %v1657
  %5442 = vmatpush.bf16.msra.mxu0 %v1649
  %5443 = vmatpush.bf16.msra.mxu0 %v1641
  %5444 = vmatpush.bf16.msra.mxu0 %v1633
  %5445 = vmatpush.bf16.msra.mxu0 %v1625
  %5446 = vmatmul.bf16.gmra.mxu0 %v4796
  %v5447 = vpop.f32.mrf.mxu0
  %v5448 = vadd.f32 %v5435, %v5447
  %v5449 = vpop.f32.mrf.mxu0
  %5450 = vdwg.mxu0
  %5451 = vmatpush.bf16.msra.mxu0 %v1618
  %5452 = vmatpush.bf16.msra.mxu0 %v1610
  %5453 = vmatpush.bf16.msra.mxu0 %v1602
  %5454 = vmatpush.bf16.msra.mxu0 %v1594
  %5455 = vmatpush.bf16.msra.mxu0 %v1586
  %5456 = vmatpush.bf16.msra.mxu0 %v1578
  %5457 = vmatpush.bf16.msra.mxu0 %v1570
  %5458 = vmatpush.bf16.msra.mxu0 %v1562
  %5459 = vmatmul.bf16.gmra.mxu0 %v4795
  %v5460 = vpop.f32.mrf.mxu0
  %v5461 = vadd.f32 0.0, %v5460
  %v5462 = vpop.f32.mrf.mxu0
  %5463 = vdwg.mxu0
  %5464 = vmatpush.bf16.msra.mxu0 %v1682
  %5465 = vmatpush.bf16.msra.mxu0 %v1674
  %5466 = vmatpush.bf16.msra.mxu0 %v1666
  %5467 = vmatpush.bf16.msra.mxu0 %v1658
  %5468 = vmatpush.bf16.msra.mxu0 %v1650
  %5469 = vmatpush.bf16.msra.mxu0 %v1642
  %5470 = vmatpush.bf16.msra.mxu0 %v1634
  %5471 = vmatpush.bf16.msra.mxu0 %v1626
  %5472 = vmatmul.bf16.gmra.mxu0 %v4796
  %v5473 = vpop.f32.mrf.mxu0
  %v5474 = vadd.f32 %v5461, %v5473
  %v5475 = vpop.f32.mrf.mxu0
  %5476 = vdwg.mxu0
  %v5477 = vadd.f32 %v5261, %v5292
  %v5478 = vadd.f32 %v5262, %v5318
  %v5479 = vadd.f32 %v5263, %v5344
  %v5480 = vadd.f32 %v5264, %v5370
  %v5481 = vadd.f32 %v5265, %v5396
  %v5482 = vadd.f32 %v5266, %v5422
  %v5483 = vadd.f32 %v5267, %v5448
  %v5484 = vadd.f32 %v5268, %v5474
  %v5485 = vmul.f32 %v5477, 0.5
  %v5486 = vmul.f32 %v5478, 0.5
  %v5487 = vmul.f32 %v5479, 0.5
  %v5488 = vmul.f32 %v5480, 0.5
  %v5489 = vmul.f32 %v5481, 0.5
  %v5490 = vmul.f32 %v5482, 0.5
  %v5491 = vtanh.pop %v5485
  %v5492 = vtanh.pop %v5486
  %v5493 = vtanh.pop %v5487
  %v5494 = vtanh.pop %v5488
  %v5495 = vtanh.pop %v5489
  %v5496 = vtanh.pop %v5490
  %v5497 = vmul.f32 %v5491, 0.5
  %v5498 = vmul.f32 %v5492, 0.5
  %v5499 = vmul.f32 %v5493, 0.5
  %v5500 = vmul.f32 %v5494, 0.5
  %v5501 = vmul.f32 %v5495, 0.5
  %v5502 = vmul.f32 %v5496, 0.5
  %v5503 = vadd.f32 %v5497, 0.5
  %v5504 = vadd.f32 %v5498, 0.5
  %v5505 = vadd.f32 %v5499, 0.5
  %v5506 = vadd.f32 %v5500, 0.5
  %v5507 = vadd.f32 %v5501, 0.5
  %v5508 = vadd.f32 %v5502, 0.5
  %v5509 = vtanh.pop %v5483
  %v5510 = vtanh.pop %v5484
  %v5511 = vmul.f32 %v5505, %v4789
  %v5512 = vmul.f32 %v5506, %v4790
  %v5513 = vmul.f32 %v5503, %v5509
  %v5514 = vmul.f32 %v5504, %v5510
  %v5515 = vadd.f32 %v5511, %v5513
  %v5516 = vadd.f32 %v5512, %v5514
  %v5517 = vtanh.pop %v5515
  %v5518 = vtanh.pop %v5516
  %v5519 = vmul.f32 %v5507, %v5517
  %v5520 = vmul.f32 %v5508, %v5518
  %v5521 = vpack.c.bf16 %v5519, %v5519
  %v5522 = vpack.c.bf16 %v5520, %v5520
  %5523 = vmatpush.bf16.msra.mxu0 %v2505
  %5524 = vmatpush.bf16.msra.mxu0 %v2497
  %5525 = vmatpush.bf16.msra.mxu0 %v2489
  %5526 = vmatpush.bf16.msra.mxu0 %v2481
  %5527 = vmatpush.bf16.msra.mxu0 %v2473
  %5528 = vmatpush.bf16.msra.mxu0 %v2465
  %5529 = vmatpush.bf16.msra.mxu0 %v2457
  %5530 = vmatpush.bf16.msra.mxu0 %v2449
  %5531 = vmatmul.bf16.gmra.mxu0 %v5521
  %v5532 = vpop.f32.mrf.mxu0
  %v5533 = vadd.f32 0.0, %v5532
  %v5534 = vpop.f32.mrf.mxu0
  %5535 = vdwg.mxu0
  %5536 = vmatpush.bf16.msra.mxu0 %v2569
  %5537 = vmatpush.bf16.msra.mxu0 %v2561
  %5538 = vmatpush.bf16.msra.mxu0 %v2553
  %5539 = vmatpush.bf16.msra.mxu0 %v2545
  %5540 = vmatpush.bf16.msra.mxu0 %v2537
  %5541 = vmatpush.bf16.msra.mxu0 %v2529
  %5542 = vmatpush.bf16.msra.mxu0 %v2521
  %5543 = vmatpush.bf16.msra.mxu0 %v2513
  %5544 = vmatmul.bf16.gmra.mxu0 %v5522
  %v5545 = vpop.f32.mrf.mxu0
  %v5546 = vadd.f32 %v5533, %v5545
  %v5547 = vpop.f32.mrf.mxu0
  %5548 = vdwg.mxu0
  %5549 = vmatpush.bf16.msra.mxu0 %v2506
  %5550 = vmatpush.bf16.msra.mxu0 %v2498
  %5551 = vmatpush.bf16.msra.mxu0 %v2490
  %5552 = vmatpush.bf16.msra.mxu0 %v2482
  %5553 = vmatpush.bf16.msra.mxu0 %v2474
  %5554 = vmatpush.bf16.msra.mxu0 %v2466
  %5555 = vmatpush.bf16.msra.mxu0 %v2458
  %5556 = vmatpush.bf16.msra.mxu0 %v2450
  %5557 = vmatmul.bf16.gmra.mxu0 %v5521
  %v5558 = vpop.f32.mrf.mxu0
  %v5559 = vadd.f32 0.0, %v5558
  %v5560 = vpop.f32.mrf.mxu0
  %5561 = vdwg.mxu0
  %5562 = vmatpush.bf16.msra.mxu0 %v2570
  %5563 = vmatpush.bf16.msra.mxu0 %v2562
  %5564 = vmatpush.bf16.msra.mxu0 %v2554
  %5565 = vmatpush.bf16.msra.mxu0 %v2546
  %5566 = vmatpush.bf16.msra.mxu0 %v2538
  %5567 = vmatpush.bf16.msra.mxu0 %v2530
  %5568 = vmatpush.bf16.msra.mxu0 %v2522
  %5569 = vmatpush.bf16.msra.mxu0 %v2514
  %5570 = vmatmul.bf16.gmra.mxu0 %v5522
  %v5571 = vpop.f32.mrf.mxu0
  %v5572 = vadd.f32 %v5559, %v5571
  %v5573 = vpop.f32.mrf.mxu0
  %5574 = vdwg.mxu0
  %5575 = vmatpush.bf16.msra.mxu0 %v2507
  %5576 = vmatpush.bf16.msra.mxu0 %v2499
  %5577 = vmatpush.bf16.msra.mxu0 %v2491
  %5578 = vmatpush.bf16.msra.mxu0 %v2483
  %5579 = vmatpush.bf16.msra.mxu0 %v2475
  %5580 = vmatpush.bf16.msra.mxu0 %v2467
  %5581 = vmatpush.bf16.msra.mxu0 %v2459
  %5582 = vmatpush.bf16.msra.mxu0 %v2451
  %5583 = vmatmul.bf16.gmra.mxu0 %v5521
  %v5584 = vpop.f32.mrf.mxu0
  %v5585 = vadd.f32 0.0, %v5584
  %v5586 = vpop.f32.mrf.mxu0
  %5587 = vdwg.mxu0
  %5588 = vmatpush.bf16.msra.mxu0 %v2571
  %5589 = vmatpush.bf16.msra.mxu0 %v2563
  %5590 = vmatpush.bf16.msra.mxu0 %v2555
  %5591 = vmatpush.bf16.msra.mxu0 %v2547
  %5592 = vmatpush.bf16.msra.mxu0 %v2539
  %5593 = vmatpush.bf16.msra.mxu0 %v2531
  %5594 = vmatpush.bf16.msra.mxu0 %v2523
  %5595 = vmatpush.bf16.msra.mxu0 %v2515
  %5596 = vmatmul.bf16.gmra.mxu0 %v5522
  %v5597 = vpop.f32.mrf.mxu0
  %v5598 = vadd.f32 %v5585, %v5597
  %v5599 = vpop.f32.mrf.mxu0
  %5600 = vdwg.mxu0
  %5601 = vmatpush.bf16.msra.mxu0 %v2508
  %5602 = vmatpush.bf16.msra.mxu0 %v2500
  %5603 = vmatpush.bf16.msra.mxu0 %v2492
  %5604 = vmatpush.bf16.msra.mxu0 %v2484
  %5605 = vmatpush.bf16.msra.mxu0 %v2476
  %5606 = vmatpush.bf16.msra.mxu0 %v2468
  %5607 = vmatpush.bf16.msra.mxu0 %v2460
  %5608 = vmatpush.bf16.msra.mxu0 %v2452
  %5609 = vmatmul.bf16.gmra.mxu0 %v5521
  %v5610 = vpop.f32.mrf.mxu0
  %v5611 = vadd.f32 0.0, %v5610
  %v5612 = vpop.f32.mrf.mxu0
  %5613 = vdwg.mxu0
  %5614 = vmatpush.bf16.msra.mxu0 %v2572
  %5615 = vmatpush.bf16.msra.mxu0 %v2564
  %5616 = vmatpush.bf16.msra.mxu0 %v2556
  %5617 = vmatpush.bf16.msra.mxu0 %v2548
  %5618 = vmatpush.bf16.msra.mxu0 %v2540
  %5619 = vmatpush.bf16.msra.mxu0 %v2532
  %5620 = vmatpush.bf16.msra.mxu0 %v2524
  %5621 = vmatpush.bf16.msra.mxu0 %v2516
  %5622 = vmatmul.bf16.gmra.mxu0 %v5522
  %v5623 = vpop.f32.mrf.mxu0
  %v5624 = vadd.f32 %v5611, %v5623
  %v5625 = vpop.f32.mrf.mxu0
  %5626 = vdwg.mxu0
  %5627 = vmatpush.bf16.msra.mxu0 %v2509
  %5628 = vmatpush.bf16.msra.mxu0 %v2501
  %5629 = vmatpush.bf16.msra.mxu0 %v2493
  %5630 = vmatpush.bf16.msra.mxu0 %v2485
  %5631 = vmatpush.bf16.msra.mxu0 %v2477
  %5632 = vmatpush.bf16.msra.mxu0 %v2469
  %5633 = vmatpush.bf16.msra.mxu0 %v2461
  %5634 = vmatpush.bf16.msra.mxu0 %v2453
  %5635 = vmatmul.bf16.gmra.mxu0 %v5521
  %v5636 = vpop.f32.mrf.mxu0
  %v5637 = vadd.f32 0.0, %v5636
  %v5638 = vpop.f32.mrf.mxu0
  %5639 = vdwg.mxu0
  %5640 = vmatpush.bf16.msra.mxu0 %v2573
  %5641 = vmatpush.bf16.msra.mxu0 %v2565
  %5642 = vmatpush.bf16.msra.mxu0 %v2557
  %5643 = vmatpush.bf16.msra.mxu0 %v2549
  %5644 = vmatpush.bf16.msra.mxu0 %v2541
  %5645 = vmatpush.bf16.msra.mxu0 %v2533
  %5646 = vmatpush.bf16.msra.mxu0 %v2525
  %5647 = vmatpush.bf16.msra.mxu0 %v2517
  %5648 = vmatmul.bf16.gmra.mxu0 %v5522
  %v5649 = vpop.f32.mrf.mxu0
  %v5650 = vadd.f32 %v5637, %v5649
  %v5651 = vpop.f32.mrf.mxu0
  %5652 = vdwg.mxu0
  %5653 = vmatpush.bf16.msra.mxu0 %v2510
  %5654 = vmatpush.bf16.msra.mxu0 %v2502
  %5655 = vmatpush.bf16.msra.mxu0 %v2494
  %5656 = vmatpush.bf16.msra.mxu0 %v2486
  %5657 = vmatpush.bf16.msra.mxu0 %v2478
  %5658 = vmatpush.bf16.msra.mxu0 %v2470
  %5659 = vmatpush.bf16.msra.mxu0 %v2462
  %5660 = vmatpush.bf16.msra.mxu0 %v2454
  %5661 = vmatmul.bf16.gmra.mxu0 %v5521
  %v5662 = vpop.f32.mrf.mxu0
  %v5663 = vadd.f32 0.0, %v5662
  %v5664 = vpop.f32.mrf.mxu0
  %5665 = vdwg.mxu0
  %5666 = vmatpush.bf16.msra.mxu0 %v2574
  %5667 = vmatpush.bf16.msra.mxu0 %v2566
  %5668 = vmatpush.bf16.msra.mxu0 %v2558
  %5669 = vmatpush.bf16.msra.mxu0 %v2550
  %5670 = vmatpush.bf16.msra.mxu0 %v2542
  %5671 = vmatpush.bf16.msra.mxu0 %v2534
  %5672 = vmatpush.bf16.msra.mxu0 %v2526
  %5673 = vmatpush.bf16.msra.mxu0 %v2518
  %5674 = vmatmul.bf16.gmra.mxu0 %v5522
  %v5675 = vpop.f32.mrf.mxu0
  %v5676 = vadd.f32 %v5663, %v5675
  %v5677 = vpop.f32.mrf.mxu0
  %5678 = vdwg.mxu0
  %5679 = vmatpush.bf16.msra.mxu0 %v2511
  %5680 = vmatpush.bf16.msra.mxu0 %v2503
  %5681 = vmatpush.bf16.msra.mxu0 %v2495
  %5682 = vmatpush.bf16.msra.mxu0 %v2487
  %5683 = vmatpush.bf16.msra.mxu0 %v2479
  %5684 = vmatpush.bf16.msra.mxu0 %v2471
  %5685 = vmatpush.bf16.msra.mxu0 %v2463
  %5686 = vmatpush.bf16.msra.mxu0 %v2455
  %5687 = vmatmul.bf16.gmra.mxu0 %v5521
  %v5688 = vpop.f32.mrf.mxu0
  %v5689 = vadd.f32 0.0, %v5688
  %v5690 = vpop.f32.mrf.mxu0
  %5691 = vdwg.mxu0
  %5692 = vmatpush.bf16.msra.mxu0 %v2575
  %5693 = vmatpush.bf16.msra.mxu0 %v2567
  %5694 = vmatpush.bf16.msra.mxu0 %v2559
  %5695 = vmatpush.bf16.msra.mxu0 %v2551
  %5696 = vmatpush.bf16.msra.mxu0 %v2543
  %5697 = vmatpush.bf16.msra.mxu0 %v2535
  %5698 = vmatpush.bf16.msra.mxu0 %v2527
  %5699 = vmatpush.bf16.msra.mxu0 %v2519
  %5700 = vmatmul.bf16.gmra.mxu0 %v5522
  %v5701 = vpop.f32.mrf.mxu0
  %v5702 = vadd.f32 %v5689, %v5701
  %v5703 = vpop.f32.mrf.mxu0
  %5704 = vdwg.mxu0
  %5705 = vmatpush.bf16.msra.mxu0 %v2512
  %5706 = vmatpush.bf16.msra.mxu0 %v2504
  %5707 = vmatpush.bf16.msra.mxu0 %v2496
  %5708 = vmatpush.bf16.msra.mxu0 %v2488
  %5709 = vmatpush.bf16.msra.mxu0 %v2480
  %5710 = vmatpush.bf16.msra.mxu0 %v2472
  %5711 = vmatpush.bf16.msra.mxu0 %v2464
  %5712 = vmatpush.bf16.msra.mxu0 %v2456
  %5713 = vmatmul.bf16.gmra.mxu0 %v5521
  %v5714 = vpop.f32.mrf.mxu0
  %v5715 = vadd.f32 0.0, %v5714
  %v5716 = vpop.f32.mrf.mxu0
  %5717 = vdwg.mxu0
  %5718 = vmatpush.bf16.msra.mxu0 %v2576
  %5719 = vmatpush.bf16.msra.mxu0 %v2568
  %5720 = vmatpush.bf16.msra.mxu0 %v2560
  %5721 = vmatpush.bf16.msra.mxu0 %v2552
  %5722 = vmatpush.bf16.msra.mxu0 %v2544
  %5723 = vmatpush.bf16.msra.mxu0 %v2536
  %5724 = vmatpush.bf16.msra.mxu0 %v2528
  %5725 = vmatpush.bf16.msra.mxu0 %v2520
  %5726 = vmatmul.bf16.gmra.mxu0 %v5522
  %v5727 = vpop.f32.mrf.mxu0
  %v5728 = vadd.f32 %v5715, %v5727
  %v5729 = vpop.f32.mrf.mxu0
  %5730 = vdwg.mxu0
  %5731 = vmatpush.bf16.msra.mxu0 %v3353
  %5732 = vmatpush.bf16.msra.mxu0 %v3345
  %5733 = vmatpush.bf16.msra.mxu0 %v3337
  %5734 = vmatpush.bf16.msra.mxu0 %v3329
  %5735 = vmatpush.bf16.msra.mxu0 %v3321
  %5736 = vmatpush.bf16.msra.mxu0 %v3313
  %5737 = vmatpush.bf16.msra.mxu0 %v3305
  %5738 = vmatpush.bf16.msra.mxu0 %v3297
  %5739 = vmatmul.bf16.gmra.mxu0 %v5259
  %v5740 = vpop.f32.mrf.mxu0
  %v5741 = vadd.f32 %v5546, %v5740
  %v5742 = vpop.f32.mrf.mxu0
  %5743 = vdwg.mxu0
  %5744 = vmatpush.bf16.msra.mxu0 %v3417
  %5745 = vmatpush.bf16.msra.mxu0 %v3409
  %5746 = vmatpush.bf16.msra.mxu0 %v3401
  %5747 = vmatpush.bf16.msra.mxu0 %v3393
  %5748 = vmatpush.bf16.msra.mxu0 %v3385
  %5749 = vmatpush.bf16.msra.mxu0 %v3377
  %5750 = vmatpush.bf16.msra.mxu0 %v3369
  %5751 = vmatpush.bf16.msra.mxu0 %v3361
  %5752 = vmatmul.bf16.gmra.mxu0 %v5260
  %v5753 = vpop.f32.mrf.mxu0
  %v5754 = vadd.f32 %v5741, %v5753
  %v5755 = vpop.f32.mrf.mxu0
  %5756 = vdwg.mxu0
  %5757 = vmatpush.bf16.msra.mxu0 %v3354
  %5758 = vmatpush.bf16.msra.mxu0 %v3346
  %5759 = vmatpush.bf16.msra.mxu0 %v3338
  %5760 = vmatpush.bf16.msra.mxu0 %v3330
  %5761 = vmatpush.bf16.msra.mxu0 %v3322
  %5762 = vmatpush.bf16.msra.mxu0 %v3314
  %5763 = vmatpush.bf16.msra.mxu0 %v3306
  %5764 = vmatpush.bf16.msra.mxu0 %v3298
  %5765 = vmatmul.bf16.gmra.mxu0 %v5259
  %v5766 = vpop.f32.mrf.mxu0
  %v5767 = vadd.f32 %v5572, %v5766
  %v5768 = vpop.f32.mrf.mxu0
  %5769 = vdwg.mxu0
  %5770 = vmatpush.bf16.msra.mxu0 %v3418
  %5771 = vmatpush.bf16.msra.mxu0 %v3410
  %5772 = vmatpush.bf16.msra.mxu0 %v3402
  %5773 = vmatpush.bf16.msra.mxu0 %v3394
  %5774 = vmatpush.bf16.msra.mxu0 %v3386
  %5775 = vmatpush.bf16.msra.mxu0 %v3378
  %5776 = vmatpush.bf16.msra.mxu0 %v3370
  %5777 = vmatpush.bf16.msra.mxu0 %v3362
  %5778 = vmatmul.bf16.gmra.mxu0 %v5260
  %v5779 = vpop.f32.mrf.mxu0
  %v5780 = vadd.f32 %v5767, %v5779
  %v5781 = vpop.f32.mrf.mxu0
  %5782 = vdwg.mxu0
  %5783 = vmatpush.bf16.msra.mxu0 %v3355
  %5784 = vmatpush.bf16.msra.mxu0 %v3347
  %5785 = vmatpush.bf16.msra.mxu0 %v3339
  %5786 = vmatpush.bf16.msra.mxu0 %v3331
  %5787 = vmatpush.bf16.msra.mxu0 %v3323
  %5788 = vmatpush.bf16.msra.mxu0 %v3315
  %5789 = vmatpush.bf16.msra.mxu0 %v3307
  %5790 = vmatpush.bf16.msra.mxu0 %v3299
  %5791 = vmatmul.bf16.gmra.mxu0 %v5259
  %v5792 = vpop.f32.mrf.mxu0
  %v5793 = vadd.f32 %v5598, %v5792
  %v5794 = vpop.f32.mrf.mxu0
  %5795 = vdwg.mxu0
  %5796 = vmatpush.bf16.msra.mxu0 %v3419
  %5797 = vmatpush.bf16.msra.mxu0 %v3411
  %5798 = vmatpush.bf16.msra.mxu0 %v3403
  %5799 = vmatpush.bf16.msra.mxu0 %v3395
  %5800 = vmatpush.bf16.msra.mxu0 %v3387
  %5801 = vmatpush.bf16.msra.mxu0 %v3379
  %5802 = vmatpush.bf16.msra.mxu0 %v3371
  %5803 = vmatpush.bf16.msra.mxu0 %v3363
  %5804 = vmatmul.bf16.gmra.mxu0 %v5260
  %v5805 = vpop.f32.mrf.mxu0
  %v5806 = vadd.f32 %v5793, %v5805
  %v5807 = vpop.f32.mrf.mxu0
  %5808 = vdwg.mxu0
  %5809 = vmatpush.bf16.msra.mxu0 %v3356
  %5810 = vmatpush.bf16.msra.mxu0 %v3348
  %5811 = vmatpush.bf16.msra.mxu0 %v3340
  %5812 = vmatpush.bf16.msra.mxu0 %v3332
  %5813 = vmatpush.bf16.msra.mxu0 %v3324
  %5814 = vmatpush.bf16.msra.mxu0 %v3316
  %5815 = vmatpush.bf16.msra.mxu0 %v3308
  %5816 = vmatpush.bf16.msra.mxu0 %v3300
  %5817 = vmatmul.bf16.gmra.mxu0 %v5259
  %v5818 = vpop.f32.mrf.mxu0
  %v5819 = vadd.f32 %v5624, %v5818
  %v5820 = vpop.f32.mrf.mxu0
  %5821 = vdwg.mxu0
  %5822 = vmatpush.bf16.msra.mxu0 %v3420
  %5823 = vmatpush.bf16.msra.mxu0 %v3412
  %5824 = vmatpush.bf16.msra.mxu0 %v3404
  %5825 = vmatpush.bf16.msra.mxu0 %v3396
  %5826 = vmatpush.bf16.msra.mxu0 %v3388
  %5827 = vmatpush.bf16.msra.mxu0 %v3380
  %5828 = vmatpush.bf16.msra.mxu0 %v3372
  %5829 = vmatpush.bf16.msra.mxu0 %v3364
  %5830 = vmatmul.bf16.gmra.mxu0 %v5260
  %v5831 = vpop.f32.mrf.mxu0
  %v5832 = vadd.f32 %v5819, %v5831
  %v5833 = vpop.f32.mrf.mxu0
  %5834 = vdwg.mxu0
  %5835 = vmatpush.bf16.msra.mxu0 %v3357
  %5836 = vmatpush.bf16.msra.mxu0 %v3349
  %5837 = vmatpush.bf16.msra.mxu0 %v3341
  %5838 = vmatpush.bf16.msra.mxu0 %v3333
  %5839 = vmatpush.bf16.msra.mxu0 %v3325
  %5840 = vmatpush.bf16.msra.mxu0 %v3317
  %5841 = vmatpush.bf16.msra.mxu0 %v3309
  %5842 = vmatpush.bf16.msra.mxu0 %v3301
  %5843 = vmatmul.bf16.gmra.mxu0 %v5259
  %v5844 = vpop.f32.mrf.mxu0
  %v5845 = vadd.f32 %v5650, %v5844
  %v5846 = vpop.f32.mrf.mxu0
  %5847 = vdwg.mxu0
  %5848 = vmatpush.bf16.msra.mxu0 %v3421
  %5849 = vmatpush.bf16.msra.mxu0 %v3413
  %5850 = vmatpush.bf16.msra.mxu0 %v3405
  %5851 = vmatpush.bf16.msra.mxu0 %v3397
  %5852 = vmatpush.bf16.msra.mxu0 %v3389
  %5853 = vmatpush.bf16.msra.mxu0 %v3381
  %5854 = vmatpush.bf16.msra.mxu0 %v3373
  %5855 = vmatpush.bf16.msra.mxu0 %v3365
  %5856 = vmatmul.bf16.gmra.mxu0 %v5260
  %v5857 = vpop.f32.mrf.mxu0
  %v5858 = vadd.f32 %v5845, %v5857
  %v5859 = vpop.f32.mrf.mxu0
  %5860 = vdwg.mxu0
  %5861 = vmatpush.bf16.msra.mxu0 %v3358
  %5862 = vmatpush.bf16.msra.mxu0 %v3350
  %5863 = vmatpush.bf16.msra.mxu0 %v3342
  %5864 = vmatpush.bf16.msra.mxu0 %v3334
  %5865 = vmatpush.bf16.msra.mxu0 %v3326
  %5866 = vmatpush.bf16.msra.mxu0 %v3318
  %5867 = vmatpush.bf16.msra.mxu0 %v3310
  %5868 = vmatpush.bf16.msra.mxu0 %v3302
  %5869 = vmatmul.bf16.gmra.mxu0 %v5259
  %v5870 = vpop.f32.mrf.mxu0
  %v5871 = vadd.f32 %v5676, %v5870
  %v5872 = vpop.f32.mrf.mxu0
  %5873 = vdwg.mxu0
  %5874 = vmatpush.bf16.msra.mxu0 %v3422
  %5875 = vmatpush.bf16.msra.mxu0 %v3414
  %5876 = vmatpush.bf16.msra.mxu0 %v3406
  %5877 = vmatpush.bf16.msra.mxu0 %v3398
  %5878 = vmatpush.bf16.msra.mxu0 %v3390
  %5879 = vmatpush.bf16.msra.mxu0 %v3382
  %5880 = vmatpush.bf16.msra.mxu0 %v3374
  %5881 = vmatpush.bf16.msra.mxu0 %v3366
  %5882 = vmatmul.bf16.gmra.mxu0 %v5260
  %v5883 = vpop.f32.mrf.mxu0
  %v5884 = vadd.f32 %v5871, %v5883
  %v5885 = vpop.f32.mrf.mxu0
  %5886 = vdwg.mxu0
  %5887 = vmatpush.bf16.msra.mxu0 %v3359
  %5888 = vmatpush.bf16.msra.mxu0 %v3351
  %5889 = vmatpush.bf16.msra.mxu0 %v3343
  %5890 = vmatpush.bf16.msra.mxu0 %v3335
  %5891 = vmatpush.bf16.msra.mxu0 %v3327
  %5892 = vmatpush.bf16.msra.mxu0 %v3319
  %5893 = vmatpush.bf16.msra.mxu0 %v3311
  %5894 = vmatpush.bf16.msra.mxu0 %v3303
  %5895 = vmatmul.bf16.gmra.mxu0 %v5259
  %v5896 = vpop.f32.mrf.mxu0
  %v5897 = vadd.f32 %v5702, %v5896
  %v5898 = vpop.f32.mrf.mxu0
  %5899 = vdwg.mxu0
  %5900 = vmatpush.bf16.msra.mxu0 %v3423
  %5901 = vmatpush.bf16.msra.mxu0 %v3415
  %5902 = vmatpush.bf16.msra.mxu0 %v3407
  %5903 = vmatpush.bf16.msra.mxu0 %v3399
  %5904 = vmatpush.bf16.msra.mxu0 %v3391
  %5905 = vmatpush.bf16.msra.mxu0 %v3383
  %5906 = vmatpush.bf16.msra.mxu0 %v3375
  %5907 = vmatpush.bf16.msra.mxu0 %v3367
  %5908 = vmatmul.bf16.gmra.mxu0 %v5260
  %v5909 = vpop.f32.mrf.mxu0
  %v5910 = vadd.f32 %v5897, %v5909
  %v5911 = vpop.f32.mrf.mxu0
  %5912 = vdwg.mxu0
  %5913 = vmatpush.bf16.msra.mxu0 %v3360
  %5914 = vmatpush.bf16.msra.mxu0 %v3352
  %5915 = vmatpush.bf16.msra.mxu0 %v3344
  %5916 = vmatpush.bf16.msra.mxu0 %v3336
  %5917 = vmatpush.bf16.msra.mxu0 %v3328
  %5918 = vmatpush.bf16.msra.mxu0 %v3320
  %5919 = vmatpush.bf16.msra.mxu0 %v3312
  %5920 = vmatpush.bf16.msra.mxu0 %v3304
  %5921 = vmatmul.bf16.gmra.mxu0 %v5259
  %v5922 = vpop.f32.mrf.mxu0
  %v5923 = vadd.f32 %v5728, %v5922
  %v5924 = vpop.f32.mrf.mxu0
  %5925 = vdwg.mxu0
  %5926 = vmatpush.bf16.msra.mxu0 %v3424
  %5927 = vmatpush.bf16.msra.mxu0 %v3416
  %5928 = vmatpush.bf16.msra.mxu0 %v3408
  %5929 = vmatpush.bf16.msra.mxu0 %v3400
  %5930 = vmatpush.bf16.msra.mxu0 %v3392
  %5931 = vmatpush.bf16.msra.mxu0 %v3384
  %5932 = vmatpush.bf16.msra.mxu0 %v3376
  %5933 = vmatpush.bf16.msra.mxu0 %v3368
  %5934 = vmatmul.bf16.gmra.mxu0 %v5260
  %v5935 = vpop.f32.mrf.mxu0
  %v5936 = vadd.f32 %v5923, %v5935
  %v5937 = vpop.f32.mrf.mxu0
  %5938 = vdwg.mxu0
  %v5939 = vadd.f32 %v5754, %v1147
  %v5940 = vadd.f32 %v5780, %v1148
  %v5941 = vadd.f32 %v5806, %v1149
  %v5942 = vadd.f32 %v5832, %v1150
  %v5943 = vadd.f32 %v5858, %v1151
  %v5944 = vadd.f32 %v5884, %v1152
  %v5945 = vadd.f32 %v5910, %v1153
  %v5946 = vadd.f32 %v5936, %v1154
  %v5947 = vmul.f32 %v5939, 0.5
  %v5948 = vmul.f32 %v5940, 0.5
  %v5949 = vmul.f32 %v5941, 0.5
  %v5950 = vmul.f32 %v5942, 0.5
  %v5951 = vmul.f32 %v5943, 0.5
  %v5952 = vmul.f32 %v5944, 0.5
  %v5953 = vtanh.pop %v5947
  %v5954 = vtanh.pop %v5948
  %v5955 = vtanh.pop %v5949
  %v5956 = vtanh.pop %v5950
  %v5957 = vtanh.pop %v5951
  %v5958 = vtanh.pop %v5952
  %v5959 = vmul.f32 %v5953, 0.5
  %v5960 = vmul.f32 %v5954, 0.5
  %v5961 = vmul.f32 %v5955, 0.5
  %v5962 = vmul.f32 %v5956, 0.5
  %v5963 = vmul.f32 %v5957, 0.5
  %v5964 = vmul.f32 %v5958, 0.5
  %v5965 = vadd.f32 %v5959, 0.5
  %v5966 = vadd.f32 %v5960, 0.5
  %v5967 = vadd.f32 %v5961, 0.5
  %v5968 = vadd.f32 %v5962, 0.5
  %v5969 = vadd.f32 %v5963, 0.5
  %v5970 = vadd.f32 %v5964, 0.5
  %v5971 = vtanh.pop %v5945
  %v5972 = vtanh.pop %v5946
  %v5973 = vmul.f32 %v5967, %v5251
  %v5974 = vmul.f32 %v5968, %v5252
  %v5975 = vmul.f32 %v5965, %v5971
  %v5976 = vmul.f32 %v5966, %v5972
  %v5977 = vadd.f32 %v5973, %v5975
  %v5978 = vadd.f32 %v5974, %v5976
  %v5979 = vtanh.pop %v5977
  %v5980 = vtanh.pop %v5978
  %v5981 = vmul.f32 %v5969, %v5979
  %v5982 = vmul.f32 %v5970, %v5980
  %5983 = vst [vmem:[#allocation3 + $0x30] sm:$0xff] %v5981
  %5984 = vst [vmem:[#allocation3 + $0x38] sm:$0xff] %v5982
  %v5985 = vpack.c.bf16 %v5981, %v5981
  %v5986 = vpack.c.bf16 %v5982, %v5982
  %v5987 = vld [vmem:[#allocation2 + $0x100] sm:$0xff]
  %v5988 = vld [vmem:[#allocation2 + $0x108] sm:$0xff]
  %v5989 = vld [vmem:[#allocation2 + $0x110] sm:$0xff]
  %v5990 = vld [vmem:[#allocation2 + $0x118] sm:$0xff]
  %v5991 = vld [vmem:[#allocation2 + $0x120] sm:$0xff]
  %v5992 = vld [vmem:[#allocation2 + $0x128] sm:$0xff]
  %v5993 = vld [vmem:[#allocation2 + $0x130] sm:$0xff]
  %v5994 = vld [vmem:[#allocation2 + $0x138] sm:$0xff]
  %5995 = vmatpush.bf16.msra.mxu0 %v1611
  %5996 = vmatpush.bf16.msra.mxu0 %v1603
  %5997 = vmatpush.bf16.msra.mxu0 %v1595
  %5998 = vmatpush.bf16.msra.mxu0 %v1587
  %5999 = vmatpush.bf16.msra.mxu0 %v1579
  %6000 = vmatpush.bf16.msra.mxu0 %v1571
  %6001 = vmatpush.bf16.msra.mxu0 %v1563
  %6002 = vmatpush.bf16.msra.mxu0 %v1555
  %6003 = vmatmul.bf16.gmra.mxu0 %v5521
  %v6004 = vpop.f32.mrf.mxu0
  %v6005 = vadd.f32 0.0, %v6004
  %v6006 = vpop.f32.mrf.mxu0
  %6007 = vdwg.mxu0
  %6008 = vmatpush.bf16.msra.mxu0 %v1675
  %6009 = vmatpush.bf16.msra.mxu0 %v1667
  %6010 = vmatpush.bf16.msra.mxu0 %v1659
  %6011 = vmatpush.bf16.msra.mxu0 %v1651
  %6012 = vmatpush.bf16.msra.mxu0 %v1643
  %6013 = vmatpush.bf16.msra.mxu0 %v1635
  %6014 = vmatpush.bf16.msra.mxu0 %v1627
  %6015 = vmatpush.bf16.msra.mxu0 %v1619
  %6016 = vmatmul.bf16.gmra.mxu0 %v5522
  %v6017 = vpop.f32.mrf.mxu0
  %v6018 = vadd.f32 %v6005, %v6017
  %v6019 = vpop.f32.mrf.mxu0
  %6020 = vdwg.mxu0
  %6021 = vmatpush.bf16.msra.mxu0 %v1612
  %6022 = vmatpush.bf16.msra.mxu0 %v1604
  %6023 = vmatpush.bf16.msra.mxu0 %v1596
  %6024 = vmatpush.bf16.msra.mxu0 %v1588
  %6025 = vmatpush.bf16.msra.mxu0 %v1580
  %6026 = vmatpush.bf16.msra.mxu0 %v1572
  %6027 = vmatpush.bf16.msra.mxu0 %v1564
  %6028 = vmatpush.bf16.msra.mxu0 %v1556
  %6029 = vmatmul.bf16.gmra.mxu0 %v5521
  %v6030 = vpop.f32.mrf.mxu0
  %v6031 = vadd.f32 0.0, %v6030
  %v6032 = vpop.f32.mrf.mxu0
  %6033 = vdwg.mxu0
  %6034 = vmatpush.bf16.msra.mxu0 %v1676
  %6035 = vmatpush.bf16.msra.mxu0 %v1668
  %6036 = vmatpush.bf16.msra.mxu0 %v1660
  %6037 = vmatpush.bf16.msra.mxu0 %v1652
  %6038 = vmatpush.bf16.msra.mxu0 %v1644
  %6039 = vmatpush.bf16.msra.mxu0 %v1636
  %6040 = vmatpush.bf16.msra.mxu0 %v1628
  %6041 = vmatpush.bf16.msra.mxu0 %v1620
  %6042 = vmatmul.bf16.gmra.mxu0 %v5522
  %v6043 = vpop.f32.mrf.mxu0
  %v6044 = vadd.f32 %v6031, %v6043
  %v6045 = vpop.f32.mrf.mxu0
  %6046 = vdwg.mxu0
  %6047 = vmatpush.bf16.msra.mxu0 %v1613
  %6048 = vmatpush.bf16.msra.mxu0 %v1605
  %6049 = vmatpush.bf16.msra.mxu0 %v1597
  %6050 = vmatpush.bf16.msra.mxu0 %v1589
  %6051 = vmatpush.bf16.msra.mxu0 %v1581
  %6052 = vmatpush.bf16.msra.mxu0 %v1573
  %6053 = vmatpush.bf16.msra.mxu0 %v1565
  %6054 = vmatpush.bf16.msra.mxu0 %v1557
  %6055 = vmatmul.bf16.gmra.mxu0 %v5521
  %v6056 = vpop.f32.mrf.mxu0
  %v6057 = vadd.f32 0.0, %v6056
  %v6058 = vpop.f32.mrf.mxu0
  %6059 = vdwg.mxu0
  %6060 = vmatpush.bf16.msra.mxu0 %v1677
  %6061 = vmatpush.bf16.msra.mxu0 %v1669
  %6062 = vmatpush.bf16.msra.mxu0 %v1661
  %6063 = vmatpush.bf16.msra.mxu0 %v1653
  %6064 = vmatpush.bf16.msra.mxu0 %v1645
  %6065 = vmatpush.bf16.msra.mxu0 %v1637
  %6066 = vmatpush.bf16.msra.mxu0 %v1629
  %6067 = vmatpush.bf16.msra.mxu0 %v1621
  %6068 = vmatmul.bf16.gmra.mxu0 %v5522
  %v6069 = vpop.f32.mrf.mxu0
  %v6070 = vadd.f32 %v6057, %v6069
  %v6071 = vpop.f32.mrf.mxu0
  %6072 = vdwg.mxu0
  %6073 = vmatpush.bf16.msra.mxu0 %v1614
  %6074 = vmatpush.bf16.msra.mxu0 %v1606
  %6075 = vmatpush.bf16.msra.mxu0 %v1598
  %6076 = vmatpush.bf16.msra.mxu0 %v1590
  %6077 = vmatpush.bf16.msra.mxu0 %v1582
  %6078 = vmatpush.bf16.msra.mxu0 %v1574
  %6079 = vmatpush.bf16.msra.mxu0 %v1566
  %6080 = vmatpush.bf16.msra.mxu0 %v1558
  %6081 = vmatmul.bf16.gmra.mxu0 %v5521
  %v6082 = vpop.f32.mrf.mxu0
  %v6083 = vadd.f32 0.0, %v6082
  %v6084 = vpop.f32.mrf.mxu0
  %6085 = vdwg.mxu0
  %6086 = vmatpush.bf16.msra.mxu0 %v1678
  %6087 = vmatpush.bf16.msra.mxu0 %v1670
  %6088 = vmatpush.bf16.msra.mxu0 %v1662
  %6089 = vmatpush.bf16.msra.mxu0 %v1654
  %6090 = vmatpush.bf16.msra.mxu0 %v1646
  %6091 = vmatpush.bf16.msra.mxu0 %v1638
  %6092 = vmatpush.bf16.msra.mxu0 %v1630
  %6093 = vmatpush.bf16.msra.mxu0 %v1622
  %6094 = vmatmul.bf16.gmra.mxu0 %v5522
  %v6095 = vpop.f32.mrf.mxu0
  %v6096 = vadd.f32 %v6083, %v6095
  %v6097 = vpop.f32.mrf.mxu0
  %6098 = vdwg.mxu0
  %6099 = vmatpush.bf16.msra.mxu0 %v1615
  %6100 = vmatpush.bf16.msra.mxu0 %v1607
  %6101 = vmatpush.bf16.msra.mxu0 %v1599
  %6102 = vmatpush.bf16.msra.mxu0 %v1591
  %6103 = vmatpush.bf16.msra.mxu0 %v1583
  %6104 = vmatpush.bf16.msra.mxu0 %v1575
  %6105 = vmatpush.bf16.msra.mxu0 %v1567
  %6106 = vmatpush.bf16.msra.mxu0 %v1559
  %6107 = vmatmul.bf16.gmra.mxu0 %v5521
  %v6108 = vpop.f32.mrf.mxu0
  %v6109 = vadd.f32 0.0, %v6108
  %v6110 = vpop.f32.mrf.mxu0
  %6111 = vdwg.mxu0
  %6112 = vmatpush.bf16.msra.mxu0 %v1679
  %6113 = vmatpush.bf16.msra.mxu0 %v1671
  %6114 = vmatpush.bf16.msra.mxu0 %v1663
  %6115 = vmatpush.bf16.msra.mxu0 %v1655
  %6116 = vmatpush.bf16.msra.mxu0 %v1647
  %6117 = vmatpush.bf16.msra.mxu0 %v1639
  %6118 = vmatpush.bf16.msra.mxu0 %v1631
  %6119 = vmatpush.bf16.msra.mxu0 %v1623
  %6120 = vmatmul.bf16.gmra.mxu0 %v5522
  %v6121 = vpop.f32.mrf.mxu0
  %v6122 = vadd.f32 %v6109, %v6121
  %v6123 = vpop.f32.mrf.mxu0
  %6124 = vdwg.mxu0
  %6125 = vmatpush.bf16.msra.mxu0 %v1616
  %6126 = vmatpush.bf16.msra.mxu0 %v1608
  %6127 = vmatpush.bf16.msra.mxu0 %v1600
  %6128 = vmatpush.bf16.msra.mxu0 %v1592
  %6129 = vmatpush.bf16.msra.mxu0 %v1584
  %6130 = vmatpush.bf16.msra.mxu0 %v1576
  %6131 = vmatpush.bf16.msra.mxu0 %v1568
  %6132 = vmatpush.bf16.msra.mxu0 %v1560
  %6133 = vmatmul.bf16.gmra.mxu0 %v5521
  %v6134 = vpop.f32.mrf.mxu0
  %v6135 = vadd.f32 0.0, %v6134
  %v6136 = vpop.f32.mrf.mxu0
  %6137 = vdwg.mxu0
  %6138 = vmatpush.bf16.msra.mxu0 %v1680
  %6139 = vmatpush.bf16.msra.mxu0 %v1672
  %6140 = vmatpush.bf16.msra.mxu0 %v1664
  %6141 = vmatpush.bf16.msra.mxu0 %v1656
  %6142 = vmatpush.bf16.msra.mxu0 %v1648
  %6143 = vmatpush.bf16.msra.mxu0 %v1640
  %6144 = vmatpush.bf16.msra.mxu0 %v1632
  %6145 = vmatpush.bf16.msra.mxu0 %v1624
  %6146 = vmatmul.bf16.gmra.mxu0 %v5522
  %v6147 = vpop.f32.mrf.mxu0
  %v6148 = vadd.f32 %v6135, %v6147
  %v6149 = vpop.f32.mrf.mxu0
  %6150 = vdwg.mxu0
  %6151 = vmatpush.bf16.msra.mxu0 %v1617
  %6152 = vmatpush.bf16.msra.mxu0 %v1609
  %6153 = vmatpush.bf16.msra.mxu0 %v1601
  %6154 = vmatpush.bf16.msra.mxu0 %v1593
  %6155 = vmatpush.bf16.msra.mxu0 %v1585
  %6156 = vmatpush.bf16.msra.mxu0 %v1577
  %6157 = vmatpush.bf16.msra.mxu0 %v1569
  %6158 = vmatpush.bf16.msra.mxu0 %v1561
  %6159 = vmatmul.bf16.gmra.mxu0 %v5521
  %v6160 = vpop.f32.mrf.mxu0
  %v6161 = vadd.f32 0.0, %v6160
  %v6162 = vpop.f32.mrf.mxu0
  %6163 = vdwg.mxu0
  %6164 = vmatpush.bf16.msra.mxu0 %v1681
  %6165 = vmatpush.bf16.msra.mxu0 %v1673
  %6166 = vmatpush.bf16.msra.mxu0 %v1665
  %6167 = vmatpush.bf16.msra.mxu0 %v1657
  %6168 = vmatpush.bf16.msra.mxu0 %v1649
  %6169 = vmatpush.bf16.msra.mxu0 %v1641
  %6170 = vmatpush.bf16.msra.mxu0 %v1633
  %6171 = vmatpush.bf16.msra.mxu0 %v1625
  %6172 = vmatmul.bf16.gmra.mxu0 %v5522
  %v6173 = vpop.f32.mrf.mxu0
  %v6174 = vadd.f32 %v6161, %v6173
  %v6175 = vpop.f32.mrf.mxu0
  %6176 = vdwg.mxu0
  %6177 = vmatpush.bf16.msra.mxu0 %v1618
  %6178 = vmatpush.bf16.msra.mxu0 %v1610
  %6179 = vmatpush.bf16.msra.mxu0 %v1602
  %6180 = vmatpush.bf16.msra.mxu0 %v1594
  %6181 = vmatpush.bf16.msra.mxu0 %v1586
  %6182 = vmatpush.bf16.msra.mxu0 %v1578
  %6183 = vmatpush.bf16.msra.mxu0 %v1570
  %6184 = vmatpush.bf16.msra.mxu0 %v1562
  %6185 = vmatmul.bf16.gmra.mxu0 %v5521
  %v6186 = vpop.f32.mrf.mxu0
  %v6187 = vadd.f32 0.0, %v6186
  %v6188 = vpop.f32.mrf.mxu0
  %6189 = vdwg.mxu0
  %6190 = vmatpush.bf16.msra.mxu0 %v1682
  %6191 = vmatpush.bf16.msra.mxu0 %v1674
  %6192 = vmatpush.bf16.msra.mxu0 %v1666
  %6193 = vmatpush.bf16.msra.mxu0 %v1658
  %6194 = vmatpush.bf16.msra.mxu0 %v1650
  %6195 = vmatpush.bf16.msra.mxu0 %v1642
  %6196 = vmatpush.bf16.msra.mxu0 %v1634
  %6197 = vmatpush.bf16.msra.mxu0 %v1626
  %6198 = vmatmul.bf16.gmra.mxu0 %v5522
  %v6199 = vpop.f32.mrf.mxu0
  %v6200 = vadd.f32 %v6187, %v6199
  %v6201 = vpop.f32.mrf.mxu0
  %6202 = vdwg.mxu0
  %v6203 = vadd.f32 %v5987, %v6018
  %v6204 = vadd.f32 %v5988, %v6044
  %v6205 = vadd.f32 %v5989, %v6070
  %v6206 = vadd.f32 %v5990, %v6096
  %v6207 = vadd.f32 %v5991, %v6122
  %v6208 = vadd.f32 %v5992, %v6148
  %v6209 = vadd.f32 %v5993, %v6174
  %v6210 = vadd.f32 %v5994, %v6200
  %v6211 = vmul.f32 %v6203, 0.5
  %v6212 = vmul.f32 %v6204, 0.5
  %v6213 = vmul.f32 %v6205, 0.5
  %v6214 = vmul.f32 %v6206, 0.5
  %v6215 = vmul.f32 %v6207, 0.5
  %v6216 = vmul.f32 %v6208, 0.5
  %v6217 = vtanh.pop %v6211
  %v6218 = vtanh.pop %v6212
  %v6219 = vtanh.pop %v6213
  %v6220 = vtanh.pop %v6214
  %v6221 = vtanh.pop %v6215
  %v6222 = vtanh.pop %v6216
  %v6223 = vmul.f32 %v6217, 0.5
  %v6224 = vmul.f32 %v6218, 0.5
  %v6225 = vmul.f32 %v6219, 0.5
  %v6226 = vmul.f32 %v6220, 0.5
  %v6227 = vmul.f32 %v6221, 0.5
  %v6228 = vmul.f32 %v6222, 0.5
  %v6229 = vadd.f32 %v6223, 0.5
  %v6230 = vadd.f32 %v6224, 0.5
  %v6231 = vadd.f32 %v6225, 0.5
  %v6232 = vadd.f32 %v6226, 0.5
  %v6233 = vadd.f32 %v6227, 0.5
  %v6234 = vadd.f32 %v6228, 0.5
  %v6235 = vtanh.pop %v6209
  %v6236 = vtanh.pop %v6210
  %v6237 = vmul.f32 %v6231, %v5515
  %v6238 = vmul.f32 %v6232, %v5516
  %v6239 = vmul.f32 %v6229, %v6235
  %v6240 = vmul.f32 %v6230, %v6236
  %v6241 = vadd.f32 %v6237, %v6239
  %v6242 = vadd.f32 %v6238, %v6240
  %v6243 = vtanh.pop %v6241
  %v6244 = vtanh.pop %v6242
  %v6245 = vmul.f32 %v6233, %v6243
  %v6246 = vmul.f32 %v6234, %v6244
  %v6247 = vpack.c.bf16 %v6245, %v6245
  %v6248 = vpack.c.bf16 %v6246, %v6246
  %6249 = vmatpush.bf16.msra.mxu0 %v2505
  %6250 = vmatpush.bf16.msra.mxu0 %v2497
  %6251 = vmatpush.bf16.msra.mxu0 %v2489
  %6252 = vmatpush.bf16.msra.mxu0 %v2481
  %6253 = vmatpush.bf16.msra.mxu0 %v2473
  %6254 = vmatpush.bf16.msra.mxu0 %v2465
  %6255 = vmatpush.bf16.msra.mxu0 %v2457
  %6256 = vmatpush.bf16.msra.mxu0 %v2449
  %6257 = vmatmul.bf16.gmra.mxu0 %v6247
  %v6258 = vpop.f32.mrf.mxu0
  %v6259 = vadd.f32 0.0, %v6258
  %v6260 = vpop.f32.mrf.mxu0
  %6261 = vdwg.mxu0
  %6262 = vmatpush.bf16.msra.mxu0 %v2569
  %6263 = vmatpush.bf16.msra.mxu0 %v2561
  %6264 = vmatpush.bf16.msra.mxu0 %v2553
  %6265 = vmatpush.bf16.msra.mxu0 %v2545
  %6266 = vmatpush.bf16.msra.mxu0 %v2537
  %6267 = vmatpush.bf16.msra.mxu0 %v2529
  %6268 = vmatpush.bf16.msra.mxu0 %v2521
  %6269 = vmatpush.bf16.msra.mxu0 %v2513
  %6270 = vmatmul.bf16.gmra.mxu0 %v6248
  %v6271 = vpop.f32.mrf.mxu0
  %v6272 = vadd.f32 %v6259, %v6271
  %v6273 = vpop.f32.mrf.mxu0
  %6274 = vdwg.mxu0
  %6275 = vmatpush.bf16.msra.mxu0 %v2506
  %6276 = vmatpush.bf16.msra.mxu0 %v2498
  %6277 = vmatpush.bf16.msra.mxu0 %v2490
  %6278 = vmatpush.bf16.msra.mxu0 %v2482
  %6279 = vmatpush.bf16.msra.mxu0 %v2474
  %6280 = vmatpush.bf16.msra.mxu0 %v2466
  %6281 = vmatpush.bf16.msra.mxu0 %v2458
  %6282 = vmatpush.bf16.msra.mxu0 %v2450
  %6283 = vmatmul.bf16.gmra.mxu0 %v6247
  %v6284 = vpop.f32.mrf.mxu0
  %v6285 = vadd.f32 0.0, %v6284
  %v6286 = vpop.f32.mrf.mxu0
  %6287 = vdwg.mxu0
  %6288 = vmatpush.bf16.msra.mxu0 %v2570
  %6289 = vmatpush.bf16.msra.mxu0 %v2562
  %6290 = vmatpush.bf16.msra.mxu0 %v2554
  %6291 = vmatpush.bf16.msra.mxu0 %v2546
  %6292 = vmatpush.bf16.msra.mxu0 %v2538
  %6293 = vmatpush.bf16.msra.mxu0 %v2530
  %6294 = vmatpush.bf16.msra.mxu0 %v2522
  %6295 = vmatpush.bf16.msra.mxu0 %v2514
  %6296 = vmatmul.bf16.gmra.mxu0 %v6248
  %v6297 = vpop.f32.mrf.mxu0
  %v6298 = vadd.f32 %v6285, %v6297
  %v6299 = vpop.f32.mrf.mxu0
  %6300 = vdwg.mxu0
  %6301 = vmatpush.bf16.msra.mxu0 %v2507
  %6302 = vmatpush.bf16.msra.mxu0 %v2499
  %6303 = vmatpush.bf16.msra.mxu0 %v2491
  %6304 = vmatpush.bf16.msra.mxu0 %v2483
  %6305 = vmatpush.bf16.msra.mxu0 %v2475
  %6306 = vmatpush.bf16.msra.mxu0 %v2467
  %6307 = vmatpush.bf16.msra.mxu0 %v2459
  %6308 = vmatpush.bf16.msra.mxu0 %v2451
  %6309 = vmatmul.bf16.gmra.mxu0 %v6247
  %v6310 = vpop.f32.mrf.mxu0
  %v6311 = vadd.f32 0.0, %v6310
  %v6312 = vpop.f32.mrf.mxu0
  %6313 = vdwg.mxu0
  %6314 = vmatpush.bf16.msra.mxu0 %v2571
  %6315 = vmatpush.bf16.msra.mxu0 %v2563
  %6316 = vmatpush.bf16.msra.mxu0 %v2555
  %6317 = vmatpush.bf16.msra.mxu0 %v2547
  %6318 = vmatpush.bf16.msra.mxu0 %v2539
  %6319 = vmatpush.bf16.msra.mxu0 %v2531
  %6320 = vmatpush.bf16.msra.mxu0 %v2523
  %6321 = vmatpush.bf16.msra.mxu0 %v2515
  %6322 = vmatmul.bf16.gmra.mxu0 %v6248
  %v6323 = vpop.f32.mrf.mxu0
  %v6324 = vadd.f32 %v6311, %v6323
  %v6325 = vpop.f32.mrf.mxu0
  %6326 = vdwg.mxu0
  %6327 = vmatpush.bf16.msra.mxu0 %v2508
  %6328 = vmatpush.bf16.msra.mxu0 %v2500
  %6329 = vmatpush.bf16.msra.mxu0 %v2492
  %6330 = vmatpush.bf16.msra.mxu0 %v2484
  %6331 = vmatpush.bf16.msra.mxu0 %v2476
  %6332 = vmatpush.bf16.msra.mxu0 %v2468
  %6333 = vmatpush.bf16.msra.mxu0 %v2460
  %6334 = vmatpush.bf16.msra.mxu0 %v2452
  %6335 = vmatmul.bf16.gmra.mxu0 %v6247
  %v6336 = vpop.f32.mrf.mxu0
  %v6337 = vadd.f32 0.0, %v6336
  %v6338 = vpop.f32.mrf.mxu0
  %6339 = vdwg.mxu0
  %6340 = vmatpush.bf16.msra.mxu0 %v2572
  %6341 = vmatpush.bf16.msra.mxu0 %v2564
  %6342 = vmatpush.bf16.msra.mxu0 %v2556
  %6343 = vmatpush.bf16.msra.mxu0 %v2548
  %6344 = vmatpush.bf16.msra.mxu0 %v2540
  %6345 = vmatpush.bf16.msra.mxu0 %v2532
  %6346 = vmatpush.bf16.msra.mxu0 %v2524
  %6347 = vmatpush.bf16.msra.mxu0 %v2516
  %6348 = vmatmul.bf16.gmra.mxu0 %v6248
  %v6349 = vpop.f32.mrf.mxu0
  %v6350 = vadd.f32 %v6337, %v6349
  %v6351 = vpop.f32.mrf.mxu0
  %6352 = vdwg.mxu0
  %6353 = vmatpush.bf16.msra.mxu0 %v2509
  %6354 = vmatpush.bf16.msra.mxu0 %v2501
  %6355 = vmatpush.bf16.msra.mxu0 %v2493
  %6356 = vmatpush.bf16.msra.mxu0 %v2485
  %6357 = vmatpush.bf16.msra.mxu0 %v2477
  %6358 = vmatpush.bf16.msra.mxu0 %v2469
  %6359 = vmatpush.bf16.msra.mxu0 %v2461
  %6360 = vmatpush.bf16.msra.mxu0 %v2453
  %6361 = vmatmul.bf16.gmra.mxu0 %v6247
  %v6362 = vpop.f32.mrf.mxu0
  %v6363 = vadd.f32 0.0, %v6362
  %v6364 = vpop.f32.mrf.mxu0
  %6365 = vdwg.mxu0
  %6366 = vmatpush.bf16.msra.mxu0 %v2573
  %6367 = vmatpush.bf16.msra.mxu0 %v2565
  %6368 = vmatpush.bf16.msra.mxu0 %v2557
  %6369 = vmatpush.bf16.msra.mxu0 %v2549
  %6370 = vmatpush.bf16.msra.mxu0 %v2541
  %6371 = vmatpush.bf16.msra.mxu0 %v2533
  %6372 = vmatpush.bf16.msra.mxu0 %v2525
  %6373 = vmatpush.bf16.msra.mxu0 %v2517
  %6374 = vmatmul.bf16.gmra.mxu0 %v6248
  %v6375 = vpop.f32.mrf.mxu0
  %v6376 = vadd.f32 %v6363, %v6375
  %v6377 = vpop.f32.mrf.mxu0
  %6378 = vdwg.mxu0
  %6379 = vmatpush.bf16.msra.mxu0 %v2510
  %6380 = vmatpush.bf16.msra.mxu0 %v2502
  %6381 = vmatpush.bf16.msra.mxu0 %v2494
  %6382 = vmatpush.bf16.msra.mxu0 %v2486
  %6383 = vmatpush.bf16.msra.mxu0 %v2478
  %6384 = vmatpush.bf16.msra.mxu0 %v2470
  %6385 = vmatpush.bf16.msra.mxu0 %v2462
  %6386 = vmatpush.bf16.msra.mxu0 %v2454
  %6387 = vmatmul.bf16.gmra.mxu0 %v6247
  %v6388 = vpop.f32.mrf.mxu0
  %v6389 = vadd.f32 0.0, %v6388
  %v6390 = vpop.f32.mrf.mxu0
  %6391 = vdwg.mxu0
  %6392 = vmatpush.bf16.msra.mxu0 %v2574
  %6393 = vmatpush.bf16.msra.mxu0 %v2566
  %6394 = vmatpush.bf16.msra.mxu0 %v2558
  %6395 = vmatpush.bf16.msra.mxu0 %v2550
  %6396 = vmatpush.bf16.msra.mxu0 %v2542
  %6397 = vmatpush.bf16.msra.mxu0 %v2534
  %6398 = vmatpush.bf16.msra.mxu0 %v2526
  %6399 = vmatpush.bf16.msra.mxu0 %v2518
  %6400 = vmatmul.bf16.gmra.mxu0 %v6248
  %v6401 = vpop.f32.mrf.mxu0
  %v6402 = vadd.f32 %v6389, %v6401
  %v6403 = vpop.f32.mrf.mxu0
  %6404 = vdwg.mxu0
  %6405 = vmatpush.bf16.msra.mxu0 %v2511
  %6406 = vmatpush.bf16.msra.mxu0 %v2503
  %6407 = vmatpush.bf16.msra.mxu0 %v2495
  %6408 = vmatpush.bf16.msra.mxu0 %v2487
  %6409 = vmatpush.bf16.msra.mxu0 %v2479
  %6410 = vmatpush.bf16.msra.mxu0 %v2471
  %6411 = vmatpush.bf16.msra.mxu0 %v2463
  %6412 = vmatpush.bf16.msra.mxu0 %v2455
  %6413 = vmatmul.bf16.gmra.mxu0 %v6247
  %v6414 = vpop.f32.mrf.mxu0
  %v6415 = vadd.f32 0.0, %v6414
  %v6416 = vpop.f32.mrf.mxu0
  %6417 = vdwg.mxu0
  %6418 = vmatpush.bf16.msra.mxu0 %v2575
  %6419 = vmatpush.bf16.msra.mxu0 %v2567
  %6420 = vmatpush.bf16.msra.mxu0 %v2559
  %6421 = vmatpush.bf16.msra.mxu0 %v2551
  %6422 = vmatpush.bf16.msra.mxu0 %v2543
  %6423 = vmatpush.bf16.msra.mxu0 %v2535
  %6424 = vmatpush.bf16.msra.mxu0 %v2527
  %6425 = vmatpush.bf16.msra.mxu0 %v2519
  %6426 = vmatmul.bf16.gmra.mxu0 %v6248
  %v6427 = vpop.f32.mrf.mxu0
  %v6428 = vadd.f32 %v6415, %v6427
  %v6429 = vpop.f32.mrf.mxu0
  %6430 = vdwg.mxu0
  %6431 = vmatpush.bf16.msra.mxu0 %v2512
  %6432 = vmatpush.bf16.msra.mxu0 %v2504
  %6433 = vmatpush.bf16.msra.mxu0 %v2496
  %6434 = vmatpush.bf16.msra.mxu0 %v2488
  %6435 = vmatpush.bf16.msra.mxu0 %v2480
  %6436 = vmatpush.bf16.msra.mxu0 %v2472
  %6437 = vmatpush.bf16.msra.mxu0 %v2464
  %6438 = vmatpush.bf16.msra.mxu0 %v2456
  %6439 = vmatmul.bf16.gmra.mxu0 %v6247
  %v6440 = vpop.f32.mrf.mxu0
  %v6441 = vadd.f32 0.0, %v6440
  %v6442 = vpop.f32.mrf.mxu0
  %6443 = vdwg.mxu0
  %6444 = vmatpush.bf16.msra.mxu0 %v2576
  %6445 = vmatpush.bf16.msra.mxu0 %v2568
  %6446 = vmatpush.bf16.msra.mxu0 %v2560
  %6447 = vmatpush.bf16.msra.mxu0 %v2552
  %6448 = vmatpush.bf16.msra.mxu0 %v2544
  %6449 = vmatpush.bf16.msra.mxu0 %v2536
  %6450 = vmatpush.bf16.msra.mxu0 %v2528
  %6451 = vmatpush.bf16.msra.mxu0 %v2520
  %6452 = vmatmul.bf16.gmra.mxu0 %v6248
  %v6453 = vpop.f32.mrf.mxu0
  %v6454 = vadd.f32 %v6441, %v6453
  %v6455 = vpop.f32.mrf.mxu0
  %6456 = vdwg.mxu0
  %6457 = vmatpush.bf16.msra.mxu0 %v3353
  %6458 = vmatpush.bf16.msra.mxu0 %v3345
  %6459 = vmatpush.bf16.msra.mxu0 %v3337
  %6460 = vmatpush.bf16.msra.mxu0 %v3329
  %6461 = vmatpush.bf16.msra.mxu0 %v3321
  %6462 = vmatpush.bf16.msra.mxu0 %v3313
  %6463 = vmatpush.bf16.msra.mxu0 %v3305
  %6464 = vmatpush.bf16.msra.mxu0 %v3297
  %6465 = vmatmul.bf16.gmra.mxu0 %v5985
  %v6466 = vpop.f32.mrf.mxu0
  %v6467 = vadd.f32 %v6272, %v6466
  %v6468 = vpop.f32.mrf.mxu0
  %6469 = vdwg.mxu0
  %6470 = vmatpush.bf16.msra.mxu0 %v3417
  %6471 = vmatpush.bf16.msra.mxu0 %v3409
  %6472 = vmatpush.bf16.msra.mxu0 %v3401
  %6473 = vmatpush.bf16.msra.mxu0 %v3393
  %6474 = vmatpush.bf16.msra.mxu0 %v3385
  %6475 = vmatpush.bf16.msra.mxu0 %v3377
  %6476 = vmatpush.bf16.msra.mxu0 %v3369
  %6477 = vmatpush.bf16.msra.mxu0 %v3361
  %6478 = vmatmul.bf16.gmra.mxu0 %v5986
  %v6479 = vpop.f32.mrf.mxu0
  %v6480 = vadd.f32 %v6467, %v6479
  %v6481 = vpop.f32.mrf.mxu0
  %6482 = vdwg.mxu0
  %6483 = vmatpush.bf16.msra.mxu0 %v3354
  %6484 = vmatpush.bf16.msra.mxu0 %v3346
  %6485 = vmatpush.bf16.msra.mxu0 %v3338
  %6486 = vmatpush.bf16.msra.mxu0 %v3330
  %6487 = vmatpush.bf16.msra.mxu0 %v3322
  %6488 = vmatpush.bf16.msra.mxu0 %v3314
  %6489 = vmatpush.bf16.msra.mxu0 %v3306
  %6490 = vmatpush.bf16.msra.mxu0 %v3298
  %6491 = vmatmul.bf16.gmra.mxu0 %v5985
  %v6492 = vpop.f32.mrf.mxu0
  %v6493 = vadd.f32 %v6298, %v6492
  %v6494 = vpop.f32.mrf.mxu0
  %6495 = vdwg.mxu0
  %6496 = vmatpush.bf16.msra.mxu0 %v3418
  %6497 = vmatpush.bf16.msra.mxu0 %v3410
  %6498 = vmatpush.bf16.msra.mxu0 %v3402
  %6499 = vmatpush.bf16.msra.mxu0 %v3394
  %6500 = vmatpush.bf16.msra.mxu0 %v3386
  %6501 = vmatpush.bf16.msra.mxu0 %v3378
  %6502 = vmatpush.bf16.msra.mxu0 %v3370
  %6503 = vmatpush.bf16.msra.mxu0 %v3362
  %6504 = vmatmul.bf16.gmra.mxu0 %v5986
  %v6505 = vpop.f32.mrf.mxu0
  %v6506 = vadd.f32 %v6493, %v6505
  %v6507 = vpop.f32.mrf.mxu0
  %6508 = vdwg.mxu0
  %6509 = vmatpush.bf16.msra.mxu0 %v3355
  %6510 = vmatpush.bf16.msra.mxu0 %v3347
  %6511 = vmatpush.bf16.msra.mxu0 %v3339
  %6512 = vmatpush.bf16.msra.mxu0 %v3331
  %6513 = vmatpush.bf16.msra.mxu0 %v3323
  %6514 = vmatpush.bf16.msra.mxu0 %v3315
  %6515 = vmatpush.bf16.msra.mxu0 %v3307
  %6516 = vmatpush.bf16.msra.mxu0 %v3299
  %6517 = vmatmul.bf16.gmra.mxu0 %v5985
  %v6518 = vpop.f32.mrf.mxu0
  %v6519 = vadd.f32 %v6324, %v6518
  %v6520 = vpop.f32.mrf.mxu0
  %6521 = vdwg.mxu0
  %6522 = vmatpush.bf16.msra.mxu0 %v3419
  %6523 = vmatpush.bf16.msra.mxu0 %v3411
  %6524 = vmatpush.bf16.msra.mxu0 %v3403
  %6525 = vmatpush.bf16.msra.mxu0 %v3395
  %6526 = vmatpush.bf16.msra.mxu0 %v3387
  %6527 = vmatpush.bf16.msra.mxu0 %v3379
  %6528 = vmatpush.bf16.msra.mxu0 %v3371
  %6529 = vmatpush.bf16.msra.mxu0 %v3363
  %6530 = vmatmul.bf16.gmra.mxu0 %v5986
  %v6531 = vpop.f32.mrf.mxu0
  %v6532 = vadd.f32 %v6519, %v6531
  %v6533 = vpop.f32.mrf.mxu0
  %6534 = vdwg.mxu0
  %6535 = vmatpush.bf16.msra.mxu0 %v3356
  %6536 = vmatpush.bf16.msra.mxu0 %v3348
  %6537 = vmatpush.bf16.msra.mxu0 %v3340
  %6538 = vmatpush.bf16.msra.mxu0 %v3332
  %6539 = vmatpush.bf16.msra.mxu0 %v3324
  %6540 = vmatpush.bf16.msra.mxu0 %v3316
  %6541 = vmatpush.bf16.msra.mxu0 %v3308
  %6542 = vmatpush.bf16.msra.mxu0 %v3300
  %6543 = vmatmul.bf16.gmra.mxu0 %v5985
  %v6544 = vpop.f32.mrf.mxu0
  %v6545 = vadd.f32 %v6350, %v6544
  %v6546 = vpop.f32.mrf.mxu0
  %6547 = vdwg.mxu0
  %6548 = vmatpush.bf16.msra.mxu0 %v3420
  %6549 = vmatpush.bf16.msra.mxu0 %v3412
  %6550 = vmatpush.bf16.msra.mxu0 %v3404
  %6551 = vmatpush.bf16.msra.mxu0 %v3396
  %6552 = vmatpush.bf16.msra.mxu0 %v3388
  %6553 = vmatpush.bf16.msra.mxu0 %v3380
  %6554 = vmatpush.bf16.msra.mxu0 %v3372
  %6555 = vmatpush.bf16.msra.mxu0 %v3364
  %6556 = vmatmul.bf16.gmra.mxu0 %v5986
  %v6557 = vpop.f32.mrf.mxu0
  %v6558 = vadd.f32 %v6545, %v6557
  %v6559 = vpop.f32.mrf.mxu0
  %6560 = vdwg.mxu0
  %6561 = vmatpush.bf16.msra.mxu0 %v3357
  %6562 = vmatpush.bf16.msra.mxu0 %v3349
  %6563 = vmatpush.bf16.msra.mxu0 %v3341
  %6564 = vmatpush.bf16.msra.mxu0 %v3333
  %6565 = vmatpush.bf16.msra.mxu0 %v3325
  %6566 = vmatpush.bf16.msra.mxu0 %v3317
  %6567 = vmatpush.bf16.msra.mxu0 %v3309
  %6568 = vmatpush.bf16.msra.mxu0 %v3301
  %6569 = vmatmul.bf16.gmra.mxu0 %v5985
  %v6570 = vpop.f32.mrf.mxu0
  %v6571 = vadd.f32 %v6376, %v6570
  %v6572 = vpop.f32.mrf.mxu0
  %6573 = vdwg.mxu0
  %6574 = vmatpush.bf16.msra.mxu0 %v3421
  %6575 = vmatpush.bf16.msra.mxu0 %v3413
  %6576 = vmatpush.bf16.msra.mxu0 %v3405
  %6577 = vmatpush.bf16.msra.mxu0 %v3397
  %6578 = vmatpush.bf16.msra.mxu0 %v3389
  %6579 = vmatpush.bf16.msra.mxu0 %v3381
  %6580 = vmatpush.bf16.msra.mxu0 %v3373
  %6581 = vmatpush.bf16.msra.mxu0 %v3365
  %6582 = vmatmul.bf16.gmra.mxu0 %v5986
  %v6583 = vpop.f32.mrf.mxu0
  %v6584 = vadd.f32 %v6571, %v6583
  %v6585 = vpop.f32.mrf.mxu0
  %6586 = vdwg.mxu0
  %6587 = vmatpush.bf16.msra.mxu0 %v3358
  %6588 = vmatpush.bf16.msra.mxu0 %v3350
  %6589 = vmatpush.bf16.msra.mxu0 %v3342
  %6590 = vmatpush.bf16.msra.mxu0 %v3334
  %6591 = vmatpush.bf16.msra.mxu0 %v3326
  %6592 = vmatpush.bf16.msra.mxu0 %v3318
  %6593 = vmatpush.bf16.msra.mxu0 %v3310
  %6594 = vmatpush.bf16.msra.mxu0 %v3302
  %6595 = vmatmul.bf16.gmra.mxu0 %v5985
  %v6596 = vpop.f32.mrf.mxu0
  %v6597 = vadd.f32 %v6402, %v6596
  %v6598 = vpop.f32.mrf.mxu0
  %6599 = vdwg.mxu0
  %6600 = vmatpush.bf16.msra.mxu0 %v3422
  %6601 = vmatpush.bf16.msra.mxu0 %v3414
  %6602 = vmatpush.bf16.msra.mxu0 %v3406
  %6603 = vmatpush.bf16.msra.mxu0 %v3398
  %6604 = vmatpush.bf16.msra.mxu0 %v3390
  %6605 = vmatpush.bf16.msra.mxu0 %v3382
  %6606 = vmatpush.bf16.msra.mxu0 %v3374
  %6607 = vmatpush.bf16.msra.mxu0 %v3366
  %6608 = vmatmul.bf16.gmra.mxu0 %v5986
  %v6609 = vpop.f32.mrf.mxu0
  %v6610 = vadd.f32 %v6597, %v6609
  %v6611 = vpop.f32.mrf.mxu0
  %6612 = vdwg.mxu0
  %6613 = vmatpush.bf16.msra.mxu0 %v3359
  %6614 = vmatpush.bf16.msra.mxu0 %v3351
  %6615 = vmatpush.bf16.msra.mxu0 %v3343
  %6616 = vmatpush.bf16.msra.mxu0 %v3335
  %6617 = vmatpush.bf16.msra.mxu0 %v3327
  %6618 = vmatpush.bf16.msra.mxu0 %v3319
  %6619 = vmatpush.bf16.msra.mxu0 %v3311
  %6620 = vmatpush.bf16.msra.mxu0 %v3303
  %6621 = vmatmul.bf16.gmra.mxu0 %v5985
  %v6622 = vpop.f32.mrf.mxu0
  %v6623 = vadd.f32 %v6428, %v6622
  %v6624 = vpop.f32.mrf.mxu0
  %6625 = vdwg.mxu0
  %6626 = vmatpush.bf16.msra.mxu0 %v3423
  %6627 = vmatpush.bf16.msra.mxu0 %v3415
  %6628 = vmatpush.bf16.msra.mxu0 %v3407
  %6629 = vmatpush.bf16.msra.mxu0 %v3399
  %6630 = vmatpush.bf16.msra.mxu0 %v3391
  %6631 = vmatpush.bf16.msra.mxu0 %v3383
  %6632 = vmatpush.bf16.msra.mxu0 %v3375
  %6633 = vmatpush.bf16.msra.mxu0 %v3367
  %6634 = vmatmul.bf16.gmra.mxu0 %v5986
  %v6635 = vpop.f32.mrf.mxu0
  %v6636 = vadd.f32 %v6623, %v6635
  %v6637 = vpop.f32.mrf.mxu0
  %6638 = vdwg.mxu0
  %6639 = vmatpush.bf16.msra.mxu0 %v3360
  %6640 = vmatpush.bf16.msra.mxu0 %v3352
  %6641 = vmatpush.bf16.msra.mxu0 %v3344
  %6642 = vmatpush.bf16.msra.mxu0 %v3336
  %6643 = vmatpush.bf16.msra.mxu0 %v3328
  %6644 = vmatpush.bf16.msra.mxu0 %v3320
  %6645 = vmatpush.bf16.msra.mxu0 %v3312
  %6646 = vmatpush.bf16.msra.mxu0 %v3304
  %6647 = vmatmul.bf16.gmra.mxu0 %v5985
  %v6648 = vpop.f32.mrf.mxu0
  %v6649 = vadd.f32 %v6454, %v6648
  %v6650 = vpop.f32.mrf.mxu0
  %6651 = vdwg.mxu0
  %6652 = vmatpush.bf16.msra.mxu0 %v3424
  %6653 = vmatpush.bf16.msra.mxu0 %v3416
  %6654 = vmatpush.bf16.msra.mxu0 %v3408
  %6655 = vmatpush.bf16.msra.mxu0 %v3400
  %6656 = vmatpush.bf16.msra.mxu0 %v3392
  %6657 = vmatpush.bf16.msra.mxu0 %v3384
  %6658 = vmatpush.bf16.msra.mxu0 %v3376
  %6659 = vmatpush.bf16.msra.mxu0 %v3368
  %6660 = vmatmul.bf16.gmra.mxu0 %v5986
  %v6661 = vpop.f32.mrf.mxu0
  %v6662 = vadd.f32 %v6649, %v6661
  %v6663 = vpop.f32.mrf.mxu0
  %6664 = vdwg.mxu0
  %v6665 = vadd.f32 %v6480, %v1147
  %v6666 = vadd.f32 %v6506, %v1148
  %v6667 = vadd.f32 %v6532, %v1149
  %v6668 = vadd.f32 %v6558, %v1150
  %v6669 = vadd.f32 %v6584, %v1151
  %v6670 = vadd.f32 %v6610, %v1152
  %v6671 = vadd.f32 %v6636, %v1153
  %v6672 = vadd.f32 %v6662, %v1154
  %v6673 = vmul.f32 %v6665, 0.5
  %v6674 = vmul.f32 %v6666, 0.5
  %v6675 = vmul.f32 %v6667, 0.5
  %v6676 = vmul.f32 %v6668, 0.5
  %v6677 = vmul.f32 %v6669, 0.5
  %v6678 = vmul.f32 %v6670, 0.5
  %v6679 = vtanh.pop %v6673
  %v6680 = vtanh.pop %v6674
  %v6681 = vtanh.pop %v6675
  %v6682 = vtanh.pop %v6676
  %v6683 = vtanh.pop %v6677
  %v6684 = vtanh.pop %v6678
  %v6685 = vmul.f32 %v6679, 0.5
  %v6686 = vmul.f32 %v6680, 0.5
  %v6687 = vmul.f32 %v6681, 0.5
  %v6688 = vmul.f32 %v6682, 0.5
  %v6689 = vmul.f32 %v6683, 0.5
  %v6690 = vmul.f32 %v6684, 0.5
  %v6691 = vadd.f32 %v6685, 0.5
  %v6692 = vadd.f32 %v6686, 0.5
  %v6693 = vadd.f32 %v6687, 0.5
  %v6694 = vadd.f32 %v6688, 0.5
  %v6695 = vadd.f32 %v6689, 0.5
  %v6696 = vadd.f32 %v6690, 0.5
  %v6697 = vtanh.pop %v6671
  %v6698 = vtanh.pop %v6672
  %v6699 = vmul.f32 %v6693, %v5977
  %v6700 = vmul.f32 %v6694, %v5978
  %v6701 = vmul.f32 %v6691, %v6697
  %v6702 = vmul.f32 %v6692, %v6698
  %v6703 = vadd.f32 %v6699, %v6701
  %v6704 = vadd.f32 %v6700, %v6702
  %v6705 = vtanh.pop %v6703
  %v6706 = vtanh.pop %v6704
  %v6707 = vmul.f32 %v6695, %v6705
  %v6708 = vmul.f32 %v6696, %v6706
  %6709 = vst [vmem:[#allocation3 + $0x40] sm:$0xff] %v6707
  %6710 = vst [vmem:[#allocation3 + $0x48] sm:$0xff] %v6708
  %v6711 = vpack.c.bf16 %v6707, %v6707
  %v6712 = vpack.c.bf16 %v6708, %v6708
  %v6713 = vld [vmem:[#allocation2 + $0x140] sm:$0xff]
  %v6714 = vld [vmem:[#allocation2 + $0x148] sm:$0xff]
  %v6715 = vld [vmem:[#allocation2 + $0x150] sm:$0xff]
  %v6716 = vld [vmem:[#allocation2 + $0x158] sm:$0xff]
  %v6717 = vld [vmem:[#allocation2 + $0x160] sm:$0xff]
  %v6718 = vld [vmem:[#allocation2 + $0x168] sm:$0xff]
  %v6719 = vld [vmem:[#allocation2 + $0x170] sm:$0xff]
  %v6720 = vld [vmem:[#allocation2 + $0x178] sm:$0xff]
  %6721 = vmatpush.bf16.msra.mxu0 %v1611
  %6722 = vmatpush.bf16.msra.mxu0 %v1603
  %6723 = vmatpush.bf16.msra.mxu0 %v1595
  %6724 = vmatpush.bf16.msra.mxu0 %v1587
  %6725 = vmatpush.bf16.msra.mxu0 %v1579
  %6726 = vmatpush.bf16.msra.mxu0 %v1571
  %6727 = vmatpush.bf16.msra.mxu0 %v1563
  %6728 = vmatpush.bf16.msra.mxu0 %v1555
  %6729 = vmatmul.bf16.gmra.mxu0 %v6247
  %v6730 = vpop.f32.mrf.mxu0
  %v6731 = vadd.f32 0.0, %v6730
  %v6732 = vpop.f32.mrf.mxu0
  %6733 = vdwg.mxu0
  %6734 = vmatpush.bf16.msra.mxu0 %v1675
  %6735 = vmatpush.bf16.msra.mxu0 %v1667
  %6736 = vmatpush.bf16.msra.mxu0 %v1659
  %6737 = vmatpush.bf16.msra.mxu0 %v1651
  %6738 = vmatpush.bf16.msra.mxu0 %v1643
  %6739 = vmatpush.bf16.msra.mxu0 %v1635
  %6740 = vmatpush.bf16.msra.mxu0 %v1627
  %6741 = vmatpush.bf16.msra.mxu0 %v1619
  %6742 = vmatmul.bf16.gmra.mxu0 %v6248
  %v6743 = vpop.f32.mrf.mxu0
  %v6744 = vadd.f32 %v6731, %v6743
  %v6745 = vpop.f32.mrf.mxu0
  %6746 = vdwg.mxu0
  %6747 = vmatpush.bf16.msra.mxu0 %v1612
  %6748 = vmatpush.bf16.msra.mxu0 %v1604
  %6749 = vmatpush.bf16.msra.mxu0 %v1596
  %6750 = vmatpush.bf16.msra.mxu0 %v1588
  %6751 = vmatpush.bf16.msra.mxu0 %v1580
  %6752 = vmatpush.bf16.msra.mxu0 %v1572
  %6753 = vmatpush.bf16.msra.mxu0 %v1564
  %6754 = vmatpush.bf16.msra.mxu0 %v1556
  %6755 = vmatmul.bf16.gmra.mxu0 %v6247
  %v6756 = vpop.f32.mrf.mxu0
  %v6757 = vadd.f32 0.0, %v6756
  %v6758 = vpop.f32.mrf.mxu0
  %6759 = vdwg.mxu0
  %6760 = vmatpush.bf16.msra.mxu0 %v1676
  %6761 = vmatpush.bf16.msra.mxu0 %v1668
  %6762 = vmatpush.bf16.msra.mxu0 %v1660
  %6763 = vmatpush.bf16.msra.mxu0 %v1652
  %6764 = vmatpush.bf16.msra.mxu0 %v1644
  %6765 = vmatpush.bf16.msra.mxu0 %v1636
  %6766 = vmatpush.bf16.msra.mxu0 %v1628
  %6767 = vmatpush.bf16.msra.mxu0 %v1620
  %6768 = vmatmul.bf16.gmra.mxu0 %v6248
  %v6769 = vpop.f32.mrf.mxu0
  %v6770 = vadd.f32 %v6757, %v6769
  %v6771 = vpop.f32.mrf.mxu0
  %6772 = vdwg.mxu0
  %6773 = vmatpush.bf16.msra.mxu0 %v1613
  %6774 = vmatpush.bf16.msra.mxu0 %v1605
  %6775 = vmatpush.bf16.msra.mxu0 %v1597
  %6776 = vmatpush.bf16.msra.mxu0 %v1589
  %6777 = vmatpush.bf16.msra.mxu0 %v1581
  %6778 = vmatpush.bf16.msra.mxu0 %v1573
  %6779 = vmatpush.bf16.msra.mxu0 %v1565
  %6780 = vmatpush.bf16.msra.mxu0 %v1557
  %6781 = vmatmul.bf16.gmra.mxu0 %v6247
  %v6782 = vpop.f32.mrf.mxu0
  %v6783 = vadd.f32 0.0, %v6782
  %v6784 = vpop.f32.mrf.mxu0
  %6785 = vdwg.mxu0
  %6786 = vmatpush.bf16.msra.mxu0 %v1677
  %6787 = vmatpush.bf16.msra.mxu0 %v1669
  %6788 = vmatpush.bf16.msra.mxu0 %v1661
  %6789 = vmatpush.bf16.msra.mxu0 %v1653
  %6790 = vmatpush.bf16.msra.mxu0 %v1645
  %6791 = vmatpush.bf16.msra.mxu0 %v1637
  %6792 = vmatpush.bf16.msra.mxu0 %v1629
  %6793 = vmatpush.bf16.msra.mxu0 %v1621
  %6794 = vmatmul.bf16.gmra.mxu0 %v6248
  %v6795 = vpop.f32.mrf.mxu0
  %v6796 = vadd.f32 %v6783, %v6795
  %v6797 = vpop.f32.mrf.mxu0
  %6798 = vdwg.mxu0
  %6799 = vmatpush.bf16.msra.mxu0 %v1614
  %6800 = vmatpush.bf16.msra.mxu0 %v1606
  %6801 = vmatpush.bf16.msra.mxu0 %v1598
  %6802 = vmatpush.bf16.msra.mxu0 %v1590
  %6803 = vmatpush.bf16.msra.mxu0 %v1582
  %6804 = vmatpush.bf16.msra.mxu0 %v1574
  %6805 = vmatpush.bf16.msra.mxu0 %v1566
  %6806 = vmatpush.bf16.msra.mxu0 %v1558
  %6807 = vmatmul.bf16.gmra.mxu0 %v6247
  %v6808 = vpop.f32.mrf.mxu0
  %v6809 = vadd.f32 0.0, %v6808
  %v6810 = vpop.f32.mrf.mxu0
  %6811 = vdwg.mxu0
  %6812 = vmatpush.bf16.msra.mxu0 %v1678
  %6813 = vmatpush.bf16.msra.mxu0 %v1670
  %6814 = vmatpush.bf16.msra.mxu0 %v1662
  %6815 = vmatpush.bf16.msra.mxu0 %v1654
  %6816 = vmatpush.bf16.msra.mxu0 %v1646
  %6817 = vmatpush.bf16.msra.mxu0 %v1638
  %6818 = vmatpush.bf16.msra.mxu0 %v1630
  %6819 = vmatpush.bf16.msra.mxu0 %v1622
  %6820 = vmatmul.bf16.gmra.mxu0 %v6248
  %v6821 = vpop.f32.mrf.mxu0
  %v6822 = vadd.f32 %v6809, %v6821
  %v6823 = vpop.f32.mrf.mxu0
  %6824 = vdwg.mxu0
  %6825 = vmatpush.bf16.msra.mxu0 %v1615
  %6826 = vmatpush.bf16.msra.mxu0 %v1607
  %6827 = vmatpush.bf16.msra.mxu0 %v1599
  %6828 = vmatpush.bf16.msra.mxu0 %v1591
  %6829 = vmatpush.bf16.msra.mxu0 %v1583
  %6830 = vmatpush.bf16.msra.mxu0 %v1575
  %6831 = vmatpush.bf16.msra.mxu0 %v1567
  %6832 = vmatpush.bf16.msra.mxu0 %v1559
  %6833 = vmatmul.bf16.gmra.mxu0 %v6247
  %v6834 = vpop.f32.mrf.mxu0
  %v6835 = vadd.f32 0.0, %v6834
  %v6836 = vpop.f32.mrf.mxu0
  %6837 = vdwg.mxu0
  %6838 = vmatpush.bf16.msra.mxu0 %v1679
  %6839 = vmatpush.bf16.msra.mxu0 %v1671
  %6840 = vmatpush.bf16.msra.mxu0 %v1663
  %6841 = vmatpush.bf16.msra.mxu0 %v1655
  %6842 = vmatpush.bf16.msra.mxu0 %v1647
  %6843 = vmatpush.bf16.msra.mxu0 %v1639
  %6844 = vmatpush.bf16.msra.mxu0 %v1631
  %6845 = vmatpush.bf16.msra.mxu0 %v1623
  %6846 = vmatmul.bf16.gmra.mxu0 %v6248
  %v6847 = vpop.f32.mrf.mxu0
  %v6848 = vadd.f32 %v6835, %v6847
  %v6849 = vpop.f32.mrf.mxu0
  %6850 = vdwg.mxu0
  %6851 = vmatpush.bf16.msra.mxu0 %v1616
  %6852 = vmatpush.bf16.msra.mxu0 %v1608
  %6853 = vmatpush.bf16.msra.mxu0 %v1600
  %6854 = vmatpush.bf16.msra.mxu0 %v1592
  %6855 = vmatpush.bf16.msra.mxu0 %v1584
  %6856 = vmatpush.bf16.msra.mxu0 %v1576
  %6857 = vmatpush.bf16.msra.mxu0 %v1568
  %6858 = vmatpush.bf16.msra.mxu0 %v1560
  %6859 = vmatmul.bf16.gmra.mxu0 %v6247
  %v6860 = vpop.f32.mrf.mxu0
  %v6861 = vadd.f32 0.0, %v6860
  %v6862 = vpop.f32.mrf.mxu0
  %6863 = vdwg.mxu0
  %6864 = vmatpush.bf16.msra.mxu0 %v1680
  %6865 = vmatpush.bf16.msra.mxu0 %v1672
  %6866 = vmatpush.bf16.msra.mxu0 %v1664
  %6867 = vmatpush.bf16.msra.mxu0 %v1656
  %6868 = vmatpush.bf16.msra.mxu0 %v1648
  %6869 = vmatpush.bf16.msra.mxu0 %v1640
  %6870 = vmatpush.bf16.msra.mxu0 %v1632
  %6871 = vmatpush.bf16.msra.mxu0 %v1624
  %6872 = vmatmul.bf16.gmra.mxu0 %v6248
  %v6873 = vpop.f32.mrf.mxu0
  %v6874 = vadd.f32 %v6861, %v6873
  %v6875 = vpop.f32.mrf.mxu0
  %6876 = vdwg.mxu0
  %6877 = vmatpush.bf16.msra.mxu0 %v1617
  %6878 = vmatpush.bf16.msra.mxu0 %v1609
  %6879 = vmatpush.bf16.msra.mxu0 %v1601
  %6880 = vmatpush.bf16.msra.mxu0 %v1593
  %6881 = vmatpush.bf16.msra.mxu0 %v1585
  %6882 = vmatpush.bf16.msra.mxu0 %v1577
  %6883 = vmatpush.bf16.msra.mxu0 %v1569
  %6884 = vmatpush.bf16.msra.mxu0 %v1561
  %6885 = vmatmul.bf16.gmra.mxu0 %v6247
  %v6886 = vpop.f32.mrf.mxu0
  %v6887 = vadd.f32 0.0, %v6886
  %v6888 = vpop.f32.mrf.mxu0
  %6889 = vdwg.mxu0
  %6890 = vmatpush.bf16.msra.mxu0 %v1681
  %6891 = vmatpush.bf16.msra.mxu0 %v1673
  %6892 = vmatpush.bf16.msra.mxu0 %v1665
  %6893 = vmatpush.bf16.msra.mxu0 %v1657
  %6894 = vmatpush.bf16.msra.mxu0 %v1649
  %6895 = vmatpush.bf16.msra.mxu0 %v1641
  %6896 = vmatpush.bf16.msra.mxu0 %v1633
  %6897 = vmatpush.bf16.msra.mxu0 %v1625
  %6898 = vmatmul.bf16.gmra.mxu0 %v6248
  %v6899 = vpop.f32.mrf.mxu0
  %v6900 = vadd.f32 %v6887, %v6899
  %v6901 = vpop.f32.mrf.mxu0
  %6902 = vdwg.mxu0
  %6903 = vmatpush.bf16.msra.mxu0 %v1618
  %6904 = vmatpush.bf16.msra.mxu0 %v1610
  %6905 = vmatpush.bf16.msra.mxu0 %v1602
  %6906 = vmatpush.bf16.msra.mxu0 %v1594
  %6907 = vmatpush.bf16.msra.mxu0 %v1586
  %6908 = vmatpush.bf16.msra.mxu0 %v1578
  %6909 = vmatpush.bf16.msra.mxu0 %v1570
  %6910 = vmatpush.bf16.msra.mxu0 %v1562
  %6911 = vmatmul.bf16.gmra.mxu0 %v6247
  %v6912 = vpop.f32.mrf.mxu0
  %v6913 = vadd.f32 0.0, %v6912
  %v6914 = vpop.f32.mrf.mxu0
  %6915 = vdwg.mxu0
  %6916 = vmatpush.bf16.msra.mxu0 %v1682
  %6917 = vmatpush.bf16.msra.mxu0 %v1674
  %6918 = vmatpush.bf16.msra.mxu0 %v1666
  %6919 = vmatpush.bf16.msra.mxu0 %v1658
  %6920 = vmatpush.bf16.msra.mxu0 %v1650
  %6921 = vmatpush.bf16.msra.mxu0 %v1642
  %6922 = vmatpush.bf16.msra.mxu0 %v1634
  %6923 = vmatpush.bf16.msra.mxu0 %v1626
  %6924 = vmatmul.bf16.gmra.mxu0 %v6248
  %v6925 = vpop.f32.mrf.mxu0
  %v6926 = vadd.f32 %v6913, %v6925
  %v6927 = vpop.f32.mrf.mxu0
  %6928 = vdwg.mxu0
  %v6929 = vadd.f32 %v6713, %v6744
  %v6930 = vadd.f32 %v6714, %v6770
  %v6931 = vadd.f32 %v6715, %v6796
  %v6932 = vadd.f32 %v6716, %v6822
  %v6933 = vadd.f32 %v6717, %v6848
  %v6934 = vadd.f32 %v6718, %v6874
  %v6935 = vadd.f32 %v6719, %v6900
  %v6936 = vadd.f32 %v6720, %v6926
  %v6937 = vmul.f32 %v6929, 0.5
  %v6938 = vmul.f32 %v6930, 0.5
  %v6939 = vmul.f32 %v6931, 0.5
  %v6940 = vmul.f32 %v6932, 0.5
  %v6941 = vmul.f32 %v6933, 0.5
  %v6942 = vmul.f32 %v6934, 0.5
  %v6943 = vtanh.pop %v6937
  %v6944 = vtanh.pop %v6938
  %v6945 = vtanh.pop %v6939
  %v6946 = vtanh.pop %v6940
  %v6947 = vtanh.pop %v6941
  %v6948 = vtanh.pop %v6942
  %v6949 = vmul.f32 %v6943, 0.5
  %v6950 = vmul.f32 %v6944, 0.5
  %v6951 = vmul.f32 %v6945, 0.5
  %v6952 = vmul.f32 %v6946, 0.5
  %v6953 = vmul.f32 %v6947, 0.5
  %v6954 = vmul.f32 %v6948, 0.5
  %v6955 = vadd.f32 %v6949, 0.5
  %v6956 = vadd.f32 %v6950, 0.5
  %v6957 = vadd.f32 %v6951, 0.5
  %v6958 = vadd.f32 %v6952, 0.5
  %v6959 = vadd.f32 %v6953, 0.5
  %v6960 = vadd.f32 %v6954, 0.5
  %v6961 = vtanh.pop %v6935
  %v6962 = vtanh.pop %v6936
  %v6963 = vmul.f32 %v6957, %v6241
  %v6964 = vmul.f32 %v6958, %v6242
  %v6965 = vmul.f32 %v6955, %v6961
  %v6966 = vmul.f32 %v6956, %v6962
  %v6967 = vadd.f32 %v6963, %v6965
  %v6968 = vadd.f32 %v6964, %v6966
  %v6969 = vtanh.pop %v6967
  %v6970 = vtanh.pop %v6968
  %v6971 = vmul.f32 %v6959, %v6969
  %v6972 = vmul.f32 %v6960, %v6970
  %v6973 = vpack.c.bf16 %v6971, %v6971
  %v6974 = vpack.c.bf16 %v6972, %v6972
  %6975 = vmatpush.bf16.msra.mxu0 %v2505
  %6976 = vmatpush.bf16.msra.mxu0 %v2497
  %6977 = vmatpush.bf16.msra.mxu0 %v2489
  %6978 = vmatpush.bf16.msra.mxu0 %v2481
  %6979 = vmatpush.bf16.msra.mxu0 %v2473
  %6980 = vmatpush.bf16.msra.mxu0 %v2465
  %6981 = vmatpush.bf16.msra.mxu0 %v2457
  %6982 = vmatpush.bf16.msra.mxu0 %v2449
  %6983 = vmatmul.bf16.gmra.mxu0 %v6973
  %v6984 = vpop.f32.mrf.mxu0
  %v6985 = vadd.f32 0.0, %v6984
  %v6986 = vpop.f32.mrf.mxu0
  %6987 = vdwg.mxu0
  %6988 = vmatpush.bf16.msra.mxu0 %v2569
  %6989 = vmatpush.bf16.msra.mxu0 %v2561
  %6990 = vmatpush.bf16.msra.mxu0 %v2553
  %6991 = vmatpush.bf16.msra.mxu0 %v2545
  %6992 = vmatpush.bf16.msra.mxu0 %v2537
  %6993 = vmatpush.bf16.msra.mxu0 %v2529
  %6994 = vmatpush.bf16.msra.mxu0 %v2521
  %6995 = vmatpush.bf16.msra.mxu0 %v2513
  %6996 = vmatmul.bf16.gmra.mxu0 %v6974
  %v6997 = vpop.f32.mrf.mxu0
  %v6998 = vadd.f32 %v6985, %v6997
  %v6999 = vpop.f32.mrf.mxu0
  %7000 = vdwg.mxu0
  %7001 = vmatpush.bf16.msra.mxu0 %v2506
  %7002 = vmatpush.bf16.msra.mxu0 %v2498
  %7003 = vmatpush.bf16.msra.mxu0 %v2490
  %7004 = vmatpush.bf16.msra.mxu0 %v2482
  %7005 = vmatpush.bf16.msra.mxu0 %v2474
  %7006 = vmatpush.bf16.msra.mxu0 %v2466
  %7007 = vmatpush.bf16.msra.mxu0 %v2458
  %7008 = vmatpush.bf16.msra.mxu0 %v2450
  %7009 = vmatmul.bf16.gmra.mxu0 %v6973
  %v7010 = vpop.f32.mrf.mxu0
  %v7011 = vadd.f32 0.0, %v7010
  %v7012 = vpop.f32.mrf.mxu0
  %7013 = vdwg.mxu0
  %7014 = vmatpush.bf16.msra.mxu0 %v2570
  %7015 = vmatpush.bf16.msra.mxu0 %v2562
  %7016 = vmatpush.bf16.msra.mxu0 %v2554
  %7017 = vmatpush.bf16.msra.mxu0 %v2546
  %7018 = vmatpush.bf16.msra.mxu0 %v2538
  %7019 = vmatpush.bf16.msra.mxu0 %v2530
  %7020 = vmatpush.bf16.msra.mxu0 %v2522
  %7021 = vmatpush.bf16.msra.mxu0 %v2514
  %7022 = vmatmul.bf16.gmra.mxu0 %v6974
  %v7023 = vpop.f32.mrf.mxu0
  %v7024 = vadd.f32 %v7011, %v7023
  %v7025 = vpop.f32.mrf.mxu0
  %7026 = vdwg.mxu0
  %7027 = vmatpush.bf16.msra.mxu0 %v2507
  %7028 = vmatpush.bf16.msra.mxu0 %v2499
  %7029 = vmatpush.bf16.msra.mxu0 %v2491
  %7030 = vmatpush.bf16.msra.mxu0 %v2483
  %7031 = vmatpush.bf16.msra.mxu0 %v2475
  %7032 = vmatpush.bf16.msra.mxu0 %v2467
  %7033 = vmatpush.bf16.msra.mxu0 %v2459
  %7034 = vmatpush.bf16.msra.mxu0 %v2451
  %7035 = vmatmul.bf16.gmra.mxu0 %v6973
  %v7036 = vpop.f32.mrf.mxu0
  %v7037 = vadd.f32 0.0, %v7036
  %v7038 = vpop.f32.mrf.mxu0
  %7039 = vdwg.mxu0
  %7040 = vmatpush.bf16.msra.mxu0 %v2571
  %7041 = vmatpush.bf16.msra.mxu0 %v2563
  %7042 = vmatpush.bf16.msra.mxu0 %v2555
  %7043 = vmatpush.bf16.msra.mxu0 %v2547
  %7044 = vmatpush.bf16.msra.mxu0 %v2539
  %7045 = vmatpush.bf16.msra.mxu0 %v2531
  %7046 = vmatpush.bf16.msra.mxu0 %v2523
  %7047 = vmatpush.bf16.msra.mxu0 %v2515
  %7048 = vmatmul.bf16.gmra.mxu0 %v6974
  %v7049 = vpop.f32.mrf.mxu0
  %v7050 = vadd.f32 %v7037, %v7049
  %v7051 = vpop.f32.mrf.mxu0
  %7052 = vdwg.mxu0
  %7053 = vmatpush.bf16.msra.mxu0 %v2508
  %7054 = vmatpush.bf16.msra.mxu0 %v2500
  %7055 = vmatpush.bf16.msra.mxu0 %v2492
  %7056 = vmatpush.bf16.msra.mxu0 %v2484
  %7057 = vmatpush.bf16.msra.mxu0 %v2476
  %7058 = vmatpush.bf16.msra.mxu0 %v2468
  %7059 = vmatpush.bf16.msra.mxu0 %v2460
  %7060 = vmatpush.bf16.msra.mxu0 %v2452
  %7061 = vmatmul.bf16.gmra.mxu0 %v6973
  %v7062 = vpop.f32.mrf.mxu0
  %v7063 = vadd.f32 0.0, %v7062
  %v7064 = vpop.f32.mrf.mxu0
  %7065 = vdwg.mxu0
  %7066 = vmatpush.bf16.msra.mxu0 %v2572
  %7067 = vmatpush.bf16.msra.mxu0 %v2564
  %7068 = vmatpush.bf16.msra.mxu0 %v2556
  %7069 = vmatpush.bf16.msra.mxu0 %v2548
  %7070 = vmatpush.bf16.msra.mxu0 %v2540
  %7071 = vmatpush.bf16.msra.mxu0 %v2532
  %7072 = vmatpush.bf16.msra.mxu0 %v2524
  %7073 = vmatpush.bf16.msra.mxu0 %v2516
  %7074 = vmatmul.bf16.gmra.mxu0 %v6974
  %v7075 = vpop.f32.mrf.mxu0
  %v7076 = vadd.f32 %v7063, %v7075
  %v7077 = vpop.f32.mrf.mxu0
  %7078 = vdwg.mxu0
  %7079 = vmatpush.bf16.msra.mxu0 %v2509
  %7080 = vmatpush.bf16.msra.mxu0 %v2501
  %7081 = vmatpush.bf16.msra.mxu0 %v2493
  %7082 = vmatpush.bf16.msra.mxu0 %v2485
  %7083 = vmatpush.bf16.msra.mxu0 %v2477
  %7084 = vmatpush.bf16.msra.mxu0 %v2469
  %7085 = vmatpush.bf16.msra.mxu0 %v2461
  %7086 = vmatpush.bf16.msra.mxu0 %v2453
  %7087 = vmatmul.bf16.gmra.mxu0 %v6973
  %v7088 = vpop.f32.mrf.mxu0
  %v7089 = vadd.f32 0.0, %v7088
  %v7090 = vpop.f32.mrf.mxu0
  %7091 = vdwg.mxu0
  %7092 = vmatpush.bf16.msra.mxu0 %v2573
  %7093 = vmatpush.bf16.msra.mxu0 %v2565
  %7094 = vmatpush.bf16.msra.mxu0 %v2557
  %7095 = vmatpush.bf16.msra.mxu0 %v2549
  %7096 = vmatpush.bf16.msra.mxu0 %v2541
  %7097 = vmatpush.bf16.msra.mxu0 %v2533
  %7098 = vmatpush.bf16.msra.mxu0 %v2525
  %7099 = vmatpush.bf16.msra.mxu0 %v2517
  %7100 = vmatmul.bf16.gmra.mxu0 %v6974
  %v7101 = vpop.f32.mrf.mxu0
  %v7102 = vadd.f32 %v7089, %v7101
  %v7103 = vpop.f32.mrf.mxu0
  %7104 = vdwg.mxu0
  %7105 = vmatpush.bf16.msra.mxu0 %v2510
  %7106 = vmatpush.bf16.msra.mxu0 %v2502
  %7107 = vmatpush.bf16.msra.mxu0 %v2494
  %7108 = vmatpush.bf16.msra.mxu0 %v2486
  %7109 = vmatpush.bf16.msra.mxu0 %v2478
  %7110 = vmatpush.bf16.msra.mxu0 %v2470
  %7111 = vmatpush.bf16.msra.mxu0 %v2462
  %7112 = vmatpush.bf16.msra.mxu0 %v2454
  %7113 = vmatmul.bf16.gmra.mxu0 %v6973
  %v7114 = vpop.f32.mrf.mxu0
  %v7115 = vadd.f32 0.0, %v7114
  %v7116 = vpop.f32.mrf.mxu0
  %7117 = vdwg.mxu0
  %7118 = vmatpush.bf16.msra.mxu0 %v2574
  %7119 = vmatpush.bf16.msra.mxu0 %v2566
  %7120 = vmatpush.bf16.msra.mxu0 %v2558
  %7121 = vmatpush.bf16.msra.mxu0 %v2550
  %7122 = vmatpush.bf16.msra.mxu0 %v2542
  %7123 = vmatpush.bf16.msra.mxu0 %v2534
  %7124 = vmatpush.bf16.msra.mxu0 %v2526
  %7125 = vmatpush.bf16.msra.mxu0 %v2518
  %7126 = vmatmul.bf16.gmra.mxu0 %v6974
  %v7127 = vpop.f32.mrf.mxu0
  %v7128 = vadd.f32 %v7115, %v7127
  %v7129 = vpop.f32.mrf.mxu0
  %7130 = vdwg.mxu0
  %7131 = vmatpush.bf16.msra.mxu0 %v2511
  %7132 = vmatpush.bf16.msra.mxu0 %v2503
  %7133 = vmatpush.bf16.msra.mxu0 %v2495
  %7134 = vmatpush.bf16.msra.mxu0 %v2487
  %7135 = vmatpush.bf16.msra.mxu0 %v2479
  %7136 = vmatpush.bf16.msra.mxu0 %v2471
  %7137 = vmatpush.bf16.msra.mxu0 %v2463
  %7138 = vmatpush.bf16.msra.mxu0 %v2455
  %7139 = vmatmul.bf16.gmra.mxu0 %v6973
  %v7140 = vpop.f32.mrf.mxu0
  %v7141 = vadd.f32 0.0, %v7140
  %v7142 = vpop.f32.mrf.mxu0
  %7143 = vdwg.mxu0
  %7144 = vmatpush.bf16.msra.mxu0 %v2575
  %7145 = vmatpush.bf16.msra.mxu0 %v2567
  %7146 = vmatpush.bf16.msra.mxu0 %v2559
  %7147 = vmatpush.bf16.msra.mxu0 %v2551
  %7148 = vmatpush.bf16.msra.mxu0 %v2543
  %7149 = vmatpush.bf16.msra.mxu0 %v2535
  %7150 = vmatpush.bf16.msra.mxu0 %v2527
  %7151 = vmatpush.bf16.msra.mxu0 %v2519
  %7152 = vmatmul.bf16.gmra.mxu0 %v6974
  %v7153 = vpop.f32.mrf.mxu0
  %v7154 = vadd.f32 %v7141, %v7153
  %v7155 = vpop.f32.mrf.mxu0
  %7156 = vdwg.mxu0
  %7157 = vmatpush.bf16.msra.mxu0 %v2512
  %7158 = vmatpush.bf16.msra.mxu0 %v2504
  %7159 = vmatpush.bf16.msra.mxu0 %v2496
  %7160 = vmatpush.bf16.msra.mxu0 %v2488
  %7161 = vmatpush.bf16.msra.mxu0 %v2480
  %7162 = vmatpush.bf16.msra.mxu0 %v2472
  %7163 = vmatpush.bf16.msra.mxu0 %v2464
  %7164 = vmatpush.bf16.msra.mxu0 %v2456
  %7165 = vmatmul.bf16.gmra.mxu0 %v6973
  %v7166 = vpop.f32.mrf.mxu0
  %v7167 = vadd.f32 0.0, %v7166
  %v7168 = vpop.f32.mrf.mxu0
  %7169 = vdwg.mxu0
  %7170 = vmatpush.bf16.msra.mxu0 %v2576
  %7171 = vmatpush.bf16.msra.mxu0 %v2568
  %7172 = vmatpush.bf16.msra.mxu0 %v2560
  %7173 = vmatpush.bf16.msra.mxu0 %v2552
  %7174 = vmatpush.bf16.msra.mxu0 %v2544
  %7175 = vmatpush.bf16.msra.mxu0 %v2536
  %7176 = vmatpush.bf16.msra.mxu0 %v2528
  %7177 = vmatpush.bf16.msra.mxu0 %v2520
  %7178 = vmatmul.bf16.gmra.mxu0 %v6974
  %v7179 = vpop.f32.mrf.mxu0
  %v7180 = vadd.f32 %v7167, %v7179
  %v7181 = vpop.f32.mrf.mxu0
  %7182 = vdwg.mxu0
  %7183 = vmatpush.bf16.msra.mxu0 %v3353
  %7184 = vmatpush.bf16.msra.mxu0 %v3345
  %7185 = vmatpush.bf16.msra.mxu0 %v3337
  %7186 = vmatpush.bf16.msra.mxu0 %v3329
  %7187 = vmatpush.bf16.msra.mxu0 %v3321
  %7188 = vmatpush.bf16.msra.mxu0 %v3313
  %7189 = vmatpush.bf16.msra.mxu0 %v3305
  %7190 = vmatpush.bf16.msra.mxu0 %v3297
  %7191 = vmatmul.bf16.gmra.mxu0 %v6711
  %v7192 = vpop.f32.mrf.mxu0
  %v7193 = vadd.f32 %v6998, %v7192
  %v7194 = vpop.f32.mrf.mxu0
  %7195 = vdwg.mxu0
  %7196 = vmatpush.bf16.msra.mxu0 %v3417
  %7197 = vmatpush.bf16.msra.mxu0 %v3409
  %7198 = vmatpush.bf16.msra.mxu0 %v3401
  %7199 = vmatpush.bf16.msra.mxu0 %v3393
  %7200 = vmatpush.bf16.msra.mxu0 %v3385
  %7201 = vmatpush.bf16.msra.mxu0 %v3377
  %7202 = vmatpush.bf16.msra.mxu0 %v3369
  %7203 = vmatpush.bf16.msra.mxu0 %v3361
  %7204 = vmatmul.bf16.gmra.mxu0 %v6712
  %v7205 = vpop.f32.mrf.mxu0
  %v7206 = vadd.f32 %v7193, %v7205
  %v7207 = vpop.f32.mrf.mxu0
  %7208 = vdwg.mxu0
  %7209 = vmatpush.bf16.msra.mxu0 %v3354
  %7210 = vmatpush.bf16.msra.mxu0 %v3346
  %7211 = vmatpush.bf16.msra.mxu0 %v3338
  %7212 = vmatpush.bf16.msra.mxu0 %v3330
  %7213 = vmatpush.bf16.msra.mxu0 %v3322
  %7214 = vmatpush.bf16.msra.mxu0 %v3314
  %7215 = vmatpush.bf16.msra.mxu0 %v3306
  %7216 = vmatpush.bf16.msra.mxu0 %v3298
  %7217 = vmatmul.bf16.gmra.mxu0 %v6711
  %v7218 = vpop.f32.mrf.mxu0
  %v7219 = vadd.f32 %v7024, %v7218
  %v7220 = vpop.f32.mrf.mxu0
  %7221 = vdwg.mxu0
  %7222 = vmatpush.bf16.msra.mxu0 %v3418
  %7223 = vmatpush.bf16.msra.mxu0 %v3410
  %7224 = vmatpush.bf16.msra.mxu0 %v3402
  %7225 = vmatpush.bf16.msra.mxu0 %v3394
  %7226 = vmatpush.bf16.msra.mxu0 %v3386
  %7227 = vmatpush.bf16.msra.mxu0 %v3378
  %7228 = vmatpush.bf16.msra.mxu0 %v3370
  %7229 = vmatpush.bf16.msra.mxu0 %v3362
  %7230 = vmatmul.bf16.gmra.mxu0 %v6712
  %v7231 = vpop.f32.mrf.mxu0
  %v7232 = vadd.f32 %v7219, %v7231
  %v7233 = vpop.f32.mrf.mxu0
  %7234 = vdwg.mxu0
  %7235 = vmatpush.bf16.msra.mxu0 %v3355
  %7236 = vmatpush.bf16.msra.mxu0 %v3347
  %7237 = vmatpush.bf16.msra.mxu0 %v3339
  %7238 = vmatpush.bf16.msra.mxu0 %v3331
  %7239 = vmatpush.bf16.msra.mxu0 %v3323
  %7240 = vmatpush.bf16.msra.mxu0 %v3315
  %7241 = vmatpush.bf16.msra.mxu0 %v3307
  %7242 = vmatpush.bf16.msra.mxu0 %v3299
  %7243 = vmatmul.bf16.gmra.mxu0 %v6711
  %v7244 = vpop.f32.mrf.mxu0
  %v7245 = vadd.f32 %v7050, %v7244
  %v7246 = vpop.f32.mrf.mxu0
  %7247 = vdwg.mxu0
  %7248 = vmatpush.bf16.msra.mxu0 %v3419
  %7249 = vmatpush.bf16.msra.mxu0 %v3411
  %7250 = vmatpush.bf16.msra.mxu0 %v3403
  %7251 = vmatpush.bf16.msra.mxu0 %v3395
  %7252 = vmatpush.bf16.msra.mxu0 %v3387
  %7253 = vmatpush.bf16.msra.mxu0 %v3379
  %7254 = vmatpush.bf16.msra.mxu0 %v3371
  %7255 = vmatpush.bf16.msra.mxu0 %v3363
  %7256 = vmatmul.bf16.gmra.mxu0 %v6712
  %v7257 = vpop.f32.mrf.mxu0
  %v7258 = vadd.f32 %v7245, %v7257
  %v7259 = vpop.f32.mrf.mxu0
  %7260 = vdwg.mxu0
  %7261 = vmatpush.bf16.msra.mxu0 %v3356
  %7262 = vmatpush.bf16.msra.mxu0 %v3348
  %7263 = vmatpush.bf16.msra.mxu0 %v3340
  %7264 = vmatpush.bf16.msra.mxu0 %v3332
  %7265 = vmatpush.bf16.msra.mxu0 %v3324
  %7266 = vmatpush.bf16.msra.mxu0 %v3316
  %7267 = vmatpush.bf16.msra.mxu0 %v3308
  %7268 = vmatpush.bf16.msra.mxu0 %v3300
  %7269 = vmatmul.bf16.gmra.mxu0 %v6711
  %v7270 = vpop.f32.mrf.mxu0
  %v7271 = vadd.f32 %v7076, %v7270
  %v7272 = vpop.f32.mrf.mxu0
  %7273 = vdwg.mxu0
  %7274 = vmatpush.bf16.msra.mxu0 %v3420
  %7275 = vmatpush.bf16.msra.mxu0 %v3412
  %7276 = vmatpush.bf16.msra.mxu0 %v3404
  %7277 = vmatpush.bf16.msra.mxu0 %v3396
  %7278 = vmatpush.bf16.msra.mxu0 %v3388
  %7279 = vmatpush.bf16.msra.mxu0 %v3380
  %7280 = vmatpush.bf16.msra.mxu0 %v3372
  %7281 = vmatpush.bf16.msra.mxu0 %v3364
  %7282 = vmatmul.bf16.gmra.mxu0 %v6712
  %v7283 = vpop.f32.mrf.mxu0
  %v7284 = vadd.f32 %v7271, %v7283
  %v7285 = vpop.f32.mrf.mxu0
  %7286 = vdwg.mxu0
  %7287 = vmatpush.bf16.msra.mxu0 %v3357
  %7288 = vmatpush.bf16.msra.mxu0 %v3349
  %7289 = vmatpush.bf16.msra.mxu0 %v3341
  %7290 = vmatpush.bf16.msra.mxu0 %v3333
  %7291 = vmatpush.bf16.msra.mxu0 %v3325
  %7292 = vmatpush.bf16.msra.mxu0 %v3317
  %7293 = vmatpush.bf16.msra.mxu0 %v3309
  %7294 = vmatpush.bf16.msra.mxu0 %v3301
  %7295 = vmatmul.bf16.gmra.mxu0 %v6711
  %v7296 = vpop.f32.mrf.mxu0
  %v7297 = vadd.f32 %v7102, %v7296
  %v7298 = vpop.f32.mrf.mxu0
  %7299 = vdwg.mxu0
  %7300 = vmatpush.bf16.msra.mxu0 %v3421
  %7301 = vmatpush.bf16.msra.mxu0 %v3413
  %7302 = vmatpush.bf16.msra.mxu0 %v3405
  %7303 = vmatpush.bf16.msra.mxu0 %v3397
  %7304 = vmatpush.bf16.msra.mxu0 %v3389
  %7305 = vmatpush.bf16.msra.mxu0 %v3381
  %7306 = vmatpush.bf16.msra.mxu0 %v3373
  %7307 = vmatpush.bf16.msra.mxu0 %v3365
  %7308 = vmatmul.bf16.gmra.mxu0 %v6712
  %v7309 = vpop.f32.mrf.mxu0
  %v7310 = vadd.f32 %v7297, %v7309
  %v7311 = vpop.f32.mrf.mxu0
  %7312 = vdwg.mxu0
  %7313 = vmatpush.bf16.msra.mxu0 %v3358
  %7314 = vmatpush.bf16.msra.mxu0 %v3350
  %7315 = vmatpush.bf16.msra.mxu0 %v3342
  %7316 = vmatpush.bf16.msra.mxu0 %v3334
  %7317 = vmatpush.bf16.msra.mxu0 %v3326
  %7318 = vmatpush.bf16.msra.mxu0 %v3318
  %7319 = vmatpush.bf16.msra.mxu0 %v3310
  %7320 = vmatpush.bf16.msra.mxu0 %v3302
  %7321 = vmatmul.bf16.gmra.mxu0 %v6711
  %v7322 = vpop.f32.mrf.mxu0
  %v7323 = vadd.f32 %v7128, %v7322
  %v7324 = vpop.f32.mrf.mxu0
  %7325 = vdwg.mxu0
  %7326 = vmatpush.bf16.msra.mxu0 %v3422
  %7327 = vmatpush.bf16.msra.mxu0 %v3414
  %7328 = vmatpush.bf16.msra.mxu0 %v3406
  %7329 = vmatpush.bf16.msra.mxu0 %v3398
  %7330 = vmatpush.bf16.msra.mxu0 %v3390
  %7331 = vmatpush.bf16.msra.mxu0 %v3382
  %7332 = vmatpush.bf16.msra.mxu0 %v3374
  %7333 = vmatpush.bf16.msra.mxu0 %v3366
  %7334 = vmatmul.bf16.gmra.mxu0 %v6712
  %v7335 = vpop.f32.mrf.mxu0
  %v7336 = vadd.f32 %v7323, %v7335
  %v7337 = vpop.f32.mrf.mxu0
  %7338 = vdwg.mxu0
  %7339 = vmatpush.bf16.msra.mxu0 %v3359
  %7340 = vmatpush.bf16.msra.mxu0 %v3351
  %7341 = vmatpush.bf16.msra.mxu0 %v3343
  %7342 = vmatpush.bf16.msra.mxu0 %v3335
  %7343 = vmatpush.bf16.msra.mxu0 %v3327
  %7344 = vmatpush.bf16.msra.mxu0 %v3319
  %7345 = vmatpush.bf16.msra.mxu0 %v3311
  %7346 = vmatpush.bf16.msra.mxu0 %v3303
  %7347 = vmatmul.bf16.gmra.mxu0 %v6711
  %v7348 = vpop.f32.mrf.mxu0
  %v7349 = vadd.f32 %v7154, %v7348
  %v7350 = vpop.f32.mrf.mxu0
  %7351 = vdwg.mxu0
  %7352 = vmatpush.bf16.msra.mxu0 %v3423
  %7353 = vmatpush.bf16.msra.mxu0 %v3415
  %7354 = vmatpush.bf16.msra.mxu0 %v3407
  %7355 = vmatpush.bf16.msra.mxu0 %v3399
  %7356 = vmatpush.bf16.msra.mxu0 %v3391
  %7357 = vmatpush.bf16.msra.mxu0 %v3383
  %7358 = vmatpush.bf16.msra.mxu0 %v3375
  %7359 = vmatpush.bf16.msra.mxu0 %v3367
  %7360 = vmatmul.bf16.gmra.mxu0 %v6712
  %v7361 = vpop.f32.mrf.mxu0
  %v7362 = vadd.f32 %v7349, %v7361
  %v7363 = vpop.f32.mrf.mxu0
  %7364 = vdwg.mxu0
  %7365 = vmatpush.bf16.msra.mxu0 %v3360
  %7366 = vmatpush.bf16.msra.mxu0 %v3352
  %7367 = vmatpush.bf16.msra.mxu0 %v3344
  %7368 = vmatpush.bf16.msra.mxu0 %v3336
  %7369 = vmatpush.bf16.msra.mxu0 %v3328
  %7370 = vmatpush.bf16.msra.mxu0 %v3320
  %7371 = vmatpush.bf16.msra.mxu0 %v3312
  %7372 = vmatpush.bf16.msra.mxu0 %v3304
  %7373 = vmatmul.bf16.gmra.mxu0 %v6711
  %v7374 = vpop.f32.mrf.mxu0
  %v7375 = vadd.f32 %v7180, %v7374
  %v7376 = vpop.f32.mrf.mxu0
  %7377 = vdwg.mxu0
  %7378 = vmatpush.bf16.msra.mxu0 %v3424
  %7379 = vmatpush.bf16.msra.mxu0 %v3416
  %7380 = vmatpush.bf16.msra.mxu0 %v3408
  %7381 = vmatpush.bf16.msra.mxu0 %v3400
  %7382 = vmatpush.bf16.msra.mxu0 %v3392
  %7383 = vmatpush.bf16.msra.mxu0 %v3384
  %7384 = vmatpush.bf16.msra.mxu0 %v3376
  %7385 = vmatpush.bf16.msra.mxu0 %v3368
  %7386 = vmatmul.bf16.gmra.mxu0 %v6712
  %v7387 = vpop.f32.mrf.mxu0
  %v7388 = vadd.f32 %v7375, %v7387
  %v7389 = vpop.f32.mrf.mxu0
  %7390 = vdwg.mxu0
  %v7391 = vadd.f32 %v7206, %v1147
  %v7392 = vadd.f32 %v7232, %v1148
  %v7393 = vadd.f32 %v7258, %v1149
  %v7394 = vadd.f32 %v7284, %v1150
  %v7395 = vadd.f32 %v7310, %v1151
  %v7396 = vadd.f32 %v7336, %v1152
  %v7397 = vadd.f32 %v7362, %v1153
  %v7398 = vadd.f32 %v7388, %v1154
  %v7399 = vmul.f32 %v7391, 0.5
  %v7400 = vmul.f32 %v7392, 0.5
  %v7401 = vmul.f32 %v7393, 0.5
  %v7402 = vmul.f32 %v7394, 0.5
  %v7403 = vmul.f32 %v7395, 0.5
  %v7404 = vmul.f32 %v7396, 0.5
  %v7405 = vtanh.pop %v7399
  %v7406 = vtanh.pop %v7400
  %v7407 = vtanh.pop %v7401
  %v7408 = vtanh.pop %v7402
  %v7409 = vtanh.pop %v7403
  %v7410 = vtanh.pop %v7404
  %v7411 = vmul.f32 %v7405, 0.5
  %v7412 = vmul.f32 %v7406, 0.5
  %v7413 = vmul.f32 %v7407, 0.5
  %v7414 = vmul.f32 %v7408, 0.5
  %v7415 = vmul.f32 %v7409, 0.5
  %v7416 = vmul.f32 %v7410, 0.5
  %v7417 = vadd.f32 %v7411, 0.5
  %v7418 = vadd.f32 %v7412, 0.5
  %v7419 = vadd.f32 %v7413, 0.5
  %v7420 = vadd.f32 %v7414, 0.5
  %v7421 = vadd.f32 %v7415, 0.5
  %v7422 = vadd.f32 %v7416, 0.5
  %v7423 = vtanh.pop %v7397
  %v7424 = vtanh.pop %v7398
  %v7425 = vmul.f32 %v7419, %v6703
  %v7426 = vmul.f32 %v7420, %v6704
  %v7427 = vmul.f32 %v7417, %v7423
  %v7428 = vmul.f32 %v7418, %v7424
  %v7429 = vadd.f32 %v7425, %v7427
  %v7430 = vadd.f32 %v7426, %v7428
  %v7431 = vtanh.pop %v7429
  %v7432 = vtanh.pop %v7430
  %v7433 = vmul.f32 %v7421, %v7431
  %v7434 = vmul.f32 %v7422, %v7432
  %7435 = vst [vmem:[#allocation3 + $0x50] sm:$0xff] %v7433
  %7436 = vst [vmem:[#allocation3 + $0x58] sm:$0xff] %v7434
  %v7437 = vpack.c.bf16 %v7433, %v7433
  %v7438 = vpack.c.bf16 %v7434, %v7434
  %v7439 = vld [vmem:[#allocation2 + $0x180] sm:$0xff]
  %v7440 = vld [vmem:[#allocation2 + $0x188] sm:$0xff]
  %v7441 = vld [vmem:[#allocation2 + $0x190] sm:$0xff]
  %v7442 = vld [vmem:[#allocation2 + $0x198] sm:$0xff]
  %v7443 = vld [vmem:[#allocation2 + $0x1a0] sm:$0xff]
  %v7444 = vld [vmem:[#allocation2 + $0x1a8] sm:$0xff]
  %v7445 = vld [vmem:[#allocation2 + $0x1b0] sm:$0xff]
  %v7446 = vld [vmem:[#allocation2 + $0x1b8] sm:$0xff]
  %7447 = vmatpush.bf16.msra.mxu0 %v1611
  %7448 = vmatpush.bf16.msra.mxu0 %v1603
  %7449 = vmatpush.bf16.msra.mxu0 %v1595
  %7450 = vmatpush.bf16.msra.mxu0 %v1587
  %7451 = vmatpush.bf16.msra.mxu0 %v1579
  %7452 = vmatpush.bf16.msra.mxu0 %v1571
  %7453 = vmatpush.bf16.msra.mxu0 %v1563
  %7454 = vmatpush.bf16.msra.mxu0 %v1555
  %7455 = vmatmul.bf16.gmra.mxu0 %v6973
  %v7456 = vpop.f32.mrf.mxu0
  %v7457 = vadd.f32 0.0, %v7456
  %v7458 = vpop.f32.mrf.mxu0
  %7459 = vdwg.mxu0
  %7460 = vmatpush.bf16.msra.mxu0 %v1675
  %7461 = vmatpush.bf16.msra.mxu0 %v1667
  %7462 = vmatpush.bf16.msra.mxu0 %v1659
  %7463 = vmatpush.bf16.msra.mxu0 %v1651
  %7464 = vmatpush.bf16.msra.mxu0 %v1643
  %7465 = vmatpush.bf16.msra.mxu0 %v1635
  %7466 = vmatpush.bf16.msra.mxu0 %v1627
  %7467 = vmatpush.bf16.msra.mxu0 %v1619
  %7468 = vmatmul.bf16.gmra.mxu0 %v6974
  %v7469 = vpop.f32.mrf.mxu0
  %v7470 = vadd.f32 %v7457, %v7469
  %v7471 = vpop.f32.mrf.mxu0
  %7472 = vdwg.mxu0
  %7473 = vmatpush.bf16.msra.mxu0 %v1612
  %7474 = vmatpush.bf16.msra.mxu0 %v1604
  %7475 = vmatpush.bf16.msra.mxu0 %v1596
  %7476 = vmatpush.bf16.msra.mxu0 %v1588
  %7477 = vmatpush.bf16.msra.mxu0 %v1580
  %7478 = vmatpush.bf16.msra.mxu0 %v1572
  %7479 = vmatpush.bf16.msra.mxu0 %v1564
  %7480 = vmatpush.bf16.msra.mxu0 %v1556
  %7481 = vmatmul.bf16.gmra.mxu0 %v6973
  %v7482 = vpop.f32.mrf.mxu0
  %v7483 = vadd.f32 0.0, %v7482
  %v7484 = vpop.f32.mrf.mxu0
  %7485 = vdwg.mxu0
  %7486 = vmatpush.bf16.msra.mxu0 %v1676
  %7487 = vmatpush.bf16.msra.mxu0 %v1668
  %7488 = vmatpush.bf16.msra.mxu0 %v1660
  %7489 = vmatpush.bf16.msra.mxu0 %v1652
  %7490 = vmatpush.bf16.msra.mxu0 %v1644
  %7491 = vmatpush.bf16.msra.mxu0 %v1636
  %7492 = vmatpush.bf16.msra.mxu0 %v1628
  %7493 = vmatpush.bf16.msra.mxu0 %v1620
  %7494 = vmatmul.bf16.gmra.mxu0 %v6974
  %v7495 = vpop.f32.mrf.mxu0
  %v7496 = vadd.f32 %v7483, %v7495
  %v7497 = vpop.f32.mrf.mxu0
  %7498 = vdwg.mxu0
  %7499 = vmatpush.bf16.msra.mxu0 %v1613
  %7500 = vmatpush.bf16.msra.mxu0 %v1605
  %7501 = vmatpush.bf16.msra.mxu0 %v1597
  %7502 = vmatpush.bf16.msra.mxu0 %v1589
  %7503 = vmatpush.bf16.msra.mxu0 %v1581
  %7504 = vmatpush.bf16.msra.mxu0 %v1573
  %7505 = vmatpush.bf16.msra.mxu0 %v1565
  %7506 = vmatpush.bf16.msra.mxu0 %v1557
  %7507 = vmatmul.bf16.gmra.mxu0 %v6973
  %v7508 = vpop.f32.mrf.mxu0
  %v7509 = vadd.f32 0.0, %v7508
  %v7510 = vpop.f32.mrf.mxu0
  %7511 = vdwg.mxu0
  %7512 = vmatpush.bf16.msra.mxu0 %v1677
  %7513 = vmatpush.bf16.msra.mxu0 %v1669
  %7514 = vmatpush.bf16.msra.mxu0 %v1661
  %7515 = vmatpush.bf16.msra.mxu0 %v1653
  %7516 = vmatpush.bf16.msra.mxu0 %v1645
  %7517 = vmatpush.bf16.msra.mxu0 %v1637
  %7518 = vmatpush.bf16.msra.mxu0 %v1629
  %7519 = vmatpush.bf16.msra.mxu0 %v1621
  %7520 = vmatmul.bf16.gmra.mxu0 %v6974
  %v7521 = vpop.f32.mrf.mxu0
  %v7522 = vadd.f32 %v7509, %v7521
  %v7523 = vpop.f32.mrf.mxu0
  %7524 = vdwg.mxu0
  %7525 = vmatpush.bf16.msra.mxu0 %v1614
  %7526 = vmatpush.bf16.msra.mxu0 %v1606
  %7527 = vmatpush.bf16.msra.mxu0 %v1598
  %7528 = vmatpush.bf16.msra.mxu0 %v1590
  %7529 = vmatpush.bf16.msra.mxu0 %v1582
  %7530 = vmatpush.bf16.msra.mxu0 %v1574
  %7531 = vmatpush.bf16.msra.mxu0 %v1566
  %7532 = vmatpush.bf16.msra.mxu0 %v1558
  %7533 = vmatmul.bf16.gmra.mxu0 %v6973
  %v7534 = vpop.f32.mrf.mxu0
  %v7535 = vadd.f32 0.0, %v7534
  %v7536 = vpop.f32.mrf.mxu0
  %7537 = vdwg.mxu0
  %7538 = vmatpush.bf16.msra.mxu0 %v1678
  %7539 = vmatpush.bf16.msra.mxu0 %v1670
  %7540 = vmatpush.bf16.msra.mxu0 %v1662
  %7541 = vmatpush.bf16.msra.mxu0 %v1654
  %7542 = vmatpush.bf16.msra.mxu0 %v1646
  %7543 = vmatpush.bf16.msra.mxu0 %v1638
  %7544 = vmatpush.bf16.msra.mxu0 %v1630
  %7545 = vmatpush.bf16.msra.mxu0 %v1622
  %7546 = vmatmul.bf16.gmra.mxu0 %v6974
  %v7547 = vpop.f32.mrf.mxu0
  %v7548 = vadd.f32 %v7535, %v7547
  %v7549 = vpop.f32.mrf.mxu0
  %7550 = vdwg.mxu0
  %7551 = vmatpush.bf16.msra.mxu0 %v1615
  %7552 = vmatpush.bf16.msra.mxu0 %v1607
  %7553 = vmatpush.bf16.msra.mxu0 %v1599
  %7554 = vmatpush.bf16.msra.mxu0 %v1591
  %7555 = vmatpush.bf16.msra.mxu0 %v1583
  %7556 = vmatpush.bf16.msra.mxu0 %v1575
  %7557 = vmatpush.bf16.msra.mxu0 %v1567
  %7558 = vmatpush.bf16.msra.mxu0 %v1559
  %7559 = vmatmul.bf16.gmra.mxu0 %v6973
  %v7560 = vpop.f32.mrf.mxu0
  %v7561 = vadd.f32 0.0, %v7560
  %v7562 = vpop.f32.mrf.mxu0
  %7563 = vdwg.mxu0
  %7564 = vmatpush.bf16.msra.mxu0 %v1679
  %7565 = vmatpush.bf16.msra.mxu0 %v1671
  %7566 = vmatpush.bf16.msra.mxu0 %v1663
  %7567 = vmatpush.bf16.msra.mxu0 %v1655
  %7568 = vmatpush.bf16.msra.mxu0 %v1647
  %7569 = vmatpush.bf16.msra.mxu0 %v1639
  %7570 = vmatpush.bf16.msra.mxu0 %v1631
  %7571 = vmatpush.bf16.msra.mxu0 %v1623
  %7572 = vmatmul.bf16.gmra.mxu0 %v6974
  %v7573 = vpop.f32.mrf.mxu0
  %v7574 = vadd.f32 %v7561, %v7573
  %v7575 = vpop.f32.mrf.mxu0
  %7576 = vdwg.mxu0
  %7577 = vmatpush.bf16.msra.mxu0 %v1616
  %7578 = vmatpush.bf16.msra.mxu0 %v1608
  %7579 = vmatpush.bf16.msra.mxu0 %v1600
  %7580 = vmatpush.bf16.msra.mxu0 %v1592
  %7581 = vmatpush.bf16.msra.mxu0 %v1584
  %7582 = vmatpush.bf16.msra.mxu0 %v1576
  %7583 = vmatpush.bf16.msra.mxu0 %v1568
  %7584 = vmatpush.bf16.msra.mxu0 %v1560
  %7585 = vmatmul.bf16.gmra.mxu0 %v6973
  %v7586 = vpop.f32.mrf.mxu0
  %v7587 = vadd.f32 0.0, %v7586
  %v7588 = vpop.f32.mrf.mxu0
  %7589 = vdwg.mxu0
  %7590 = vmatpush.bf16.msra.mxu0 %v1680
  %7591 = vmatpush.bf16.msra.mxu0 %v1672
  %7592 = vmatpush.bf16.msra.mxu0 %v1664
  %7593 = vmatpush.bf16.msra.mxu0 %v1656
  %7594 = vmatpush.bf16.msra.mxu0 %v1648
  %7595 = vmatpush.bf16.msra.mxu0 %v1640
  %7596 = vmatpush.bf16.msra.mxu0 %v1632
  %7597 = vmatpush.bf16.msra.mxu0 %v1624
  %7598 = vmatmul.bf16.gmra.mxu0 %v6974
  %v7599 = vpop.f32.mrf.mxu0
  %v7600 = vadd.f32 %v7587, %v7599
  %v7601 = vpop.f32.mrf.mxu0
  %7602 = vdwg.mxu0
  %7603 = vmatpush.bf16.msra.mxu0 %v1617
  %7604 = vmatpush.bf16.msra.mxu0 %v1609
  %7605 = vmatpush.bf16.msra.mxu0 %v1601
  %7606 = vmatpush.bf16.msra.mxu0 %v1593
  %7607 = vmatpush.bf16.msra.mxu0 %v1585
  %7608 = vmatpush.bf16.msra.mxu0 %v1577
  %7609 = vmatpush.bf16.msra.mxu0 %v1569
  %7610 = vmatpush.bf16.msra.mxu0 %v1561
  %7611 = vmatmul.bf16.gmra.mxu0 %v6973
  %v7612 = vpop.f32.mrf.mxu0
  %v7613 = vadd.f32 0.0, %v7612
  %v7614 = vpop.f32.mrf.mxu0
  %7615 = vdwg.mxu0
  %7616 = vmatpush.bf16.msra.mxu0 %v1681
  %7617 = vmatpush.bf16.msra.mxu0 %v1673
  %7618 = vmatpush.bf16.msra.mxu0 %v1665
  %7619 = vmatpush.bf16.msra.mxu0 %v1657
  %7620 = vmatpush.bf16.msra.mxu0 %v1649
  %7621 = vmatpush.bf16.msra.mxu0 %v1641
  %7622 = vmatpush.bf16.msra.mxu0 %v1633
  %7623 = vmatpush.bf16.msra.mxu0 %v1625
  %7624 = vmatmul.bf16.gmra.mxu0 %v6974
  %v7625 = vpop.f32.mrf.mxu0
  %v7626 = vadd.f32 %v7613, %v7625
  %v7627 = vpop.f32.mrf.mxu0
  %7628 = vdwg.mxu0
  %7629 = vmatpush.bf16.msra.mxu0 %v1618
  %7630 = vmatpush.bf16.msra.mxu0 %v1610
  %7631 = vmatpush.bf16.msra.mxu0 %v1602
  %7632 = vmatpush.bf16.msra.mxu0 %v1594
  %7633 = vmatpush.bf16.msra.mxu0 %v1586
  %7634 = vmatpush.bf16.msra.mxu0 %v1578
  %7635 = vmatpush.bf16.msra.mxu0 %v1570
  %7636 = vmatpush.bf16.msra.mxu0 %v1562
  %7637 = vmatmul.bf16.gmra.mxu0 %v6973
  %v7638 = vpop.f32.mrf.mxu0
  %v7639 = vadd.f32 0.0, %v7638
  %v7640 = vpop.f32.mrf.mxu0
  %7641 = vdwg.mxu0
  %7642 = vmatpush.bf16.msra.mxu0 %v1682
  %7643 = vmatpush.bf16.msra.mxu0 %v1674
  %7644 = vmatpush.bf16.msra.mxu0 %v1666
  %7645 = vmatpush.bf16.msra.mxu0 %v1658
  %7646 = vmatpush.bf16.msra.mxu0 %v1650
  %7647 = vmatpush.bf16.msra.mxu0 %v1642
  %7648 = vmatpush.bf16.msra.mxu0 %v1634
  %7649 = vmatpush.bf16.msra.mxu0 %v1626
  %7650 = vmatmul.bf16.gmra.mxu0 %v6974
  %v7651 = vpop.f32.mrf.mxu0
  %v7652 = vadd.f32 %v7639, %v7651
  %v7653 = vpop.f32.mrf.mxu0
  %7654 = vdwg.mxu0
  %v7655 = vadd.f32 %v7439, %v7470
  %v7656 = vadd.f32 %v7440, %v7496
  %v7657 = vadd.f32 %v7441, %v7522
  %v7658 = vadd.f32 %v7442, %v7548
  %v7659 = vadd.f32 %v7443, %v7574
  %v7660 = vadd.f32 %v7444, %v7600
  %v7661 = vadd.f32 %v7445, %v7626
  %v7662 = vadd.f32 %v7446, %v7652
  %v7663 = vmul.f32 %v7655, 0.5
  %v7664 = vmul.f32 %v7656, 0.5
  %v7665 = vmul.f32 %v7657, 0.5
  %v7666 = vmul.f32 %v7658, 0.5
  %v7667 = vmul.f32 %v7659, 0.5
  %v7668 = vmul.f32 %v7660, 0.5
  %v7669 = vtanh.pop %v7663
  %v7670 = vtanh.pop %v7664
  %v7671 = vtanh.pop %v7665
  %v7672 = vtanh.pop %v7666
  %v7673 = vtanh.pop %v7667
  %v7674 = vtanh.pop %v7668
  %v7675 = vmul.f32 %v7669, 0.5
  %v7676 = vmul.f32 %v7670, 0.5
  %v7677 = vmul.f32 %v7671, 0.5
  %v7678 = vmul.f32 %v7672, 0.5
  %v7679 = vmul.f32 %v7673, 0.5
  %v7680 = vmul.f32 %v7674, 0.5
  %v7681 = vadd.f32 %v7675, 0.5
  %v7682 = vadd.f32 %v7676, 0.5
  %v7683 = vadd.f32 %v7677, 0.5
  %v7684 = vadd.f32 %v7678, 0.5
  %v7685 = vadd.f32 %v7679, 0.5
  %v7686 = vadd.f32 %v7680, 0.5
  %v7687 = vtanh.pop %v7661
  %v7688 = vtanh.pop %v7662
  %v7689 = vmul.f32 %v7683, %v6967
  %v7690 = vmul.f32 %v7684, %v6968
  %v7691 = vmul.f32 %v7681, %v7687
  %v7692 = vmul.f32 %v7682, %v7688
  %v7693 = vadd.f32 %v7689, %v7691
  %v7694 = vadd.f32 %v7690, %v7692
  %v7695 = vtanh.pop %v7693
  %v7696 = vtanh.pop %v7694
  %v7697 = vmul.f32 %v7685, %v7695
  %v7698 = vmul.f32 %v7686, %v7696
  %v7699 = vpack.c.bf16 %v7697, %v7697
  %v7700 = vpack.c.bf16 %v7698, %v7698
  %7701 = vmatpush.bf16.msra.mxu0 %v2505
  %7702 = vmatpush.bf16.msra.mxu0 %v2497
  %7703 = vmatpush.bf16.msra.mxu0 %v2489
  %7704 = vmatpush.bf16.msra.mxu0 %v2481
  %7705 = vmatpush.bf16.msra.mxu0 %v2473
  %7706 = vmatpush.bf16.msra.mxu0 %v2465
  %7707 = vmatpush.bf16.msra.mxu0 %v2457
  %7708 = vmatpush.bf16.msra.mxu0 %v2449
  %7709 = vmatmul.bf16.gmra.mxu0 %v7699
  %v7710 = vpop.f32.mrf.mxu0
  %v7711 = vadd.f32 0.0, %v7710
  %v7712 = vpop.f32.mrf.mxu0
  %7713 = vdwg.mxu0
  %7714 = vmatpush.bf16.msra.mxu0 %v2569
  %7715 = vmatpush.bf16.msra.mxu0 %v2561
  %7716 = vmatpush.bf16.msra.mxu0 %v2553
  %7717 = vmatpush.bf16.msra.mxu0 %v2545
  %7718 = vmatpush.bf16.msra.mxu0 %v2537
  %7719 = vmatpush.bf16.msra.mxu0 %v2529
  %7720 = vmatpush.bf16.msra.mxu0 %v2521
  %7721 = vmatpush.bf16.msra.mxu0 %v2513
  %7722 = vmatmul.bf16.gmra.mxu0 %v7700
  %v7723 = vpop.f32.mrf.mxu0
  %v7724 = vadd.f32 %v7711, %v7723
  %v7725 = vpop.f32.mrf.mxu0
  %7726 = vdwg.mxu0
  %7727 = vmatpush.bf16.msra.mxu0 %v2506
  %7728 = vmatpush.bf16.msra.mxu0 %v2498
  %7729 = vmatpush.bf16.msra.mxu0 %v2490
  %7730 = vmatpush.bf16.msra.mxu0 %v2482
  %7731 = vmatpush.bf16.msra.mxu0 %v2474
  %7732 = vmatpush.bf16.msra.mxu0 %v2466
  %7733 = vmatpush.bf16.msra.mxu0 %v2458
  %7734 = vmatpush.bf16.msra.mxu0 %v2450
  %7735 = vmatmul.bf16.gmra.mxu0 %v7699
  %v7736 = vpop.f32.mrf.mxu0
  %v7737 = vadd.f32 0.0, %v7736
  %v7738 = vpop.f32.mrf.mxu0
  %7739 = vdwg.mxu0
  %7740 = vmatpush.bf16.msra.mxu0 %v2570
  %7741 = vmatpush.bf16.msra.mxu0 %v2562
  %7742 = vmatpush.bf16.msra.mxu0 %v2554
  %7743 = vmatpush.bf16.msra.mxu0 %v2546
  %7744 = vmatpush.bf16.msra.mxu0 %v2538
  %7745 = vmatpush.bf16.msra.mxu0 %v2530
  %7746 = vmatpush.bf16.msra.mxu0 %v2522
  %7747 = vmatpush.bf16.msra.mxu0 %v2514
  %7748 = vmatmul.bf16.gmra.mxu0 %v7700
  %v7749 = vpop.f32.mrf.mxu0
  %v7750 = vadd.f32 %v7737, %v7749
  %v7751 = vpop.f32.mrf.mxu0
  %7752 = vdwg.mxu0
  %7753 = vmatpush.bf16.msra.mxu0 %v2507
  %7754 = vmatpush.bf16.msra.mxu0 %v2499
  %7755 = vmatpush.bf16.msra.mxu0 %v2491
  %7756 = vmatpush.bf16.msra.mxu0 %v2483
  %7757 = vmatpush.bf16.msra.mxu0 %v2475
  %7758 = vmatpush.bf16.msra.mxu0 %v2467
  %7759 = vmatpush.bf16.msra.mxu0 %v2459
  %7760 = vmatpush.bf16.msra.mxu0 %v2451
  %7761 = vmatmul.bf16.gmra.mxu0 %v7699
  %v7762 = vpop.f32.mrf.mxu0
  %v7763 = vadd.f32 0.0, %v7762
  %v7764 = vpop.f32.mrf.mxu0
  %7765 = vdwg.mxu0
  %7766 = vmatpush.bf16.msra.mxu0 %v2571
  %7767 = vmatpush.bf16.msra.mxu0 %v2563
  %7768 = vmatpush.bf16.msra.mxu0 %v2555
  %7769 = vmatpush.bf16.msra.mxu0 %v2547
  %7770 = vmatpush.bf16.msra.mxu0 %v2539
  %7771 = vmatpush.bf16.msra.mxu0 %v2531
  %7772 = vmatpush.bf16.msra.mxu0 %v2523
  %7773 = vmatpush.bf16.msra.mxu0 %v2515
  %7774 = vmatmul.bf16.gmra.mxu0 %v7700
  %v7775 = vpop.f32.mrf.mxu0
  %v7776 = vadd.f32 %v7763, %v7775
  %v7777 = vpop.f32.mrf.mxu0
  %7778 = vdwg.mxu0
  %7779 = vmatpush.bf16.msra.mxu0 %v2508
  %7780 = vmatpush.bf16.msra.mxu0 %v2500
  %7781 = vmatpush.bf16.msra.mxu0 %v2492
  %7782 = vmatpush.bf16.msra.mxu0 %v2484
  %7783 = vmatpush.bf16.msra.mxu0 %v2476
  %7784 = vmatpush.bf16.msra.mxu0 %v2468
  %7785 = vmatpush.bf16.msra.mxu0 %v2460
  %7786 = vmatpush.bf16.msra.mxu0 %v2452
  %7787 = vmatmul.bf16.gmra.mxu0 %v7699
  %v7788 = vpop.f32.mrf.mxu0
  %v7789 = vadd.f32 0.0, %v7788
  %v7790 = vpop.f32.mrf.mxu0
  %7791 = vdwg.mxu0
  %7792 = vmatpush.bf16.msra.mxu0 %v2572
  %7793 = vmatpush.bf16.msra.mxu0 %v2564
  %7794 = vmatpush.bf16.msra.mxu0 %v2556
  %7795 = vmatpush.bf16.msra.mxu0 %v2548
  %7796 = vmatpush.bf16.msra.mxu0 %v2540
  %7797 = vmatpush.bf16.msra.mxu0 %v2532
  %7798 = vmatpush.bf16.msra.mxu0 %v2524
  %7799 = vmatpush.bf16.msra.mxu0 %v2516
  %7800 = vmatmul.bf16.gmra.mxu0 %v7700
  %v7801 = vpop.f32.mrf.mxu0
  %v7802 = vadd.f32 %v7789, %v7801
  %v7803 = vpop.f32.mrf.mxu0
  %7804 = vdwg.mxu0
  %7805 = vmatpush.bf16.msra.mxu0 %v2509
  %7806 = vmatpush.bf16.msra.mxu0 %v2501
  %7807 = vmatpush.bf16.msra.mxu0 %v2493
  %7808 = vmatpush.bf16.msra.mxu0 %v2485
  %7809 = vmatpush.bf16.msra.mxu0 %v2477
  %7810 = vmatpush.bf16.msra.mxu0 %v2469
  %7811 = vmatpush.bf16.msra.mxu0 %v2461
  %7812 = vmatpush.bf16.msra.mxu0 %v2453
  %7813 = vmatmul.bf16.gmra.mxu0 %v7699
  %v7814 = vpop.f32.mrf.mxu0
  %v7815 = vadd.f32 0.0, %v7814
  %v7816 = vpop.f32.mrf.mxu0
  %7817 = vdwg.mxu0
  %7818 = vmatpush.bf16.msra.mxu0 %v2573
  %7819 = vmatpush.bf16.msra.mxu0 %v2565
  %7820 = vmatpush.bf16.msra.mxu0 %v2557
  %7821 = vmatpush.bf16.msra.mxu0 %v2549
  %7822 = vmatpush.bf16.msra.mxu0 %v2541
  %7823 = vmatpush.bf16.msra.mxu0 %v2533
  %7824 = vmatpush.bf16.msra.mxu0 %v2525
  %7825 = vmatpush.bf16.msra.mxu0 %v2517
  %7826 = vmatmul.bf16.gmra.mxu0 %v7700
  %v7827 = vpop.f32.mrf.mxu0
  %v7828 = vadd.f32 %v7815, %v7827
  %v7829 = vpop.f32.mrf.mxu0
  %7830 = vdwg.mxu0
  %7831 = vmatpush.bf16.msra.mxu0 %v2510
  %7832 = vmatpush.bf16.msra.mxu0 %v2502
  %7833 = vmatpush.bf16.msra.mxu0 %v2494
  %7834 = vmatpush.bf16.msra.mxu0 %v2486
  %7835 = vmatpush.bf16.msra.mxu0 %v2478
  %7836 = vmatpush.bf16.msra.mxu0 %v2470
  %7837 = vmatpush.bf16.msra.mxu0 %v2462
  %7838 = vmatpush.bf16.msra.mxu0 %v2454
  %7839 = vmatmul.bf16.gmra.mxu0 %v7699
  %v7840 = vpop.f32.mrf.mxu0
  %v7841 = vadd.f32 0.0, %v7840
  %v7842 = vpop.f32.mrf.mxu0
  %7843 = vdwg.mxu0
  %7844 = vmatpush.bf16.msra.mxu0 %v2574
  %7845 = vmatpush.bf16.msra.mxu0 %v2566
  %7846 = vmatpush.bf16.msra.mxu0 %v2558
  %7847 = vmatpush.bf16.msra.mxu0 %v2550
  %7848 = vmatpush.bf16.msra.mxu0 %v2542
  %7849 = vmatpush.bf16.msra.mxu0 %v2534
  %7850 = vmatpush.bf16.msra.mxu0 %v2526
  %7851 = vmatpush.bf16.msra.mxu0 %v2518
  %7852 = vmatmul.bf16.gmra.mxu0 %v7700
  %v7853 = vpop.f32.mrf.mxu0
  %v7854 = vadd.f32 %v7841, %v7853
  %v7855 = vpop.f32.mrf.mxu0
  %7856 = vdwg.mxu0
  %7857 = vmatpush.bf16.msra.mxu0 %v2511
  %7858 = vmatpush.bf16.msra.mxu0 %v2503
  %7859 = vmatpush.bf16.msra.mxu0 %v2495
  %7860 = vmatpush.bf16.msra.mxu0 %v2487
  %7861 = vmatpush.bf16.msra.mxu0 %v2479
  %7862 = vmatpush.bf16.msra.mxu0 %v2471
  %7863 = vmatpush.bf16.msra.mxu0 %v2463
  %7864 = vmatpush.bf16.msra.mxu0 %v2455
  %7865 = vmatmul.bf16.gmra.mxu0 %v7699
  %v7866 = vpop.f32.mrf.mxu0
  %v7867 = vadd.f32 0.0, %v7866
  %v7868 = vpop.f32.mrf.mxu0
  %7869 = vdwg.mxu0
  %7870 = vmatpush.bf16.msra.mxu0 %v2575
  %7871 = vmatpush.bf16.msra.mxu0 %v2567
  %7872 = vmatpush.bf16.msra.mxu0 %v2559
  %7873 = vmatpush.bf16.msra.mxu0 %v2551
  %7874 = vmatpush.bf16.msra.mxu0 %v2543
  %7875 = vmatpush.bf16.msra.mxu0 %v2535
  %7876 = vmatpush.bf16.msra.mxu0 %v2527
  %7877 = vmatpush.bf16.msra.mxu0 %v2519
  %7878 = vmatmul.bf16.gmra.mxu0 %v7700
  %v7879 = vpop.f32.mrf.mxu0
  %v7880 = vadd.f32 %v7867, %v7879
  %v7881 = vpop.f32.mrf.mxu0
  %7882 = vdwg.mxu0
  %7883 = vmatpush.bf16.msra.mxu0 %v2512
  %7884 = vmatpush.bf16.msra.mxu0 %v2504
  %7885 = vmatpush.bf16.msra.mxu0 %v2496
  %7886 = vmatpush.bf16.msra.mxu0 %v2488
  %7887 = vmatpush.bf16.msra.mxu0 %v2480
  %7888 = vmatpush.bf16.msra.mxu0 %v2472
  %7889 = vmatpush.bf16.msra.mxu0 %v2464
  %7890 = vmatpush.bf16.msra.mxu0 %v2456
  %7891 = vmatmul.bf16.gmra.mxu0 %v7699
  %v7892 = vpop.f32.mrf.mxu0
  %v7893 = vadd.f32 0.0, %v7892
  %v7894 = vpop.f32.mrf.mxu0
  %7895 = vdwg.mxu0
  %7896 = vmatpush.bf16.msra.mxu0 %v2576
  %7897 = vmatpush.bf16.msra.mxu0 %v2568
  %7898 = vmatpush.bf16.msra.mxu0 %v2560
  %7899 = vmatpush.bf16.msra.mxu0 %v2552
  %7900 = vmatpush.bf16.msra.mxu0 %v2544
  %7901 = vmatpush.bf16.msra.mxu0 %v2536
  %7902 = vmatpush.bf16.msra.mxu0 %v2528
  %7903 = vmatpush.bf16.msra.mxu0 %v2520
  %7904 = vmatmul.bf16.gmra.mxu0 %v7700
  %v7905 = vpop.f32.mrf.mxu0
  %v7906 = vadd.f32 %v7893, %v7905
  %v7907 = vpop.f32.mrf.mxu0
  %7908 = vdwg.mxu0
  %7909 = vmatpush.bf16.msra.mxu0 %v3353
  %7910 = vmatpush.bf16.msra.mxu0 %v3345
  %7911 = vmatpush.bf16.msra.mxu0 %v3337
  %7912 = vmatpush.bf16.msra.mxu0 %v3329
  %7913 = vmatpush.bf16.msra.mxu0 %v3321
  %7914 = vmatpush.bf16.msra.mxu0 %v3313
  %7915 = vmatpush.bf16.msra.mxu0 %v3305
  %7916 = vmatpush.bf16.msra.mxu0 %v3297
  %7917 = vmatmul.bf16.gmra.mxu0 %v7437
  %v7918 = vpop.f32.mrf.mxu0
  %v7919 = vadd.f32 %v7724, %v7918
  %v7920 = vpop.f32.mrf.mxu0
  %7921 = vdwg.mxu0
  %7922 = vmatpush.bf16.msra.mxu0 %v3417
  %7923 = vmatpush.bf16.msra.mxu0 %v3409
  %7924 = vmatpush.bf16.msra.mxu0 %v3401
  %7925 = vmatpush.bf16.msra.mxu0 %v3393
  %7926 = vmatpush.bf16.msra.mxu0 %v3385
  %7927 = vmatpush.bf16.msra.mxu0 %v3377
  %7928 = vmatpush.bf16.msra.mxu0 %v3369
  %7929 = vmatpush.bf16.msra.mxu0 %v3361
  %7930 = vmatmul.bf16.gmra.mxu0 %v7438
  %v7931 = vpop.f32.mrf.mxu0
  %v7932 = vadd.f32 %v7919, %v7931
  %v7933 = vpop.f32.mrf.mxu0
  %7934 = vdwg.mxu0
  %7935 = vmatpush.bf16.msra.mxu0 %v3354
  %7936 = vmatpush.bf16.msra.mxu0 %v3346
  %7937 = vmatpush.bf16.msra.mxu0 %v3338
  %7938 = vmatpush.bf16.msra.mxu0 %v3330
  %7939 = vmatpush.bf16.msra.mxu0 %v3322
  %7940 = vmatpush.bf16.msra.mxu0 %v3314
  %7941 = vmatpush.bf16.msra.mxu0 %v3306
  %7942 = vmatpush.bf16.msra.mxu0 %v3298
  %7943 = vmatmul.bf16.gmra.mxu0 %v7437
  %v7944 = vpop.f32.mrf.mxu0
  %v7945 = vadd.f32 %v7750, %v7944
  %v7946 = vpop.f32.mrf.mxu0
  %7947 = vdwg.mxu0
  %7948 = vmatpush.bf16.msra.mxu0 %v3418
  %7949 = vmatpush.bf16.msra.mxu0 %v3410
  %7950 = vmatpush.bf16.msra.mxu0 %v3402
  %7951 = vmatpush.bf16.msra.mxu0 %v3394
  %7952 = vmatpush.bf16.msra.mxu0 %v3386
  %7953 = vmatpush.bf16.msra.mxu0 %v3378
  %7954 = vmatpush.bf16.msra.mxu0 %v3370
  %7955 = vmatpush.bf16.msra.mxu0 %v3362
  %7956 = vmatmul.bf16.gmra.mxu0 %v7438
  %v7957 = vpop.f32.mrf.mxu0
  %v7958 = vadd.f32 %v7945, %v7957
  %v7959 = vpop.f32.mrf.mxu0
  %7960 = vdwg.mxu0
  %7961 = vmatpush.bf16.msra.mxu0 %v3355
  %7962 = vmatpush.bf16.msra.mxu0 %v3347
  %7963 = vmatpush.bf16.msra.mxu0 %v3339
  %7964 = vmatpush.bf16.msra.mxu0 %v3331
  %7965 = vmatpush.bf16.msra.mxu0 %v3323
  %7966 = vmatpush.bf16.msra.mxu0 %v3315
  %7967 = vmatpush.bf16.msra.mxu0 %v3307
  %7968 = vmatpush.bf16.msra.mxu0 %v3299
  %7969 = vmatmul.bf16.gmra.mxu0 %v7437
  %v7970 = vpop.f32.mrf.mxu0
  %v7971 = vadd.f32 %v7776, %v7970
  %v7972 = vpop.f32.mrf.mxu0
  %7973 = vdwg.mxu0
  %7974 = vmatpush.bf16.msra.mxu0 %v3419
  %7975 = vmatpush.bf16.msra.mxu0 %v3411
  %7976 = vmatpush.bf16.msra.mxu0 %v3403
  %7977 = vmatpush.bf16.msra.mxu0 %v3395
  %7978 = vmatpush.bf16.msra.mxu0 %v3387
  %7979 = vmatpush.bf16.msra.mxu0 %v3379
  %7980 = vmatpush.bf16.msra.mxu0 %v3371
  %7981 = vmatpush.bf16.msra.mxu0 %v3363
  %7982 = vmatmul.bf16.gmra.mxu0 %v7438
  %v7983 = vpop.f32.mrf.mxu0
  %v7984 = vadd.f32 %v7971, %v7983
  %v7985 = vpop.f32.mrf.mxu0
  %7986 = vdwg.mxu0
  %7987 = vmatpush.bf16.msra.mxu0 %v3356
  %7988 = vmatpush.bf16.msra.mxu0 %v3348
  %7989 = vmatpush.bf16.msra.mxu0 %v3340
  %7990 = vmatpush.bf16.msra.mxu0 %v3332
  %7991 = vmatpush.bf16.msra.mxu0 %v3324
  %7992 = vmatpush.bf16.msra.mxu0 %v3316
  %7993 = vmatpush.bf16.msra.mxu0 %v3308
  %7994 = vmatpush.bf16.msra.mxu0 %v3300
  %7995 = vmatmul.bf16.gmra.mxu0 %v7437
  %v7996 = vpop.f32.mrf.mxu0
  %v7997 = vadd.f32 %v7802, %v7996
  %v7998 = vpop.f32.mrf.mxu0
  %7999 = vdwg.mxu0
  %8000 = vmatpush.bf16.msra.mxu0 %v3420
  %8001 = vmatpush.bf16.msra.mxu0 %v3412
  %8002 = vmatpush.bf16.msra.mxu0 %v3404
  %8003 = vmatpush.bf16.msra.mxu0 %v3396
  %8004 = vmatpush.bf16.msra.mxu0 %v3388
  %8005 = vmatpush.bf16.msra.mxu0 %v3380
  %8006 = vmatpush.bf16.msra.mxu0 %v3372
  %8007 = vmatpush.bf16.msra.mxu0 %v3364
  %8008 = vmatmul.bf16.gmra.mxu0 %v7438
  %v8009 = vpop.f32.mrf.mxu0
  %v8010 = vadd.f32 %v7997, %v8009
  %v8011 = vpop.f32.mrf.mxu0
  %8012 = vdwg.mxu0
  %8013 = vmatpush.bf16.msra.mxu0 %v3357
  %8014 = vmatpush.bf16.msra.mxu0 %v3349
  %8015 = vmatpush.bf16.msra.mxu0 %v3341
  %8016 = vmatpush.bf16.msra.mxu0 %v3333
  %8017 = vmatpush.bf16.msra.mxu0 %v3325
  %8018 = vmatpush.bf16.msra.mxu0 %v3317
  %8019 = vmatpush.bf16.msra.mxu0 %v3309
  %8020 = vmatpush.bf16.msra.mxu0 %v3301
  %8021 = vmatmul.bf16.gmra.mxu0 %v7437
  %v8022 = vpop.f32.mrf.mxu0
  %v8023 = vadd.f32 %v7828, %v8022
  %v8024 = vpop.f32.mrf.mxu0
  %8025 = vdwg.mxu0
  %8026 = vmatpush.bf16.msra.mxu0 %v3421
  %8027 = vmatpush.bf16.msra.mxu0 %v3413
  %8028 = vmatpush.bf16.msra.mxu0 %v3405
  %8029 = vmatpush.bf16.msra.mxu0 %v3397
  %8030 = vmatpush.bf16.msra.mxu0 %v3389
  %8031 = vmatpush.bf16.msra.mxu0 %v3381
  %8032 = vmatpush.bf16.msra.mxu0 %v3373
  %8033 = vmatpush.bf16.msra.mxu0 %v3365
  %8034 = vmatmul.bf16.gmra.mxu0 %v7438
  %v8035 = vpop.f32.mrf.mxu0
  %v8036 = vadd.f32 %v8023, %v8035
  %v8037 = vpop.f32.mrf.mxu0
  %8038 = vdwg.mxu0
  %8039 = vmatpush.bf16.msra.mxu0 %v3358
  %8040 = vmatpush.bf16.msra.mxu0 %v3350
  %8041 = vmatpush.bf16.msra.mxu0 %v3342
  %8042 = vmatpush.bf16.msra.mxu0 %v3334
  %8043 = vmatpush.bf16.msra.mxu0 %v3326
  %8044 = vmatpush.bf16.msra.mxu0 %v3318
  %8045 = vmatpush.bf16.msra.mxu0 %v3310
  %8046 = vmatpush.bf16.msra.mxu0 %v3302
  %8047 = vmatmul.bf16.gmra.mxu0 %v7437
  %v8048 = vpop.f32.mrf.mxu0
  %v8049 = vadd.f32 %v7854, %v8048
  %v8050 = vpop.f32.mrf.mxu0
  %8051 = vdwg.mxu0
  %8052 = vmatpush.bf16.msra.mxu0 %v3422
  %8053 = vmatpush.bf16.msra.mxu0 %v3414
  %8054 = vmatpush.bf16.msra.mxu0 %v3406
  %8055 = vmatpush.bf16.msra.mxu0 %v3398
  %8056 = vmatpush.bf16.msra.mxu0 %v3390
  %8057 = vmatpush.bf16.msra.mxu0 %v3382
  %8058 = vmatpush.bf16.msra.mxu0 %v3374
  %8059 = vmatpush.bf16.msra.mxu0 %v3366
  %8060 = vmatmul.bf16.gmra.mxu0 %v7438
  %v8061 = vpop.f32.mrf.mxu0
  %v8062 = vadd.f32 %v8049, %v8061
  %v8063 = vpop.f32.mrf.mxu0
  %8064 = vdwg.mxu0
  %8065 = vmatpush.bf16.msra.mxu0 %v3359
  %8066 = vmatpush.bf16.msra.mxu0 %v3351
  %8067 = vmatpush.bf16.msra.mxu0 %v3343
  %8068 = vmatpush.bf16.msra.mxu0 %v3335
  %8069 = vmatpush.bf16.msra.mxu0 %v3327
  %8070 = vmatpush.bf16.msra.mxu0 %v3319
  %8071 = vmatpush.bf16.msra.mxu0 %v3311
  %8072 = vmatpush.bf16.msra.mxu0 %v3303
  %8073 = vmatmul.bf16.gmra.mxu0 %v7437
  %v8074 = vpop.f32.mrf.mxu0
  %v8075 = vadd.f32 %v7880, %v8074
  %v8076 = vpop.f32.mrf.mxu0
  %8077 = vdwg.mxu0
  %8078 = vmatpush.bf16.msra.mxu0 %v3423
  %8079 = vmatpush.bf16.msra.mxu0 %v3415
  %8080 = vmatpush.bf16.msra.mxu0 %v3407
  %8081 = vmatpush.bf16.msra.mxu0 %v3399
  %8082 = vmatpush.bf16.msra.mxu0 %v3391
  %8083 = vmatpush.bf16.msra.mxu0 %v3383
  %8084 = vmatpush.bf16.msra.mxu0 %v3375
  %8085 = vmatpush.bf16.msra.mxu0 %v3367
  %8086 = vmatmul.bf16.gmra.mxu0 %v7438
  %v8087 = vpop.f32.mrf.mxu0
  %v8088 = vadd.f32 %v8075, %v8087
  %v8089 = vpop.f32.mrf.mxu0
  %8090 = vdwg.mxu0
  %8091 = vmatpush.bf16.msra.mxu0 %v3360
  %8092 = vmatpush.bf16.msra.mxu0 %v3352
  %8093 = vmatpush.bf16.msra.mxu0 %v3344
  %8094 = vmatpush.bf16.msra.mxu0 %v3336
  %8095 = vmatpush.bf16.msra.mxu0 %v3328
  %8096 = vmatpush.bf16.msra.mxu0 %v3320
  %8097 = vmatpush.bf16.msra.mxu0 %v3312
  %8098 = vmatpush.bf16.msra.mxu0 %v3304
  %8099 = vmatmul.bf16.gmra.mxu0 %v7437
  %v8100 = vpop.f32.mrf.mxu0
  %v8101 = vadd.f32 %v7906, %v8100
  %v8102 = vpop.f32.mrf.mxu0
  %8103 = vdwg.mxu0
  %8104 = vmatpush.bf16.msra.mxu0 %v3424
  %8105 = vmatpush.bf16.msra.mxu0 %v3416
  %8106 = vmatpush.bf16.msra.mxu0 %v3408
  %8107 = vmatpush.bf16.msra.mxu0 %v3400
  %8108 = vmatpush.bf16.msra.mxu0 %v3392
  %8109 = vmatpush.bf16.msra.mxu0 %v3384
  %8110 = vmatpush.bf16.msra.mxu0 %v3376
  %8111 = vmatpush.bf16.msra.mxu0 %v3368
  %8112 = vmatmul.bf16.gmra.mxu0 %v7438
  %v8113 = vpop.f32.mrf.mxu0
  %v8114 = vadd.f32 %v8101, %v8113
  %v8115 = vpop.f32.mrf.mxu0
  %8116 = vdwg.mxu0
  %v8117 = vadd.f32 %v7932, %v1147
  %v8118 = vadd.f32 %v7958, %v1148
  %v8119 = vadd.f32 %v7984, %v1149
  %v8120 = vadd.f32 %v8010, %v1150
  %v8121 = vadd.f32 %v8036, %v1151
  %v8122 = vadd.f32 %v8062, %v1152
  %v8123 = vadd.f32 %v8088, %v1153
  %v8124 = vadd.f32 %v8114, %v1154
  %v8125 = vmul.f32 %v8117, 0.5
  %v8126 = vmul.f32 %v8118, 0.5
  %v8127 = vmul.f32 %v8119, 0.5
  %v8128 = vmul.f32 %v8120, 0.5
  %v8129 = vmul.f32 %v8121, 0.5
  %v8130 = vmul.f32 %v8122, 0.5
  %v8131 = vtanh.pop %v8125
  %v8132 = vtanh.pop %v8126
  %v8133 = vtanh.pop %v8127
  %v8134 = vtanh.pop %v8128
  %v8135 = vtanh.pop %v8129
  %v8136 = vtanh.pop %v8130
  %v8137 = vmul.f32 %v8131, 0.5
  %v8138 = vmul.f32 %v8132, 0.5
  %v8139 = vmul.f32 %v8133, 0.5
  %v8140 = vmul.f32 %v8134, 0.5
  %v8141 = vmul.f32 %v8135, 0.5
  %v8142 = vmul.f32 %v8136, 0.5
  %v8143 = vadd.f32 %v8137, 0.5
  %v8144 = vadd.f32 %v8138, 0.5
  %v8145 = vadd.f32 %v8139, 0.5
  %v8146 = vadd.f32 %v8140, 0.5
  %v8147 = vadd.f32 %v8141, 0.5
  %v8148 = vadd.f32 %v8142, 0.5
  %v8149 = vtanh.pop %v8123
  %v8150 = vtanh.pop %v8124
  %v8151 = vmul.f32 %v8145, %v7429
  %v8152 = vmul.f32 %v8146, %v7430
  %v8153 = vmul.f32 %v8143, %v8149
  %v8154 = vmul.f32 %v8144, %v8150
  %v8155 = vadd.f32 %v8151, %v8153
  %v8156 = vadd.f32 %v8152, %v8154
  %v8157 = vtanh.pop %v8155
  %v8158 = vtanh.pop %v8156
  %v8159 = vmul.f32 %v8147, %v8157
  %v8160 = vmul.f32 %v8148, %v8158
  %8161 = vst [vmem:[#allocation3 + $0x60] sm:$0xff] %v8159
  %8162 = vst [vmem:[#allocation3 + $0x68] sm:$0xff] %v8160
  %v8163 = vpack.c.bf16 %v8159, %v8159
  %v8164 = vpack.c.bf16 %v8160, %v8160
  %v8165 = vld [vmem:[#allocation2 + $0x1c0] sm:$0xff]
  %v8166 = vld [vmem:[#allocation2 + $0x1c8] sm:$0xff]
  %v8167 = vld [vmem:[#allocation2 + $0x1d0] sm:$0xff]
  %v8168 = vld [vmem:[#allocation2 + $0x1d8] sm:$0xff]
  %v8169 = vld [vmem:[#allocation2 + $0x1e0] sm:$0xff]
  %v8170 = vld [vmem:[#allocation2 + $0x1e8] sm:$0xff]
  %v8171 = vld [vmem:[#allocation2 + $0x1f0] sm:$0xff]
  %v8172 = vld [vmem:[#allocation2 + $0x1f8] sm:$0xff]
  %8173 = vmatpush.bf16.msra.mxu0 %v1611
  %8174 = vmatpush.bf16.msra.mxu0 %v1603
  %8175 = vmatpush.bf16.msra.mxu0 %v1595
  %8176 = vmatpush.bf16.msra.mxu0 %v1587
  %8177 = vmatpush.bf16.msra.mxu0 %v1579
  %8178 = vmatpush.bf16.msra.mxu0 %v1571
  %8179 = vmatpush.bf16.msra.mxu0 %v1563
  %8180 = vmatpush.bf16.msra.mxu0 %v1555
  %8181 = vmatmul.bf16.gmra.mxu0 %v7699
  %v8182 = vpop.f32.mrf.mxu0
  %v8183 = vadd.f32 0.0, %v8182
  %v8184 = vpop.f32.mrf.mxu0
  %8185 = vdwg.mxu0
  %8186 = vmatpush.bf16.msra.mxu0 %v1675
  %8187 = vmatpush.bf16.msra.mxu0 %v1667
  %8188 = vmatpush.bf16.msra.mxu0 %v1659
  %8189 = vmatpush.bf16.msra.mxu0 %v1651
  %8190 = vmatpush.bf16.msra.mxu0 %v1643
  %8191 = vmatpush.bf16.msra.mxu0 %v1635
  %8192 = vmatpush.bf16.msra.mxu0 %v1627
  %8193 = vmatpush.bf16.msra.mxu0 %v1619
  %8194 = vmatmul.bf16.gmra.mxu0 %v7700
  %v8195 = vpop.f32.mrf.mxu0
  %v8196 = vadd.f32 %v8183, %v8195
  %v8197 = vpop.f32.mrf.mxu0
  %8198 = vdwg.mxu0
  %8199 = vmatpush.bf16.msra.mxu0 %v1612
  %8200 = vmatpush.bf16.msra.mxu0 %v1604
  %8201 = vmatpush.bf16.msra.mxu0 %v1596
  %8202 = vmatpush.bf16.msra.mxu0 %v1588
  %8203 = vmatpush.bf16.msra.mxu0 %v1580
  %8204 = vmatpush.bf16.msra.mxu0 %v1572
  %8205 = vmatpush.bf16.msra.mxu0 %v1564
  %8206 = vmatpush.bf16.msra.mxu0 %v1556
  %8207 = vmatmul.bf16.gmra.mxu0 %v7699
  %v8208 = vpop.f32.mrf.mxu0
  %v8209 = vadd.f32 0.0, %v8208
  %v8210 = vpop.f32.mrf.mxu0
  %8211 = vdwg.mxu0
  %8212 = vmatpush.bf16.msra.mxu0 %v1676
  %8213 = vmatpush.bf16.msra.mxu0 %v1668
  %8214 = vmatpush.bf16.msra.mxu0 %v1660
  %8215 = vmatpush.bf16.msra.mxu0 %v1652
  %8216 = vmatpush.bf16.msra.mxu0 %v1644
  %8217 = vmatpush.bf16.msra.mxu0 %v1636
  %8218 = vmatpush.bf16.msra.mxu0 %v1628
  %8219 = vmatpush.bf16.msra.mxu0 %v1620
  %8220 = vmatmul.bf16.gmra.mxu0 %v7700
  %v8221 = vpop.f32.mrf.mxu0
  %v8222 = vadd.f32 %v8209, %v8221
  %v8223 = vpop.f32.mrf.mxu0
  %8224 = vdwg.mxu0
  %8225 = vmatpush.bf16.msra.mxu0 %v1613
  %8226 = vmatpush.bf16.msra.mxu0 %v1605
  %8227 = vmatpush.bf16.msra.mxu0 %v1597
  %8228 = vmatpush.bf16.msra.mxu0 %v1589
  %8229 = vmatpush.bf16.msra.mxu0 %v1581
  %8230 = vmatpush.bf16.msra.mxu0 %v1573
  %8231 = vmatpush.bf16.msra.mxu0 %v1565
  %8232 = vmatpush.bf16.msra.mxu0 %v1557
  %8233 = vmatmul.bf16.gmra.mxu0 %v7699
  %v8234 = vpop.f32.mrf.mxu0
  %v8235 = vadd.f32 0.0, %v8234
  %v8236 = vpop.f32.mrf.mxu0
  %8237 = vdwg.mxu0
  %8238 = vmatpush.bf16.msra.mxu0 %v1677
  %8239 = vmatpush.bf16.msra.mxu0 %v1669
  %8240 = vmatpush.bf16.msra.mxu0 %v1661
  %8241 = vmatpush.bf16.msra.mxu0 %v1653
  %8242 = vmatpush.bf16.msra.mxu0 %v1645
  %8243 = vmatpush.bf16.msra.mxu0 %v1637
  %8244 = vmatpush.bf16.msra.mxu0 %v1629
  %8245 = vmatpush.bf16.msra.mxu0 %v1621
  %8246 = vmatmul.bf16.gmra.mxu0 %v7700
  %v8247 = vpop.f32.mrf.mxu0
  %v8248 = vadd.f32 %v8235, %v8247
  %v8249 = vpop.f32.mrf.mxu0
  %8250 = vdwg.mxu0
  %8251 = vmatpush.bf16.msra.mxu0 %v1614
  %8252 = vmatpush.bf16.msra.mxu0 %v1606
  %8253 = vmatpush.bf16.msra.mxu0 %v1598
  %8254 = vmatpush.bf16.msra.mxu0 %v1590
  %8255 = vmatpush.bf16.msra.mxu0 %v1582
  %8256 = vmatpush.bf16.msra.mxu0 %v1574
  %8257 = vmatpush.bf16.msra.mxu0 %v1566
  %8258 = vmatpush.bf16.msra.mxu0 %v1558
  %8259 = vmatmul.bf16.gmra.mxu0 %v7699
  %v8260 = vpop.f32.mrf.mxu0
  %v8261 = vadd.f32 0.0, %v8260
  %v8262 = vpop.f32.mrf.mxu0
  %8263 = vdwg.mxu0
  %8264 = vmatpush.bf16.msra.mxu0 %v1678
  %8265 = vmatpush.bf16.msra.mxu0 %v1670
  %8266 = vmatpush.bf16.msra.mxu0 %v1662
  %8267 = vmatpush.bf16.msra.mxu0 %v1654
  %8268 = vmatpush.bf16.msra.mxu0 %v1646
  %8269 = vmatpush.bf16.msra.mxu0 %v1638
  %8270 = vmatpush.bf16.msra.mxu0 %v1630
  %8271 = vmatpush.bf16.msra.mxu0 %v1622
  %8272 = vmatmul.bf16.gmra.mxu0 %v7700
  %v8273 = vpop.f32.mrf.mxu0
  %v8274 = vadd.f32 %v8261, %v8273
  %v8275 = vpop.f32.mrf.mxu0
  %8276 = vdwg.mxu0
  %8277 = vmatpush.bf16.msra.mxu0 %v1615
  %8278 = vmatpush.bf16.msra.mxu0 %v1607
  %8279 = vmatpush.bf16.msra.mxu0 %v1599
  %8280 = vmatpush.bf16.msra.mxu0 %v1591
  %8281 = vmatpush.bf16.msra.mxu0 %v1583
  %8282 = vmatpush.bf16.msra.mxu0 %v1575
  %8283 = vmatpush.bf16.msra.mxu0 %v1567
  %8284 = vmatpush.bf16.msra.mxu0 %v1559
  %8285 = vmatmul.bf16.gmra.mxu0 %v7699
  %v8286 = vpop.f32.mrf.mxu0
  %v8287 = vadd.f32 0.0, %v8286
  %v8288 = vpop.f32.mrf.mxu0
  %8289 = vdwg.mxu0
  %8290 = vmatpush.bf16.msra.mxu0 %v1679
  %8291 = vmatpush.bf16.msra.mxu0 %v1671
  %8292 = vmatpush.bf16.msra.mxu0 %v1663
  %8293 = vmatpush.bf16.msra.mxu0 %v1655
  %8294 = vmatpush.bf16.msra.mxu0 %v1647
  %8295 = vmatpush.bf16.msra.mxu0 %v1639
  %8296 = vmatpush.bf16.msra.mxu0 %v1631
  %8297 = vmatpush.bf16.msra.mxu0 %v1623
  %8298 = vmatmul.bf16.gmra.mxu0 %v7700
  %v8299 = vpop.f32.mrf.mxu0
  %v8300 = vadd.f32 %v8287, %v8299
  %v8301 = vpop.f32.mrf.mxu0
  %8302 = vdwg.mxu0
  %8303 = vmatpush.bf16.msra.mxu0 %v1616
  %8304 = vmatpush.bf16.msra.mxu0 %v1608
  %8305 = vmatpush.bf16.msra.mxu0 %v1600
  %8306 = vmatpush.bf16.msra.mxu0 %v1592
  %8307 = vmatpush.bf16.msra.mxu0 %v1584
  %8308 = vmatpush.bf16.msra.mxu0 %v1576
  %8309 = vmatpush.bf16.msra.mxu0 %v1568
  %8310 = vmatpush.bf16.msra.mxu0 %v1560
  %8311 = vmatmul.bf16.gmra.mxu0 %v7699
  %v8312 = vpop.f32.mrf.mxu0
  %v8313 = vadd.f32 0.0, %v8312
  %v8314 = vpop.f32.mrf.mxu0
  %8315 = vdwg.mxu0
  %8316 = vmatpush.bf16.msra.mxu0 %v1680
  %8317 = vmatpush.bf16.msra.mxu0 %v1672
  %8318 = vmatpush.bf16.msra.mxu0 %v1664
  %8319 = vmatpush.bf16.msra.mxu0 %v1656
  %8320 = vmatpush.bf16.msra.mxu0 %v1648
  %8321 = vmatpush.bf16.msra.mxu0 %v1640
  %8322 = vmatpush.bf16.msra.mxu0 %v1632
  %8323 = vmatpush.bf16.msra.mxu0 %v1624
  %8324 = vmatmul.bf16.gmra.mxu0 %v7700
  %v8325 = vpop.f32.mrf.mxu0
  %v8326 = vadd.f32 %v8313, %v8325
  %v8327 = vpop.f32.mrf.mxu0
  %8328 = vdwg.mxu0
  %8329 = vmatpush.bf16.msra.mxu0 %v1617
  %8330 = vmatpush.bf16.msra.mxu0 %v1609
  %8331 = vmatpush.bf16.msra.mxu0 %v1601
  %8332 = vmatpush.bf16.msra.mxu0 %v1593
  %8333 = vmatpush.bf16.msra.mxu0 %v1585
  %8334 = vmatpush.bf16.msra.mxu0 %v1577
  %8335 = vmatpush.bf16.msra.mxu0 %v1569
  %8336 = vmatpush.bf16.msra.mxu0 %v1561
  %8337 = vmatmul.bf16.gmra.mxu0 %v7699
  %v8338 = vpop.f32.mrf.mxu0
  %v8339 = vadd.f32 0.0, %v8338
  %v8340 = vpop.f32.mrf.mxu0
  %8341 = vdwg.mxu0
  %8342 = vmatpush.bf16.msra.mxu0 %v1681
  %8343 = vmatpush.bf16.msra.mxu0 %v1673
  %8344 = vmatpush.bf16.msra.mxu0 %v1665
  %8345 = vmatpush.bf16.msra.mxu0 %v1657
  %8346 = vmatpush.bf16.msra.mxu0 %v1649
  %8347 = vmatpush.bf16.msra.mxu0 %v1641
  %8348 = vmatpush.bf16.msra.mxu0 %v1633
  %8349 = vmatpush.bf16.msra.mxu0 %v1625
  %8350 = vmatmul.bf16.gmra.mxu0 %v7700
  %v8351 = vpop.f32.mrf.mxu0
  %v8352 = vadd.f32 %v8339, %v8351
  %v8353 = vpop.f32.mrf.mxu0
  %8354 = vdwg.mxu0
  %8355 = vmatpush.bf16.msra.mxu0 %v1618
  %8356 = vmatpush.bf16.msra.mxu0 %v1610
  %8357 = vmatpush.bf16.msra.mxu0 %v1602
  %8358 = vmatpush.bf16.msra.mxu0 %v1594
  %8359 = vmatpush.bf16.msra.mxu0 %v1586
  %8360 = vmatpush.bf16.msra.mxu0 %v1578
  %8361 = vmatpush.bf16.msra.mxu0 %v1570
  %8362 = vmatpush.bf16.msra.mxu0 %v1562
  %8363 = vmatmul.bf16.gmra.mxu0 %v7699
  %v8364 = vpop.f32.mrf.mxu0
  %v8365 = vadd.f32 0.0, %v8364
  %v8366 = vpop.f32.mrf.mxu0
  %8367 = vdwg.mxu0
  %8368 = vmatpush.bf16.msra.mxu0 %v1682
  %8369 = vmatpush.bf16.msra.mxu0 %v1674
  %8370 = vmatpush.bf16.msra.mxu0 %v1666
  %8371 = vmatpush.bf16.msra.mxu0 %v1658
  %8372 = vmatpush.bf16.msra.mxu0 %v1650
  %8373 = vmatpush.bf16.msra.mxu0 %v1642
  %8374 = vmatpush.bf16.msra.mxu0 %v1634
  %8375 = vmatpush.bf16.msra.mxu0 %v1626
  %8376 = vmatmul.bf16.gmra.mxu0 %v7700
  %v8377 = vpop.f32.mrf.mxu0
  %v8378 = vadd.f32 %v8365, %v8377
  %v8379 = vpop.f32.mrf.mxu0
  %8380 = vdwg.mxu0
  %v8381 = vadd.f32 %v8165, %v8196
  %v8382 = vadd.f32 %v8166, %v8222
  %v8383 = vadd.f32 %v8167, %v8248
  %v8384 = vadd.f32 %v8168, %v8274
  %v8385 = vadd.f32 %v8169, %v8300
  %v8386 = vadd.f32 %v8170, %v8326
  %v8387 = vadd.f32 %v8171, %v8352
  %v8388 = vadd.f32 %v8172, %v8378
  %v8389 = vmul.f32 %v8381, 0.5
  %v8390 = vmul.f32 %v8382, 0.5
  %v8391 = vmul.f32 %v8383, 0.5
  %v8392 = vmul.f32 %v8384, 0.5
  %v8393 = vmul.f32 %v8385, 0.5
  %v8394 = vmul.f32 %v8386, 0.5
  %v8395 = vtanh.pop %v8389
  %v8396 = vtanh.pop %v8390
  %v8397 = vtanh.pop %v8391
  %v8398 = vtanh.pop %v8392
  %v8399 = vtanh.pop %v8393
  %v8400 = vtanh.pop %v8394
  %v8401 = vmul.f32 %v8395, 0.5
  %v8402 = vmul.f32 %v8396, 0.5
  %v8403 = vmul.f32 %v8397, 0.5
  %v8404 = vmul.f32 %v8398, 0.5
  %v8405 = vmul.f32 %v8399, 0.5
  %v8406 = vmul.f32 %v8400, 0.5
  %v8407 = vadd.f32 %v8401, 0.5
  %v8408 = vadd.f32 %v8402, 0.5
  %v8409 = vadd.f32 %v8403, 0.5
  %v8410 = vadd.f32 %v8404, 0.5
  %v8411 = vadd.f32 %v8405, 0.5
  %v8412 = vadd.f32 %v8406, 0.5
  %v8413 = vtanh.pop %v8387
  %v8414 = vtanh.pop %v8388
  %v8415 = vmul.f32 %v8409, %v7693
  %v8416 = vmul.f32 %v8410, %v7694
  %v8417 = vmul.f32 %v8407, %v8413
  %v8418 = vmul.f32 %v8408, %v8414
  %v8419 = vadd.f32 %v8415, %v8417
  %v8420 = vadd.f32 %v8416, %v8418
  %v8421 = vtanh.pop %v8419
  %v8422 = vtanh.pop %v8420
  %v8423 = vmul.f32 %v8411, %v8421
  %v8424 = vmul.f32 %v8412, %v8422
  %v8425 = vpack.c.bf16 %v8423, %v8423
  %v8426 = vpack.c.bf16 %v8424, %v8424
  %8427 = vmatpush.bf16.msra.mxu0 %v2505
  %8428 = vmatpush.bf16.msra.mxu0 %v2497
  %8429 = vmatpush.bf16.msra.mxu0 %v2489
  %8430 = vmatpush.bf16.msra.mxu0 %v2481
  %8431 = vmatpush.bf16.msra.mxu0 %v2473
  %8432 = vmatpush.bf16.msra.mxu0 %v2465
  %8433 = vmatpush.bf16.msra.mxu0 %v2457
  %8434 = vmatpush.bf16.msra.mxu0 %v2449
  %8435 = vmatmul.bf16.gmra.mxu0 %v8425
  %v8436 = vpop.f32.mrf.mxu0
  %v8437 = vadd.f32 0.0, %v8436
  %v8438 = vpop.f32.mrf.mxu0
  %8439 = vdwg.mxu0
  %8440 = vmatpush.bf16.msra.mxu0 %v2569
  %8441 = vmatpush.bf16.msra.mxu0 %v2561
  %8442 = vmatpush.bf16.msra.mxu0 %v2553
  %8443 = vmatpush.bf16.msra.mxu0 %v2545
  %8444 = vmatpush.bf16.msra.mxu0 %v2537
  %8445 = vmatpush.bf16.msra.mxu0 %v2529
  %8446 = vmatpush.bf16.msra.mxu0 %v2521
  %8447 = vmatpush.bf16.msra.mxu0 %v2513
  %8448 = vmatmul.bf16.gmra.mxu0 %v8426
  %v8449 = vpop.f32.mrf.mxu0
  %v8450 = vadd.f32 %v8437, %v8449
  %v8451 = vpop.f32.mrf.mxu0
  %8452 = vdwg.mxu0
  %8453 = vmatpush.bf16.msra.mxu0 %v2506
  %8454 = vmatpush.bf16.msra.mxu0 %v2498
  %8455 = vmatpush.bf16.msra.mxu0 %v2490
  %8456 = vmatpush.bf16.msra.mxu0 %v2482
  %8457 = vmatpush.bf16.msra.mxu0 %v2474
  %8458 = vmatpush.bf16.msra.mxu0 %v2466
  %8459 = vmatpush.bf16.msra.mxu0 %v2458
  %8460 = vmatpush.bf16.msra.mxu0 %v2450
  %8461 = vmatmul.bf16.gmra.mxu0 %v8425
  %v8462 = vpop.f32.mrf.mxu0
  %v8463 = vadd.f32 0.0, %v8462
  %v8464 = vpop.f32.mrf.mxu0
  %8465 = vdwg.mxu0
  %8466 = vmatpush.bf16.msra.mxu0 %v2570
  %8467 = vmatpush.bf16.msra.mxu0 %v2562
  %8468 = vmatpush.bf16.msra.mxu0 %v2554
  %8469 = vmatpush.bf16.msra.mxu0 %v2546
  %8470 = vmatpush.bf16.msra.mxu0 %v2538
  %8471 = vmatpush.bf16.msra.mxu0 %v2530
  %8472 = vmatpush.bf16.msra.mxu0 %v2522
  %8473 = vmatpush.bf16.msra.mxu0 %v2514
  %8474 = vmatmul.bf16.gmra.mxu0 %v8426
  %v8475 = vpop.f32.mrf.mxu0
  %v8476 = vadd.f32 %v8463, %v8475
  %v8477 = vpop.f32.mrf.mxu0
  %8478 = vdwg.mxu0
  %8479 = vmatpush.bf16.msra.mxu0 %v2507
  %8480 = vmatpush.bf16.msra.mxu0 %v2499
  %8481 = vmatpush.bf16.msra.mxu0 %v2491
  %8482 = vmatpush.bf16.msra.mxu0 %v2483
  %8483 = vmatpush.bf16.msra.mxu0 %v2475
  %8484 = vmatpush.bf16.msra.mxu0 %v2467
  %8485 = vmatpush.bf16.msra.mxu0 %v2459
  %8486 = vmatpush.bf16.msra.mxu0 %v2451
  %8487 = vmatmul.bf16.gmra.mxu0 %v8425
  %v8488 = vpop.f32.mrf.mxu0
  %v8489 = vadd.f32 0.0, %v8488
  %v8490 = vpop.f32.mrf.mxu0
  %8491 = vdwg.mxu0
  %8492 = vmatpush.bf16.msra.mxu0 %v2571
  %8493 = vmatpush.bf16.msra.mxu0 %v2563
  %8494 = vmatpush.bf16.msra.mxu0 %v2555
  %8495 = vmatpush.bf16.msra.mxu0 %v2547
  %8496 = vmatpush.bf16.msra.mxu0 %v2539
  %8497 = vmatpush.bf16.msra.mxu0 %v2531
  %8498 = vmatpush.bf16.msra.mxu0 %v2523
  %8499 = vmatpush.bf16.msra.mxu0 %v2515
  %8500 = vmatmul.bf16.gmra.mxu0 %v8426
  %v8501 = vpop.f32.mrf.mxu0
  %v8502 = vadd.f32 %v8489, %v8501
  %v8503 = vpop.f32.mrf.mxu0
  %8504 = vdwg.mxu0
  %8505 = vmatpush.bf16.msra.mxu0 %v2508
  %8506 = vmatpush.bf16.msra.mxu0 %v2500
  %8507 = vmatpush.bf16.msra.mxu0 %v2492
  %8508 = vmatpush.bf16.msra.mxu0 %v2484
  %8509 = vmatpush.bf16.msra.mxu0 %v2476
  %8510 = vmatpush.bf16.msra.mxu0 %v2468
  %8511 = vmatpush.bf16.msra.mxu0 %v2460
  %8512 = vmatpush.bf16.msra.mxu0 %v2452
  %8513 = vmatmul.bf16.gmra.mxu0 %v8425
  %v8514 = vpop.f32.mrf.mxu0
  %v8515 = vadd.f32 0.0, %v8514
  %v8516 = vpop.f32.mrf.mxu0
  %8517 = vdwg.mxu0
  %8518 = vmatpush.bf16.msra.mxu0 %v2572
  %8519 = vmatpush.bf16.msra.mxu0 %v2564
  %8520 = vmatpush.bf16.msra.mxu0 %v2556
  %8521 = vmatpush.bf16.msra.mxu0 %v2548
  %8522 = vmatpush.bf16.msra.mxu0 %v2540
  %8523 = vmatpush.bf16.msra.mxu0 %v2532
  %8524 = vmatpush.bf16.msra.mxu0 %v2524
  %8525 = vmatpush.bf16.msra.mxu0 %v2516
  %8526 = vmatmul.bf16.gmra.mxu0 %v8426
  %v8527 = vpop.f32.mrf.mxu0
  %v8528 = vadd.f32 %v8515, %v8527
  %v8529 = vpop.f32.mrf.mxu0
  %8530 = vdwg.mxu0
  %8531 = vmatpush.bf16.msra.mxu0 %v2509
  %8532 = vmatpush.bf16.msra.mxu0 %v2501
  %8533 = vmatpush.bf16.msra.mxu0 %v2493
  %8534 = vmatpush.bf16.msra.mxu0 %v2485
  %8535 = vmatpush.bf16.msra.mxu0 %v2477
  %8536 = vmatpush.bf16.msra.mxu0 %v2469
  %8537 = vmatpush.bf16.msra.mxu0 %v2461
  %8538 = vmatpush.bf16.msra.mxu0 %v2453
  %8539 = vmatmul.bf16.gmra.mxu0 %v8425
  %v8540 = vpop.f32.mrf.mxu0
  %v8541 = vadd.f32 0.0, %v8540
  %v8542 = vpop.f32.mrf.mxu0
  %8543 = vdwg.mxu0
  %8544 = vmatpush.bf16.msra.mxu0 %v2573
  %8545 = vmatpush.bf16.msra.mxu0 %v2565
  %8546 = vmatpush.bf16.msra.mxu0 %v2557
  %8547 = vmatpush.bf16.msra.mxu0 %v2549
  %8548 = vmatpush.bf16.msra.mxu0 %v2541
  %8549 = vmatpush.bf16.msra.mxu0 %v2533
  %8550 = vmatpush.bf16.msra.mxu0 %v2525
  %8551 = vmatpush.bf16.msra.mxu0 %v2517
  %8552 = vmatmul.bf16.gmra.mxu0 %v8426
  %v8553 = vpop.f32.mrf.mxu0
  %v8554 = vadd.f32 %v8541, %v8553
  %v8555 = vpop.f32.mrf.mxu0
  %8556 = vdwg.mxu0
  %8557 = vmatpush.bf16.msra.mxu0 %v2510
  %8558 = vmatpush.bf16.msra.mxu0 %v2502
  %8559 = vmatpush.bf16.msra.mxu0 %v2494
  %8560 = vmatpush.bf16.msra.mxu0 %v2486
  %8561 = vmatpush.bf16.msra.mxu0 %v2478
  %8562 = vmatpush.bf16.msra.mxu0 %v2470
  %8563 = vmatpush.bf16.msra.mxu0 %v2462
  %8564 = vmatpush.bf16.msra.mxu0 %v2454
  %8565 = vmatmul.bf16.gmra.mxu0 %v8425
  %v8566 = vpop.f32.mrf.mxu0
  %v8567 = vadd.f32 0.0, %v8566
  %v8568 = vpop.f32.mrf.mxu0
  %8569 = vdwg.mxu0
  %8570 = vmatpush.bf16.msra.mxu0 %v2574
  %8571 = vmatpush.bf16.msra.mxu0 %v2566
  %8572 = vmatpush.bf16.msra.mxu0 %v2558
  %8573 = vmatpush.bf16.msra.mxu0 %v2550
  %8574 = vmatpush.bf16.msra.mxu0 %v2542
  %8575 = vmatpush.bf16.msra.mxu0 %v2534
  %8576 = vmatpush.bf16.msra.mxu0 %v2526
  %8577 = vmatpush.bf16.msra.mxu0 %v2518
  %8578 = vmatmul.bf16.gmra.mxu0 %v8426
  %v8579 = vpop.f32.mrf.mxu0
  %v8580 = vadd.f32 %v8567, %v8579
  %v8581 = vpop.f32.mrf.mxu0
  %8582 = vdwg.mxu0
  %8583 = vmatpush.bf16.msra.mxu0 %v2511
  %8584 = vmatpush.bf16.msra.mxu0 %v2503
  %8585 = vmatpush.bf16.msra.mxu0 %v2495
  %8586 = vmatpush.bf16.msra.mxu0 %v2487
  %8587 = vmatpush.bf16.msra.mxu0 %v2479
  %8588 = vmatpush.bf16.msra.mxu0 %v2471
  %8589 = vmatpush.bf16.msra.mxu0 %v2463
  %8590 = vmatpush.bf16.msra.mxu0 %v2455
  %8591 = vmatmul.bf16.gmra.mxu0 %v8425
  %v8592 = vpop.f32.mrf.mxu0
  %v8593 = vadd.f32 0.0, %v8592
  %v8594 = vpop.f32.mrf.mxu0
  %8595 = vdwg.mxu0
  %8596 = vmatpush.bf16.msra.mxu0 %v2575
  %8597 = vmatpush.bf16.msra.mxu0 %v2567
  %8598 = vmatpush.bf16.msra.mxu0 %v2559
  %8599 = vmatpush.bf16.msra.mxu0 %v2551
  %8600 = vmatpush.bf16.msra.mxu0 %v2543
  %8601 = vmatpush.bf16.msra.mxu0 %v2535
  %8602 = vmatpush.bf16.msra.mxu0 %v2527
  %8603 = vmatpush.bf16.msra.mxu0 %v2519
  %8604 = vmatmul.bf16.gmra.mxu0 %v8426
  %v8605 = vpop.f32.mrf.mxu0
  %v8606 = vadd.f32 %v8593, %v8605
  %v8607 = vpop.f32.mrf.mxu0
  %8608 = vdwg.mxu0
  %8609 = vmatpush.bf16.msra.mxu0 %v2512
  %8610 = vmatpush.bf16.msra.mxu0 %v2504
  %8611 = vmatpush.bf16.msra.mxu0 %v2496
  %8612 = vmatpush.bf16.msra.mxu0 %v2488
  %8613 = vmatpush.bf16.msra.mxu0 %v2480
  %8614 = vmatpush.bf16.msra.mxu0 %v2472
  %8615 = vmatpush.bf16.msra.mxu0 %v2464
  %8616 = vmatpush.bf16.msra.mxu0 %v2456
  %8617 = vmatmul.bf16.gmra.mxu0 %v8425
  %v8618 = vpop.f32.mrf.mxu0
  %v8619 = vadd.f32 0.0, %v8618
  %v8620 = vpop.f32.mrf.mxu0
  %8621 = vdwg.mxu0
  %8622 = vmatpush.bf16.msra.mxu0 %v2576
  %8623 = vmatpush.bf16.msra.mxu0 %v2568
  %8624 = vmatpush.bf16.msra.mxu0 %v2560
  %8625 = vmatpush.bf16.msra.mxu0 %v2552
  %8626 = vmatpush.bf16.msra.mxu0 %v2544
  %8627 = vmatpush.bf16.msra.mxu0 %v2536
  %8628 = vmatpush.bf16.msra.mxu0 %v2528
  %8629 = vmatpush.bf16.msra.mxu0 %v2520
  %8630 = vmatmul.bf16.gmra.mxu0 %v8426
  %v8631 = vpop.f32.mrf.mxu0
  %v8632 = vadd.f32 %v8619, %v8631
  %v8633 = vpop.f32.mrf.mxu0
  %8634 = vdwg.mxu0
  %8635 = vmatpush.bf16.msra.mxu0 %v3353
  %8636 = vmatpush.bf16.msra.mxu0 %v3345
  %8637 = vmatpush.bf16.msra.mxu0 %v3337
  %8638 = vmatpush.bf16.msra.mxu0 %v3329
  %8639 = vmatpush.bf16.msra.mxu0 %v3321
  %8640 = vmatpush.bf16.msra.mxu0 %v3313
  %8641 = vmatpush.bf16.msra.mxu0 %v3305
  %8642 = vmatpush.bf16.msra.mxu0 %v3297
  %8643 = vmatmul.bf16.gmra.mxu0 %v8163
  %v8644 = vpop.f32.mrf.mxu0
  %v8645 = vadd.f32 %v8450, %v8644
  %v8646 = vpop.f32.mrf.mxu0
  %8647 = vdwg.mxu0
  %8648 = vmatpush.bf16.msra.mxu0 %v3417
  %8649 = vmatpush.bf16.msra.mxu0 %v3409
  %8650 = vmatpush.bf16.msra.mxu0 %v3401
  %8651 = vmatpush.bf16.msra.mxu0 %v3393
  %8652 = vmatpush.bf16.msra.mxu0 %v3385
  %8653 = vmatpush.bf16.msra.mxu0 %v3377
  %8654 = vmatpush.bf16.msra.mxu0 %v3369
  %8655 = vmatpush.bf16.msra.mxu0 %v3361
  %8656 = vmatmul.bf16.gmra.mxu0 %v8164
  %v8657 = vpop.f32.mrf.mxu0
  %v8658 = vadd.f32 %v8645, %v8657
  %v8659 = vpop.f32.mrf.mxu0
  %8660 = vdwg.mxu0
  %8661 = vmatpush.bf16.msra.mxu0 %v3354
  %8662 = vmatpush.bf16.msra.mxu0 %v3346
  %8663 = vmatpush.bf16.msra.mxu0 %v3338
  %8664 = vmatpush.bf16.msra.mxu0 %v3330
  %8665 = vmatpush.bf16.msra.mxu0 %v3322
  %8666 = vmatpush.bf16.msra.mxu0 %v3314
  %8667 = vmatpush.bf16.msra.mxu0 %v3306
  %8668 = vmatpush.bf16.msra.mxu0 %v3298
  %8669 = vmatmul.bf16.gmra.mxu0 %v8163
  %v8670 = vpop.f32.mrf.mxu0
  %v8671 = vadd.f32 %v8476, %v8670
  %v8672 = vpop.f32.mrf.mxu0
  %8673 = vdwg.mxu0
  %8674 = vmatpush.bf16.msra.mxu0 %v3418
  %8675 = vmatpush.bf16.msra.mxu0 %v3410
  %8676 = vmatpush.bf16.msra.mxu0 %v3402
  %8677 = vmatpush.bf16.msra.mxu0 %v3394
  %8678 = vmatpush.bf16.msra.mxu0 %v3386
  %8679 = vmatpush.bf16.msra.mxu0 %v3378
  %8680 = vmatpush.bf16.msra.mxu0 %v3370
  %8681 = vmatpush.bf16.msra.mxu0 %v3362
  %8682 = vmatmul.bf16.gmra.mxu0 %v8164
  %v8683 = vpop.f32.mrf.mxu0
  %v8684 = vadd.f32 %v8671, %v8683
  %v8685 = vpop.f32.mrf.mxu0
  %8686 = vdwg.mxu0
  %8687 = vmatpush.bf16.msra.mxu0 %v3355
  %8688 = vmatpush.bf16.msra.mxu0 %v3347
  %8689 = vmatpush.bf16.msra.mxu0 %v3339
  %8690 = vmatpush.bf16.msra.mxu0 %v3331
  %8691 = vmatpush.bf16.msra.mxu0 %v3323
  %8692 = vmatpush.bf16.msra.mxu0 %v3315
  %8693 = vmatpush.bf16.msra.mxu0 %v3307
  %8694 = vmatpush.bf16.msra.mxu0 %v3299
  %8695 = vmatmul.bf16.gmra.mxu0 %v8163
  %v8696 = vpop.f32.mrf.mxu0
  %v8697 = vadd.f32 %v8502, %v8696
  %v8698 = vpop.f32.mrf.mxu0
  %8699 = vdwg.mxu0
  %8700 = vmatpush.bf16.msra.mxu0 %v3419
  %8701 = vmatpush.bf16.msra.mxu0 %v3411
  %8702 = vmatpush.bf16.msra.mxu0 %v3403
  %8703 = vmatpush.bf16.msra.mxu0 %v3395
  %8704 = vmatpush.bf16.msra.mxu0 %v3387
  %8705 = vmatpush.bf16.msra.mxu0 %v3379
  %8706 = vmatpush.bf16.msra.mxu0 %v3371
  %8707 = vmatpush.bf16.msra.mxu0 %v3363
  %8708 = vmatmul.bf16.gmra.mxu0 %v8164
  %v8709 = vpop.f32.mrf.mxu0
  %v8710 = vadd.f32 %v8697, %v8709
  %v8711 = vpop.f32.mrf.mxu0
  %8712 = vdwg.mxu0
  %8713 = vmatpush.bf16.msra.mxu0 %v3356
  %8714 = vmatpush.bf16.msra.mxu0 %v3348
  %8715 = vmatpush.bf16.msra.mxu0 %v3340
  %8716 = vmatpush.bf16.msra.mxu0 %v3332
  %8717 = vmatpush.bf16.msra.mxu0 %v3324
  %8718 = vmatpush.bf16.msra.mxu0 %v3316
  %8719 = vmatpush.bf16.msra.mxu0 %v3308
  %8720 = vmatpush.bf16.msra.mxu0 %v3300
  %8721 = vmatmul.bf16.gmra.mxu0 %v8163
  %v8722 = vpop.f32.mrf.mxu0
  %v8723 = vadd.f32 %v8528, %v8722
  %v8724 = vpop.f32.mrf.mxu0
  %8725 = vdwg.mxu0
  %8726 = vmatpush.bf16.msra.mxu0 %v3420
  %8727 = vmatpush.bf16.msra.mxu0 %v3412
  %8728 = vmatpush.bf16.msra.mxu0 %v3404
  %8729 = vmatpush.bf16.msra.mxu0 %v3396
  %8730 = vmatpush.bf16.msra.mxu0 %v3388
  %8731 = vmatpush.bf16.msra.mxu0 %v3380
  %8732 = vmatpush.bf16.msra.mxu0 %v3372
  %8733 = vmatpush.bf16.msra.mxu0 %v3364
  %8734 = vmatmul.bf16.gmra.mxu0 %v8164
  %v8735 = vpop.f32.mrf.mxu0
  %v8736 = vadd.f32 %v8723, %v8735
  %v8737 = vpop.f32.mrf.mxu0
  %8738 = vdwg.mxu0
  %8739 = vmatpush.bf16.msra.mxu0 %v3357
  %8740 = vmatpush.bf16.msra.mxu0 %v3349
  %8741 = vmatpush.bf16.msra.mxu0 %v3341
  %8742 = vmatpush.bf16.msra.mxu0 %v3333
  %8743 = vmatpush.bf16.msra.mxu0 %v3325
  %8744 = vmatpush.bf16.msra.mxu0 %v3317
  %8745 = vmatpush.bf16.msra.mxu0 %v3309
  %8746 = vmatpush.bf16.msra.mxu0 %v3301
  %8747 = vmatmul.bf16.gmra.mxu0 %v8163
  %v8748 = vpop.f32.mrf.mxu0
  %v8749 = vadd.f32 %v8554, %v8748
  %v8750 = vpop.f32.mrf.mxu0
  %8751 = vdwg.mxu0
  %8752 = vmatpush.bf16.msra.mxu0 %v3421
  %8753 = vmatpush.bf16.msra.mxu0 %v3413
  %8754 = vmatpush.bf16.msra.mxu0 %v3405
  %8755 = vmatpush.bf16.msra.mxu0 %v3397
  %8756 = vmatpush.bf16.msra.mxu0 %v3389
  %8757 = vmatpush.bf16.msra.mxu0 %v3381
  %8758 = vmatpush.bf16.msra.mxu0 %v3373
  %8759 = vmatpush.bf16.msra.mxu0 %v3365
  %8760 = vmatmul.bf16.gmra.mxu0 %v8164
  %v8761 = vpop.f32.mrf.mxu0
  %v8762 = vadd.f32 %v8749, %v8761
  %v8763 = vpop.f32.mrf.mxu0
  %8764 = vdwg.mxu0
  %8765 = vmatpush.bf16.msra.mxu0 %v3358
  %8766 = vmatpush.bf16.msra.mxu0 %v3350
  %8767 = vmatpush.bf16.msra.mxu0 %v3342
  %8768 = vmatpush.bf16.msra.mxu0 %v3334
  %8769 = vmatpush.bf16.msra.mxu0 %v3326
  %8770 = vmatpush.bf16.msra.mxu0 %v3318
  %8771 = vmatpush.bf16.msra.mxu0 %v3310
  %8772 = vmatpush.bf16.msra.mxu0 %v3302
  %8773 = vmatmul.bf16.gmra.mxu0 %v8163
  %v8774 = vpop.f32.mrf.mxu0
  %v8775 = vadd.f32 %v8580, %v8774
  %v8776 = vpop.f32.mrf.mxu0
  %8777 = vdwg.mxu0
  %8778 = vmatpush.bf16.msra.mxu0 %v3422
  %8779 = vmatpush.bf16.msra.mxu0 %v3414
  %8780 = vmatpush.bf16.msra.mxu0 %v3406
  %8781 = vmatpush.bf16.msra.mxu0 %v3398
  %8782 = vmatpush.bf16.msra.mxu0 %v3390
  %8783 = vmatpush.bf16.msra.mxu0 %v3382
  %8784 = vmatpush.bf16.msra.mxu0 %v3374
  %8785 = vmatpush.bf16.msra.mxu0 %v3366
  %8786 = vmatmul.bf16.gmra.mxu0 %v8164
  %v8787 = vpop.f32.mrf.mxu0
  %v8788 = vadd.f32 %v8775, %v8787
  %v8789 = vpop.f32.mrf.mxu0
  %8790 = vdwg.mxu0
  %8791 = vmatpush.bf16.msra.mxu0 %v3359
  %8792 = vmatpush.bf16.msra.mxu0 %v3351
  %8793 = vmatpush.bf16.msra.mxu0 %v3343
  %8794 = vmatpush.bf16.msra.mxu0 %v3335
  %8795 = vmatpush.bf16.msra.mxu0 %v3327
  %8796 = vmatpush.bf16.msra.mxu0 %v3319
  %8797 = vmatpush.bf16.msra.mxu0 %v3311
  %8798 = vmatpush.bf16.msra.mxu0 %v3303
  %8799 = vmatmul.bf16.gmra.mxu0 %v8163
  %v8800 = vpop.f32.mrf.mxu0
  %v8801 = vadd.f32 %v8606, %v8800
  %v8802 = vpop.f32.mrf.mxu0
  %8803 = vdwg.mxu0
  %8804 = vmatpush.bf16.msra.mxu0 %v3423
  %8805 = vmatpush.bf16.msra.mxu0 %v3415
  %8806 = vmatpush.bf16.msra.mxu0 %v3407
  %8807 = vmatpush.bf16.msra.mxu0 %v3399
  %8808 = vmatpush.bf16.msra.mxu0 %v3391
  %8809 = vmatpush.bf16.msra.mxu0 %v3383
  %8810 = vmatpush.bf16.msra.mxu0 %v3375
  %8811 = vmatpush.bf16.msra.mxu0 %v3367
  %8812 = vmatmul.bf16.gmra.mxu0 %v8164
  %v8813 = vpop.f32.mrf.mxu0
  %v8814 = vadd.f32 %v8801, %v8813
  %v8815 = vpop.f32.mrf.mxu0
  %8816 = vdwg.mxu0
  %8817 = vmatpush.bf16.msra.mxu0 %v3360
  %8818 = vmatpush.bf16.msra.mxu0 %v3352
  %8819 = vmatpush.bf16.msra.mxu0 %v3344
  %8820 = vmatpush.bf16.msra.mxu0 %v3336
  %8821 = vmatpush.bf16.msra.mxu0 %v3328
  %8822 = vmatpush.bf16.msra.mxu0 %v3320
  %8823 = vmatpush.bf16.msra.mxu0 %v3312
  %8824 = vmatpush.bf16.msra.mxu0 %v3304
  %8825 = vmatmul.bf16.gmra.mxu0 %v8163
  %v8826 = vpop.f32.mrf.mxu0
  %v8827 = vadd.f32 %v8632, %v8826
  %v8828 = vpop.f32.mrf.mxu0
  %8829 = vdwg.mxu0
  %8830 = vmatpush.bf16.msra.mxu0 %v3424
  %8831 = vmatpush.bf16.msra.mxu0 %v3416
  %8832 = vmatpush.bf16.msra.mxu0 %v3408
  %8833 = vmatpush.bf16.msra.mxu0 %v3400
  %8834 = vmatpush.bf16.msra.mxu0 %v3392
  %8835 = vmatpush.bf16.msra.mxu0 %v3384
  %8836 = vmatpush.bf16.msra.mxu0 %v3376
  %8837 = vmatpush.bf16.msra.mxu0 %v3368
  %8838 = vmatmul.bf16.gmra.mxu0 %v8164
  %v8839 = vpop.f32.mrf.mxu0
  %v8840 = vadd.f32 %v8827, %v8839
  %v8841 = vpop.f32.mrf.mxu0
  %8842 = vdwg.mxu0
  %v8843 = vadd.f32 %v8658, %v1147
  %v8844 = vadd.f32 %v8684, %v1148
  %v8845 = vadd.f32 %v8710, %v1149
  %v8846 = vadd.f32 %v8736, %v1150
  %v8847 = vadd.f32 %v8762, %v1151
  %v8848 = vadd.f32 %v8788, %v1152
  %v8849 = vadd.f32 %v8814, %v1153
  %v8850 = vadd.f32 %v8840, %v1154
  %v8851 = vmul.f32 %v8843, 0.5
  %v8852 = vmul.f32 %v8844, 0.5
  %v8853 = vmul.f32 %v8845, 0.5
  %v8854 = vmul.f32 %v8846, 0.5
  %v8855 = vmul.f32 %v8847, 0.5
  %v8856 = vmul.f32 %v8848, 0.5
  %v8857 = vtanh.pop %v8851
  %v8858 = vtanh.pop %v8852
  %v8859 = vtanh.pop %v8853
  %v8860 = vtanh.pop %v8854
  %v8861 = vtanh.pop %v8855
  %v8862 = vtanh.pop %v8856
  %v8863 = vmul.f32 %v8857, 0.5
  %v8864 = vmul.f32 %v8858, 0.5
  %v8865 = vmul.f32 %v8859, 0.5
  %v8866 = vmul.f32 %v8860, 0.5
  %v8867 = vmul.f32 %v8861, 0.5
  %v8868 = vmul.f32 %v8862, 0.5
  %v8869 = vadd.f32 %v8863, 0.5
  %v8870 = vadd.f32 %v8864, 0.5
  %v8871 = vadd.f32 %v8865, 0.5
  %v8872 = vadd.f32 %v8866, 0.5
  %v8873 = vadd.f32 %v8867, 0.5
  %v8874 = vadd.f32 %v8868, 0.5
  %v8875 = vtanh.pop %v8849
  %v8876 = vtanh.pop %v8850
  %v8877 = vmul.f32 %v8871, %v8155
  %v8878 = vmul.f32 %v8872, %v8156
  %v8879 = vmul.f32 %v8869, %v8875
  %v8880 = vmul.f32 %v8870, %v8876
  %v8881 = vadd.f32 %v8877, %v8879
  %v8882 = vadd.f32 %v8878, %v8880
  %v8883 = vtanh.pop %v8881
  %v8884 = vtanh.pop %v8882
  %v8885 = vmul.f32 %v8873, %v8883
  %v8886 = vmul.f32 %v8874, %v8884
  %8887 = vst [vmem:[#allocation3 + $0x70] sm:$0xff] %v8885
  %8888 = vst [vmem:[#allocation3 + $0x78] sm:$0xff] %v8886
  %v8889 = vld [vmem:[#allocation3] sm:$0xff]
  %v8890 = vld [vmem:[#allocation3 + $0x8] sm:$0xff]
  %v8891 = vld [vmem:[#allocation3 + $0x10] sm:$0xff]
  %v8892 = vld [vmem:[#allocation3 + $0x18] sm:$0xff]
  %v8893 = vld [vmem:[#allocation3 + $0x20] sm:$0xff]
  %v8894 = vld [vmem:[#allocation3 + $0x28] sm:$0xff]
  %v8895 = vld [vmem:[#allocation3 + $0x30] sm:$0xff]
  %v8896 = vld [vmem:[#allocation3 + $0x38] sm:$0xff]
  %v8897 = vld [vmem:[#allocation3 + $0x40] sm:$0xff]
  %v8898 = vld [vmem:[#allocation3 + $0x48] sm:$0xff]
  %v8899 = vld [vmem:[#allocation3 + $0x50] sm:$0xff]
  %v8900 = vld [vmem:[#allocation3 + $0x58] sm:$0xff]
  %v8901 = vld [vmem:[#allocation3 + $0x60] sm:$0xff]
  %v8902 = vld [vmem:[#allocation3 + $0x68] sm:$0xff]
  %v8903 = vld [vmem:[#allocation3 + $0x70] sm:$0xff]
  %v8904 = vld [vmem:[#allocation3 + $0x78] sm:$0xff]
  %vm8921 = vcmask 1045504
  %v8922 = vrot.slane %v8889, 2
  %v8923 = vrot.slane %v8891, 2
  %v8924 = vsel %vm8921, %v8922, %v8923
  %v8925 = vrot.slane %v8890, 2
  %v8926 = vrot.slane %v8892, 2
  %v8927 = vsel %vm8921, %v8925, %v8926
  %v8928 = vrot.slane %v8893, 2
  %v8929 = vsel %vm8921, %v8923, %v8928
  %v8930 = vrot.slane %v8894, 2
  %v8931 = vsel %vm8921, %v8926, %v8930
  %v8932 = vrot.slane %v8895, 2
  %v8933 = vsel %vm8921, %v8928, %v8932
  %v8934 = vrot.slane %v8896, 2
  %v8935 = vsel %vm8921, %v8930, %v8934
  %v8936 = vrot.slane %v8897, 2
  %v8937 = vsel %vm8921, %v8932, %v8936
  %v8938 = vrot.slane %v8898, 2
  %v8939 = vsel %vm8921, %v8934, %v8938
  %v8940 = vrot.slane %v8899, 2
  %v8941 = vsel %vm8921, %v8936, %v8940
  %v8942 = vrot.slane %v8900, 2
  %v8943 = vsel %vm8921, %v8938, %v8942
  %v8944 = vrot.slane %v8901, 2
  %v8945 = vsel %vm8921, %v8940, %v8944
  %v8946 = vrot.slane %v8902, 2
  %v8947 = vsel %vm8921, %v8942, %v8946
  %v8948 = vrot.slane %v8903, 2
  %v8949 = vsel %vm8921, %v8944, %v8948
  %v8950 = vrot.slane %v8904, 2
  %v8951 = vsel %vm8921, %v8946, %v8950
  %v8968 = vsel %vm8921, %v8948, 0.0
  %v8969 = vsel %vm8921, %v8950, 0.0
  %v8970 = vadd.f32 %v8889, %v8924
  %v8971 = vadd.f32 %v8890, %v8927
  %v8972 = vadd.f32 %v8891, %v8929
  %v8973 = vadd.f32 %v8892, %v8931
  %v8974 = vadd.f32 %v8893, %v8933
  %v8975 = vadd.f32 %v8894, %v8935
  %v8976 = vadd.f32 %v8895, %v8937
  %v8977 = vadd.f32 %v8896, %v8939
  %v8978 = vadd.f32 %v8897, %v8941
  %v8979 = vadd.f32 %v8898, %v8943
  %v8980 = vadd.f32 %v8899, %v8945
  %v8981 = vadd.f32 %v8900, %v8947
  %v8982 = vadd.f32 %v8901, %v8949
  %v8983 = vadd.f32 %v8902, %v8951
  %v8984 = vadd.f32 %v8903, %v8968
  %v8985 = vadd.f32 %v8904, %v8969
  %v8986 = vpack.c.bf16 %v8972, %v8970
  %v8987 = vpack.c.bf16 %v8973, %v8971
  %v8988 = vpack.c.bf16 %v8976, %v8974
  %v8989 = vpack.c.bf16 %v8977, %v8975
  %v8990 = vpack.c.bf16 %v8980, %v8978
  %v8991 = vpack.c.bf16 %v8981, %v8979
  %v8992 = vpack.c.bf16 %v8984, %v8982
  %v8993 = vpack.c.bf16 %v8985, %v8983
  %v8994 = vld [vmem:[%s7] sm:$0xf]
  %v8995 = vld [vmem:[%s7 + $0x4] sm:$0xf]
  %v8996 = vld [vmem:[%s7 + $0x8] sm:$0xf]
  %v8997 = vld [vmem:[%s7 + $0xc] sm:$0xf]
  %v8998 = vld [vmem:[%s7 + $0x10] sm:$0xf]
  %v8999 = vld [vmem:[%s7 + $0x14] sm:$0xf]
  %v9000 = vld [vmem:[%s7 + $0x18] sm:$0xf]
  %v9001 = vld [vmem:[%s7 + $0x1c] sm:$0xf]
  %v9002 = vld [vmem:[%s7 + $0x20] sm:$0xf]
  %v9003 = vld [vmem:[%s7 + $0x24] sm:$0xf]
  %v9004 = vld [vmem:[%s7 + $0x28] sm:$0xf]
  %v9005 = vld [vmem:[%s7 + $0x2c] sm:$0xf]
  %v9006 = vld [vmem:[%s7 + $0x30] sm:$0xf]
  %v9007 = vld [vmem:[%s7 + $0x34] sm:$0xf]
  %v9008 = vld [vmem:[%s7 + $0x38] sm:$0xf]
  %v9009 = vld [vmem:[%s7 + $0x3c] sm:$0xf]
  %v9010 = vld [vmem:[%s7 + $0x40] sm:$0xf]
  %v9011 = vld [vmem:[%s7 + $0x44] sm:$0xf]
  %v9012 = vld [vmem:[%s7 + $0x48] sm:$0xf]
  %v9013 = vld [vmem:[%s7 + $0x4c] sm:$0xf]
  %v9014 = vld [vmem:[%s7 + $0x50] sm:$0xf]
  %v9015 = vld [vmem:[%s7 + $0x54] sm:$0xf]
  %v9016 = vld [vmem:[%s7 + $0x58] sm:$0xf]
  %v9017 = vld [vmem:[%s7 + $0x5c] sm:$0xf]
  %v9018 = vld [vmem:[%s7 + $0x60] sm:$0xf]
  %v9019 = vld [vmem:[%s7 + $0x64] sm:$0xf]
  %v9020 = vld [vmem:[%s7 + $0x68] sm:$0xf]
  %v9021 = vld [vmem:[%s7 + $0x6c] sm:$0xf]
  %v9022 = vld [vmem:[%s7 + $0x70] sm:$0xf]
  %v9023 = vld [vmem:[%s7 + $0x74] sm:$0xf]
  %v9024 = vld [vmem:[%s7 + $0x78] sm:$0xf]
  %v9025 = vld [vmem:[%s7 + $0x7c] sm:$0xf]
  %v9026 = vld [vmem:[%s8] sm:$0x1]
  %v9028 = vperm.slane %v9026, 0
  %v9062 = vunpack.c.l.b16 %v8994
  %v9063 = vunpack.c.l.b16 %v8995
  %v9064 = vunpack.c.l.b16 %v8996
  %v9065 = vunpack.c.l.b16 %v8997
  %v9066 = vunpack.c.l.b16 %v8998
  %v9067 = vunpack.c.l.b16 %v8999
  %v9068 = vunpack.c.l.b16 %v9000
  %v9069 = vunpack.c.l.b16 %v9001
  %v9070 = vunpack.c.l.b16 %v9002
  %v9071 = vunpack.c.l.b16 %v9003
  %v9072 = vunpack.c.l.b16 %v9004
  %v9073 = vunpack.c.l.b16 %v9005
  %v9074 = vunpack.c.l.b16 %v9006
  %v9075 = vunpack.c.l.b16 %v9007
  %v9076 = vunpack.c.l.b16 %v9008
  %v9077 = vunpack.c.l.b16 %v9009
  %v9078 = vunpack.c.l.b16 %v9010
  %v9079 = vunpack.c.l.b16 %v9011
  %v9080 = vunpack.c.l.b16 %v9012
  %v9081 = vunpack.c.l.b16 %v9013
  %v9082 = vunpack.c.l.b16 %v9014
  %v9083 = vunpack.c.l.b16 %v9015
  %v9084 = vunpack.c.l.b16 %v9016
  %v9085 = vunpack.c.l.b16 %v9017
  %v9086 = vunpack.c.l.b16 %v9018
  %v9087 = vunpack.c.l.b16 %v9019
  %v9088 = vunpack.c.l.b16 %v9020
  %v9089 = vunpack.c.l.b16 %v9021
  %v9090 = vunpack.c.l.b16 %v9022
  %v9091 = vunpack.c.l.b16 %v9023
  %v9092 = vunpack.c.l.b16 %v9024
  %v9093 = vunpack.c.l.b16 %v9025
  %v9094 = vpack.c.b16 %v9063, %v9062
  %v9095 = vpack.c.b16 %v9065, %v9064
  %v9096 = vpack.c.b16 %v9067, %v9066
  %v9097 = vpack.c.b16 %v9069, %v9068
  %v9098 = vpack.c.b16 %v9071, %v9070
  %v9099 = vpack.c.b16 %v9073, %v9072
  %v9100 = vpack.c.b16 %v9075, %v9074
  %v9101 = vpack.c.b16 %v9077, %v9076
  %v9102 = vpack.c.b16 %v9079, %v9078
  %v9103 = vpack.c.b16 %v9081, %v9080
  %v9104 = vpack.c.b16 %v9083, %v9082
  %v9105 = vpack.c.b16 %v9085, %v9084
  %v9106 = vpack.c.b16 %v9087, %v9086
  %v9107 = vpack.c.b16 %v9089, %v9088
  %v9108 = vpack.c.b16 %v9091, %v9090
  %v9109 = vpack.c.b16 %v9093, %v9092
  %9126 = vmatpush.bf16.msra.mxu0 %v9101
  %9127 = vmatpush.bf16.msra.mxu0 %v9100
  %9128 = vmatpush.bf16.msra.mxu0 %v9099
  %9129 = vmatpush.bf16.msra.mxu0 %v9098
  %9130 = vmatpush.bf16.msra.mxu0 %v9097
  %9131 = vmatpush.bf16.msra.mxu0 %v9096
  %9132 = vmatpush.bf16.msra.mxu0 %v9095
  %9133 = vmatpush.bf16.msra.mxu0 %v9094
  %9134 = vmatmul.bf16.gmra.mxu0 %v8986
  %v9135 = vpop.f32.mrf.mxu0
  %v9136 = vadd.f32 %v9028, %v9135
  %v9137 = vpop.f32.mrf.mxu0
  %v9138 = vadd.f32 %v9028, %v9137
  %9139 = vmatmul.bf16.gmra.mxu0 %v8988
  %v9140 = vpop.f32.mrf.mxu0
  %v9141 = vadd.f32 %v9028, %v9140
  %v9142 = vpop.f32.mrf.mxu0
  %v9143 = vadd.f32 %v9028, %v9142
  %9144 = vmatmul.bf16.gmra.mxu0 %v8990
  %v9145 = vpop.f32.mrf.mxu0
  %v9146 = vadd.f32 %v9028, %v9145
  %v9147 = vpop.f32.mrf.mxu0
  %v9148 = vadd.f32 %v9028, %v9147
  %9149 = vmatmul.bf16.gmra.mxu0 %v8992
  %v9150 = vpop.f32.mrf.mxu0
  %v9151 = vadd.f32 %v9028, %v9150
  %v9152 = vpop.f32.mrf.mxu0
  %v9153 = vadd.f32 %v9028, %v9152
  %9154 = vdwg.mxu0
  %9155 = vmatpush.bf16.msra.mxu0 %v9109
  %9156 = vmatpush.bf16.msra.mxu0 %v9108
  %9157 = vmatpush.bf16.msra.mxu0 %v9107
  %9158 = vmatpush.bf16.msra.mxu0 %v9106
  %9159 = vmatpush.bf16.msra.mxu0 %v9105
  %9160 = vmatpush.bf16.msra.mxu0 %v9104
  %9161 = vmatpush.bf16.msra.mxu0 %v9103
  %9162 = vmatpush.bf16.msra.mxu0 %v9102
  %9163 = vmatmul.bf16.gmra.mxu0 %v8987
  %v9164 = vpop.f32.mrf.mxu0
  %v9165 = vadd.f32 %v9136, %v9164
  %v9166 = vpop.f32.mrf.mxu0
  %v9167 = vadd.f32 %v9138, %v9166
  %9168 = vmatmul.bf16.gmra.mxu0 %v8989
  %v9169 = vpop.f32.mrf.mxu0
  %v9170 = vadd.f32 %v9141, %v9169
  %v9171 = vpop.f32.mrf.mxu0
  %v9172 = vadd.f32 %v9143, %v9171
  %9173 = vmatmul.bf16.gmra.mxu0 %v8991
  %v9174 = vpop.f32.mrf.mxu0
  %v9175 = vadd.f32 %v9146, %v9174
  %v9176 = vpop.f32.mrf.mxu0
  %v9177 = vadd.f32 %v9148, %v9176
  %9178 = vmatmul.bf16.gmra.mxu0 %v8993
  %v9179 = vpop.f32.mrf.mxu0
  %v9180 = vadd.f32 %v9151, %v9179
  %v9181 = vpop.f32.mrf.mxu0
  %v9182 = vadd.f32 %v9153, %v9181
  %9183 = vdwg.mxu0
  %v9184 = vtanh.pop %v9165
  %v9185 = vtanh.pop %v9167
  %v9186 = vtanh.pop %v9170
  %v9187 = vtanh.pop %v9172
  %v9188 = vtanh.pop %v9175
  %v9189 = vtanh.pop %v9177
  %v9190 = vtanh.pop %v9180
  %v9191 = vtanh.pop %v9182
  %v9192 = vpack.c.bf16 %v9185, %v9184
  %v9193 = vpack.c.bf16 %v9187, %v9186
  %v9194 = vpack.c.bf16 %v9189, %v9188
  %v9195 = vpack.c.bf16 %v9191, %v9190
  %v9196 = vld [vmem:[%s9] sm:$0xf]
  %v9197 = vld [vmem:[%s9 + $0x4] sm:$0xf]
  %v9198 = vld [vmem:[%s9 + $0x8] sm:$0xf]
  %v9199 = vld [vmem:[%s9 + $0xc] sm:$0xf]
  %v9200 = vld [vmem:[%s9 + $0x10] sm:$0xf]
  %v9201 = vld [vmem:[%s9 + $0x14] sm:$0xf]
  %v9202 = vld [vmem:[%s9 + $0x18] sm:$0xf]
  %v9203 = vld [vmem:[%s9 + $0x1c] sm:$0xf]
  %v9204 = vld [vmem:[%s9 + $0x20] sm:$0xf]
  %v9205 = vld [vmem:[%s9 + $0x24] sm:$0xf]
  %v9206 = vld [vmem:[%s9 + $0x28] sm:$0xf]
  %v9207 = vld [vmem:[%s9 + $0x2c] sm:$0xf]
  %v9208 = vld [vmem:[%s9 + $0x30] sm:$0xf]
  %v9209 = vld [vmem:[%s9 + $0x34] sm:$0xf]
  %v9210 = vld [vmem:[%s9 + $0x38] sm:$0xf]
  %v9211 = vld [vmem:[%s9 + $0x3c] sm:$0xf]
  %v9212 = vld [vmem:[%s10] sm:$0x1]
  %v9214 = vperm.slane %v9212, 0
  %v9232 = vunpack.c.l.b16 %v9196
  %v9233 = vunpack.c.l.b16 %v9197
  %v9234 = vunpack.c.l.b16 %v9198
  %v9235 = vunpack.c.l.b16 %v9199
  %v9236 = vunpack.c.l.b16 %v9200
  %v9237 = vunpack.c.l.b16 %v9201
  %v9238 = vunpack.c.l.b16 %v9202
  %v9239 = vunpack.c.l.b16 %v9203
  %v9240 = vunpack.c.l.b16 %v9204
  %v9241 = vunpack.c.l.b16 %v9205
  %v9242 = vunpack.c.l.b16 %v9206
  %v9243 = vunpack.c.l.b16 %v9207
  %v9244 = vunpack.c.l.b16 %v9208
  %v9245 = vunpack.c.l.b16 %v9209
  %v9246 = vunpack.c.l.b16 %v9210
  %v9247 = vunpack.c.l.b16 %v9211
  %v9248 = vpack.c.b16 %v9233, %v9232
  %v9249 = vpack.c.b16 %v9235, %v9234
  %v9250 = vpack.c.b16 %v9237, %v9236
  %v9251 = vpack.c.b16 %v9239, %v9238
  %v9252 = vpack.c.b16 %v9241, %v9240
  %v9253 = vpack.c.b16 %v9243, %v9242
  %v9254 = vpack.c.b16 %v9245, %v9244
  %v9255 = vpack.c.b16 %v9247, %v9246
  %9264 = vmatpush.bf16.msra.mxu0 %v9255
  %9265 = vmatpush.bf16.msra.mxu0 %v9254
  %9266 = vmatpush.bf16.msra.mxu0 %v9253
  %9267 = vmatpush.bf16.msra.mxu0 %v9252
  %9268 = vmatpush.bf16.msra.mxu0 %v9251
  %9269 = vmatpush.bf16.msra.mxu0 %v9250
  %9270 = vmatpush.bf16.msra.mxu0 %v9249
  %9271 = vmatpush.bf16.msra.mxu0 %v9248
  %9272 = vmatmul.bf16.gmra.mxu0 %v9192
  %v9273 = vpop.f32.mrf.mxu0
  %v9274 = vadd.f32 %v9214, %v9273
  %v9275 = vpop.f32.mrf.mxu0
  %v9276 = vadd.f32 %v9214, %v9275
  %9277 = vmatmul.bf16.gmra.mxu0 %v9193
  %v9278 = vpop.f32.mrf.mxu0
  %v9279 = vadd.f32 %v9214, %v9278
  %v9280 = vpop.f32.mrf.mxu0
  %v9281 = vadd.f32 %v9214, %v9280
  %9282 = vmatmul.bf16.gmra.mxu0 %v9194
  %v9283 = vpop.f32.mrf.mxu0
  %v9284 = vadd.f32 %v9214, %v9283
  %v9285 = vpop.f32.mrf.mxu0
  %v9286 = vadd.f32 %v9214, %v9285
  %9287 = vmatmul.bf16.gmra.mxu0 %v9195
  %v9288 = vpop.f32.mrf.mxu0
  %v9289 = vadd.f32 %v9214, %v9288
  %v9290 = vpop.f32.mrf.mxu0
  %v9291 = vadd.f32 %v9214, %v9290
  %9292 = vdwg.mxu0
  %v9293 = vtanh.pop %v9274
  %v9294 = vtanh.pop %v9276
  %v9295 = vtanh.pop %v9279
  %v9296 = vtanh.pop %v9281
  %v9297 = vtanh.pop %v9284
  %v9298 = vtanh.pop %v9286
  %v9299 = vtanh.pop %v9289
  %v9300 = vtanh.pop %v9291
  %v9301 = vld [vmem:[%s0] sm:$0xff]
  %v9302 = vld [vmem:[%s0 + $0x8] sm:$0xff]
  %v9303 = vld [vmem:[%s0 + $0x10] sm:$0xff]
  %v9304 = vld [vmem:[%s0 + $0x18] sm:$0xff]
  %v9305 = vld [vmem:[%s0 + $0x20] sm:$0xff]
  %v9306 = vld [vmem:[%s0 + $0x28] sm:$0xff]
  %v9307 = vld [vmem:[%s0 + $0x30] sm:$0xff]
  %v9308 = vld [vmem:[%s0 + $0x38] sm:$0xff]
  %v9309 = vld [vmem:[%s11] sm:$0xff]
  %v9310 = vld [vmem:[%s11 + $0x8] sm:$0xff]
  %v9311 = vld [vmem:[%s11 + $0x10] sm:$0xff]
  %v9312 = vld [vmem:[%s11 + $0x18] sm:$0xff]
  %v9313 = vld [vmem:[%s11 + $0x20] sm:$0xff]
  %v9314 = vld [vmem:[%s11 + $0x28] sm:$0xff]
  %v9315 = vld [vmem:[%s11 + $0x30] sm:$0xff]
  %v9316 = vld [vmem:[%s11 + $0x38] sm:$0xff]
  %v9317 = vld [vmem:[%s11 + $0x40] sm:$0xff]
  %v9318 = vld [vmem:[%s11 + $0x48] sm:$0xff]
  %v9319 = vld [vmem:[%s11 + $0x50] sm:$0xff]
  %v9320 = vld [vmem:[%s11 + $0x58] sm:$0xff]
  %v9321 = vld [vmem:[%s11 + $0x60] sm:$0xff]
  %v9322 = vld [vmem:[%s11 + $0x68] sm:$0xff]
  %v9323 = vld [vmem:[%s11 + $0x70] sm:$0xff]
  %v9324 = vld [vmem:[%s11 + $0x78] sm:$0xff]
  %v9325 = vld [vmem:[%s12] sm:$0x1]
  %v9327 = vperm.slane %v9325, 0
  %9329 = vmatpush.msra.mxu0 %v9324
  %9330 = vmatpush.msra.mxu0 %v9323
  %9331 = vmatpush.msra.mxu0 %v9322
  %9332 = vmatpush.msra.mxu0 %v9321
  %9333 = vmatpush.msra.mxu0 %v9320
  %9334 = vmatpush.msra.mxu0 %v9319
  %9335 = vmatpush.msra.mxu0 %v9318
  %9336 = vmatpush.msra.mxu0 %v9317
  %9337 = vmatpush.msra.mxu0 %v9316
  %9338 = vmatpush.msra.mxu0 %v9315
  %9339 = vmatpush.msra.mxu0 %v9314
  %9340 = vmatpush.msra.mxu0 %v9313
  %9341 = vmatpush.msra.mxu0 %v9312
  %9342 = vmatpush.msra.mxu0 %v9311
  %9343 = vmatpush.msra.mxu0 %v9310
  %9344 = vmatpush.msra.mxu0 %v9309
  %9345 = vmatmul.f32.gmra.mxu0 %v9301
  %v9346 = vpop.f32.mrf.mxu0
  %v9347 = vadd.f32 %v9327, %v9346
  %9348 = vmatmul.f32.gmra.mxu0 %v9302
  %v9349 = vpop.f32.mrf.mxu0
  %v9350 = vadd.f32 %v9327, %v9349
  %9351 = vmatmul.f32.gmra.mxu0 %v9303
  %v9352 = vpop.f32.mrf.mxu0
  %v9353 = vadd.f32 %v9327, %v9352
  %9354 = vmatmul.f32.gmra.mxu0 %v9304
  %v9355 = vpop.f32.mrf.mxu0
  %v9356 = vadd.f32 %v9327, %v9355
  %9357 = vmatmul.f32.gmra.mxu0 %v9305
  %v9358 = vpop.f32.mrf.mxu0
  %v9359 = vadd.f32 %v9327, %v9358
  %9360 = vmatmul.f32.gmra.mxu0 %v9306
  %v9361 = vpop.f32.mrf.mxu0
  %v9362 = vadd.f32 %v9327, %v9361
  %9363 = vmatmul.f32.gmra.mxu0 %v9307
  %v9364 = vpop.f32.mrf.mxu0
  %v9365 = vadd.f32 %v9327, %v9364
  %9366 = vmatmul.f32.gmra.mxu0 %v9308
  %v9367 = vpop.f32.mrf.mxu0
  %v9368 = vadd.f32 %v9327, %v9367
  %9369 = vdwg.mxu0
  %v9370 = vadd.f32 %v9293, %v9347
  %v9371 = vadd.f32 %v9294, %v9350
  %v9372 = vadd.f32 %v9295, %v9353
  %v9373 = vadd.f32 %v9296, %v9356
  %v9374 = vadd.f32 %v9297, %v9359
  %v9375 = vadd.f32 %v9298, %v9362
  %v9376 = vadd.f32 %v9299, %v9365
  %v9377 = vadd.f32 %v9300, %v9368
  %v9378 = vld [vmem:[%s13] sm:$0xff]
  %v9379 = vld [vmem:[%s13 + $0x8] sm:$0xff]
  %v9380 = vld [vmem:[%s13 + $0x10] sm:$0xff]
  %v9381 = vld [vmem:[%s13 + $0x18] sm:$0xff]
  %v9382 = vld [vmem:[%s13 + $0x20] sm:$0xff]
  %v9383 = vld [vmem:[%s13 + $0x28] sm:$0xff]
  %v9384 = vld [vmem:[%s13 + $0x30] sm:$0xff]
  %v9385 = vld [vmem:[%s13 + $0x38] sm:$0xff]
  %v9386 = vld [vmem:[%s13 + $0x40] sm:$0xff]
  %v9387 = vld [vmem:[%s13 + $0x48] sm:$0xff]
  %v9388 = vld [vmem:[%s13 + $0x50] sm:$0xff]
  %v9389 = vld [vmem:[%s13 + $0x58] sm:$0xff]
  %v9390 = vld [vmem:[%s13 + $0x60] sm:$0xff]
  %v9391 = vld [vmem:[%s13 + $0x68] sm:$0xff]
  %v9392 = vld [vmem:[%s13 + $0x70] sm:$0xff]
  %v9393 = vld [vmem:[%s13 + $0x78] sm:$0xff]
  %v9394 = vld [vmem:[%s14] sm:$0x1]
  %v9396 = vperm.slane %v9394, 0
  %9398 = vmatpush.msra.mxu0 %v9393
  %9399 = vmatpush.msra.mxu0 %v9392
  %9400 = vmatpush.msra.mxu0 %v9391
  %9401 = vmatpush.msra.mxu0 %v9390
  %9402 = vmatpush.msra.mxu0 %v9389
  %9403 = vmatpush.msra.mxu0 %v9388
  %9404 = vmatpush.msra.mxu0 %v9387
  %9405 = vmatpush.msra.mxu0 %v9386
  %9406 = vmatpush.msra.mxu0 %v9385
  %9407 = vmatpush.msra.mxu0 %v9384
  %9408 = vmatpush.msra.mxu0 %v9383
  %9409 = vmatpush.msra.mxu0 %v9382
  %9410 = vmatpush.msra.mxu0 %v9381
  %9411 = vmatpush.msra.mxu0 %v9380
  %9412 = vmatpush.msra.mxu0 %v9379
  %9413 = vmatpush.msra.mxu0 %v9378
  %9414 = vmatmul.f32.gmra.mxu0 %v9370
  %v9415 = vpop.f32.mrf.mxu0
  %v9416 = vadd.f32 %v9396, %v9415
  %9417 = vmatmul.f32.gmra.mxu0 %v9371
  %v9418 = vpop.f32.mrf.mxu0
  %v9419 = vadd.f32 %v9396, %v9418
  %9420 = vmatmul.f32.gmra.mxu0 %v9372
  %v9421 = vpop.f32.mrf.mxu0
  %v9422 = vadd.f32 %v9396, %v9421
  %9423 = vmatmul.f32.gmra.mxu0 %v9373
  %v9424 = vpop.f32.mrf.mxu0
  %v9425 = vadd.f32 %v9396, %v9424
  %9426 = vmatmul.f32.gmra.mxu0 %v9374
  %v9427 = vpop.f32.mrf.mxu0
  %v9428 = vadd.f32 %v9396, %v9427
  %9429 = vmatmul.f32.gmra.mxu0 %v9375
  %v9430 = vpop.f32.mrf.mxu0
  %v9431 = vadd.f32 %v9396, %v9430
  %9432 = vmatmul.f32.gmra.mxu0 %v9376
  %v9433 = vpop.f32.mrf.mxu0
  %v9434 = vadd.f32 %v9396, %v9433
  %9435 = vmatmul.f32.gmra.mxu0 %v9377
  %v9436 = vpop.f32.mrf.mxu0
  %v9437 = vadd.f32 %v9396, %v9436
  %9438 = vdwg.mxu0
  %9439 = vst [vmem:[%s15] sm:$0xff] %v9416
  %9440 = vst [vmem:[%s15 + $0x8] sm:$0xff] %v9419
  %9441 = vst [vmem:[%s15 + $0x10] sm:$0xff] %v9422
  %9442 = vst [vmem:[%s15 + $0x18] sm:$0xff] %v9425
  %9443 = vst [vmem:[%s15 + $0x20] sm:$0xff] %v9428
  %9444 = vst [vmem:[%s15 + $0x28] sm:$0xff] %v9431
  %9445 = vst [vmem:[%s15 + $0x30] sm:$0xff] %v9434
  %9446 = vst [vmem:[%s15 + $0x38] sm:$0xff] %v9437
  // Predicated region
  $region62: #{nnpred_forward.1} parent=0 // pred_check
    _
  $region63: #{nnpred_forward.1} parent=0 // pred_check_branch
    %9448 = sbr.rel (0) target = $region65
  $region64: #{nnpred_forward.1} parent=0 // pred_region
    _
  $region65: #{nnpred_forward.1} parent=0 // pred_fallthru
    _
  // Predicated region
  $region66: #{nnpred_forward.1} parent=0 // pred_check
    _
  $region67: #{nnpred_forward.1} parent=0 // pred_check_branch
    %9450 = sbr.rel (0) target = $region69
  $region68: #{nnpred_forward.1} parent=0 // pred_region
    _
  $region69: #{nnpred_forward.1} parent=0 // pred_fallthru
    _

</llo_original>
